<compile_context>
chip_gen: v6e
topology: v6e:2x2x1
jax: 0.10.0
libtpu: 0.0.40
codegen_flags: <defaults>
</compile_context>

<pallas_src>
import functools

import jax
import jax.numpy as jnp
from jax.experimental import pallas as pl
from jax.experimental.pallas import tpu as pltpu

LEAKY_SLOPE = 0.2
BN_EPS = 1e-5

# Set to jnp.bfloat16 on v6e/v7x for ~2-3x MXU throughput (accumulation stays
# fp32).  Default fp32 keeps exact parity with the PyTorch fp32 forward pass.
MATMUL_DTYPE = jnp.float32

# Preferred row-tile size.  128 is a better match for v5e's 4x128x128 MXU;
# 256 suits v6e/v7x's 256x256 MXU.
ROW_TILE = 256


def _leaky_relu(y):
    return jnp.where(y > 0, y, LEAKY_SLOPE * y)


def _tile_divisor(n, pref):
    """Largest tile t <= pref with n % t == 0 and t a multiple of 8 (or t == n)."""
    if n <= pref:
        return n
    for t in range(min(pref, n), 7, -1):
        if n % t == 0 and t % 8 == 0:
            return t
    return n


# --------------------------------------------------------------------------
# Pallas kernels
# --------------------------------------------------------------------------
def _pairwise_kernel(xr_ref, xf_ref, d_ref):
    # xr_ref: (1, tn, C) query rows, xf_ref: (1, N, C) all points,
    # d_ref: (1, tn, N) negative squared distances.  Kept fp32 for kNN parity.
    xr = xr_ref[0]                                             # (tn, C)
    xf = xf_ref[0]                                             # (N, C)
    rr = jnp.sum(xr * xr, axis=-1, keepdims=True)              # (tn, 1)
    ff = jnp.sum(xf * xf, axis=-1)[None, :]                    # (1, N)
    inner = jax.lax.dot_general(                               # (tn, N)
        xr, xf, (((1,), (1,)), ((), ())),
        preferred_element_type=jnp.float32)
    d_ref[0] = 2.0 * inner - rr - ff


def pairwise_neg_sqdist(x, tn_pref=ROW_TILE):
    """x: (B, N, C) -> (B, N, N) negative squared pairwise distances."""
    B, N, C = x.shape
    tn = _tile_divisor(N, tn_pref)
    return pl.pallas_call(
        _pairwise_kernel,
        out_shape=jax.ShapeDtypeStruct((B, N, N), jnp.float32),
        grid=(B, N // tn),
        in_specs=[
            pl.BlockSpec((1, tn, C), lambda b, n: (b, n, 0)),
            pl.BlockSpec((1, N, C), lambda b, n: (b, 0, 0)),
        ],
        out_specs=pl.BlockSpec((1, tn, N), lambda b, n: (b, n, 0)),
        compiler_params=pltpu.CompilerParams(
            dimension_semantics=("parallel", "parallel")),
    )(x, x)


def _make_linear_kernel(leaky):
    def kernel(x_ref, w_ref, s_ref, b_ref, o_ref):
        a = x_ref[...].astype(MATMUL_DTYPE)
        w = w_ref[...].astype(MATMUL_DTYPE)
        y = jnp.dot(a, w, preferred_element_type=jnp.float32)
        y = y * s_ref[...] + b_ref[...]                        # fp32 epilogue
        if leaky:
            y = _leaky_relu(y)
        o_ref[...] = y
    return kernel


def fused_linear(x, w, scale, bias, leaky=False, tm_pref=ROW_TILE):
    """y = [leaky_relu](x @ w * scale + bias); x: (M, K), w: (K, N).

    Row-tiled over M with the weight block resident (constant index map)."""
    M, K = x.shape
    N = w.shape[1]
    tm = _tile_divisor(M, tm_pref)
    return pl.pallas_call(
        _make_linear_kernel(leaky),
        out_shape=jax.ShapeDtypeStruct((M, N), jnp.float32),
        grid=(M // tm,),
        in_specs=[
            pl.BlockSpec((tm, K), lambda i: (i, 0)),
            pl.BlockSpec((K, N), lambda i: (0, 0)),
            pl.BlockSpec((1, N), lambda i: (0, 0)),
            pl.BlockSpec((1, N), lambda i: (0, 0)),
        ],
        out_specs=pl.BlockSpec((tm, N), lambda i: (i, 0)),
        compiler_params=pltpu.CompilerParams(
            dimension_semantics=("parallel",)),
    )(x, w, scale, bias)


def _edge_agg_kernel(ug_ref, v_ref, o_ref):
    # ug_ref: (tm, k, C) gathered neighbor term (BN scale already folded in),
    # v_ref : (tm, C)    center term (scale + BN bias already folded in),
    # out   : (tm, C)  = max_k leaky_relu(ug + v)
    y = ug_ref[...] + v_ref[...][:, None, :]
    y = _leaky_relu(y)
    o_ref[...] = jnp.max(y, axis=1)


def edge_aggregate(ug, v):
    """ug: (M, k, C), v: (M, C) -> (M, C) fused add + LeakyReLU + max over k."""
    M, k, c = ug.shape
    # Cap the double-buffered (tm, k, C) fp32 block at ~4 MiB so we stay well
    # inside v7x's 32 MiB scoped / 64 MiB physical VMEM.
    bytes_per_row = k * c * 4
    cap = max(8, ((4 * 1024 * 1024) // bytes_per_row) // 8 * 8)
    tm = _tile_divisor(M, min(ROW_TILE, cap))
    return pl.pallas_call(
        _edge_agg_kernel,
        out_shape=jax.ShapeDtypeStruct((M, c), jnp.float32),
        grid=(M // tm,),
        in_specs=[
            pl.BlockSpec((tm, k, c), lambda i: (i, 0, 0)),
            pl.BlockSpec((tm, c), lambda i: (i, 0)),
        ],
        out_specs=pl.BlockSpec((tm, c), lambda i: (i, 0)),
        compiler_params=pltpu.CompilerParams(
            dimension_semantics=("parallel",)),
    )(ug, v)


def _conv5_pool_kernel(x_ref, w_ref, s_ref, b_ref, max_ref, avg_ref, *, inv_n):
    # x_ref: (1, tn, 512), w_ref: (512, E); outputs (1, 1, E) max / mean over N.
    n = pl.program_id(1)
    x = x_ref[0].astype(MATMUL_DTYPE)
    w = w_ref[...].astype(MATMUL_DTYPE)
    y = jnp.dot(x, w, preferred_element_type=jnp.float32)     # (tn, E)
    y = _leaky_relu(y * s_ref[...] + b_ref[...])
    tile_max = jnp.max(y, axis=0, keepdims=True)[None]        # (1, 1, E)
    tile_sum = jnp.sum(y, axis=0, keepdims=True)[None]        # (1, 1, E)

    @pl.when(n == 0)
    def _():
        max_ref[...] = tile_max
        avg_ref[...] = tile_sum

    @pl.when(n > 0)
    def _():
        max_ref[...] = jnp.maximum(max_ref[...], tile_max)
        avg_ref[...] = avg_ref[...] + tile_sum

    @pl.when(n == pl.num_programs(1) - 1)
    def _():
        avg_ref[...] = avg_ref[...] * inv_n


def conv5_pool(x, w, scale, bias, tn_pref=ROW_TILE):
    """x: (B, N, 512) -> (max, avg), each (B, E); fused conv5+BN+LeakyReLU+pool."""
    B, N, C = x.shape
    E = w.shape[1]
    tn = _tile_divisor(N, tn_pref)
    xmax, xavg = pl.pallas_call(
        functools.partial(_conv5_pool_kernel, inv_n=1.0 / N),
        out_shape=(jax.ShapeDtypeStruct((B, 1, E), jnp.float32),
                   jax.ShapeDtypeStruct((B, 1, E), jnp.float32)),
        grid=(B, N // tn),
        in_specs=[
            pl.BlockSpec((1, tn, C), lambda b, n: (b, n, 0)),
            pl.BlockSpec((C, E), lambda b, n: (0, 0)),   # weight stays resident
            pl.BlockSpec((1, E), lambda b, n: (0, 0)),
            pl.BlockSpec((1, E), lambda b, n: (0, 0)),
        ],
        out_specs=(pl.BlockSpec((1, 1, E), lambda b, n: (b, 0, 0)),
                   pl.BlockSpec((1, 1, E), lambda b, n: (b, 0, 0))),
        compiler_params=pltpu.CompilerParams(
            dimension_semantics=("parallel", "arbitrary")),
    )(x, w, scale, bias)
    return xmax[:, 0, :], xavg[:, 0, :]


# --------------------------------------------------------------------------
# Glue: kNN graph construction + algebraically-fused edge conv block
# --------------------------------------------------------------------------
def knn_idx(x, k):
    d = pairwise_neg_sqdist(x)                 # (B, N, N) fp32
    # TODO(synk): fuse a running top-k into the pairwise kernel to avoid the
    # (B, N, N) HBM round-trip; lax.top_k has no clean Pallas equivalent.
    return jax.lax.top_k(d, k)[1]              # (B, N, k) int32


def edge_conv_block(x, w, bn_scale, bn_bias, k):
    """One DGCNN edge-conv layer: knn -> 1x1 conv -> BN -> LeakyReLU -> max_k.

    Uses [x_j - x_i, x_i] @ W = x_j @ W_top + x_i @ (W_bot - W_top), with the
    BN scale folded into the matmul and BN bias folded into the center term,
    so the per-neighbor work is only add + leaky_relu + max."""
    B, N, Cin = x.shape
    Cout = w.shape[1]
    idx = knn_idx(x, k)                                          # (B, N, k)

    w_top, w_bot = w[:Cin], w[Cin:]
    w_comb = jnp.concatenate([w_top, w_bot - w_top], axis=1)     # (Cin, 2*Cout)
    scale2 = jnp.concatenate([bn_scale, bn_scale], axis=1)       # (1, 2*Cout)
    bias2 = jnp.concatenate([jnp.zeros_like(bn_bias), bn_bias], axis=1)

    uv = fused_linear(x.reshape(B * N, Cin), w_comb, scale2, bias2)  # (B*N, 2*Cout)
    u = uv[:, :Cout].reshape(B, N, Cout)        # neighbor term (scale folded in)
    v = uv[:, Cout:]                            # center term (scale+bias folded in)

    # TODO(synk): the per-point neighbor gather stays in XLA (data-dependent
    # indexing is not expressible as a rectangular BlockSpec).
    ug = jax.vmap(lambda ub, ib: ub[ib])(u, idx)                 # (B, N, k, Cout)

    out = edge_aggregate(ug.reshape(B * N, k, Cout), v)          # (B*N, Cout)
    return out.reshape(B, N, Cout)


# --------------------------------------------------------------------------
# Parameters (deterministic, synthetic) and forward pass
# --------------------------------------------------------------------------
def bn_fold(gamma, beta, mean, var, eps=BN_EPS):
    scale = gamma / jnp.sqrt(var + eps)
    bias = beta - mean * scale
    return scale[None, :].astype(jnp.float32), bias[None, :].astype(jnp.float32)


def init_params(key, emb_dims, latent_dim):
    ks = jax.random.split(key, 8)

    def w_init(k_, cin, cout):
        return (jax.random.normal(k_, (cin, cout), jnp.float32)
                * (1.0 / jnp.sqrt(cin)))

    p = {
        "w1": w_init(ks[0], 6, 64),
        "w2": w_init(ks[1], 128, 64),
        "w3": w_init(ks[2], 128, 128),
        "w4": w_init(ks[3], 256, 256),
        "w5": w_init(ks[4], 512, emb_dims),
        "w_lin1": w_init(ks[5], emb_dims * 2, 2048),
        "w_mean": w_init(ks[6], 2048, latent_dim),
        "b_mean": jnp.full((latent_dim,), 0.01, jnp.float32),
        "w_logvar": w_init(ks[7], 2048, latent_dim),
        "b_logvar": jnp.full((latent_dim,), -0.01, jnp.float32),
    }
    # BatchNorm layers at PyTorch default init, folded (inference mode).
    for name, c in [("bn1", 64), ("bn2", 64), ("bn3", 128), ("bn4", 256),
                    ("bn5", emb_dims), ("bn6", 2048)]:
        p[name] = bn_fold(jnp.ones((c,)), jnp.zeros((c,)),
                          jnp.zeros((c,)), jnp.ones((c,)))
    return p


def dgcnn_encoder(params, x, k):
    """x: (B, N, 3) point cloud -> (mean, logvar) each (B, latent_dim)."""
    B, N, _ = x.shape

    x1 = edge_conv_block(x,  params["w1"], *params["bn1"], k)   # (B, N, 64)
    x2 = edge_conv_block(x1, params["w2"], *params["bn2"], k)   # (B, N, 64)
    x3 = edge_conv_block(x2, params["w3"], *params["bn3"], k)   # (B, N, 128)
    x4 = edge_conv_block(x3, params["w4"], *params["bn4"], k)   # (B, N, 256)

    xcat = jnp.concatenate([x1, x2, x3, x4], axis=-1)           # (B, N, 512)
    xmax, xavg = conv5_pool(xcat, params["w5"],
                            params["bn5"][0], params["bn5"][1])  # (B, E) each
    feat = jnp.concatenate([xmax, xavg], axis=-1)               # (B, 2E)

    h = fused_linear(feat, params["w_lin1"],
                     params["bn6"][0], params["bn6"][1], leaky=True)  # (B, 2048)

    # Fused mean/logvar heads: one lane-dense (2048, 2*latent) matmul.
    ld = params["w_mean"].shape[1]
    w_heads = jnp.concatenate([params["w_mean"], params["w_logvar"]], axis=1)
    b_heads = jnp.concatenate([params["b_mean"], params["b_logvar"]])[None, :]
    heads = fused_linear(h, w_heads, jnp.ones_like(b_heads), b_heads,
                         leaky=False)                            # (B, 2*latent)
    return heads[:, :ld], heads[:, ld:]


if __name__ == "__main__":
    B, N, K = 2, 16, 4            # small shapes: 2 clouds of 16 points, k=4 neighbors
    EMB, LATENT = 128, 64         # emb_dims / latent_dim constructor args (shrunk)

    key = jax.random.PRNGKey(0)
    kp, kx = jax.random.split(key)
    params = init_params(kp, EMB, LATENT)
    x = jax.random.normal(kx, (B, N, 3), jnp.float32)

    fwd = jax.jit(functools.partial(dgcnn_encoder, k=K))
    mean, logvar = fwd(params, x)
    jax.block_until_ready((mean, logvar))

    assert mean.shape == (B, LATENT) and logvar.shape == (B, LATENT)
    assert mean.dtype == jnp.float32 and logvar.dtype == jnp.float32
    print("KERNEL_OK")
</pallas_src>

<mosaic_0001>
module attributes {stable_mosaic.version = 11 : i64} {
  func.func @_pairwise_kernel(%arg0: i32, %arg1: i32, %arg2: memref<1x16x3xf32, #tpu.memory_space<vmem>>, %arg3: memref<1x16x3xf32, #tpu.memory_space<vmem>>, %arg4: memref<1x16x16xf32, #tpu.memory_space<vmem>>) attributes {dimension_semantics = [#tpu.dimension_semantics<parallel>, #tpu.dimension_semantics<parallel>], iteration_bounds = array<i64: 2, 1>, scalar_prefetch = 0 : i64, scratch_operands = 0 : i64, tpu.core_type = #tpu.core_type<tc>, window_params = [{transform_indices = @transform_0, window_bounds = array<i64: 1, 16, 3>}, {transform_indices = @transform_1, window_bounds = array<i64: 1, 16, 3>}, {transform_indices = @transform_2, window_bounds = array<i64: 1, 16, 16>}]} {
    %c0 = arith.constant 0 : index
    %c0_0 = arith.constant 0 : index
    %c0_1 = arith.constant 0 : index
    %0 = vector.load %arg2[%c0, %c0_0, %c0_1] : memref<1x16x3xf32, #tpu.memory_space<vmem>>, vector<1x16x3xf32>
    %1 = vector.shape_cast %0 : vector<1x16x3xf32> to vector<16x3xf32>
    %c0_2 = arith.constant 0 : index
    %c0_3 = arith.constant 0 : index
    %c0_4 = arith.constant 0 : index
    %2 = vector.load %arg3[%c0_2, %c0_3, %c0_4] : memref<1x16x3xf32, #tpu.memory_space<vmem>>, vector<1x16x3xf32>
    %3 = vector.shape_cast %2 : vector<1x16x3xf32> to vector<16x3xf32>
    %4 = arith.mulf %1, %1 : vector<16x3xf32>
    %cst = arith.constant dense<0.000000e+00> : vector<16xf32>
    %5 = vector.multi_reduction <add>, %4, %cst [1] : vector<16x3xf32> to vector<16xf32>
    %6 = vector.shape_cast %5 : vector<16xf32> to vector<16x1xf32>
    %7 = arith.mulf %3, %3 : vector<16x3xf32>
    %cst_5 = arith.constant dense<0.000000e+00> : vector<16xf32>
    %8 = vector.multi_reduction <add>, %7, %cst_5 [1] : vector<16x3xf32> to vector<16xf32>
    %9 = vector.shape_cast %8 : vector<16xf32> to vector<1x16xf32>
    %cst_6 = arith.constant dense<0.000000e+00> : vector<16x16xf32>
    %10 = tpu.matmul %1, %3, %cst_6 {dimension_numbers = #tpu.dot_dimension_numbers<[1], [1], [0], [0], [0, 0, 1, 0], [], []>} : vector<16x3xf32>, vector<16x3xf32>, vector<16x16xf32> -> vector<16x16xf32>
    %cst_7 = arith.constant 2.000000e+00 : f32
    %11 = vector.broadcast %cst_7 : f32 to vector<16x16xf32>
    %12 = arith.mulf %11, %10 : vector<16x16xf32>
    %13 = vector.broadcast %6 : vector<16x1xf32> to vector<16x16xf32>
    %14 = arith.subf %12, %13 : vector<16x16xf32>
    %15 = vector.broadcast %9 : vector<1x16xf32> to vector<16x16xf32>
    %16 = arith.subf %14, %15 : vector<16x16xf32>
    %c0_8 = arith.constant 0 : index
    %c0_9 = arith.constant 0 : index
    %c0_10 = arith.constant 0 : index
    %17 = vector.load %arg4[%c0_8, %c0_9, %c0_10] : memref<1x16x16xf32, #tpu.memory_space<vmem>>, vector<1x16x16xf32>
    %18 = vector.shape_cast %17 : vector<1x16x16xf32> to vector<16x16xf32>
    %19 = vector.shape_cast %16 : vector<16x16xf32> to vector<1x16x16xf32>
    tpu.vector_store %arg4[%c0_8, %c0_9, %c0_10], %19 {strides = array<i32>} : memref<1x16x16xf32, #tpu.memory_space<vmem>>, vector<1x16x16xf32>,
    return
  }
  func.func @transform_0(%arg0: i32, %arg1: i32) -> (i32, i32, i32) {
    %c0_i32 = arith.constant 0 : i32
    %c0_i32_0 = arith.constant 0 : i32
    return %arg0, %arg1, %c0_i32 : i32, i32, i32
  }
  func.func @transform_1(%arg0: i32, %arg1: i32) -> (i32, i32, i32) {
    %c0_i32 = arith.constant 0 : i32
    %c0_i32_0 = arith.constant 0 : i32
    %c0_i32_1 = arith.constant 0 : i32
    return %arg0, %c0_i32, %c0_i32_0 : i32, i32, i32
  }
  func.func @transform_2(%arg0: i32, %arg1: i32) -> (i32, i32, i32) {
    %c0_i32 = arith.constant 0 : i32
    %c0_i32_0 = arith.constant 0 : i32
    return %arg0, %arg1, %c0_i32 : i32, i32, i32
  }
}

module attributes {stable_mosaic.version = 11 : i64} {
  func.func @kernel(%arg0: i32, %arg1: memref<32x3xf32, #tpu.memory_space<vmem>>, %arg2: memref<3x128xf32, #tpu.memory_space<vmem>>, %arg3: memref<1x128xf32, #tpu.memory_space<vmem>>, %arg4: memref<1x128xf32, #tpu.memory_space<vmem>>, %arg5: memref<32x128xf32, #tpu.memory_space<vmem>>) attributes {dimension_semantics = [#tpu.dimension_semantics<parallel>], iteration_bounds = array<i64: 1>, scalar_prefetch = 0 : i64, scratch_operands = 0 : i64, tpu.core_type = #tpu.core_type<tc>, window_params = [{transform_indices = @transform_0, window_bounds = array<i64: 32, 3>}, {pipeline_mode = #tpu.pipeline_mode<synchronous>, transform_indices = @transform_1, window_bounds = array<i64: 3, 128>}, {pipeline_mode = #tpu.pipeline_mode<synchronous>, transform_indices = @transform_2, window_bounds = array<i64: 1, 128>}, {pipeline_mode = #tpu.pipeline_mode<synchronous>, transform_indices = @transform_3, window_bounds = array<i64: 1, 128>}, {transform_indices = @transform_4, window_bounds = array<i64: 32, 128>}]} {
    %c0 = arith.constant 0 : index
    %c0_0 = arith.constant 0 : index
    %0 = vector.load %arg1[%c0, %c0_0] : memref<32x3xf32, #tpu.memory_space<vmem>>, vector<32x3xf32>
    %c0_1 = arith.constant 0 : index
    %c0_2 = arith.constant 0 : index
    %1 = vector.load %arg2[%c0_1, %c0_2] : memref<3x128xf32, #tpu.memory_space<vmem>>, vector<3x128xf32>
    %cst = arith.constant dense<0.000000e+00> : vector<32x128xf32>
    %2 = tpu.matmul %0, %1, %cst {dimension_numbers = #tpu.dot_dimension_numbers<[1], [0], [0], [1], [0, 0, 1, 1], [], []>} : vector<32x3xf32>, vector<3x128xf32>, vector<32x128xf32> -> vector<32x128xf32>
    %c0_3 = arith.constant 0 : index
    %c0_4 = arith.constant 0 : index
    %3 = vector.load %arg3[%c0_3, %c0_4] : memref<1x128xf32, #tpu.memory_space<vmem>>, vector<1x128xf32>
    %4 = vector.broadcast %3 : vector<1x128xf32> to vector<32x128xf32>
    %5 = arith.mulf %2, %4 : vector<32x128xf32>
    %c0_5 = arith.constant 0 : index
    %c0_6 = arith.constant 0 : index
    %6 = vector.load %arg4[%c0_5, %c0_6] : memref<1x128xf32, #tpu.memory_space<vmem>>, vector<1x128xf32>
    %7 = vector.broadcast %6 : vector<1x128xf32> to vector<32x128xf32>
    %8 = arith.addf %5, %7 : vector<32x128xf32>
    %c0_7 = arith.constant 0 : index
    %c0_8 = arith.constant 0 : index
    %9 = vector.load %arg5[%c0_7, %c0_8] : memref<32x128xf32, #tpu.memory_space<vmem>>, vector<32x128xf32>
    tpu.vector_store %arg5[%c0_7, %c0_8], %8 {strides = array<i32>} : memref<32x128xf32, #tpu.memory_space<vmem>>, vector<32x128xf32>,
    return
  }
  func.func @transform_0(%arg0: i32) -> (i32, i32) {
    %c0_i32 = arith.constant 0 : i32
    %c0_i32_0 = arith.constant 0 : i32
    return %arg0, %c0_i32 : i32, i32
  }
  func.func @transform_1(%arg0: i32) -> (i32, i32) {
    %c0_i32 = arith.constant 0 : i32
    %c0_i32_0 = arith.constant 0 : i32
    %c0_i32_1 = arith.constant 0 : i32
    return %c0_i32, %c0_i32_0 : i32, i32
  }
  func.func @transform_2(%arg0: i32) -> (i32, i32) {
    %c0_i32 = arith.constant 0 : i32
    %c0_i32_0 = arith.constant 0 : i32
    %c0_i32_1 = arith.constant 0 : i32
    return %c0_i32, %c0_i32_0 : i32, i32
  }
  func.func @transform_3(%arg0: i32) -> (i32, i32) {
    %c0_i32 = arith.constant 0 : i32
    %c0_i32_0 = arith.constant 0 : i32
    %c0_i32_1 = arith.constant 0 : i32
    return %c0_i32, %c0_i32_0 : i32, i32
  }
  func.func @transform_4(%arg0: i32) -> (i32, i32) {
    %c0_i32 = arith.constant 0 : i32
    %c0_i32_0 = arith.constant 0 : i32
    return %arg0, %c0_i32 : i32, i32
  }
}

module attributes {stable_mosaic.version = 11 : i64} {
  func.func @_edge_agg_kernel(%arg0: i32, %arg1: memref<32x4x64xf32, #tpu.memory_space<vmem>>, %arg2: memref<32x64xf32, #tpu.memory_space<vmem>>, %arg3: memref<32x64xf32, #tpu.memory_space<vmem>>) attributes {dimension_semantics = [#tpu.dimension_semantics<parallel>], iteration_bounds = array<i64: 1>, scalar_prefetch = 0 : i64, scratch_operands = 0 : i64, tpu.core_type = #tpu.core_type<tc>, window_params = [{transform_indices = @transform_0, window_bounds = array<i64: 32, 4, 64>}, {transform_indices = @transform_1, window_bounds = array<i64: 32, 64>}, {transform_indices = @transform_2, window_bounds = array<i64: 32, 64>}]} {
    %c0 = arith.constant 0 : index
    %c0_0 = arith.constant 0 : index
    %c0_1 = arith.constant 0 : index
    %0 = vector.load %arg1[%c0, %c0_0, %c0_1] : memref<32x4x64xf32, #tpu.memory_space<vmem>>, vector<32x4x64xf32>
    %c0_2 = arith.constant 0 : index
    %c0_3 = arith.constant 0 : index
    %1 = vector.load %arg2[%c0_2, %c0_3] : memref<32x64xf32, #tpu.memory_space<vmem>>, vector<32x64xf32>
    %2 = vector.shape_cast %1 : vector<32x64xf32> to vector<32x1x64xf32>
    %3 = vector.broadcast %2 : vector<32x1x64xf32> to vector<32x4x64xf32>
    %4 = arith.addf %0, %3 : vector<32x4x64xf32>
    %cst = arith.constant 0.000000e+00 : f32
    %5 = vector.broadcast %cst : f32 to vector<32x4x64xf32>
    %6 = arith.cmpf ogt, %4, %5 : vector<32x4x64xf32>
    %cst_4 = arith.constant 2.000000e-01 : f32
    %7 = vector.broadcast %cst_4 : f32 to vector<32x4x64xf32>
    %8 = arith.mulf %7, %4 : vector<32x4x64xf32>
    %9 = arith.select %6, %4, %8 : vector<32x4x64xi1>, vector<32x4x64xf32>
    %cst_5 = arith.constant dense<0xFF800000> : vector<32x64xf32>
    %10 = vector.multi_reduction <maximumf>, %9, %cst_5 [1] : vector<32x4x64xf32> to vector<32x64xf32>
    %c0_6 = arith.constant 0 : index
    %c0_7 = arith.constant 0 : index
    %11 = vector.load %arg3[%c0_6, %c0_7] : memref<32x64xf32, #tpu.memory_space<vmem>>, vector<32x64xf32>
    tpu.vector_store %arg3[%c0_6, %c0_7], %10 {strides = array<i32>} : memref<32x64xf32, #tpu.memory_space<vmem>>, vector<32x64xf32>,
    return
  }
  func.func @transform_0(%arg0: i32) -> (i32, i32, i32) {
    %c0_i32 = arith.constant 0 : i32
    %c0_i32_0 = arith.constant 0 : i32
    %c0_i32_1 = arith.constant 0 : i32
    return %arg0, %c0_i32, %c0_i32_0 : i32, i32, i32
  }
  func.func @transform_1(%arg0: i32) -> (i32, i32) {
    %c0_i32 = arith.constant 0 : i32
    %c0_i32_0 = arith.constant 0 : i32
    return %arg0, %c0_i32 : i32, i32
  }
  func.func @transform_2(%arg0: i32) -> (i32, i32) {
    %c0_i32 = arith.constant 0 : i32
    %c0_i32_0 = arith.constant 0 : i32
    return %arg0, %c0_i32 : i32, i32
  }
}

module attributes {stable_mosaic.version = 11 : i64} {
  func.func @kernel(%arg0: i32, %arg1: memref<32x64xf32, #tpu.memory_space<vmem>>, %arg2: memref<64x128xf32, #tpu.memory_space<vmem>>, %arg3: memref<1x128xf32, #tpu.memory_space<vmem>>, %arg4: memref<1x128xf32, #tpu.memory_space<vmem>>, %arg5: memref<32x128xf32, #tpu.memory_space<vmem>>) attributes {dimension_semantics = [#tpu.dimension_semantics<parallel>], iteration_bounds = array<i64: 1>, scalar_prefetch = 0 : i64, scratch_operands = 0 : i64, tpu.core_type = #tpu.core_type<tc>, window_params = [{transform_indices = @transform_0, window_bounds = array<i64: 32, 64>}, {pipeline_mode = #tpu.pipeline_mode<synchronous>, transform_indices = @transform_1, window_bounds = array<i64: 64, 128>}, {pipeline_mode = #tpu.pipeline_mode<synchronous>, transform_indices = @transform_2, window_bounds = array<i64: 1, 128>}, {pipeline_mode = #tpu.pipeline_mode<synchronous>, transform_indices = @transform_3, window_bounds = array<i64: 1, 128>}, {transform_indices = @transform_4, window_bounds = array<i64: 32, 128>}]} {
    %c0 = arith.constant 0 : index
    %c0_0 = arith.constant 0 : index
    %0 = vector.load %arg1[%c0, %c0_0] : memref<32x64xf32, #tpu.memory_space<vmem>>, vector<32x64xf32>
    %c0_1 = arith.constant 0 : index
    %c0_2 = arith.constant 0 : index
    %1 = vector.load %arg2[%c0_1, %c0_2] : memref<64x128xf32, #tpu.memory_space<vmem>>, vector<64x128xf32>
    %cst = arith.constant dense<0.000000e+00> : vector<32x128xf32>
    %2 = tpu.matmul %0, %1, %cst {dimension_numbers = #tpu.dot_dimension_numbers<[1], [0], [0], [1], [0, 0, 1, 1], [], []>} : vector<32x64xf32>, vector<64x128xf32>, vector<32x128xf32> -> vector<32x128xf32>
    %c0_3 = arith.constant 0 : index
    %c0_4 = arith.constant 0 : index
    %3 = vector.load %arg3[%c0_3, %c0_4] : memref<1x128xf32, #tpu.memory_space<vmem>>, vector<1x128xf32>
    %4 = vector.broadcast %3 : vector<1x128xf32> to vector<32x128xf32>
    %5 = arith.mulf %2, %4 : vector<32x128xf32>
    %c0_5 = arith.constant 0 : index
    %c0_6 = arith.constant 0 : index
    %6 = vector.load %arg4[%c0_5, %c0_6] : memref<1x128xf32, #tpu.memory_space<vmem>>, vector<1x128xf32>
    %7 = vector.broadcast %6 : vector<1x128xf32> to vector<32x128xf32>
    %8 = arith.addf %5, %7 : vector<32x128xf32>
    %c0_7 = arith.constant 0 : index
    %c0_8 = arith.constant 0 : index
    %9 = vector.load %arg5[%c0_7, %c0_8] : memref<32x128xf32, #tpu.memory_space<vmem>>, vector<32x128xf32>
    tpu.vector_store %arg5[%c0_7, %c0_8], %8 {strides = array<i32>} : memref<32x128xf32, #tpu.memory_space<vmem>>, vector<32x128xf32>,
    return
  }
  func.func @transform_0(%arg0: i32) -> (i32, i32) {
    %c0_i32 = arith.constant 0 : i32
    %c0_i32_0 = arith.constant 0 : i32
    return %arg0, %c0_i32 : i32, i32
  }
  func.func @transform_1(%arg0: i32) -> (i32, i32) {
    %c0_i32 = arith.constant 0 : i32
    %c0_i32_0 = arith.constant 0 : i32
    %c0_i32_1 = arith.constant 0 : i32
    return %c0_i32, %c0_i32_0 : i32, i32
  }
  func.func @transform_2(%arg0: i32) -> (i32, i32) {
    %c0_i32 = arith.constant 0 : i32
    %c0_i32_0 = arith.constant 0 : i32
    %c0_i32_1 = arith.constant 0 : i32
    return %c0_i32, %c0_i32_0 : i32, i32
  }
  func.func @transform_3(%arg0: i32) -> (i32, i32) {
    %c0_i32 = arith.constant 0 : i32
    %c0_i32_0 = arith.constant 0 : i32
    %c0_i32_1 = arith.constant 0 : i32
    return %c0_i32, %c0_i32_0 : i32, i32
  }
  func.func @transform_4(%arg0: i32) -> (i32, i32) {
    %c0_i32 = arith.constant 0 : i32
    %c0_i32_0 = arith.constant 0 : i32
    return %arg0, %c0_i32 : i32, i32
  }
}

module attributes {stable_mosaic.version = 11 : i64} {
  func.func @_pairwise_kernel(%arg0: i32, %arg1: i32, %arg2: memref<1x16x64xf32, #tpu.memory_space<vmem>>, %arg3: memref<1x16x64xf32, #tpu.memory_space<vmem>>, %arg4: memref<1x16x16xf32, #tpu.memory_space<vmem>>) attributes {dimension_semantics = [#tpu.dimension_semantics<parallel>, #tpu.dimension_semantics<parallel>], iteration_bounds = array<i64: 2, 1>, scalar_prefetch = 0 : i64, scratch_operands = 0 : i64, tpu.core_type = #tpu.core_type<tc>, window_params = [{transform_indices = @transform_0, window_bounds = array<i64: 1, 16, 64>}, {transform_indices = @transform_1, window_bounds = array<i64: 1, 16, 64>}, {transform_indices = @transform_2, window_bounds = array<i64: 1, 16, 16>}]} {
    %c0 = arith.constant 0 : index
    %c0_0 = arith.constant 0 : index
    %c0_1 = arith.constant 0 : index
    %0 = vector.load %arg2[%c0, %c0_0, %c0_1] : memref<1x16x64xf32, #tpu.memory_space<vmem>>, vector<1x16x64xf32>
    %1 = vector.shape_cast %0 : vector<1x16x64xf32> to vector<16x64xf32>
    %c0_2 = arith.constant 0 : index
    %c0_3 = arith.constant 0 : index
    %c0_4 = arith.constant 0 : index
    %2 = vector.load %arg3[%c0_2, %c0_3, %c0_4] : memref<1x16x64xf32, #tpu.memory_space<vmem>>, vector<1x16x64xf32>
    %3 = vector.shape_cast %2 : vector<1x16x64xf32> to vector<16x64xf32>
    %4 = arith.mulf %1, %1 : vector<16x64xf32>
    %cst = arith.constant dense<0.000000e+00> : vector<16xf32>
    %5 = vector.multi_reduction <add>, %4, %cst [1] : vector<16x64xf32> to vector<16xf32>
    %6 = vector.shape_cast %5 : vector<16xf32> to vector<16x1xf32>
    %7 = arith.mulf %3, %3 : vector<16x64xf32>
    %cst_5 = arith.constant dense<0.000000e+00> : vector<16xf32>
    %8 = vector.multi_reduction <add>, %7, %cst_5 [1] : vector<16x64xf32> to vector<16xf32>
    %9 = vector.shape_cast %8 : vector<16xf32> to vector<1x16xf32>
    %cst_6 = arith.constant dense<0.000000e+00> : vector<16x16xf32>
    %10 = tpu.matmul %1, %3, %cst_6 {dimension_numbers = #tpu.dot_dimension_numbers<[1], [1], [0], [0], [0, 0, 1, 0], [], []>} : vector<16x64xf32>, vector<16x64xf32>, vector<16x16xf32> -> vector<16x16xf32>
    %cst_7 = arith.constant 2.000000e+00 : f32
    %11 = vector.broadcast %cst_7 : f32 to vector<16x16xf32>
    %12 = arith.mulf %11, %10 : vector<16x16xf32>
    %13 = vector.broadcast %6 : vector<16x1xf32> to vector<16x16xf32>
    %14 = arith.subf %12, %13 : vector<16x16xf32>
    %15 = vector.broadcast %9 : vector<1x16xf32> to vector<16x16xf32>
    %16 = arith.subf %14, %15 : vector<16x16xf32>
    %c0_8 = arith.constant 0 : index
    %c0_9 = arith.constant 0 : index
    %c0_10 = arith.constant 0 : index
    %17 = vector.load %arg4[%c0_8, %c0_9, %c0_10] : memref<1x16x16xf32, #tpu.memory_space<vmem>>, vector<1x16x16xf32>
    %18 = vector.shape_cast %17 : vector<1x16x16xf32> to vector<16x16xf32>
    %19 = vector.shape_cast %16 : vector<16x16xf32> to vector<1x16x16xf32>
    tpu.vector_store %arg4[%c0_8, %c0_9, %c0_10], %19 {strides = array<i32>} : memref<1x16x16xf32, #tpu.memory_space<vmem>>, vector<1x16x16xf32>,
    return
  }
  func.func @transform_0(%arg0: i32, %arg1: i32) -> (i32, i32, i32) {
    %c0_i32 = arith.constant 0 : i32
    %c0_i32_0 = arith.constant 0 : i32
    return %arg0, %arg1, %c0_i32 : i32, i32, i32
  }
  func.func @transform_1(%arg0: i32, %arg1: i32) -> (i32, i32, i32) {
    %c0_i32 = arith.constant 0 : i32
    %c0_i32_0 = arith.constant 0 : i32
    %c0_i32_1 = arith.constant 0 : i32
    return %arg0, %c0_i32, %c0_i32_0 : i32, i32, i32
  }
  func.func @transform_2(%arg0: i32, %arg1: i32) -> (i32, i32, i32) {
    %c0_i32 = arith.constant 0 : i32
    %c0_i32_0 = arith.constant 0 : i32
    return %arg0, %arg1, %c0_i32 : i32, i32, i32
  }
}

module attributes {stable_mosaic.version = 11 : i64} {
  func.func @kernel(%arg0: i32, %arg1: memref<32x64xf32, #tpu.memory_space<vmem>>, %arg2: memref<64x256xf32, #tpu.memory_space<vmem>>, %arg3: memref<1x256xf32, #tpu.memory_space<vmem>>, %arg4: memref<1x256xf32, #tpu.memory_space<vmem>>, %arg5: memref<32x256xf32, #tpu.memory_space<vmem>>) attributes {dimension_semantics = [#tpu.dimension_semantics<parallel>], iteration_bounds = array<i64: 1>, scalar_prefetch = 0 : i64, scratch_operands = 0 : i64, tpu.core_type = #tpu.core_type<tc>, window_params = [{transform_indices = @transform_0, window_bounds = array<i64: 32, 64>}, {pipeline_mode = #tpu.pipeline_mode<synchronous>, transform_indices = @transform_1, window_bounds = array<i64: 64, 256>}, {pipeline_mode = #tpu.pipeline_mode<synchronous>, transform_indices = @transform_2, window_bounds = array<i64: 1, 256>}, {pipeline_mode = #tpu.pipeline_mode<synchronous>, transform_indices = @transform_3, window_bounds = array<i64: 1, 256>}, {transform_indices = @transform_4, window_bounds = array<i64: 32, 256>}]} {
    %c0 = arith.constant 0 : index
    %c0_0 = arith.constant 0 : index
    %0 = vector.load %arg1[%c0, %c0_0] : memref<32x64xf32, #tpu.memory_space<vmem>>, vector<32x64xf32>
    %c0_1 = arith.constant 0 : index
    %c0_2 = arith.constant 0 : index
    %1 = vector.load %arg2[%c0_1, %c0_2] : memref<64x256xf32, #tpu.memory_space<vmem>>, vector<64x256xf32>
    %cst = arith.constant dense<0.000000e+00> : vector<32x256xf32>
    %2 = tpu.matmul %0, %1, %cst {dimension_numbers = #tpu.dot_dimension_numbers<[1], [0], [0], [1], [0, 0, 1, 1], [], []>} : vector<32x64xf32>, vector<64x256xf32>, vector<32x256xf32> -> vector<32x256xf32>
    %c0_3 = arith.constant 0 : index
    %c0_4 = arith.constant 0 : index
    %3 = vector.load %arg3[%c0_3, %c0_4] : memref<1x256xf32, #tpu.memory_space<vmem>>, vector<1x256xf32>
    %4 = vector.broadcast %3 : vector<1x256xf32> to vector<32x256xf32>
    %5 = arith.mulf %2, %4 : vector<32x256xf32>
    %c0_5 = arith.constant 0 : index
    %c0_6 = arith.constant 0 : index
    %6 = vector.load %arg4[%c0_5, %c0_6] : memref<1x256xf32, #tpu.memory_space<vmem>>, vector<1x256xf32>
    %7 = vector.broadcast %6 : vector<1x256xf32> to vector<32x256xf32>
    %8 = arith.addf %5, %7 : vector<32x256xf32>
    %c0_7 = arith.constant 0 : index
    %c0_8 = arith.constant 0 : index
    %9 = vector.load %arg5[%c0_7, %c0_8] : memref<32x256xf32, #tpu.memory_space<vmem>>, vector<32x256xf32>
    tpu.vector_store %arg5[%c0_7, %c0_8], %8 {strides = array<i32>} : memref<32x256xf32, #tpu.memory_space<vmem>>, vector<32x256xf32>,
    return
  }
  func.func @transform_0(%arg0: i32) -> (i32, i32) {
    %c0_i32 = arith.constant 0 : i32
    %c0_i32_0 = arith.constant 0 : i32
    return %arg0, %c0_i32 : i32, i32
  }
  func.func @transform_1(%arg0: i32) -> (i32, i32) {
    %c0_i32 = arith.constant 0 : i32
    %c0_i32_0 = arith.constant 0 : i32
    %c0_i32_1 = arith.constant 0 : i32
    return %c0_i32, %c0_i32_0 : i32, i32
  }
  func.func @transform_2(%arg0: i32) -> (i32, i32) {
    %c0_i32 = arith.constant 0 : i32
    %c0_i32_0 = arith.constant 0 : i32
    %c0_i32_1 = arith.constant 0 : i32
    return %c0_i32, %c0_i32_0 : i32, i32
  }
  func.func @transform_3(%arg0: i32) -> (i32, i32) {
    %c0_i32 = arith.constant 0 : i32
    %c0_i32_0 = arith.constant 0 : i32
    %c0_i32_1 = arith.constant 0 : i32
    return %c0_i32, %c0_i32_0 : i32, i32
  }
  func.func @transform_4(%arg0: i32) -> (i32, i32) {
    %c0_i32 = arith.constant 0 : i32
    %c0_i32_0 = arith.constant 0 : i32
    return %arg0, %c0_i32 : i32, i32
  }
}

module attributes {stable_mosaic.version = 11 : i64} {
  func.func @_edge_agg_kernel(%arg0: i32, %arg1: memref<32x4x128xf32, #tpu.memory_space<vmem>>, %arg2: memref<32x128xf32, #tpu.memory_space<vmem>>, %arg3: memref<32x128xf32, #tpu.memory_space<vmem>>) attributes {dimension_semantics = [#tpu.dimension_semantics<parallel>], iteration_bounds = array<i64: 1>, scalar_prefetch = 0 : i64, scratch_operands = 0 : i64, tpu.core_type = #tpu.core_type<tc>, window_params = [{transform_indices = @transform_0, window_bounds = array<i64: 32, 4, 128>}, {transform_indices = @transform_1, window_bounds = array<i64: 32, 128>}, {transform_indices = @transform_2, window_bounds = array<i64: 32, 128>}]} {
    %c0 = arith.constant 0 : index
    %c0_0 = arith.constant 0 : index
    %c0_1 = arith.constant 0 : index
    %0 = vector.load %arg1[%c0, %c0_0, %c0_1] : memref<32x4x128xf32, #tpu.memory_space<vmem>>, vector<32x4x128xf32>
    %c0_2 = arith.constant 0 : index
    %c0_3 = arith.constant 0 : index
    %1 = vector.load %arg2[%c0_2, %c0_3] : memref<32x128xf32, #tpu.memory_space<vmem>>, vector<32x128xf32>
    %2 = vector.shape_cast %1 : vector<32x128xf32> to vector<32x1x128xf32>
    %3 = vector.broadcast %2 : vector<32x1x128xf32> to vector<32x4x128xf32>
    %4 = arith.addf %0, %3 : vector<32x4x128xf32>
    %cst = arith.constant 0.000000e+00 : f32
    %5 = vector.broadcast %cst : f32 to vector<32x4x128xf32>
    %6 = arith.cmpf ogt, %4, %5 : vector<32x4x128xf32>
    %cst_4 = arith.constant 2.000000e-01 : f32
    %7 = vector.broadcast %cst_4 : f32 to vector<32x4x128xf32>
    %8 = arith.mulf %7, %4 : vector<32x4x128xf32>
    %9 = arith.select %6, %4, %8 : vector<32x4x128xi1>, vector<32x4x128xf32>
    %cst_5 = arith.constant dense<0xFF800000> : vector<32x128xf32>
    %10 = vector.multi_reduction <maximumf>, %9, %cst_5 [1] : vector<32x4x128xf32> to vector<32x128xf32>
    %c0_6 = arith.constant 0 : index
    %c0_7 = arith.constant 0 : index
    %11 = vector.load %arg3[%c0_6, %c0_7] : memref<32x128xf32, #tpu.memory_space<vmem>>, vector<32x128xf32>
    tpu.vector_store %arg3[%c0_6, %c0_7], %10 {strides = array<i32>} : memref<32x128xf32, #tpu.memory_space<vmem>>, vector<32x128xf32>,
    return
  }
  func.func @transform_0(%arg0: i32) -> (i32, i32, i32) {
    %c0_i32 = arith.constant 0 : i32
    %c0_i32_0 = arith.constant 0 : i32
    %c0_i32_1 = arith.constant 0 : i32
    return %arg0, %c0_i32, %c0_i32_0 : i32, i32, i32
  }
  func.func @transform_1(%arg0: i32) -> (i32, i32) {
    %c0_i32 = arith.constant 0 : i32
    %c0_i32_0 = arith.constant 0 : i32
    return %arg0, %c0_i32 : i32, i32
  }
  func.func @transform_2(%arg0: i32) -> (i32, i32) {
    %c0_i32 = arith.constant 0 : i32
    %c0_i32_0 = arith.constant 0 : i32
    return %arg0, %c0_i32 : i32, i32
  }
}

module attributes {stable_mosaic.version = 11 : i64} {
  func.func @kernel(%arg0: i32, %arg1: memref<32x128xf32, #tpu.memory_space<vmem>>, %arg2: memref<128x512xf32, #tpu.memory_space<vmem>>, %arg3: memref<1x512xf32, #tpu.memory_space<vmem>>, %arg4: memref<1x512xf32, #tpu.memory_space<vmem>>, %arg5: memref<32x512xf32, #tpu.memory_space<vmem>>) attributes {dimension_semantics = [#tpu.dimension_semantics<parallel>], iteration_bounds = array<i64: 1>, scalar_prefetch = 0 : i64, scratch_operands = 0 : i64, tpu.core_type = #tpu.core_type<tc>, window_params = [{transform_indices = @transform_0, window_bounds = array<i64: 32, 128>}, {pipeline_mode = #tpu.pipeline_mode<synchronous>, transform_indices = @transform_1, window_bounds = array<i64: 128, 512>}, {pipeline_mode = #tpu.pipeline_mode<synchronous>, transform_indices = @transform_2, window_bounds = array<i64: 1, 512>}, {pipeline_mode = #tpu.pipeline_mode<synchronous>, transform_indices = @transform_3, window_bounds = array<i64: 1, 512>}, {transform_indices = @transform_4, window_bounds = array<i64: 32, 512>}]} {
    %c0 = arith.constant 0 : index
    %c0_0 = arith.constant 0 : index
    %0 = vector.load %arg1[%c0, %c0_0] : memref<32x128xf32, #tpu.memory_space<vmem>>, vector<32x128xf32>
    %c0_1 = arith.constant 0 : index
    %c0_2 = arith.constant 0 : index
    %1 = vector.load %arg2[%c0_1, %c0_2] : memref<128x512xf32, #tpu.memory_space<vmem>>, vector<128x512xf32>
    %cst = arith.constant dense<0.000000e+00> : vector<32x512xf32>
    %2 = tpu.matmul %0, %1, %cst {dimension_numbers = #tpu.dot_dimension_numbers<[1], [0], [0], [1], [0, 0, 1, 1], [], []>} : vector<32x128xf32>, vector<128x512xf32>, vector<32x512xf32> -> vector<32x512xf32>
    %c0_3 = arith.constant 0 : index
    %c0_4 = arith.constant 0 : index
    %3 = vector.load %arg3[%c0_3, %c0_4] : memref<1x512xf32, #tpu.memory_space<vmem>>, vector<1x512xf32>
    %4 = vector.broadcast %3 : vector<1x512xf32> to vector<32x512xf32>
    %5 = arith.mulf %2, %4 : vector<32x512xf32>
    %c0_5 = arith.constant 0 : index
    %c0_6 = arith.constant 0 : index
    %6 = vector.load %arg4[%c0_5, %c0_6] : memref<1x512xf32, #tpu.memory_space<vmem>>, vector<1x512xf32>
    %7 = vector.broadcast %6 : vector<1x512xf32> to vector<32x512xf32>
    %8 = arith.addf %5, %7 : vector<32x512xf32>
    %c0_7 = arith.constant 0 : index
    %c0_8 = arith.constant 0 : index
    %9 = vector.load %arg5[%c0_7, %c0_8] : memref<32x512xf32, #tpu.memory_space<vmem>>, vector<32x512xf32>
    tpu.vector_store %arg5[%c0_7, %c0_8], %8 {strides = array<i32>} : memref<32x512xf32, #tpu.memory_space<vmem>>, vector<32x512xf32>,
    return
  }
  func.func @transform_0(%arg0: i32) -> (i32, i32) {
    %c0_i32 = arith.constant 0 : i32
    %c0_i32_0 = arith.constant 0 : i32
    return %arg0, %c0_i32 : i32, i32
  }
  func.func @transform_1(%arg0: i32) -> (i32, i32) {
    %c0_i32 = arith.constant 0 : i32
    %c0_i32_0 = arith.constant 0 : i32
    %c0_i32_1 = arith.constant 0 : i32
    return %c0_i32, %c0_i32_0 : i32, i32
  }
  func.func @transform_2(%arg0: i32) -> (i32, i32) {
    %c0_i32 = arith.constant 0 : i32
    %c0_i32_0 = arith.constant 0 : i32
    %c0_i32_1 = arith.constant 0 : i32
    return %c0_i32, %c0_i32_0 : i32, i32
  }
  func.func @transform_3(%arg0: i32) -> (i32, i32) {
    %c0_i32 = arith.constant 0 : i32
    %c0_i32_0 = arith.constant 0 : i32
    %c0_i32_1 = arith.constant 0 : i32
    return %c0_i32, %c0_i32_0 : i32, i32
  }
  func.func @transform_4(%arg0: i32) -> (i32, i32) {
    %c0_i32 = arith.constant 0 : i32
    %c0_i32_0 = arith.constant 0 : i32
    return %arg0, %c0_i32 : i32, i32
  }
}

module attributes {stable_mosaic.version = 11 : i64} {
  func.func @_pairwise_kernel(%arg0: i32, %arg1: i32, %arg2: memref<1x16x128xf32, #tpu.memory_space<vmem>>, %arg3: memref<1x16x128xf32, #tpu.memory_space<vmem>>, %arg4: memref<1x16x16xf32, #tpu.memory_space<vmem>>) attributes {dimension_semantics = [#tpu.dimension_semantics<parallel>, #tpu.dimension_semantics<parallel>], iteration_bounds = array<i64: 2, 1>, scalar_prefetch = 0 : i64, scratch_operands = 0 : i64, tpu.core_type = #tpu.core_type<tc>, window_params = [{transform_indices = @transform_0, window_bounds = array<i64: 1, 16, 128>}, {transform_indices = @transform_1, window_bounds = array<i64: 1, 16, 128>}, {transform_indices = @transform_2, window_bounds = array<i64: 1, 16, 16>}]} {
    %c0 = arith.constant 0 : index
    %c0_0 = arith.constant 0 : index
    %c0_1 = arith.constant 0 : index
    %0 = vector.load %arg2[%c0, %c0_0, %c0_1] : memref<1x16x128xf32, #tpu.memory_space<vmem>>, vector<1x16x128xf32>
    %1 = vector.shape_cast %0 : vector<1x16x128xf32> to vector<16x128xf32>
    %c0_2 = arith.constant 0 : index
    %c0_3 = arith.constant 0 : index
    %c0_4 = arith.constant 0 : index
    %2 = vector.load %arg3[%c0_2, %c0_3, %c0_4] : memref<1x16x128xf32, #tpu.memory_space<vmem>>, vector<1x16x128xf32>
    %3 = vector.shape_cast %2 : vector<1x16x128xf32> to vector<16x128xf32>
    %4 = arith.mulf %1, %1 : vector<16x128xf32>
    %cst = arith.constant dense<0.000000e+00> : vector<16xf32>
    %5 = vector.multi_reduction <add>, %4, %cst [1] : vector<16x128xf32> to vector<16xf32>
    %6 = vector.shape_cast %5 : vector<16xf32> to vector<16x1xf32>
    %7 = arith.mulf %3, %3 : vector<16x128xf32>
    %cst_5 = arith.constant dense<0.000000e+00> : vector<16xf32>
    %8 = vector.multi_reduction <add>, %7, %cst_5 [1] : vector<16x128xf32> to vector<16xf32>
    %9 = vector.shape_cast %8 : vector<16xf32> to vector<1x16xf32>
    %cst_6 = arith.constant dense<0.000000e+00> : vector<16x16xf32>
    %10 = tpu.matmul %1, %3, %cst_6 {dimension_numbers = #tpu.dot_dimension_numbers<[1], [1], [0], [0], [0, 0, 1, 0], [], []>} : vector<16x128xf32>, vector<16x128xf32>, vector<16x16xf32> -> vector<16x16xf32>
    %cst_7 = arith.constant 2.000000e+00 : f32
    %11 = vector.broadcast %cst_7 : f32 to vector<16x16xf32>
    %12 = arith.mulf %11, %10 : vector<16x16xf32>
    %13 = vector.broadcast %6 : vector<16x1xf32> to vector<16x16xf32>
    %14 = arith.subf %12, %13 : vector<16x16xf32>
    %15 = vector.broadcast %9 : vector<1x16xf32> to vector<16x16xf32>
    %16 = arith.subf %14, %15 : vector<16x16xf32>
    %c0_8 = arith.constant 0 : index
    %c0_9 = arith.constant 0 : index
    %c0_10 = arith.constant 0 : index
    %17 = vector.load %arg4[%c0_8, %c0_9, %c0_10] : memref<1x16x16xf32, #tpu.memory_space<vmem>>, vector<1x16x16xf32>
    %18 = vector.shape_cast %17 : vector<1x16x16xf32> to vector<16x16xf32>
    %19 = vector.shape_cast %16 : vector<16x16xf32> to vector<1x16x16xf32>
    tpu.vector_store %arg4[%c0_8, %c0_9, %c0_10], %19 {strides = array<i32>} : memref<1x16x16xf32, #tpu.memory_space<vmem>>, vector<1x16x16xf32>,
    return
  }
  func.func @transform_0(%arg0: i32, %arg1: i32) -> (i32, i32, i32) {
    %c0_i32 = arith.constant 0 : i32
    %c0_i32_0 = arith.constant 0 : i32
    return %arg0, %arg1, %c0_i32 : i32, i32, i32
  }
  func.func @transform_1(%arg0: i32, %arg1: i32) -> (i32, i32, i32) {
    %c0_i32 = arith.constant 0 : i32
    %c0_i32_0 = arith.constant 0 : i32
    %c0_i32_1 = arith.constant 0 : i32
    return %arg0, %c0_i32, %c0_i32_0 : i32, i32, i32
  }
  func.func @transform_2(%arg0: i32, %arg1: i32) -> (i32, i32, i32) {
    %c0_i32 = arith.constant 0 : i32
    %c0_i32_0 = arith.constant 0 : i32
    return %arg0, %arg1, %c0_i32 : i32, i32, i32
  }
}

module attributes {stable_mosaic.version = 11 : i64} {
  func.func @_edge_agg_kernel(%arg0: i32, %arg1: memref<32x4x256xf32, #tpu.memory_space<vmem>>, %arg2: memref<32x256xf32, #tpu.memory_space<vmem>>, %arg3: memref<32x256xf32, #tpu.memory_space<vmem>>) attributes {dimension_semantics = [#tpu.dimension_semantics<parallel>], iteration_bounds = array<i64: 1>, scalar_prefetch = 0 : i64, scratch_operands = 0 : i64, tpu.core_type = #tpu.core_type<tc>, window_params = [{transform_indices = @transform_0, window_bounds = array<i64: 32, 4, 256>}, {transform_indices = @transform_1, window_bounds = array<i64: 32, 256>}, {transform_indices = @transform_2, window_bounds = array<i64: 32, 256>}]} {
    %c0 = arith.constant 0 : index
    %c0_0 = arith.constant 0 : index
    %c0_1 = arith.constant 0 : index
    %0 = vector.load %arg1[%c0, %c0_0, %c0_1] : memref<32x4x256xf32, #tpu.memory_space<vmem>>, vector<32x4x256xf32>
    %c0_2 = arith.constant 0 : index
    %c0_3 = arith.constant 0 : index
    %1 = vector.load %arg2[%c0_2, %c0_3] : memref<32x256xf32, #tpu.memory_space<vmem>>, vector<32x256xf32>
    %2 = vector.shape_cast %1 : vector<32x256xf32> to vector<32x1x256xf32>
    %3 = vector.broadcast %2 : vector<32x1x256xf32> to vector<32x4x256xf32>
    %4 = arith.addf %0, %3 : vector<32x4x256xf32>
    %cst = arith.constant 0.000000e+00 : f32
    %5 = vector.broadcast %cst : f32 to vector<32x4x256xf32>
    %6 = arith.cmpf ogt, %4, %5 : vector<32x4x256xf32>
    %cst_4 = arith.constant 2.000000e-01 : f32
    %7 = vector.broadcast %cst_4 : f32 to vector<32x4x256xf32>
    %8 = arith.mulf %7, %4 : vector<32x4x256xf32>
    %9 = arith.select %6, %4, %8 : vector<32x4x256xi1>, vector<32x4x256xf32>
    %cst_5 = arith.constant dense<0xFF800000> : vector<32x256xf32>
    %10 = vector.multi_reduction <maximumf>, %9, %cst_5 [1] : vector<32x4x256xf32> to vector<32x256xf32>
    %c0_6 = arith.constant 0 : index
    %c0_7 = arith.constant 0 : index
    %11 = vector.load %arg3[%c0_6, %c0_7] : memref<32x256xf32, #tpu.memory_space<vmem>>, vector<32x256xf32>
    tpu.vector_store %arg3[%c0_6, %c0_7], %10 {strides = array<i32>} : memref<32x256xf32, #tpu.memory_space<vmem>>, vector<32x256xf32>,
    return
  }
  func.func @transform_0(%arg0: i32) -> (i32, i32, i32) {
    %c0_i32 = arith.constant 0 : i32
    %c0_i32_0 = arith.constant 0 : i32
    %c0_i32_1 = arith.constant 0 : i32
    return %arg0, %c0_i32, %c0_i32_0 : i32, i32, i32
  }
  func.func @transform_1(%arg0: i32) -> (i32, i32) {
    %c0_i32 = arith.constant 0 : i32
    %c0_i32_0 = arith.constant 0 : i32
    return %arg0, %c0_i32 : i32, i32
  }
  func.func @transform_2(%arg0: i32) -> (i32, i32) {
    %c0_i32 = arith.constant 0 : i32
    %c0_i32_0 = arith.constant 0 : i32
    return %arg0, %c0_i32 : i32, i32
  }
}

module attributes {stable_mosaic.version = 11 : i64} {
  func.func @_conv5_pool_kernel(%arg0: i32, %arg1: i32, %arg2: memref<1x16x512xf32, #tpu.memory_space<vmem>>, %arg3: memref<512x128xf32, #tpu.memory_space<vmem>>, %arg4: memref<1x128xf32, #tpu.memory_space<vmem>>, %arg5: memref<1x128xf32, #tpu.memory_space<vmem>>, %arg6: memref<1x1x128xf32, #tpu.memory_space<vmem>>, %arg7: memref<1x1x128xf32, #tpu.memory_space<vmem>>) attributes {dimension_semantics = [#tpu.dimension_semantics<parallel>, #tpu.dimension_semantics<arbitrary>], iteration_bounds = array<i64: 2, 1>, scalar_prefetch = 0 : i64, scratch_operands = 0 : i64, tpu.core_type = #tpu.core_type<tc>, window_params = [{transform_indices = @transform_0, window_bounds = array<i64: 1, 16, 512>}, {pipeline_mode = #tpu.pipeline_mode<synchronous>, transform_indices = @transform_1, window_bounds = array<i64: 512, 128>}, {pipeline_mode = #tpu.pipeline_mode<synchronous>, transform_indices = @transform_2, window_bounds = array<i64: 1, 128>}, {pipeline_mode = #tpu.pipeline_mode<synchronous>, transform_indices = @transform_3, window_bounds = array<i64: 1, 128>}, {transform_indices = @transform_4, window_bounds = array<i64: 1, 1, 128>}, {transform_indices = @transform_5, window_bounds = array<i64: 1, 1, 128>}]} {
    %c0 = arith.constant 0 : index
    %c0_0 = arith.constant 0 : index
    %c0_1 = arith.constant 0 : index
    %0 = vector.load %arg2[%c0, %c0_0, %c0_1] : memref<1x16x512xf32, #tpu.memory_space<vmem>>, vector<1x16x512xf32>
    %1 = vector.shape_cast %0 : vector<1x16x512xf32> to vector<16x512xf32>
    %c0_2 = arith.constant 0 : index
    %c0_3 = arith.constant 0 : index
    %2 = vector.load %arg3[%c0_2, %c0_3] : memref<512x128xf32, #tpu.memory_space<vmem>>, vector<512x128xf32>
    %cst = arith.constant dense<0.000000e+00> : vector<16x128xf32>
    %3 = tpu.matmul %1, %2, %cst {dimension_numbers = #tpu.dot_dimension_numbers<[1], [0], [0], [1], [0, 0, 1, 1], [], []>} : vector<16x512xf32>, vector<512x128xf32>, vector<16x128xf32> -> vector<16x128xf32>
    %c0_4 = arith.constant 0 : index
    %c0_5 = arith.constant 0 : index
    %4 = vector.load %arg4[%c0_4, %c0_5] : memref<1x128xf32, #tpu.memory_space<vmem>>, vector<1x128xf32>
    %5 = vector.broadcast %4 : vector<1x128xf32> to vector<16x128xf32>
    %6 = arith.mulf %3, %5 : vector<16x128xf32>
    %c0_6 = arith.constant 0 : index
    %c0_7 = arith.constant 0 : index
    %7 = vector.load %arg5[%c0_6, %c0_7] : memref<1x128xf32, #tpu.memory_space<vmem>>, vector<1x128xf32>
    %8 = vector.broadcast %7 : vector<1x128xf32> to vector<16x128xf32>
    %9 = arith.addf %6, %8 : vector<16x128xf32>
    %cst_8 = arith.constant 0.000000e+00 : f32
    %10 = vector.broadcast %cst_8 : f32 to vector<16x128xf32>
    %11 = arith.cmpf ogt, %9, %10 : vector<16x128xf32>
    %cst_9 = arith.constant 2.000000e-01 : f32
    %12 = vector.broadcast %cst_9 : f32 to vector<16x128xf32>
    %13 = arith.mulf %12, %9 : vector<16x128xf32>
    %14 = arith.select %11, %9, %13 : vector<16x128xi1>, vector<16x128xf32>
    %cst_10 = arith.constant dense<0xFF800000> : vector<128xf32>
    %15 = vector.multi_reduction <maximumf>, %14, %cst_10 [0] : vector<16x128xf32> to vector<128xf32>
    %16 = vector.shape_cast %15 : vector<128xf32> to vector<1x128xf32>
    %17 = vector.shape_cast %16 : vector<1x128xf32> to vector<1x1x128xf32>
    %cst_11 = arith.constant dense<0.000000e+00> : vector<128xf32>
    %18 = vector.multi_reduction <add>, %14, %cst_11 [0] : vector<16x128xf32> to vector<128xf32>
    %19 = vector.shape_cast %18 : vector<128xf32> to vector<1x128xf32>
    %20 = vector.shape_cast %19 : vector<1x128xf32> to vector<1x1x128xf32>
    %c0_i32 = arith.constant 0 : i32
    %21 = arith.cmpi eq, %arg1, %c0_i32 : i32
    %22 = arith.extui %21 : i1 to i32
    %c0_i32_12 = arith.constant 0 : i32
    %23 = arith.cmpi ne, %22, %c0_i32_12 : i32
    scf.if %23 {
      %c0_17 = arith.constant 0 : index
      %c0_18 = arith.constant 0 : index
      %c0_19 = arith.constant 0 : index
      %30 = vector.load %arg6[%c0_17, %c0_18, %c0_19] : memref<1x1x128xf32, #tpu.memory_space<vmem>>, vector<1x1x128xf32>
      tpu.vector_store %arg6[%c0_17, %c0_18, %c0_19], %17 {strides = array<i32>} : memref<1x1x128xf32, #tpu.memory_space<vmem>>, vector<1x1x128xf32>,
      %c0_20 = arith.constant 0 : index
      %c0_21 = arith.constant 0 : index
      %c0_22 = arith.constant 0 : index
      %31 = vector.load %arg7[%c0_20, %c0_21, %c0_22] : memref<1x1x128xf32, #tpu.memory_space<vmem>>, vector<1x1x128xf32>
      tpu.vector_store %arg7[%c0_20, %c0_21, %c0_22], %20 {strides = array<i32>} : memref<1x1x128xf32, #tpu.memory_space<vmem>>, vector<1x1x128xf32>,
    } else {
    }
    %c0_i32_13 = arith.constant 0 : i32
    %24 = arith.cmpi sgt, %arg1, %c0_i32_13 : i32
    %25 = arith.extui %24 : i1 to i32
    %c0_i32_14 = arith.constant 0 : i32
    %26 = arith.cmpi ne, %25, %c0_i32_14 : i32
    scf.if %26 {
      %c0_17 = arith.constant 0 : index
      %c0_18 = arith.constant 0 : index
      %c0_19 = arith.constant 0 : index
      %30 = vector.load %arg6[%c0_17, %c0_18, %c0_19] : memref<1x1x128xf32, #tpu.memory_space<vmem>>, vector<1x1x128xf32>
      %31 = arith.maximumf %30, %17 : vector<1x1x128xf32>
      %c0_20 = arith.constant 0 : index
      %c0_21 = arith.constant 0 : index
      %c0_22 = arith.constant 0 : index
      %32 = vector.load %arg6[%c0_20, %c0_21, %c0_22] : memref<1x1x128xf32, #tpu.memory_space<vmem>>, vector<1x1x128xf32>
      tpu.vector_store %arg6[%c0_20, %c0_21, %c0_22], %31 {strides = array<i32>} : memref<1x1x128xf32, #tpu.memory_space<vmem>>, vector<1x1x128xf32>,
      %c0_23 = arith.constant 0 : index
      %c0_24 = arith.constant 0 : index
      %c0_25 = arith.constant 0 : index
      %33 = vector.load %arg7[%c0_23, %c0_24, %c0_25] : memref<1x1x128xf32, #tpu.memory_space<vmem>>, vector<1x1x128xf32>
      %34 = arith.addf %33, %20 : vector<1x1x128xf32>
      %c0_26 = arith.constant 0 : index
      %c0_27 = arith.constant 0 : index
      %c0_28 = arith.constant 0 : index
      %35 = vector.load %arg7[%c0_26, %c0_27, %c0_28] : memref<1x1x128xf32, #tpu.memory_space<vmem>>, vector<1x1x128xf32>
      tpu.vector_store %arg7[%c0_26, %c0_27, %c0_28], %34 {strides = array<i32>} : memref<1x1x128xf32, #tpu.memory_space<vmem>>, vector<1x1x128xf32>,
    } else {
    }
    %c0_i32_15 = arith.constant 0 : i32
    %27 = arith.cmpi eq, %arg1, %c0_i32_15 : i32
    %28 = arith.extui %27 : i1 to i32
    %c0_i32_16 = arith.constant 0 : i32
    %29 = arith.cmpi ne, %28, %c0_i32_16 : i32
    scf.if %29 {
      %c0_17 = arith.constant 0 : index
      %c0_18 = arith.constant 0 : index
      %c0_19 = arith.constant 0 : index
      %30 = vector.load %arg7[%c0_17, %c0_18, %c0_19] : memref<1x1x128xf32, #tpu.memory_space<vmem>>, vector<1x1x128xf32>
      %cst_20 = arith.constant 6.250000e-02 : f32
      %31 = vector.broadcast %cst_20 : f32 to vector<1x1x128xf32>
      %32 = arith.mulf %30, %31 : vector<1x1x128xf32>
      %c0_21 = arith.constant 0 : index
      %c0_22 = arith.constant 0 : index
      %c0_23 = arith.constant 0 : index
      %33 = vector.load %arg7[%c0_21, %c0_22, %c0_23] : memref<1x1x128xf32, #tpu.memory_space<vmem>>, vector<1x1x128xf32>
      tpu.vector_store %arg7[%c0_21, %c0_22, %c0_23], %32 {strides = array<i32>} : memref<1x1x128xf32, #tpu.memory_space<vmem>>, vector<1x1x128xf32>,
    } else {
    }
    return
  }
  func.func @transform_0(%arg0: i32, %arg1: i32) -> (i32, i32, i32) {
    %c0_i32 = arith.constant 0 : i32
    %c0_i32_0 = arith.constant 0 : i32
    return %arg0, %arg1, %c0_i32 : i32, i32, i32
  }
  func.func @transform_1(%arg0: i32, %arg1: i32) -> (i32, i32) {
    %c0_i32 = arith.constant 0 : i32
    %c0_i32_0 = arith.constant 0 : i32
    %c0_i32_1 = arith.constant 0 : i32
    return %c0_i32, %c0_i32_0 : i32, i32
  }
  func.func @transform_2(%arg0: i32, %arg1: i32) -> (i32, i32) {
    %c0_i32 = arith.constant 0 : i32
    %c0_i32_0 = arith.constant 0 : i32
    %c0_i32_1 = arith.constant 0 : i32
    return %c0_i32, %c0_i32_0 : i32, i32
  }
  func.func @transform_3(%arg0: i32, %arg1: i32) -> (i32, i32) {
    %c0_i32 = arith.constant 0 : i32
    %c0_i32_0 = arith.constant 0 : i32
    %c0_i32_1 = arith.constant 0 : i32
    return %c0_i32, %c0_i32_0 : i32, i32
  }
  func.func @transform_4(%arg0: i32, %arg1: i32) -> (i32, i32, i32) {
    %c0_i32 = arith.constant 0 : i32
    %c0_i32_0 = arith.constant 0 : i32
    %c0_i32_1 = arith.constant 0 : i32
    return %arg0, %c0_i32, %c0_i32_0 : i32, i32, i32
  }
  func.func @transform_5(%arg0: i32, %arg1: i32) -> (i32, i32, i32) {
    %c0_i32 = arith.constant 0 : i32
    %c0_i32_0 = arith.constant 0 : i32
    %c0_i32_1 = arith.constant 0 : i32
    return %arg0, %c0_i32, %c0_i32_0 : i32, i32, i32
  }
}

module attributes {stable_mosaic.version = 11 : i64} {
  func.func @kernel(%arg0: i32, %arg1: memref<2x256xf32, #tpu.memory_space<vmem>>, %arg2: memref<256x2048xf32, #tpu.memory_space<vmem>>, %arg3: memref<1x2048xf32, #tpu.memory_space<vmem>>, %arg4: memref<1x2048xf32, #tpu.memory_space<vmem>>, %arg5: memref<2x2048xf32, #tpu.memory_space<vmem>>) attributes {dimension_semantics = [#tpu.dimension_semantics<parallel>], iteration_bounds = array<i64: 1>, scalar_prefetch = 0 : i64, scratch_operands = 0 : i64, tpu.core_type = #tpu.core_type<tc>, window_params = [{transform_indices = @transform_0, window_bounds = array<i64: 2, 256>}, {pipeline_mode = #tpu.pipeline_mode<synchronous>, transform_indices = @transform_1, window_bounds = array<i64: 256, 2048>}, {pipeline_mode = #tpu.pipeline_mode<synchronous>, transform_indices = @transform_2, window_bounds = array<i64: 1, 2048>}, {pipeline_mode = #tpu.pipeline_mode<synchronous>, transform_indices = @transform_3, window_bounds = array<i64: 1, 2048>}, {transform_indices = @transform_4, window_bounds = array<i64: 2, 2048>}]} {
    %c0 = arith.constant 0 : index
    %c0_0 = arith.constant 0 : index
    %0 = vector.load %arg1[%c0, %c0_0] : memref<2x256xf32, #tpu.memory_space<vmem>>, vector<2x256xf32>
    %c0_1 = arith.constant 0 : index
    %c0_2 = arith.constant 0 : index
    %1 = vector.load %arg2[%c0_1, %c0_2] : memref<256x2048xf32, #tpu.memory_space<vmem>>, vector<256x2048xf32>
    %cst = arith.constant dense<0.000000e+00> : vector<2x2048xf32>
    %2 = tpu.matmul %0, %1, %cst {dimension_numbers = #tpu.dot_dimension_numbers<[1], [0], [0], [1], [0, 0, 1, 1], [], []>} : vector<2x256xf32>, vector<256x2048xf32>, vector<2x2048xf32> -> vector<2x2048xf32>
    %c0_3 = arith.constant 0 : index
    %c0_4 = arith.constant 0 : index
    %3 = vector.load %arg3[%c0_3, %c0_4] : memref<1x2048xf32, #tpu.memory_space<vmem>>, vector<1x2048xf32>
    %4 = vector.broadcast %3 : vector<1x2048xf32> to vector<2x2048xf32>
    %5 = arith.mulf %2, %4 : vector<2x2048xf32>
    %c0_5 = arith.constant 0 : index
    %c0_6 = arith.constant 0 : index
    %6 = vector.load %arg4[%c0_5, %c0_6] : memref<1x2048xf32, #tpu.memory_space<vmem>>, vector<1x2048xf32>
    %7 = vector.broadcast %6 : vector<1x2048xf32> to vector<2x2048xf32>
    %8 = arith.addf %5, %7 : vector<2x2048xf32>
    %cst_7 = arith.constant 0.000000e+00 : f32
    %9 = vector.broadcast %cst_7 : f32 to vector<2x2048xf32>
    %10 = arith.cmpf ogt, %8, %9 : vector<2x2048xf32>
    %cst_8 = arith.constant 2.000000e-01 : f32
    %11 = vector.broadcast %cst_8 : f32 to vector<2x2048xf32>
    %12 = arith.mulf %11, %8 : vector<2x2048xf32>
    %13 = arith.select %10, %8, %12 : vector<2x2048xi1>, vector<2x2048xf32>
    %c0_9 = arith.constant 0 : index
    %c0_10 = arith.constant 0 : index
    %14 = vector.load %arg5[%c0_9, %c0_10] : memref<2x2048xf32, #tpu.memory_space<vmem>>, vector<2x2048xf32>
    tpu.vector_store %arg5[%c0_9, %c0_10], %13 {strides = array<i32>} : memref<2x2048xf32, #tpu.memory_space<vmem>>, vector<2x2048xf32>,
    return
  }
  func.func @transform_0(%arg0: i32) -> (i32, i32) {
    %c0_i32 = arith.constant 0 : i32
    %c0_i32_0 = arith.constant 0 : i32
    return %arg0, %c0_i32 : i32, i32
  }
  func.func @transform_1(%arg0: i32) -> (i32, i32) {
    %c0_i32 = arith.constant 0 : i32
    %c0_i32_0 = arith.constant 0 : i32
    %c0_i32_1 = arith.constant 0 : i32
    return %c0_i32, %c0_i32_0 : i32, i32
  }
  func.func @transform_2(%arg0: i32) -> (i32, i32) {
    %c0_i32 = arith.constant 0 : i32
    %c0_i32_0 = arith.constant 0 : i32
    %c0_i32_1 = arith.constant 0 : i32
    return %c0_i32, %c0_i32_0 : i32, i32
  }
  func.func @transform_3(%arg0: i32) -> (i32, i32) {
    %c0_i32 = arith.constant 0 : i32
    %c0_i32_0 = arith.constant 0 : i32
    %c0_i32_1 = arith.constant 0 : i32
    return %c0_i32, %c0_i32_0 : i32, i32
  }
  func.func @transform_4(%arg0: i32) -> (i32, i32) {
    %c0_i32 = arith.constant 0 : i32
    %c0_i32_0 = arith.constant 0 : i32
    return %arg0, %c0_i32 : i32, i32
  }
}

module attributes {stable_mosaic.version = 11 : i64} {
  func.func @kernel(%arg0: i32, %arg1: memref<2x2048xf32, #tpu.memory_space<vmem>>, %arg2: memref<2048x128xf32, #tpu.memory_space<vmem>>, %arg3: memref<1x128xf32, #tpu.memory_space<vmem>>, %arg4: memref<1x128xf32, #tpu.memory_space<vmem>>, %arg5: memref<2x128xf32, #tpu.memory_space<vmem>>) attributes {dimension_semantics = [#tpu.dimension_semantics<parallel>], iteration_bounds = array<i64: 1>, scalar_prefetch = 0 : i64, scratch_operands = 0 : i64, tpu.core_type = #tpu.core_type<tc>, window_params = [{transform_indices = @transform_0, window_bounds = array<i64: 2, 2048>}, {pipeline_mode = #tpu.pipeline_mode<synchronous>, transform_indices = @transform_1, window_bounds = array<i64: 2048, 128>}, {pipeline_mode = #tpu.pipeline_mode<synchronous>, transform_indices = @transform_2, window_bounds = array<i64: 1, 128>}, {pipeline_mode = #tpu.pipeline_mode<synchronous>, transform_indices = @transform_3, window_bounds = array<i64: 1, 128>}, {transform_indices = @transform_4, window_bounds = array<i64: 2, 128>}]} {
    %c0 = arith.constant 0 : index
    %c0_0 = arith.constant 0 : index
    %0 = vector.load %arg1[%c0, %c0_0] : memref<2x2048xf32, #tpu.memory_space<vmem>>, vector<2x2048xf32>
    %c0_1 = arith.constant 0 : index
    %c0_2 = arith.constant 0 : index
    %1 = vector.load %arg2[%c0_1, %c0_2] : memref<2048x128xf32, #tpu.memory_space<vmem>>, vector<2048x128xf32>
    %cst = arith.constant dense<0.000000e+00> : vector<2x128xf32>
    %2 = tpu.matmul %0, %1, %cst {dimension_numbers = #tpu.dot_dimension_numbers<[1], [0], [0], [1], [0, 0, 1, 1], [], []>} : vector<2x2048xf32>, vector<2048x128xf32>, vector<2x128xf32> -> vector<2x128xf32>
    %c0_3 = arith.constant 0 : index
    %c0_4 = arith.constant 0 : index
    %3 = vector.load %arg3[%c0_3, %c0_4] : memref<1x128xf32, #tpu.memory_space<vmem>>, vector<1x128xf32>
    %4 = vector.broadcast %3 : vector<1x128xf32> to vector<2x128xf32>
    %5 = arith.mulf %2, %4 : vector<2x128xf32>
    %c0_5 = arith.constant 0 : index
    %c0_6 = arith.constant 0 : index
    %6 = vector.load %arg4[%c0_5, %c0_6] : memref<1x128xf32, #tpu.memory_space<vmem>>, vector<1x128xf32>
    %7 = vector.broadcast %6 : vector<1x128xf32> to vector<2x128xf32>
    %8 = arith.addf %5, %7 : vector<2x128xf32>
    %c0_7 = arith.constant 0 : index
    %c0_8 = arith.constant 0 : index
    %9 = vector.load %arg5[%c0_7, %c0_8] : memref<2x128xf32, #tpu.memory_space<vmem>>, vector<2x128xf32>
    tpu.vector_store %arg5[%c0_7, %c0_8], %8 {strides = array<i32>} : memref<2x128xf32, #tpu.memory_space<vmem>>, vector<2x128xf32>,
    return
  }
  func.func @transform_0(%arg0: i32) -> (i32, i32) {
    %c0_i32 = arith.constant 0 : i32
    %c0_i32_0 = arith.constant 0 : i32
    return %arg0, %c0_i32 : i32, i32
  }
  func.func @transform_1(%arg0: i32) -> (i32, i32) {
    %c0_i32 = arith.constant 0 : i32
    %c0_i32_0 = arith.constant 0 : i32
    %c0_i32_1 = arith.constant 0 : i32
    return %c0_i32, %c0_i32_0 : i32, i32
  }
  func.func @transform_2(%arg0: i32) -> (i32, i32) {
    %c0_i32 = arith.constant 0 : i32
    %c0_i32_0 = arith.constant 0 : i32
    %c0_i32_1 = arith.constant 0 : i32
    return %c0_i32, %c0_i32_0 : i32, i32
  }
  func.func @transform_3(%arg0: i32) -> (i32, i32) {
    %c0_i32 = arith.constant 0 : i32
    %c0_i32_0 = arith.constant 0 : i32
    %c0_i32_1 = arith.constant 0 : i32
    return %c0_i32, %c0_i32_0 : i32, i32
  }
  func.func @transform_4(%arg0: i32) -> (i32, i32) {
    %c0_i32 = arith.constant 0 : i32
    %c0_i32_0 = arith.constant 0 : i32
    return %arg0, %c0_i32 : i32, i32
  }
}

</mosaic_0001>

<llo_original>
// kernel: dgcnn_encoder.16
$region0: #{dgcnn_encoder.16}
  #allocation0 [shape = 'u32[]', space=smem, size = 0x4, offset = 0x4, fixed_abs, tag = 'smem constant byte address 0x4 - core index']
  #allocation1 [shape = 'u32[144,128]{1,0:T(1,128)}', space=vmem, size = 0x12000, scoped, tag = 'internal scratch']
  %s0 = inlined_call_operand.vmem [shape: f32[32,3], index: 0, kind: input, shape index: {}]
  %s1 = inlined_call_operand.vmem [shape: f32[3,128], index: 1, kind: input, shape index: {}]
  %s2 = inlined_call_operand.vmem [shape: f32[1,128], index: 2, kind: input, shape index: {}]
  %s3 = inlined_call_operand.vmem [shape: f32[1,128], index: 3, kind: input, shape index: {}]
  %s4 = inlined_call_operand.vmem [shape: f32[32,128], index: 4, kind: output, shape index: {}]
  %s5 = sld [smem:[#allocation0]]
  $region26: #{dgcnn_encoder.16} parent=0
    _
  %s7 = ssub.s32 1, %s5
  %s8 = scalar_select 0, %s7, %s5
  // Predicated region
  $region2: #{dgcnn_encoder.16} parent=0 // pred_check
    _
  $region3: #{dgcnn_encoder.16} parent=0 // pred_check_branch
    %10 = sbr.rel (0) target = $region5
  $region4: #{dgcnn_encoder.16} parent=0 // pred_region
    _
  $region5: #{dgcnn_encoder.16} parent=0 // pred_fallthru
    _
  // Predicated region
  $region6: #{dgcnn_encoder.16} parent=0 // pred_check
    _
  $region7: #{dgcnn_encoder.16} parent=0 // pred_check_branch
    %12 = sbr.rel (0) target = $region9
  $region8: #{dgcnn_encoder.16} parent=0 // pred_region
    _
  $region9: #{dgcnn_encoder.16} parent=0 // pred_fallthru
    _
  // Predicated region
  $region10: #{dgcnn_encoder.16} parent=0 // pred_check
    _
  $region11: #{dgcnn_encoder.16} parent=0 // pred_check_branch
    %14 = sbr.rel (0) target = $region13
  $region12: #{dgcnn_encoder.16} parent=0 // pred_region
    _
  $region13: #{dgcnn_encoder.16} parent=0 // pred_fallthru
    _
  // Predicated region
  $region14: #{dgcnn_encoder.16} parent=0 // pred_check
    _
  $region15: #{dgcnn_encoder.16} parent=0 // pred_check_branch
    %16 = sbr.rel (0) target = $region17
  $region16: #{dgcnn_encoder.16} parent=0 // pred_region
    _
  $region17: #{dgcnn_encoder.16} parent=0 // pred_fallthru
    _
  %v17 = vld [vmem:[%s0] sm:$0xff]
  %v18 = vld [vmem:[%s0 + $0x8] sm:$0xff]
  %v19 = vld [vmem:[%s0 + $0x10] sm:$0xff]
  %v20 = vld [vmem:[%s0 + $0x18] sm:$0xff]
  %v21 = vld [vmem:[%s1] sm:$0x7]
  %vm22 = vcmask 23552
  %v24 = vsel %vm22, %v17, 0
  %v27 = vsel %vm22, %v18, 0
  %v30 = vsel %vm22, %v19, 0
  %v33 = vsel %vm22, %v20, 0
  %vm35 = vcmask 1042432
  %v37 = vsel %vm35, %v21, 0
  %39 = vmatprep.subr.mxu0 0.0
  %40 = vmatpush1.msra.mxu0 0.0
  %41 = vmatprep.subr.mxu0 0.0
  %42 = vmatpush1.msra.mxu0 0.0
  %43 = vmatprep.subr.mxu0 0.0
  %44 = vmatpush1.msra.mxu0 0.0
  %45 = vmatprep.subr.mxu0 0.0
  %46 = vmatpush1.msra.mxu0 0.0
  %47 = vmatprep.subr.mxu0 0.0
  %48 = vmatpush1.msra.mxu0 0.0
  %49 = vmatprep.subr.mxu0 0.0
  %50 = vmatpush1.msra.mxu0 0.0
  %51 = vmatprep.subr.mxu0 0.0
  %52 = vmatpush1.msra.mxu0 0.0
  %53 = vmatprep.subr.mxu0 0.0
  %54 = vmatpush1.msra.mxu0 0.0
  %55 = vmatprep.subr.mxu0 0.0
  %56 = vmatpush1.msra.mxu0 0.0
  %57 = vmatprep.subr.mxu0 0.0
  %58 = vmatpush1.msra.mxu0 0.0
  %59 = vmatprep.subr.mxu0 0.0
  %60 = vmatpush1.msra.mxu0 0.0
  %61 = vmatprep.subr.mxu0 0.0
  %62 = vmatpush1.msra.mxu0 0.0
  %63 = vmatprep.subr.mxu0 0.0
  %64 = vmatpush1.msra.mxu0 0.0
  %65 = vmatprep.subr.mxu0 0.0
  %66 = vmatpush1.msra.mxu0 0.0
  %67 = vmatprep.subr.mxu0 0.0
  %68 = vmatpush1.msra.mxu0 0.0
  %69 = vmatprep.subr.mxu0 0.0
  %70 = vmatpush1.msra.mxu0 %v37
  %71 = vmatprep.subr.mxu0 0.0
  %72 = vmatpush2.msra.mxu0 0.0
  %73 = vmatprep.subr.mxu0 0.0
  %74 = vmatpush2.msra.mxu0 0.0
  %75 = vmatprep.subr.mxu0 0.0
  %76 = vmatpush2.msra.mxu0 0.0
  %77 = vmatprep.subr.mxu0 0.0
  %78 = vmatpush2.msra.mxu0 0.0
  %79 = vmatprep.subr.mxu0 0.0
  %80 = vmatpush2.msra.mxu0 0.0
  %81 = vmatprep.subr.mxu0 0.0
  %82 = vmatpush2.msra.mxu0 0.0
  %83 = vmatprep.subr.mxu0 0.0
  %84 = vmatpush2.msra.mxu0 0.0
  %85 = vmatprep.subr.mxu0 0.0
  %86 = vmatpush2.msra.mxu0 0.0
  %87 = vmatprep.subr.mxu0 0.0
  %88 = vmatpush2.msra.mxu0 0.0
  %89 = vmatprep.subr.mxu0 0.0
  %90 = vmatpush2.msra.mxu0 0.0
  %91 = vmatprep.subr.mxu0 0.0
  %92 = vmatpush2.msra.mxu0 0.0
  %93 = vmatprep.subr.mxu0 0.0
  %94 = vmatpush2.msra.mxu0 0.0
  %95 = vmatprep.subr.mxu0 0.0
  %96 = vmatpush2.msra.mxu0 0.0
  %97 = vmatprep.subr.mxu0 0.0
  %98 = vmatpush2.msra.mxu0 0.0
  %99 = vmatprep.subr.mxu0 0.0
  %100 = vmatpush2.msra.mxu0 0.0
  %101 = vmatprep.subr.mxu0 0.0
  %102 = vmatpush2.msra.mxu0 0.0
  %103 = vmatprep.mubr.f32.mxu0 0.0
  %104 = vmatmul.mubr.f32.gmra.mxu0 %v24
  %v105 = vpop.f32.mrf.mxu0
  %v106 = vadd.f32 0.0, %v105
  %v107 = vpop.f32.mrf.mxu0
  %108 = vmatprep.mubr.f32.mxu0 0.0
  %109 = vmatmul.mubr.f32.gmra.mxu0 %v27
  %v110 = vpop.f32.mrf.mxu0
  %v111 = vadd.f32 0.0, %v110
  %v112 = vpop.f32.mrf.mxu0
  %113 = vmatprep.mubr.f32.mxu0 0.0
  %114 = vmatmul.mubr.f32.gmra.mxu0 %v30
  %v115 = vpop.f32.mrf.mxu0
  %v116 = vadd.f32 0.0, %v115
  %v117 = vpop.f32.mrf.mxu0
  %118 = vmatprep.mubr.f32.mxu0 0.0
  %119 = vmatmul.mubr.f32.gmra.mxu0 %v33
  %v120 = vpop.f32.mrf.mxu0
  %v121 = vadd.f32 0.0, %v120
  %v122 = vpop.f32.mrf.mxu0
  %123 = vdwg.mxu0
  %v124 = vld [vmem:[%s2] sm:$0x1]
  %v126 = vlaneseq
  %v127 = vshrl.u32 %v126, 7
  %v128 = vsub.s32 0, %v127
  %v129 = vrot.slane %v124, %v128
  %v131 = vmul.f32 %v106, %v129
  %v132 = vmul.f32 %v111, %v129
  %v133 = vmul.f32 %v116, %v129
  %v134 = vmul.f32 %v121, %v129
  %v135 = vld [vmem:[%s3] sm:$0x1]
  %v137 = vlaneseq
  %v138 = vshrl.u32 %v137, 7
  %v139 = vsub.s32 0, %v138
  %v140 = vrot.slane %v135, %v139
  %v142 = vadd.f32 %v131, %v140
  %v143 = vadd.f32 %v132, %v140
  %v144 = vadd.f32 %v133, %v140
  %v145 = vadd.f32 %v134, %v140
  %146 = vst [vmem:[%s4] sm:$0xff] %v142
  %147 = vst [vmem:[%s4 + $0x8] sm:$0xff] %v143
  %148 = vst [vmem:[%s4 + $0x10] sm:$0xff] %v144
  %149 = vst [vmem:[%s4 + $0x18] sm:$0xff] %v145
  // Predicated region
  $region18: #{dgcnn_encoder.16} parent=0 // pred_check
    _
  $region19: #{dgcnn_encoder.16} parent=0 // pred_check_branch
    %151 = sbr.rel (0) target = $region21
  $region20: #{dgcnn_encoder.16} parent=0 // pred_region
    _
  $region21: #{dgcnn_encoder.16} parent=0 // pred_fallthru
    _
  // Predicated region
  $region22: #{dgcnn_encoder.16} parent=0 // pred_check
    _
  $region23: #{dgcnn_encoder.16} parent=0 // pred_check_branch
    %153 = sbr.rel (0) target = $region25
  $region24: #{dgcnn_encoder.16} parent=0 // pred_region
    _
  $region25: #{dgcnn_encoder.16} parent=0 // pred_fallthru
    _

// kernel: dgcnn_encoder.15
$region0: #{dgcnn_encoder.15}
  #allocation0 [shape = 'u32[]', space=smem, size = 0x4, offset = 0x4, fixed_abs, tag = 'smem constant byte address 0x4 - core index']
  #allocation1 [shape = 'u32[144,128]{1,0:T(1,128)}', space=vmem, size = 0x12000, scoped, tag = 'internal scratch']
  %s0 = inlined_call_operand.vmem [shape: f32[2,16,3], index: 0, kind: input, shape index: {}, may-alias: {0,1}]
  %s1 = inlined_call_operand.vmem [shape: f32[2,16,3], index: 1, kind: input, shape index: {}, may-alias: {0,1}]
  %s2 = inlined_call_operand.vmem [shape: f32[2,16,16], index: 2, kind: output, shape index: {}]
  %s3 = sld [smem:[#allocation0]]
  $region41: #{dgcnn_encoder.15} parent=0
    _
  %s5 = ssub.s32 1, %s3
  %s6 = scalar_select 0, %s5, %s3
  loop: start=0, step=1, limit=4
  $region2: #{dgcnn_encoder.15} parent=0 // loop_pre_header
    _
  $region3: #{dgcnn_encoder.15} parent=0 // loop_header
    %s8 = sphi 0, %s12
    %p9 = scmp.ge.s32.totalorder %s8, 4
    %s15 = sphi 0, %s27
    %s16 = sphi 0, %s23
    %s17 = sphi 0, %s15
    %s18 = sphi 0, %s16
    %s19 = sphi 0, %s17
    %s20 = sphi 0, %s18
    %s32 = sphi 0, %s34
    %s35 = sphi 0, %s32
    %s36 = sphi 0, %s35
    %s52 = sphi 0, %s36
    %s58 = sphi 0, %s60
    %s61 = sphi 0, %s58
    %s62 = sphi 0, %s61
    %s78 = sphi 0, %s62
    %s86 = sphi 0, %s88
    %s89 = sphi 0, %s86
    %s90 = sphi 0, %s89
    %s106 = sphi 0, %s90
  $region4: #{dgcnn_encoder.15} parent=0 // loop_header_branch
    %11 = sbr.rel (%p9) target = $region8
  $region5: #{dgcnn_encoder.15} parent=0 // loop_body
    %s13 = ssub.s32 %s8, 1
    %s14 = ssub.s32 %s8, 2
    %s21 = sadd.s32 1, %s16
    %p22 = scmp.ge.s32.totalorder %s21, 1
    %s23 = scalar_select %p22, 0, %s21
    %s24 = sadd.s32 1, %s15
    %s25 = scalar_select %p22, %s24, %s15
    %p26 = scmp.ge.s32.totalorder %s25, 2
    %s27 = scalar_select %p26, 0, %s25
    %s28 = ssub.s32 %s15, %s27
    %s29 = ssub.s32 %s16, %s23
    %s30 = sor.u32 %s28, %s29
    %p31 = scmp.eq.s32.totalorder %s30, 0
    %s33 = sadd.s32 %s32, 1
    %s34 = scalar_select %p31, %s32, %s33
    %p37 = pneg %p31
    %p38 = scmp.eq.s32.totalorder %s8, 1
    %p39 = por %p37, %p38
    %p40 = scmp.ne.s32.totalorder %s32, %s35
    %p41 = scmp.eq.s32.totalorder %s8, 0
    %p42 = por %p40, %p41
    %p43 = scmp.ne.s32.totalorder %s32, %s35
    %p44 = scmp.eq.s32.totalorder %s13, 1
    %p45 = por %p43, %p44
    %p46 = scmp.ne.s32.totalorder %s35, %s36
    %p47 = scmp.eq.s32.totalorder %s13, 0
    %p48 = por %p46, %p47
    %p49 = scmp.ne.s32.totalorder %s35, %s36
    %p50 = scmp.eq.s32.totalorder %s14, 1
    %p51 = por %p49, %p50
    %p53 = scmp.ne.s32.totalorder %s36, %s52
    %p54 = scmp.eq.s32.totalorder %s14, 0
    %p55 = por %p53, %p54
    %s56 = ssub.s32 %s15, %s27
    %p57 = scmp.eq.s32.totalorder %s56, 0
    %s59 = sadd.s32 %s58, 1
    %s60 = scalar_select %p57, %s58, %s59
    %p63 = pneg %p57
    %p64 = scmp.eq.s32.totalorder %s8, 1
    %p65 = por %p63, %p64
    %p66 = scmp.ne.s32.totalorder %s58, %s61
    %p67 = scmp.eq.s32.totalorder %s8, 0
    %p68 = por %p66, %p67
    %p69 = scmp.ne.s32.totalorder %s58, %s61
    %p70 = scmp.eq.s32.totalorder %s13, 1
    %p71 = por %p69, %p70
    %p72 = scmp.ne.s32.totalorder %s61, %s62
    %p73 = scmp.eq.s32.totalorder %s13, 0
    %p74 = por %p72, %p73
    %p75 = scmp.ne.s32.totalorder %s61, %s62
    %p76 = scmp.eq.s32.totalorder %s14, 1
    %p77 = por %p75, %p76
    %p79 = scmp.ne.s32.totalorder %s62, %s78
    %p80 = scmp.eq.s32.totalorder %s14, 0
    %p81 = por %p79, %p80
    %s82 = ssub.s32 %s15, %s27
    %s83 = ssub.s32 %s16, %s23
    %s84 = sor.u32 %s82, %s83
    %p85 = scmp.eq.s32.totalorder %s84, 0
    %s87 = sadd.s32 %s86, 1
    %s88 = scalar_select %p85, %s86, %s87
    %p91 = pneg %p85
    %p92 = scmp.eq.s32.totalorder %s8, 1
    %p93 = por %p91, %p92
    %p94 = scmp.ne.s32.totalorder %s86, %s89
    %p95 = scmp.eq.s32.totalorder %s8, 0
    %p96 = por %p94, %p95
    %p97 = scmp.ne.s32.totalorder %s86, %s89
    %p98 = scmp.eq.s32.totalorder %s13, 1
    %p99 = por %p97, %p98
    %p100 = scmp.ne.s32.totalorder %s89, %s90
    %p101 = scmp.eq.s32.totalorder %s13, 0
    %p102 = por %p100, %p101
    %p103 = scmp.ne.s32.totalorder %s89, %s90
    %p104 = scmp.eq.s32.totalorder %s14, 1
    %p105 = por %p103, %p104
    %p107 = scmp.ne.s32.totalorder %s90, %s106
    %p108 = scmp.eq.s32.totalorder %s14, 0
    %p109 = por %p107, %p108
    %p110 = scmp.le.s32.totalorder 1, %s8
    %p111 = scmp.lt.s32.totalorder %s8, 3
    %p112 = pnand %p110, %p111
    %p113 = pneg %p112
    // Predicated region
    $region9: #{dgcnn_encoder.15} parent=5 // pred_check
      _
    $region10: #{dgcnn_encoder.15} parent=5 // pred_check_branch
      %115 = sbr.rel (%p112) target = $region12
    $region11: #{dgcnn_encoder.15} parent=5 // pred_region
      %s116 = ssub.s32 %s8, 1
    $region12: #{dgcnn_encoder.15} parent=5 // pred_fallthru
      _
    %p117 = scmp.lt.s32.totalorder %s8, 2
    // Predicated region
    $region13: #{dgcnn_encoder.15} parent=5 // pred_check
      %p118 = pneg %p117
    $region14: #{dgcnn_encoder.15} parent=5 // pred_check_branch
      %120 = sbr.rel (%p118) target = $region16
    $region15: #{dgcnn_encoder.15} parent=5 // pred_region
      // Predicated region
      $region17: #{dgcnn_encoder.15} parent=15 // pred_check
        %p121 = pneg %p42
      $region18: #{dgcnn_encoder.15} parent=15 // pred_check_branch
        %123 = sbr.rel (%p121) target = $region20
      $region19: #{dgcnn_encoder.15} parent=15 // pred_region
        %s124 = smul.u32 2, %s16
        %p125 = scmp.lt.s32.totalorder %s15, 1
        %s126 = scalar_select %p125, %s15, 1
        %p127 = scmp.lt.s32.totalorder %s124, 1
        %s128 = scalar_select %p127, %s124, 1
        %s129 = smul.addr %s126, 2
        %s130 = sadd.s32 %s128, %s129
        %s131 = smul.addr %s130, 8
        %s132 = scalar_lea.vmem %s0, %s131
        %s133 = smul.u32 2, %s16
      $region20: #{dgcnn_encoder.15} parent=15 // pred_fallthru
        _
      // Predicated region
      $region21: #{dgcnn_encoder.15} parent=15 // pred_check
        %p134 = pneg %p68
      $region22: #{dgcnn_encoder.15} parent=15 // pred_check_branch
        %136 = sbr.rel (%p134) target = $region24
      $region23: #{dgcnn_encoder.15} parent=15 // pred_region
        %p137 = scmp.lt.s32.totalorder %s15, 1
        %s138 = scalar_select %p137, %s15, 1
        %s139 = smul.addr %s138, 2
        %s140 = smul.addr %s139, 8
        %s141 = scalar_lea.vmem %s1, %s140
      $region24: #{dgcnn_encoder.15} parent=15 // pred_fallthru
        _
    $region16: #{dgcnn_encoder.15} parent=5 // pred_fallthru
      _
    %p142 = scmp.le.s32.totalorder 1, %s8
    %p143 = scmp.lt.s32.totalorder %s8, 3
    %p144 = pnand %p142, %p143
    %p145 = pneg %p144
    // Predicated region
    $region25: #{dgcnn_encoder.15} parent=5 // pred_check
      _
    $region26: #{dgcnn_encoder.15} parent=5 // pred_check_branch
      %147 = sbr.rel (%p144) target = $region28
    $region27: #{dgcnn_encoder.15} parent=5 // pred_region
      %s148 = ssub.s32 %s8, 1
      %s149 = smul.u32 2, %s18
      %p150 = scmp.lt.s32.totalorder %s17, 1
      %s151 = scalar_select %p150, %s17, 1
      %p152 = scmp.lt.s32.totalorder %s149, 1
      %s153 = scalar_select %p152, %s149, 1
      %s154 = smul.addr %s151, 2
      %s155 = sadd.s32 %s153, %s154
      %s156 = smul.addr %s155, 8
      %s157 = scalar_lea.vmem %s0, %s156
      %p158 = pneg %p48
      %p159 = pneg %p45
      %p160 = scmp.lt.s32.totalorder %s17, 1
      %s161 = scalar_select %p160, %s17, 1
      %s162 = smul.addr %s161, 2
      %s163 = smul.addr %s162, 8
      %s164 = scalar_lea.vmem %s1, %s163
      %p165 = pneg %p74
      %p166 = pneg %p71
      %p167 = pneg %p102
      %p168 = pneg %p99
      %s169 = smul.u32 2, %s18
      %p170 = scmp.lt.s32.totalorder %s17, 1
      %s171 = scalar_select %p170, %s17, 1
      %p172 = scmp.lt.s32.totalorder %s169, 1
      %s173 = scalar_select %p172, %s169, 1
      %s174 = smul.addr %s171, 2
      %s175 = sadd.s32 %s173, %s174
      %s176 = smul.addr %s175, 8
      %s177 = scalar_lea.vmem %s2, %s176
      %s178 = smul.u32 2, %s18
      %p179 = scmp.lt.s32.totalorder %s17, 1
      %s180 = scalar_select %p179, %s17, 1
      %p181 = scmp.lt.s32.totalorder %s178, 1
      %s182 = scalar_select %p181, %s178, 1
      %s183 = smul.addr %s180, 2
      %s184 = sadd.s32 %s182, %s183
      %s185 = smul.addr %s184, 8
      %s186 = scalar_lea.vmem %s0, %s185
      %s187 = smul.u32 2, %s18
      %p188 = scmp.lt.s32.totalorder %s17, 1
      %s189 = scalar_select %p188, %s17, 1
      %s190 = smul.addr %s189, 2
      %s191 = smul.addr %s190, 8
      %s192 = scalar_lea.vmem %s1, %s191
      %s193 = smul.u32 2, %s18
      %p194 = scmp.lt.s32.totalorder %s17, 1
      %s195 = scalar_select %p194, %s17, 1
      %p196 = scmp.lt.s32.totalorder %s193, 1
      %s197 = scalar_select %p196, %s193, 1
      %s198 = smul.addr %s195, 2
      %s199 = sadd.s32 %s197, %s198
      %s200 = smul.addr %s199, 8
      %s201 = scalar_lea.vmem %s2, %s200
      %s202 = smul.u32 2, %s18
      %v203 = vld [vmem:[%s186] sm:$0xff]
      %v204 = vld [vmem:[%s186 + $0x8] sm:$0xff]
      %v205 = vld [vmem:[%s192] sm:$0xff]
      %v206 = vld [vmem:[%s192 + $0x8] sm:$0xff]
      %v207 = vmul.f32 %v203, %v203
      %v208 = vmul.f32 %v204, %v204
      %vm209 = vcmask 23552
      %v210 = vsel %vm209, %v207, 0.0
      %211 = vadd.xlane.f32.xlu0 %v210
      %v212 = vpop.xlane.xlu0 %211
      %v213 = vsel %vm209, %v208, 0.0
      %214 = vadd.xlane.f32.xlu0 %v213
      %v215 = vpop.xlane.xlu0 %214
      %v216 = vmul.f32 %v205, %v205
      %v217 = vmul.f32 %v206, %v206
      %v218 = vsel %vm209, %v216, 0.0
      %219 = vadd.xlane.f32.xlu0 %v218
      %v220 = vpop.xlane.xlu0 %219
      %v221 = vsel %vm209, %v217, 0.0
      %222 = vadd.xlane.f32.xlu0 %v221
      %v223 = vpop.xlane.xlu0 %222
      %v225 = vsel %vm209, %v203, 0
      %v228 = vsel %vm209, %v204, 0
      %v231 = vsel %vm209, %v205, 0
      %v234 = vsel %vm209, %v206, 0
      %236 = vmatprep.subr.mxu0 0.0
      %237 = vmatpush1.xpose.msra.mxu0 0.0
      %238 = vmatprep.subr.mxu0 0.0
      %239 = vmatpush1.xpose.msra.mxu0 0.0
      %240 = vmatprep.subr.mxu0 0.0
      %241 = vmatpush1.xpose.msra.mxu0 0.0
      %242 = vmatprep.subr.mxu0 0.0
      %243 = vmatpush1.xpose.msra.mxu0 0.0
      %244 = vmatprep.subr.mxu0 0.0
      %245 = vmatpush1.xpose.msra.mxu0 0.0
      %246 = vmatprep.subr.mxu0 0.0
      %247 = vmatpush1.xpose.msra.mxu0 0.0
      %248 = vmatprep.subr.mxu0 0.0
      %249 = vmatpush1.xpose.msra.mxu0 0.0
      %250 = vmatprep.subr.mxu0 0.0
      %251 = vmatpush1.xpose.msra.mxu0 0.0
      %252 = vmatprep.subr.mxu0 0.0
      %253 = vmatpush1.xpose.msra.mxu0 0.0
      %254 = vmatprep.subr.mxu0 0.0
      %255 = vmatpush1.xpose.msra.mxu0 0.0
      %256 = vmatprep.subr.mxu0 0.0
      %257 = vmatpush1.xpose.msra.mxu0 0.0
      %258 = vmatprep.subr.mxu0 0.0
      %259 = vmatpush1.xpose.msra.mxu0 0.0
      %260 = vmatprep.subr.mxu0 0.0
      %261 = vmatpush1.xpose.msra.mxu0 0.0
      %262 = vmatprep.subr.mxu0 0.0
      %263 = vmatpush1.xpose.msra.mxu0 0.0
      %264 = vmatprep.subr.mxu0 0.0
      %265 = vmatpush1.xpose.msra.mxu0 %v234
      %266 = vmatprep.subr.mxu0 0.0
      %267 = vmatpush1.xpose.msra.mxu0 %v231
      %268 = vmatprep.subr.mxu0 0.0
      %269 = vmatpush2.xpose.msra.mxu0 0.0
      %270 = vmatprep.subr.mxu0 0.0
      %271 = vmatpush2.xpose.msra.mxu0 0.0
      %272 = vmatprep.subr.mxu0 0.0
      %273 = vmatpush2.xpose.msra.mxu0 0.0
      %274 = vmatprep.subr.mxu0 0.0
      %275 = vmatpush2.xpose.msra.mxu0 0.0
      %276 = vmatprep.subr.mxu0 0.0
      %277 = vmatpush2.xpose.msra.mxu0 0.0
      %278 = vmatprep.subr.mxu0 0.0
      %279 = vmatpush2.xpose.msra.mxu0 0.0
      %280 = vmatprep.subr.mxu0 0.0
      %281 = vmatpush2.xpose.msra.mxu0 0.0
      %282 = vmatprep.subr.mxu0 0.0
      %283 = vmatpush2.xpose.msra.mxu0 0.0
      %284 = vmatprep.subr.mxu0 0.0
      %285 = vmatpush2.xpose.msra.mxu0 0.0
      %286 = vmatprep.subr.mxu0 0.0
      %287 = vmatpush2.xpose.msra.mxu0 0.0
      %288 = vmatprep.subr.mxu0 0.0
      %289 = vmatpush2.xpose.msra.mxu0 0.0
      %290 = vmatprep.subr.mxu0 0.0
      %291 = vmatpush2.xpose.msra.mxu0 0.0
      %292 = vmatprep.subr.mxu0 0.0
      %293 = vmatpush2.xpose.msra.mxu0 0.0
      %294 = vmatprep.subr.mxu0 0.0
      %295 = vmatpush2.xpose.msra.mxu0 0.0
      %296 = vmatprep.subr.mxu0 0.0
      %297 = vmatpush2.xpose.msra.mxu0 0.0
      %298 = vmatprep.subr.mxu0 0.0
      %299 = vmatpush2.xpose.msra.mxu0 0.0
      %300 = vmatprep.mubr.f32.mxu0 0.0
      %301 = vmatmul.mubr.f32.gmra.mxu0 %v225
      %v302 = vpop.f32.mrf.mxu0
      %v303 = vadd.f32 0.0, %v302
      %v304 = vpop.f32.mrf.mxu0
      %305 = vmatprep.mubr.f32.mxu0 0.0
      %306 = vmatmul.mubr.f32.gmra.mxu0 %v228
      %v307 = vpop.f32.mrf.mxu0
      %v308 = vadd.f32 0.0, %v307
      %v309 = vpop.f32.mrf.mxu0
      %310 = vdwg.mxu0
      %v311 = vmul.f32 %v303, 2.0
      %v312 = vmul.f32 %v308, 2.0
      %v313 = vsub.f32 %v311, %v212
      %v314 = vsub.f32 %v312, %v215
      %v317 = vlaneseq
      %v318 = vand.u32 %v317, 127
      %v319 = vlaneseq
      %v320 = vshrl.u32 %v319, 7
      %v321 = vsub.s32 %v318, %v320
      %v322 = vrot.slane %v220, %v321
      %v323 = vadd.s32 %v318, 4294967288
      %v324 = vlaneseq
      %v325 = vshrl.u32 %v324, 7
      %v326 = vsub.s32 %v323, %v325
      %v327 = vrot.slane %v223, %v326
      %vm328 = vcmask 130112
      %v329 = vsel %vm328, %v327, %v322
      %vm330 = vcmask 1042434
      %v331 = vsel %vm330, %v329, %v329
      %vm332 = vcmask 1043459
      %v333 = vsel %vm332, %v329, %v331
      %vm334 = vcmask 1044484
      %v335 = vsel %vm334, %v329, %v333
      %vm336 = vcmask 1045509
      %v337 = vsel %vm336, %v329, %v335
      %vm338 = vcmask 1046534
      %v339 = vsel %vm338, %v329, %v337
      %vm340 = vcmask 1047559
      %v341 = vsel %vm340, %v329, %v339
      %v343 = vsub.f32 %v313, %v341
      %v344 = vsub.f32 %v314, %v341
      %vm345 = vcmask 130048
      %346 = vst.msk [vmem:[%s201] sm:$0xff] %vm345, %v343
      %347 = vst.msk [vmem:[%s201 + $0x8] sm:$0xff] %vm345, %v344
      %s348 = smul.u32 2, %s18
      %p349 = scmp.lt.s32.totalorder %s17, 1
      %s350 = scalar_select %p349, %s17, 1
      %p351 = scmp.lt.s32.totalorder %s348, 1
      %s352 = scalar_select %p351, %s348, 1
      %s353 = smul.addr %s350, 2
      %s354 = sadd.s32 %s352, %s353
      %s355 = smul.addr %s354, 8
      %s356 = scalar_lea.vmem %s2, %s355
      // Predicated region
      $region29: #{dgcnn_encoder.15} parent=27 // pred_check
        %p357 = pneg %p99
      $region30: #{dgcnn_encoder.15} parent=27 // pred_check_branch
        %359 = sbr.rel (%p357) target = $region32
      $region31: #{dgcnn_encoder.15} parent=27 // pred_region
        %s360 = smul.u32 2, %s18
      $region32: #{dgcnn_encoder.15} parent=27 // pred_fallthru
        _
    $region28: #{dgcnn_encoder.15} parent=5 // pred_fallthru
      _
    %p361 = scmp.le.s32.totalorder 2, %s8
    // Predicated region
    $region33: #{dgcnn_encoder.15} parent=5 // pred_check
      %p362 = pneg %p361
    $region34: #{dgcnn_encoder.15} parent=5 // pred_check_branch
      %364 = sbr.rel (%p362) target = $region36
    $region35: #{dgcnn_encoder.15} parent=5 // pred_region
      %s365 = ssub.s32 %s8, 2
      // Predicated region
      $region37: #{dgcnn_encoder.15} parent=35 // pred_check
        %p366 = pneg %p105
      $region38: #{dgcnn_encoder.15} parent=35 // pred_check_branch
        %368 = sbr.rel (%p366) target = $region40
      $region39: #{dgcnn_encoder.15} parent=35 // pred_region
        %s369 = smul.u32 2, %s20
        %p370 = scmp.lt.s32.totalorder %s19, 1
        %s371 = scalar_select %p370, %s19, 1
        %p372 = scmp.lt.s32.totalorder %s369, 1
        %s373 = scalar_select %p372, %s369, 1
        %s374 = smul.addr %s371, 2
        %s375 = sadd.s32 %s373, %s374
        %s376 = smul.addr %s375, 8
        %s377 = scalar_lea.vmem %s2, %s376
      $region40: #{dgcnn_encoder.15} parent=35 // pred_fallthru
        _
    $region36: #{dgcnn_encoder.15} parent=5 // pred_fallthru
      _
  $region6: #{dgcnn_encoder.15} parent=0 // loop_footer
    %s12 = sadd.s32 1, %s8
  $region7: #{dgcnn_encoder.15} parent=0 // loop_footer_branch
    %7 = sbr.rel target = $region3
  $region8: #{dgcnn_encoder.15} parent=0 // loop_exit
    _

// kernel: sub.5
$region0: #{sub.5}
  #allocation0 [shape = 's32[1]{0}', space=sflag, size = 0x4, scoped, tag = 'scoped memory for sub.5']
  %s0 = inlined_call_operand.vmem [shape: f32[64,64], index: 0, kind: input, shape index: {}]
  %s1 = inlined_call_operand.vmem [shape: f32[64,64], index: 1, kind: input, shape index: {}]
  %s2 = inlined_call_operand.vmem [shape: f32[64,64], index: 2, kind: output, shape index: {}]
  %v3 = vld [vmem:[%s0] sm:$0xff]
  %v4 = vld [vmem:[%s1] sm:$0xff]
  %5 = xla_tuple %v3, %v4
  %6 = xla_tuple %5
  %v7 = vsub.f32 %v3, %v4
  %8 = xla_tuple %v7
  %9 = vst [vmem:[%s2] sm:$0xff] %v7
  %s10 = scalar_lea.vmem %s0, 8
  %v11 = vld [vmem:[%s10] sm:$0xff]
  %s12 = scalar_lea.vmem %s1, 8
  %v13 = vld [vmem:[%s12] sm:$0xff]
  %14 = xla_tuple %v11, %v13
  %15 = xla_tuple %14
  %v16 = vsub.f32 %v11, %v13
  %17 = xla_tuple %v16
  %s18 = scalar_lea.vmem %s2, 8
  %19 = vst [vmem:[%s18] sm:$0xff] %v16
  %s20 = scalar_lea.vmem %s0, 16
  %v21 = vld [vmem:[%s20] sm:$0xff]
  %s22 = scalar_lea.vmem %s1, 16
  %v23 = vld [vmem:[%s22] sm:$0xff]
  %24 = xla_tuple %v21, %v23
  %25 = xla_tuple %24
  %v26 = vsub.f32 %v21, %v23
  %27 = xla_tuple %v26
  %s28 = scalar_lea.vmem %s2, 16
  %29 = vst [vmem:[%s28] sm:$0xff] %v26
  %s30 = scalar_lea.vmem %s0, 24
  %v31 = vld [vmem:[%s30] sm:$0xff]
  %s32 = scalar_lea.vmem %s1, 24
  %v33 = vld [vmem:[%s32] sm:$0xff]
  %34 = xla_tuple %v31, %v33
  %35 = xla_tuple %34
  %v36 = vsub.f32 %v31, %v33
  %37 = xla_tuple %v36
  %s38 = scalar_lea.vmem %s2, 24
  %39 = vst [vmem:[%s38] sm:$0xff] %v36
  %s40 = scalar_lea.vmem %s0, 32
  %v41 = vld [vmem:[%s40] sm:$0xff]
  %s42 = scalar_lea.vmem %s1, 32
  %v43 = vld [vmem:[%s42] sm:$0xff]
  %44 = xla_tuple %v41, %v43
  %45 = xla_tuple %44
  %v46 = vsub.f32 %v41, %v43
  %47 = xla_tuple %v46
  %s48 = scalar_lea.vmem %s2, 32
  %49 = vst [vmem:[%s48] sm:$0xff] %v46
  %s50 = scalar_lea.vmem %s0, 40
  %v51 = vld [vmem:[%s50] sm:$0xff]
  %s52 = scalar_lea.vmem %s1, 40
  %v53 = vld [vmem:[%s52] sm:$0xff]
  %54 = xla_tuple %v51, %v53
  %55 = xla_tuple %54
  %v56 = vsub.f32 %v51, %v53
  %57 = xla_tuple %v56
  %s58 = scalar_lea.vmem %s2, 40
  %59 = vst [vmem:[%s58] sm:$0xff] %v56
  %s60 = scalar_lea.vmem %s0, 48
  %v61 = vld [vmem:[%s60] sm:$0xff]
  %s62 = scalar_lea.vmem %s1, 48
  %v63 = vld [vmem:[%s62] sm:$0xff]
  %64 = xla_tuple %v61, %v63
  %65 = xla_tuple %64
  %v66 = vsub.f32 %v61, %v63
  %67 = xla_tuple %v66
  %s68 = scalar_lea.vmem %s2, 48
  %69 = vst [vmem:[%s68] sm:$0xff] %v66
  %s70 = scalar_lea.vmem %s0, 56
  %v71 = vld [vmem:[%s70] sm:$0xff]
  %s72 = scalar_lea.vmem %s1, 56
  %v73 = vld [vmem:[%s72] sm:$0xff]
  %74 = xla_tuple %v71, %v73
  %75 = xla_tuple %74
  %v76 = vsub.f32 %v71, %v73
  %77 = xla_tuple %v76
  %s78 = scalar_lea.vmem %s2, 56
  %79 = vst [vmem:[%s78] sm:$0xff] %v76

// kernel: dgcnn_encoder.19
$region0: #{dgcnn_encoder.19}
  #allocation0 [shape = 'u32[]', space=smem, size = 0x4, offset = 0x4, fixed_abs, tag = 'smem constant byte address 0x4 - core index']
  #allocation1 [shape = 'u32[144,128]{1,0:T(1,128)}', space=vmem, size = 0x12000, scoped, tag = 'internal scratch']
  %s0 = inlined_call_operand.vmem [shape: f32[32,64], index: 0, kind: input, shape index: {}]
  %s1 = inlined_call_operand.vmem [shape: f32[64,128], index: 1, kind: input, shape index: {}]
  %s2 = inlined_call_operand.vmem [shape: f32[1,128], index: 2, kind: input, shape index: {}]
  %s3 = inlined_call_operand.vmem [shape: f32[1,128], index: 3, kind: input, shape index: {}]
  %s4 = inlined_call_operand.vmem [shape: f32[32,128], index: 4, kind: output, shape index: {}]
  %s5 = sld [smem:[#allocation0]]
  $region26: #{dgcnn_encoder.19} parent=0
    _
  %s7 = ssub.s32 1, %s5
  %s8 = scalar_select 0, %s7, %s5
  // Predicated region
  $region2: #{dgcnn_encoder.19} parent=0 // pred_check
    _
  $region3: #{dgcnn_encoder.19} parent=0 // pred_check_branch
    %10 = sbr.rel (0) target = $region5
  $region4: #{dgcnn_encoder.19} parent=0 // pred_region
    _
  $region5: #{dgcnn_encoder.19} parent=0 // pred_fallthru
    _
  // Predicated region
  $region6: #{dgcnn_encoder.19} parent=0 // pred_check
    _
  $region7: #{dgcnn_encoder.19} parent=0 // pred_check_branch
    %12 = sbr.rel (0) target = $region9
  $region8: #{dgcnn_encoder.19} parent=0 // pred_region
    _
  $region9: #{dgcnn_encoder.19} parent=0 // pred_fallthru
    _
  // Predicated region
  $region10: #{dgcnn_encoder.19} parent=0 // pred_check
    _
  $region11: #{dgcnn_encoder.19} parent=0 // pred_check_branch
    %14 = sbr.rel (0) target = $region13
  $region12: #{dgcnn_encoder.19} parent=0 // pred_region
    _
  $region13: #{dgcnn_encoder.19} parent=0 // pred_fallthru
    _
  // Predicated region
  $region14: #{dgcnn_encoder.19} parent=0 // pred_check
    _
  $region15: #{dgcnn_encoder.19} parent=0 // pred_check_branch
    %16 = sbr.rel (0) target = $region17
  $region16: #{dgcnn_encoder.19} parent=0 // pred_region
    _
  $region17: #{dgcnn_encoder.19} parent=0 // pred_fallthru
    _
  %v17 = vld [vmem:[%s0] sm:$0xff]
  %v18 = vld [vmem:[%s0 + $0x8] sm:$0xff]
  %v19 = vld [vmem:[%s0 + $0x10] sm:$0xff]
  %v20 = vld [vmem:[%s0 + $0x18] sm:$0xff]
  %v21 = vld [vmem:[%s1] sm:$0xff]
  %v22 = vld [vmem:[%s1 + $0x8] sm:$0xff]
  %v23 = vld [vmem:[%s1 + $0x10] sm:$0xff]
  %v24 = vld [vmem:[%s1 + $0x18] sm:$0xff]
  %v25 = vld [vmem:[%s1 + $0x20] sm:$0xff]
  %v26 = vld [vmem:[%s1 + $0x28] sm:$0xff]
  %v27 = vld [vmem:[%s1 + $0x30] sm:$0xff]
  %v28 = vld [vmem:[%s1 + $0x38] sm:$0xff]
  %vm29 = vcmask 523264
  %v31 = vsel %vm29, %v17, 0
  %v34 = vsel %vm29, %v18, 0
  %v37 = vsel %vm29, %v19, 0
  %v40 = vsel %vm29, %v20, 0
  %42 = vmatprep.subr.mxu0 0.0
  %43 = vmatpush1.msra.mxu0 0.0
  %44 = vmatprep.subr.mxu0 0.0
  %45 = vmatpush1.msra.mxu0 0.0
  %46 = vmatprep.subr.mxu0 0.0
  %47 = vmatpush1.msra.mxu0 0.0
  %48 = vmatprep.subr.mxu0 0.0
  %49 = vmatpush1.msra.mxu0 0.0
  %50 = vmatprep.subr.mxu0 0.0
  %51 = vmatpush1.msra.mxu0 0.0
  %52 = vmatprep.subr.mxu0 0.0
  %53 = vmatpush1.msra.mxu0 0.0
  %54 = vmatprep.subr.mxu0 0.0
  %55 = vmatpush1.msra.mxu0 0.0
  %56 = vmatprep.subr.mxu0 0.0
  %57 = vmatpush1.msra.mxu0 0.0
  %58 = vmatprep.subr.mxu0 0.0
  %59 = vmatpush1.msra.mxu0 %v28
  %60 = vmatprep.subr.mxu0 0.0
  %61 = vmatpush1.msra.mxu0 %v27
  %62 = vmatprep.subr.mxu0 0.0
  %63 = vmatpush1.msra.mxu0 %v26
  %64 = vmatprep.subr.mxu0 0.0
  %65 = vmatpush1.msra.mxu0 %v25
  %66 = vmatprep.subr.mxu0 0.0
  %67 = vmatpush1.msra.mxu0 %v24
  %68 = vmatprep.subr.mxu0 0.0
  %69 = vmatpush1.msra.mxu0 %v23
  %70 = vmatprep.subr.mxu0 0.0
  %71 = vmatpush1.msra.mxu0 %v22
  %72 = vmatprep.subr.mxu0 0.0
  %73 = vmatpush1.msra.mxu0 %v21
  %74 = vmatprep.subr.mxu0 0.0
  %75 = vmatpush2.msra.mxu0 0.0
  %76 = vmatprep.subr.mxu0 0.0
  %77 = vmatpush2.msra.mxu0 0.0
  %78 = vmatprep.subr.mxu0 0.0
  %79 = vmatpush2.msra.mxu0 0.0
  %80 = vmatprep.subr.mxu0 0.0
  %81 = vmatpush2.msra.mxu0 0.0
  %82 = vmatprep.subr.mxu0 0.0
  %83 = vmatpush2.msra.mxu0 0.0
  %84 = vmatprep.subr.mxu0 0.0
  %85 = vmatpush2.msra.mxu0 0.0
  %86 = vmatprep.subr.mxu0 0.0
  %87 = vmatpush2.msra.mxu0 0.0
  %88 = vmatprep.subr.mxu0 0.0
  %89 = vmatpush2.msra.mxu0 0.0
  %90 = vmatprep.subr.mxu0 0.0
  %91 = vmatpush2.msra.mxu0 0.0
  %92 = vmatprep.subr.mxu0 0.0
  %93 = vmatpush2.msra.mxu0 0.0
  %94 = vmatprep.subr.mxu0 0.0
  %95 = vmatpush2.msra.mxu0 0.0
  %96 = vmatprep.subr.mxu0 0.0
  %97 = vmatpush2.msra.mxu0 0.0
  %98 = vmatprep.subr.mxu0 0.0
  %99 = vmatpush2.msra.mxu0 0.0
  %100 = vmatprep.subr.mxu0 0.0
  %101 = vmatpush2.msra.mxu0 0.0
  %102 = vmatprep.subr.mxu0 0.0
  %103 = vmatpush2.msra.mxu0 0.0
  %104 = vmatprep.subr.mxu0 0.0
  %105 = vmatpush2.msra.mxu0 0.0
  %106 = vmatprep.mubr.f32.mxu0 0.0
  %107 = vmatmul.mubr.f32.gmra.mxu0 %v31
  %v108 = vpop.f32.mrf.mxu0
  %v109 = vadd.f32 0.0, %v108
  %v110 = vpop.f32.mrf.mxu0
  %111 = vmatprep.mubr.f32.mxu0 0.0
  %112 = vmatmul.mubr.f32.gmra.mxu0 %v34
  %v113 = vpop.f32.mrf.mxu0
  %v114 = vadd.f32 0.0, %v113
  %v115 = vpop.f32.mrf.mxu0
  %116 = vmatprep.mubr.f32.mxu0 0.0
  %117 = vmatmul.mubr.f32.gmra.mxu0 %v37
  %v118 = vpop.f32.mrf.mxu0
  %v119 = vadd.f32 0.0, %v118
  %v120 = vpop.f32.mrf.mxu0
  %121 = vmatprep.mubr.f32.mxu0 0.0
  %122 = vmatmul.mubr.f32.gmra.mxu0 %v40
  %v123 = vpop.f32.mrf.mxu0
  %v124 = vadd.f32 0.0, %v123
  %v125 = vpop.f32.mrf.mxu0
  %126 = vdwg.mxu0
  %v127 = vld [vmem:[%s2] sm:$0x1]
  %v129 = vlaneseq
  %v130 = vshrl.u32 %v129, 7
  %v131 = vsub.s32 0, %v130
  %v132 = vrot.slane %v127, %v131
  %v134 = vmul.f32 %v109, %v132
  %v135 = vmul.f32 %v114, %v132
  %v136 = vmul.f32 %v119, %v132
  %v137 = vmul.f32 %v124, %v132
  %v138 = vld [vmem:[%s3] sm:$0x1]
  %v140 = vlaneseq
  %v141 = vshrl.u32 %v140, 7
  %v142 = vsub.s32 0, %v141
  %v143 = vrot.slane %v138, %v142
  %v145 = vadd.f32 %v134, %v143
  %v146 = vadd.f32 %v135, %v143
  %v147 = vadd.f32 %v136, %v143
  %v148 = vadd.f32 %v137, %v143
  %149 = vst [vmem:[%s4] sm:$0xff] %v145
  %150 = vst [vmem:[%s4 + $0x8] sm:$0xff] %v146
  %151 = vst [vmem:[%s4 + $0x10] sm:$0xff] %v147
  %152 = vst [vmem:[%s4 + $0x18] sm:$0xff] %v148
  // Predicated region
  $region18: #{dgcnn_encoder.19} parent=0 // pred_check
    _
  $region19: #{dgcnn_encoder.19} parent=0 // pred_check_branch
    %154 = sbr.rel (0) target = $region21
  $region20: #{dgcnn_encoder.19} parent=0 // pred_region
    _
  $region21: #{dgcnn_encoder.19} parent=0 // pred_fallthru
    _
  // Predicated region
  $region22: #{dgcnn_encoder.19} parent=0 // pred_check
    _
  $region23: #{dgcnn_encoder.19} parent=0 // pred_check_branch
    %156 = sbr.rel (0) target = $region25
  $region24: #{dgcnn_encoder.19} parent=0 // pred_region
    _
  $region25: #{dgcnn_encoder.19} parent=0 // pred_fallthru
    _

// kernel: dgcnn_encoder.17
$region0: #{dgcnn_encoder.17}
  #allocation0 [shape = 'u32[]', space=smem, size = 0x4, offset = 0x4, fixed_abs, tag = 'smem constant byte address 0x4 - core index']
  #allocation1 [shape = 'u32[144,128]{1,0:T(1,128)}', space=vmem, size = 0x12000, scoped, tag = 'internal scratch']
  %s0 = inlined_call_operand.vmem [shape: f32[32,4,64], index: 0, kind: input, shape index: {}]
  %s1 = inlined_call_operand.vmem [shape: f32[32,64], index: 1, kind: input, shape index: {}]
  %s2 = inlined_call_operand.vmem [shape: f32[32,64], index: 2, kind: output, shape index: {}]
  %s3 = sld [smem:[#allocation0]]
  $region18: #{dgcnn_encoder.17} parent=0
    _
  %s5 = ssub.s32 1, %s3
  %s6 = scalar_select 0, %s5, %s3
  // Predicated region
  $region2: #{dgcnn_encoder.17} parent=0 // pred_check
    _
  $region3: #{dgcnn_encoder.17} parent=0 // pred_check_branch
    %8 = sbr.rel (0) target = $region5
  $region4: #{dgcnn_encoder.17} parent=0 // pred_region
    _
  $region5: #{dgcnn_encoder.17} parent=0 // pred_fallthru
    _
  // Predicated region
  $region6: #{dgcnn_encoder.17} parent=0 // pred_check
    _
  $region7: #{dgcnn_encoder.17} parent=0 // pred_check_branch
    %10 = sbr.rel (0) target = $region9
  $region8: #{dgcnn_encoder.17} parent=0 // pred_region
    _
  $region9: #{dgcnn_encoder.17} parent=0 // pred_fallthru
    _
  %v11 = vld [vmem:[%s0] sm:$0xf]
  %v12 = vld [vmem:[%s0 + $0x4] sm:$0xf]
  %v13 = vld [vmem:[%s0 + $0x8] sm:$0xf]
  %v14 = vld [vmem:[%s0 + $0xc] sm:$0xf]
  %v15 = vld [vmem:[%s0 + $0x10] sm:$0xf]
  %v16 = vld [vmem:[%s0 + $0x14] sm:$0xf]
  %v17 = vld [vmem:[%s0 + $0x18] sm:$0xf]
  %v18 = vld [vmem:[%s0 + $0x1c] sm:$0xf]
  %v19 = vld [vmem:[%s0 + $0x20] sm:$0xf]
  %v20 = vld [vmem:[%s0 + $0x24] sm:$0xf]
  %v21 = vld [vmem:[%s0 + $0x28] sm:$0xf]
  %v22 = vld [vmem:[%s0 + $0x2c] sm:$0xf]
  %v23 = vld [vmem:[%s0 + $0x30] sm:$0xf]
  %v24 = vld [vmem:[%s0 + $0x34] sm:$0xf]
  %v25 = vld [vmem:[%s0 + $0x38] sm:$0xf]
  %v26 = vld [vmem:[%s0 + $0x3c] sm:$0xf]
  %v27 = vld [vmem:[%s0 + $0x40] sm:$0xf]
  %v28 = vld [vmem:[%s0 + $0x44] sm:$0xf]
  %v29 = vld [vmem:[%s0 + $0x48] sm:$0xf]
  %v30 = vld [vmem:[%s0 + $0x4c] sm:$0xf]
  %v31 = vld [vmem:[%s0 + $0x50] sm:$0xf]
  %v32 = vld [vmem:[%s0 + $0x54] sm:$0xf]
  %v33 = vld [vmem:[%s0 + $0x58] sm:$0xf]
  %v34 = vld [vmem:[%s0 + $0x5c] sm:$0xf]
  %v35 = vld [vmem:[%s0 + $0x60] sm:$0xf]
  %v36 = vld [vmem:[%s0 + $0x64] sm:$0xf]
  %v37 = vld [vmem:[%s0 + $0x68] sm:$0xf]
  %v38 = vld [vmem:[%s0 + $0x6c] sm:$0xf]
  %v39 = vld [vmem:[%s0 + $0x70] sm:$0xf]
  %v40 = vld [vmem:[%s0 + $0x74] sm:$0xf]
  %v41 = vld [vmem:[%s0 + $0x78] sm:$0xf]
  %v42 = vld [vmem:[%s0 + $0x7c] sm:$0xf]
  %v43 = vld [vmem:[%s1] sm:$0xff]
  %v44 = vld [vmem:[%s1 + $0x8] sm:$0xff]
  %v45 = vld [vmem:[%s1 + $0x10] sm:$0xff]
  %v46 = vld [vmem:[%s1 + $0x18] sm:$0xff]
  %v51 = vcombine.high %v43, %v43
  %v53 = vunpack.c.l.s4 1966171168
  %v54 = vunpack.c.0.s8 %v53
  %v55 = vlaneseq
  %v56 = vshrl.u32 %v55, 7
  %v57 = vsub.s32 %v54, %v56
  %v58 = vrot.slane %v43, %v57
  %v60 = vunpack.c.l.s4 1966171168
  %v61 = vunpack.c.0.s8 %v60
  %v62 = vlaneseq
  %v63 = vshrl.u32 %v62, 7
  %v64 = vsub.s32 %v61, %v63
  %v65 = vrot.slane %v51, %v64
  %v66 = vcombine.high %v58, %v58
  %v67 = vcombine.high %v65, %v65
  %v69 = vunpack.c.l.s4 1966171168
  %v70 = vunpack.c.0.s8 %v69
  %v71 = vlaneseq
  %v72 = vshrl.u32 %v71, 7
  %v73 = vsub.s32 %v70, %v72
  %v74 = vrot.slane %v58, %v73
  %v76 = vunpack.c.l.s4 1966171168
  %v77 = vunpack.c.0.s8 %v76
  %v78 = vlaneseq
  %v79 = vshrl.u32 %v78, 7
  %v80 = vsub.s32 %v77, %v79
  %v81 = vrot.slane %v65, %v80
  %v83 = vunpack.c.l.s4 1966171168
  %v84 = vunpack.c.0.s8 %v83
  %v85 = vlaneseq
  %v86 = vshrl.u32 %v85, 7
  %v87 = vsub.s32 %v84, %v86
  %v88 = vrot.slane %v66, %v87
  %v90 = vunpack.c.l.s4 1966171168
  %v91 = vunpack.c.0.s8 %v90
  %v92 = vlaneseq
  %v93 = vshrl.u32 %v92, 7
  %v94 = vsub.s32 %v91, %v93
  %v95 = vrot.slane %v67, %v94
  %v96 = vcombine.high %v74, %v74
  %v97 = vcombine.high %v81, %v81
  %v98 = vcombine.high %v88, %v88
  %v99 = vcombine.high %v95, %v95
  %v100 = vcombine.high %v44, %v44
  %v102 = vunpack.c.l.s4 1966171168
  %v103 = vunpack.c.0.s8 %v102
  %v104 = vlaneseq
  %v105 = vshrl.u32 %v104, 7
  %v106 = vsub.s32 %v103, %v105
  %v107 = vrot.slane %v44, %v106
  %v109 = vunpack.c.l.s4 1966171168
  %v110 = vunpack.c.0.s8 %v109
  %v111 = vlaneseq
  %v112 = vshrl.u32 %v111, 7
  %v113 = vsub.s32 %v110, %v112
  %v114 = vrot.slane %v100, %v113
  %v115 = vcombine.high %v107, %v107
  %v116 = vcombine.high %v114, %v114
  %v118 = vunpack.c.l.s4 1966171168
  %v119 = vunpack.c.0.s8 %v118
  %v120 = vlaneseq
  %v121 = vshrl.u32 %v120, 7
  %v122 = vsub.s32 %v119, %v121
  %v123 = vrot.slane %v107, %v122
  %v125 = vunpack.c.l.s4 1966171168
  %v126 = vunpack.c.0.s8 %v125
  %v127 = vlaneseq
  %v128 = vshrl.u32 %v127, 7
  %v129 = vsub.s32 %v126, %v128
  %v130 = vrot.slane %v114, %v129
  %v132 = vunpack.c.l.s4 1966171168
  %v133 = vunpack.c.0.s8 %v132
  %v134 = vlaneseq
  %v135 = vshrl.u32 %v134, 7
  %v136 = vsub.s32 %v133, %v135
  %v137 = vrot.slane %v115, %v136
  %v139 = vunpack.c.l.s4 1966171168
  %v140 = vunpack.c.0.s8 %v139
  %v141 = vlaneseq
  %v142 = vshrl.u32 %v141, 7
  %v143 = vsub.s32 %v140, %v142
  %v144 = vrot.slane %v116, %v143
  %v145 = vcombine.high %v123, %v123
  %v146 = vcombine.high %v130, %v130
  %v147 = vcombine.high %v137, %v137
  %v148 = vcombine.high %v144, %v144
  %v149 = vcombine.high %v45, %v45
  %v151 = vunpack.c.l.s4 1966171168
  %v152 = vunpack.c.0.s8 %v151
  %v153 = vlaneseq
  %v154 = vshrl.u32 %v153, 7
  %v155 = vsub.s32 %v152, %v154
  %v156 = vrot.slane %v45, %v155
  %v158 = vunpack.c.l.s4 1966171168
  %v159 = vunpack.c.0.s8 %v158
  %v160 = vlaneseq
  %v161 = vshrl.u32 %v160, 7
  %v162 = vsub.s32 %v159, %v161
  %v163 = vrot.slane %v149, %v162
  %v164 = vcombine.high %v156, %v156
  %v165 = vcombine.high %v163, %v163
  %v167 = vunpack.c.l.s4 1966171168
  %v168 = vunpack.c.0.s8 %v167
  %v169 = vlaneseq
  %v170 = vshrl.u32 %v169, 7
  %v171 = vsub.s32 %v168, %v170
  %v172 = vrot.slane %v156, %v171
  %v174 = vunpack.c.l.s4 1966171168
  %v175 = vunpack.c.0.s8 %v174
  %v176 = vlaneseq
  %v177 = vshrl.u32 %v176, 7
  %v178 = vsub.s32 %v175, %v177
  %v179 = vrot.slane %v163, %v178
  %v181 = vunpack.c.l.s4 1966171168
  %v182 = vunpack.c.0.s8 %v181
  %v183 = vlaneseq
  %v184 = vshrl.u32 %v183, 7
  %v185 = vsub.s32 %v182, %v184
  %v186 = vrot.slane %v164, %v185
  %v188 = vunpack.c.l.s4 1966171168
  %v189 = vunpack.c.0.s8 %v188
  %v190 = vlaneseq
  %v191 = vshrl.u32 %v190, 7
  %v192 = vsub.s32 %v189, %v191
  %v193 = vrot.slane %v165, %v192
  %v194 = vcombine.high %v172, %v172
  %v195 = vcombine.high %v179, %v179
  %v196 = vcombine.high %v186, %v186
  %v197 = vcombine.high %v193, %v193
  %v198 = vcombine.high %v46, %v46
  %v200 = vunpack.c.l.s4 1966171168
  %v201 = vunpack.c.0.s8 %v200
  %v202 = vlaneseq
  %v203 = vshrl.u32 %v202, 7
  %v204 = vsub.s32 %v201, %v203
  %v205 = vrot.slane %v46, %v204
  %v207 = vunpack.c.l.s4 1966171168
  %v208 = vunpack.c.0.s8 %v207
  %v209 = vlaneseq
  %v210 = vshrl.u32 %v209, 7
  %v211 = vsub.s32 %v208, %v210
  %v212 = vrot.slane %v198, %v211
  %v213 = vcombine.high %v205, %v205
  %v214 = vcombine.high %v212, %v212
  %v216 = vunpack.c.l.s4 1966171168
  %v217 = vunpack.c.0.s8 %v216
  %v218 = vlaneseq
  %v219 = vshrl.u32 %v218, 7
  %v220 = vsub.s32 %v217, %v219
  %v221 = vrot.slane %v205, %v220
  %v223 = vunpack.c.l.s4 1966171168
  %v224 = vunpack.c.0.s8 %v223
  %v225 = vlaneseq
  %v226 = vshrl.u32 %v225, 7
  %v227 = vsub.s32 %v224, %v226
  %v228 = vrot.slane %v212, %v227
  %v230 = vunpack.c.l.s4 1966171168
  %v231 = vunpack.c.0.s8 %v230
  %v232 = vlaneseq
  %v233 = vshrl.u32 %v232, 7
  %v234 = vsub.s32 %v231, %v233
  %v235 = vrot.slane %v213, %v234
  %v237 = vunpack.c.l.s4 1966171168
  %v238 = vunpack.c.0.s8 %v237
  %v239 = vlaneseq
  %v240 = vshrl.u32 %v239, 7
  %v241 = vsub.s32 %v238, %v240
  %v242 = vrot.slane %v214, %v241
  %v243 = vcombine.high %v221, %v221
  %v244 = vcombine.high %v228, %v228
  %v245 = vcombine.high %v235, %v235
  %v246 = vcombine.high %v242, %v242
  %v247 = vlaneseq
  %v248 = vshrl.u32 %v247, 7
  %v249 = vsub.s32 0, %v248
  %v250 = vrot.slane %v74, %v249
  %v251 = vlaneseq
  %v252 = vshrl.u32 %v251, 7
  %v253 = vsub.s32 0, %v252
  %v254 = vrot.slane %v88, %v253
  %v255 = vlaneseq
  %v256 = vshrl.u32 %v255, 7
  %v257 = vsub.s32 0, %v256
  %v258 = vrot.slane %v96, %v257
  %v259 = vlaneseq
  %v260 = vshrl.u32 %v259, 7
  %v261 = vsub.s32 0, %v260
  %v262 = vrot.slane %v98, %v261
  %v263 = vlaneseq
  %v264 = vshrl.u32 %v263, 7
  %v265 = vsub.s32 0, %v264
  %v266 = vrot.slane %v81, %v265
  %v267 = vlaneseq
  %v268 = vshrl.u32 %v267, 7
  %v269 = vsub.s32 0, %v268
  %v270 = vrot.slane %v95, %v269
  %v271 = vlaneseq
  %v272 = vshrl.u32 %v271, 7
  %v273 = vsub.s32 0, %v272
  %v274 = vrot.slane %v97, %v273
  %v275 = vlaneseq
  %v276 = vshrl.u32 %v275, 7
  %v277 = vsub.s32 0, %v276
  %v278 = vrot.slane %v99, %v277
  %v279 = vlaneseq
  %v280 = vshrl.u32 %v279, 7
  %v281 = vsub.s32 0, %v280
  %v282 = vrot.slane %v123, %v281
  %v283 = vlaneseq
  %v284 = vshrl.u32 %v283, 7
  %v285 = vsub.s32 0, %v284
  %v286 = vrot.slane %v137, %v285
  %v287 = vlaneseq
  %v288 = vshrl.u32 %v287, 7
  %v289 = vsub.s32 0, %v288
  %v290 = vrot.slane %v145, %v289
  %v291 = vlaneseq
  %v292 = vshrl.u32 %v291, 7
  %v293 = vsub.s32 0, %v292
  %v294 = vrot.slane %v147, %v293
  %v295 = vlaneseq
  %v296 = vshrl.u32 %v295, 7
  %v297 = vsub.s32 0, %v296
  %v298 = vrot.slane %v130, %v297
  %v299 = vlaneseq
  %v300 = vshrl.u32 %v299, 7
  %v301 = vsub.s32 0, %v300
  %v302 = vrot.slane %v144, %v301
  %v303 = vlaneseq
  %v304 = vshrl.u32 %v303, 7
  %v305 = vsub.s32 0, %v304
  %v306 = vrot.slane %v146, %v305
  %v307 = vlaneseq
  %v308 = vshrl.u32 %v307, 7
  %v309 = vsub.s32 0, %v308
  %v310 = vrot.slane %v148, %v309
  %v311 = vlaneseq
  %v312 = vshrl.u32 %v311, 7
  %v313 = vsub.s32 0, %v312
  %v314 = vrot.slane %v172, %v313
  %v315 = vlaneseq
  %v316 = vshrl.u32 %v315, 7
  %v317 = vsub.s32 0, %v316
  %v318 = vrot.slane %v186, %v317
  %v319 = vlaneseq
  %v320 = vshrl.u32 %v319, 7
  %v321 = vsub.s32 0, %v320
  %v322 = vrot.slane %v194, %v321
  %v323 = vlaneseq
  %v324 = vshrl.u32 %v323, 7
  %v325 = vsub.s32 0, %v324
  %v326 = vrot.slane %v196, %v325
  %v327 = vlaneseq
  %v328 = vshrl.u32 %v327, 7
  %v329 = vsub.s32 0, %v328
  %v330 = vrot.slane %v179, %v329
  %v331 = vlaneseq
  %v332 = vshrl.u32 %v331, 7
  %v333 = vsub.s32 0, %v332
  %v334 = vrot.slane %v193, %v333
  %v335 = vlaneseq
  %v336 = vshrl.u32 %v335, 7
  %v337 = vsub.s32 0, %v336
  %v338 = vrot.slane %v195, %v337
  %v339 = vlaneseq
  %v340 = vshrl.u32 %v339, 7
  %v341 = vsub.s32 0, %v340
  %v342 = vrot.slane %v197, %v341
  %v343 = vlaneseq
  %v344 = vshrl.u32 %v343, 7
  %v345 = vsub.s32 0, %v344
  %v346 = vrot.slane %v221, %v345
  %v347 = vlaneseq
  %v348 = vshrl.u32 %v347, 7
  %v349 = vsub.s32 0, %v348
  %v350 = vrot.slane %v235, %v349
  %v351 = vlaneseq
  %v352 = vshrl.u32 %v351, 7
  %v353 = vsub.s32 0, %v352
  %v354 = vrot.slane %v243, %v353
  %v355 = vlaneseq
  %v356 = vshrl.u32 %v355, 7
  %v357 = vsub.s32 0, %v356
  %v358 = vrot.slane %v245, %v357
  %v359 = vlaneseq
  %v360 = vshrl.u32 %v359, 7
  %v361 = vsub.s32 0, %v360
  %v362 = vrot.slane %v228, %v361
  %v363 = vlaneseq
  %v364 = vshrl.u32 %v363, 7
  %v365 = vsub.s32 0, %v364
  %v366 = vrot.slane %v242, %v365
  %v367 = vlaneseq
  %v368 = vshrl.u32 %v367, 7
  %v369 = vsub.s32 0, %v368
  %v370 = vrot.slane %v244, %v369
  %v371 = vlaneseq
  %v372 = vshrl.u32 %v371, 7
  %v373 = vsub.s32 0, %v372
  %v374 = vrot.slane %v246, %v373
  %v407 = vadd.f32 %v11, %v250
  %v408 = vadd.f32 %v12, %v254
  %v409 = vadd.f32 %v13, %v258
  %v410 = vadd.f32 %v14, %v262
  %v411 = vadd.f32 %v15, %v266
  %v412 = vadd.f32 %v16, %v270
  %v413 = vadd.f32 %v17, %v274
  %v414 = vadd.f32 %v18, %v278
  %v415 = vadd.f32 %v19, %v282
  %v416 = vadd.f32 %v20, %v286
  %v417 = vadd.f32 %v21, %v290
  %v418 = vadd.f32 %v22, %v294
  %v419 = vadd.f32 %v23, %v298
  %v420 = vadd.f32 %v24, %v302
  %v421 = vadd.f32 %v25, %v306
  %v422 = vadd.f32 %v26, %v310
  %v423 = vadd.f32 %v27, %v314
  %v424 = vadd.f32 %v28, %v318
  %v425 = vadd.f32 %v29, %v322
  %v426 = vadd.f32 %v30, %v326
  %v427 = vadd.f32 %v31, %v330
  %v428 = vadd.f32 %v32, %v334
  %v429 = vadd.f32 %v33, %v338
  %v430 = vadd.f32 %v34, %v342
  %v431 = vadd.f32 %v35, %v346
  %v432 = vadd.f32 %v36, %v350
  %v433 = vadd.f32 %v37, %v354
  %v434 = vadd.f32 %v38, %v358
  %v435 = vadd.f32 %v39, %v362
  %v436 = vadd.f32 %v40, %v366
  %v437 = vadd.f32 %v41, %v370
  %v438 = vadd.f32 %v42, %v374
  %vm439 = vcmp.gt.f32.partialorder %v407, 0.0
  %vm440 = vcmp.gt.f32.partialorder %v408, 0.0
  %vm441 = vcmp.gt.f32.partialorder %v409, 0.0
  %vm442 = vcmp.gt.f32.partialorder %v410, 0.0
  %vm443 = vcmp.gt.f32.partialorder %v411, 0.0
  %vm444 = vcmp.gt.f32.partialorder %v412, 0.0
  %vm445 = vcmp.gt.f32.partialorder %v413, 0.0
  %vm446 = vcmp.gt.f32.partialorder %v414, 0.0
  %vm447 = vcmp.gt.f32.partialorder %v415, 0.0
  %vm448 = vcmp.gt.f32.partialorder %v416, 0.0
  %vm449 = vcmp.gt.f32.partialorder %v417, 0.0
  %vm450 = vcmp.gt.f32.partialorder %v418, 0.0
  %vm451 = vcmp.gt.f32.partialorder %v419, 0.0
  %vm452 = vcmp.gt.f32.partialorder %v420, 0.0
  %vm453 = vcmp.gt.f32.partialorder %v421, 0.0
  %vm454 = vcmp.gt.f32.partialorder %v422, 0.0
  %vm455 = vcmp.gt.f32.partialorder %v423, 0.0
  %vm456 = vcmp.gt.f32.partialorder %v424, 0.0
  %vm457 = vcmp.gt.f32.partialorder %v425, 0.0
  %vm458 = vcmp.gt.f32.partialorder %v426, 0.0
  %vm459 = vcmp.gt.f32.partialorder %v427, 0.0
  %vm460 = vcmp.gt.f32.partialorder %v428, 0.0
  %vm461 = vcmp.gt.f32.partialorder %v429, 0.0
  %vm462 = vcmp.gt.f32.partialorder %v430, 0.0
  %vm463 = vcmp.gt.f32.partialorder %v431, 0.0
  %vm464 = vcmp.gt.f32.partialorder %v432, 0.0
  %vm465 = vcmp.gt.f32.partialorder %v433, 0.0
  %vm466 = vcmp.gt.f32.partialorder %v434, 0.0
  %vm467 = vcmp.gt.f32.partialorder %v435, 0.0
  %vm468 = vcmp.gt.f32.partialorder %v436, 0.0
  %vm469 = vcmp.gt.f32.partialorder %v437, 0.0
  %vm470 = vcmp.gt.f32.partialorder %v438, 0.0
  %v471 = vmul.f32 %v407, 0.2
  %v472 = vmul.f32 %v408, 0.2
  %v473 = vmul.f32 %v409, 0.2
  %v474 = vmul.f32 %v410, 0.2
  %v475 = vmul.f32 %v411, 0.2
  %v476 = vmul.f32 %v412, 0.2
  %v477 = vmul.f32 %v413, 0.2
  %v478 = vmul.f32 %v414, 0.2
  %v479 = vmul.f32 %v415, 0.2
  %v480 = vmul.f32 %v416, 0.2
  %v481 = vmul.f32 %v417, 0.2
  %v482 = vmul.f32 %v418, 0.2
  %v483 = vmul.f32 %v419, 0.2
  %v484 = vmul.f32 %v420, 0.2
  %v485 = vmul.f32 %v421, 0.2
  %v486 = vmul.f32 %v422, 0.2
  %v487 = vmul.f32 %v423, 0.2
  %v488 = vmul.f32 %v424, 0.2
  %v489 = vmul.f32 %v425, 0.2
  %v490 = vmul.f32 %v426, 0.2
  %v491 = vmul.f32 %v427, 0.2
  %v492 = vmul.f32 %v428, 0.2
  %v493 = vmul.f32 %v429, 0.2
  %v494 = vmul.f32 %v430, 0.2
  %v495 = vmul.f32 %v431, 0.2
  %v496 = vmul.f32 %v432, 0.2
  %v497 = vmul.f32 %v433, 0.2
  %v498 = vmul.f32 %v434, 0.2
  %v499 = vmul.f32 %v435, 0.2
  %v500 = vmul.f32 %v436, 0.2
  %v501 = vmul.f32 %v437, 0.2
  %v502 = vmul.f32 %v438, 0.2
  %v503 = vsel %vm439, %v407, %v471
  %v504 = vsel %vm440, %v408, %v472
  %v505 = vsel %vm441, %v409, %v473
  %v506 = vsel %vm442, %v410, %v474
  %v507 = vsel %vm443, %v411, %v475
  %v508 = vsel %vm444, %v412, %v476
  %v509 = vsel %vm445, %v413, %v477
  %v510 = vsel %vm446, %v414, %v478
  %v511 = vsel %vm447, %v415, %v479
  %v512 = vsel %vm448, %v416, %v480
  %v513 = vsel %vm449, %v417, %v481
  %v514 = vsel %vm450, %v418, %v482
  %v515 = vsel %vm451, %v419, %v483
  %v516 = vsel %vm452, %v420, %v484
  %v517 = vsel %vm453, %v421, %v485
  %v518 = vsel %vm454, %v422, %v486
  %v519 = vsel %vm455, %v423, %v487
  %v520 = vsel %vm456, %v424, %v488
  %v521 = vsel %vm457, %v425, %v489
  %v522 = vsel %vm458, %v426, %v490
  %v523 = vsel %vm459, %v427, %v491
  %v524 = vsel %vm460, %v428, %v492
  %v525 = vsel %vm461, %v429, %v493
  %v526 = vsel %vm462, %v430, %v494
  %v527 = vsel %vm463, %v431, %v495
  %v528 = vsel %vm464, %v432, %v496
  %v529 = vsel %vm465, %v433, %v497
  %v530 = vsel %vm466, %v434, %v498
  %v531 = vsel %vm467, %v435, %v499
  %v532 = vsel %vm468, %v436, %v500
  %v533 = vsel %vm469, %v437, %v501
  %v534 = vsel %vm470, %v438, %v502
  %vm535 = vcmask 519168
  %v536 = vsel %vm535, %v503, -inf
  %v537 = vrot.slane %v536, 4
  %v538 = vmax.f32 %v536, %v537
  %v539 = vrot.slane %v538, 2
  %v540 = vmax.f32 %v538, %v539
  %v541 = vrot.slane %v540, 1
  %v542 = vmax.f32 %v540, %v541
  %v543 = vsel %vm535, %v504, -inf
  %v544 = vrot.slane %v543, 4
  %v545 = vmax.f32 %v543, %v544
  %v546 = vrot.slane %v545, 2
  %v547 = vmax.f32 %v545, %v546
  %v548 = vrot.slane %v547, 1
  %v549 = vmax.f32 %v547, %v548
  %v550 = vsel %vm535, %v505, -inf
  %v551 = vrot.slane %v550, 4
  %v552 = vmax.f32 %v550, %v551
  %v553 = vrot.slane %v552, 2
  %v554 = vmax.f32 %v552, %v553
  %v555 = vrot.slane %v554, 1
  %v556 = vmax.f32 %v554, %v555
  %v557 = vsel %vm535, %v506, -inf
  %v558 = vrot.slane %v557, 4
  %v559 = vmax.f32 %v557, %v558
  %v560 = vrot.slane %v559, 2
  %v561 = vmax.f32 %v559, %v560
  %v562 = vrot.slane %v561, 1
  %v563 = vmax.f32 %v561, %v562
  %v564 = vsel %vm535, %v507, -inf
  %v565 = vrot.slane %v564, 4
  %v566 = vmax.f32 %v564, %v565
  %v567 = vrot.slane %v566, 2
  %v568 = vmax.f32 %v566, %v567
  %v569 = vrot.slane %v568, 1
  %v570 = vmax.f32 %v568, %v569
  %v571 = vsel %vm535, %v508, -inf
  %v572 = vrot.slane %v571, 4
  %v573 = vmax.f32 %v571, %v572
  %v574 = vrot.slane %v573, 2
  %v575 = vmax.f32 %v573, %v574
  %v576 = vrot.slane %v575, 1
  %v577 = vmax.f32 %v575, %v576
  %v578 = vsel %vm535, %v509, -inf
  %v579 = vrot.slane %v578, 4
  %v580 = vmax.f32 %v578, %v579
  %v581 = vrot.slane %v580, 2
  %v582 = vmax.f32 %v580, %v581
  %v583 = vrot.slane %v582, 1
  %v584 = vmax.f32 %v582, %v583
  %v585 = vsel %vm535, %v510, -inf
  %v586 = vrot.slane %v585, 4
  %v587 = vmax.f32 %v585, %v586
  %v588 = vrot.slane %v587, 2
  %v589 = vmax.f32 %v587, %v588
  %v590 = vrot.slane %v589, 1
  %v591 = vmax.f32 %v589, %v590
  %v592 = vsel %vm535, %v511, -inf
  %v593 = vrot.slane %v592, 4
  %v594 = vmax.f32 %v592, %v593
  %v595 = vrot.slane %v594, 2
  %v596 = vmax.f32 %v594, %v595
  %v597 = vrot.slane %v596, 1
  %v598 = vmax.f32 %v596, %v597
  %v599 = vsel %vm535, %v512, -inf
  %v600 = vrot.slane %v599, 4
  %v601 = vmax.f32 %v599, %v600
  %v602 = vrot.slane %v601, 2
  %v603 = vmax.f32 %v601, %v602
  %v604 = vrot.slane %v603, 1
  %v605 = vmax.f32 %v603, %v604
  %v606 = vsel %vm535, %v513, -inf
  %v607 = vrot.slane %v606, 4
  %v608 = vmax.f32 %v606, %v607
  %v609 = vrot.slane %v608, 2
  %v610 = vmax.f32 %v608, %v609
  %v611 = vrot.slane %v610, 1
  %v612 = vmax.f32 %v610, %v611
  %v613 = vsel %vm535, %v514, -inf
  %v614 = vrot.slane %v613, 4
  %v615 = vmax.f32 %v613, %v614
  %v616 = vrot.slane %v615, 2
  %v617 = vmax.f32 %v615, %v616
  %v618 = vrot.slane %v617, 1
  %v619 = vmax.f32 %v617, %v618
  %v620 = vsel %vm535, %v515, -inf
  %v621 = vrot.slane %v620, 4
  %v622 = vmax.f32 %v620, %v621
  %v623 = vrot.slane %v622, 2
  %v624 = vmax.f32 %v622, %v623
  %v625 = vrot.slane %v624, 1
  %v626 = vmax.f32 %v624, %v625
  %v627 = vsel %vm535, %v516, -inf
  %v628 = vrot.slane %v627, 4
  %v629 = vmax.f32 %v627, %v628
  %v630 = vrot.slane %v629, 2
  %v631 = vmax.f32 %v629, %v630
  %v632 = vrot.slane %v631, 1
  %v633 = vmax.f32 %v631, %v632
  %v634 = vsel %vm535, %v517, -inf
  %v635 = vrot.slane %v634, 4
  %v636 = vmax.f32 %v634, %v635
  %v637 = vrot.slane %v636, 2
  %v638 = vmax.f32 %v636, %v637
  %v639 = vrot.slane %v638, 1
  %v640 = vmax.f32 %v638, %v639
  %v641 = vsel %vm535, %v518, -inf
  %v642 = vrot.slane %v641, 4
  %v643 = vmax.f32 %v641, %v642
  %v644 = vrot.slane %v643, 2
  %v645 = vmax.f32 %v643, %v644
  %v646 = vrot.slane %v645, 1
  %v647 = vmax.f32 %v645, %v646
  %v648 = vsel %vm535, %v519, -inf
  %v649 = vrot.slane %v648, 4
  %v650 = vmax.f32 %v648, %v649
  %v651 = vrot.slane %v650, 2
  %v652 = vmax.f32 %v650, %v651
  %v653 = vrot.slane %v652, 1
  %v654 = vmax.f32 %v652, %v653
  %v655 = vsel %vm535, %v520, -inf
  %v656 = vrot.slane %v655, 4
  %v657 = vmax.f32 %v655, %v656
  %v658 = vrot.slane %v657, 2
  %v659 = vmax.f32 %v657, %v658
  %v660 = vrot.slane %v659, 1
  %v661 = vmax.f32 %v659, %v660
  %v662 = vsel %vm535, %v521, -inf
  %v663 = vrot.slane %v662, 4
  %v664 = vmax.f32 %v662, %v663
  %v665 = vrot.slane %v664, 2
  %v666 = vmax.f32 %v664, %v665
  %v667 = vrot.slane %v666, 1
  %v668 = vmax.f32 %v666, %v667
  %v669 = vsel %vm535, %v522, -inf
  %v670 = vrot.slane %v669, 4
  %v671 = vmax.f32 %v669, %v670
  %v672 = vrot.slane %v671, 2
  %v673 = vmax.f32 %v671, %v672
  %v674 = vrot.slane %v673, 1
  %v675 = vmax.f32 %v673, %v674
  %v676 = vsel %vm535, %v523, -inf
  %v677 = vrot.slane %v676, 4
  %v678 = vmax.f32 %v676, %v677
  %v679 = vrot.slane %v678, 2
  %v680 = vmax.f32 %v678, %v679
  %v681 = vrot.slane %v680, 1
  %v682 = vmax.f32 %v680, %v681
  %v683 = vsel %vm535, %v524, -inf
  %v684 = vrot.slane %v683, 4
  %v685 = vmax.f32 %v683, %v684
  %v686 = vrot.slane %v685, 2
  %v687 = vmax.f32 %v685, %v686
  %v688 = vrot.slane %v687, 1
  %v689 = vmax.f32 %v687, %v688
  %v690 = vsel %vm535, %v525, -inf
  %v691 = vrot.slane %v690, 4
  %v692 = vmax.f32 %v690, %v691
  %v693 = vrot.slane %v692, 2
  %v694 = vmax.f32 %v692, %v693
  %v695 = vrot.slane %v694, 1
  %v696 = vmax.f32 %v694, %v695
  %v697 = vsel %vm535, %v526, -inf
  %v698 = vrot.slane %v697, 4
  %v699 = vmax.f32 %v697, %v698
  %v700 = vrot.slane %v699, 2
  %v701 = vmax.f32 %v699, %v700
  %v702 = vrot.slane %v701, 1
  %v703 = vmax.f32 %v701, %v702
  %v704 = vsel %vm535, %v527, -inf
  %v705 = vrot.slane %v704, 4
  %v706 = vmax.f32 %v704, %v705
  %v707 = vrot.slane %v706, 2
  %v708 = vmax.f32 %v706, %v707
  %v709 = vrot.slane %v708, 1
  %v710 = vmax.f32 %v708, %v709
  %v711 = vsel %vm535, %v528, -inf
  %v712 = vrot.slane %v711, 4
  %v713 = vmax.f32 %v711, %v712
  %v714 = vrot.slane %v713, 2
  %v715 = vmax.f32 %v713, %v714
  %v716 = vrot.slane %v715, 1
  %v717 = vmax.f32 %v715, %v716
  %v718 = vsel %vm535, %v529, -inf
  %v719 = vrot.slane %v718, 4
  %v720 = vmax.f32 %v718, %v719
  %v721 = vrot.slane %v720, 2
  %v722 = vmax.f32 %v720, %v721
  %v723 = vrot.slane %v722, 1
  %v724 = vmax.f32 %v722, %v723
  %v725 = vsel %vm535, %v530, -inf
  %v726 = vrot.slane %v725, 4
  %v727 = vmax.f32 %v725, %v726
  %v728 = vrot.slane %v727, 2
  %v729 = vmax.f32 %v727, %v728
  %v730 = vrot.slane %v729, 1
  %v731 = vmax.f32 %v729, %v730
  %v732 = vsel %vm535, %v531, -inf
  %v733 = vrot.slane %v732, 4
  %v734 = vmax.f32 %v732, %v733
  %v735 = vrot.slane %v734, 2
  %v736 = vmax.f32 %v734, %v735
  %v737 = vrot.slane %v736, 1
  %v738 = vmax.f32 %v736, %v737
  %v739 = vsel %vm535, %v532, -inf
  %v740 = vrot.slane %v739, 4
  %v741 = vmax.f32 %v739, %v740
  %v742 = vrot.slane %v741, 2
  %v743 = vmax.f32 %v741, %v742
  %v744 = vrot.slane %v743, 1
  %v745 = vmax.f32 %v743, %v744
  %v746 = vsel %vm535, %v533, -inf
  %v747 = vrot.slane %v746, 4
  %v748 = vmax.f32 %v746, %v747
  %v749 = vrot.slane %v748, 2
  %v750 = vmax.f32 %v748, %v749
  %v751 = vrot.slane %v750, 1
  %v752 = vmax.f32 %v750, %v751
  %v753 = vsel %vm535, %v534, -inf
  %v754 = vrot.slane %v753, 4
  %v755 = vmax.f32 %v753, %v754
  %v756 = vrot.slane %v755, 2
  %v757 = vmax.f32 %v755, %v756
  %v758 = vrot.slane %v757, 1
  %v759 = vmax.f32 %v757, %v758
  %vm792 = vcmask 1041409
  %v793 = vsel %vm792, %v549, %v542
  %vm794 = vcmask 1042434
  %v795 = vsel %vm794, %v556, %v793
  %vm796 = vcmask 1043459
  %v797 = vsel %vm796, %v563, %v795
  %vm798 = vcmask 1044484
  %v799 = vsel %vm798, %v570, %v797
  %vm800 = vcmask 1045509
  %v801 = vsel %vm800, %v577, %v799
  %vm802 = vcmask 1046534
  %v803 = vsel %vm802, %v584, %v801
  %vm804 = vcmask 1047559
  %v805 = vsel %vm804, %v591, %v803
  %v806 = vsel %vm792, %v605, %v598
  %v807 = vsel %vm794, %v612, %v806
  %v808 = vsel %vm796, %v619, %v807
  %v809 = vsel %vm798, %v626, %v808
  %v810 = vsel %vm800, %v633, %v809
  %v811 = vsel %vm802, %v640, %v810
  %v812 = vsel %vm804, %v647, %v811
  %v813 = vsel %vm792, %v661, %v654
  %v814 = vsel %vm794, %v668, %v813
  %v815 = vsel %vm796, %v675, %v814
  %v816 = vsel %vm798, %v682, %v815
  %v817 = vsel %vm800, %v689, %v816
  %v818 = vsel %vm802, %v696, %v817
  %v819 = vsel %vm804, %v703, %v818
  %v820 = vsel %vm792, %v717, %v710
  %v821 = vsel %vm794, %v724, %v820
  %v822 = vsel %vm796, %v731, %v821
  %v823 = vsel %vm798, %v738, %v822
  %v824 = vsel %vm800, %v745, %v823
  %v825 = vsel %vm802, %v752, %v824
  %v826 = vsel %vm804, %v759, %v825
  %vm831 = vcmask 523264
  %832 = vst.msk [vmem:[%s2] sm:$0xff] %vm831, %v805
  %833 = vst.msk [vmem:[%s2 + $0x8] sm:$0xff] %vm831, %v812
  %834 = vst.msk [vmem:[%s2 + $0x10] sm:$0xff] %vm831, %v819
  %835 = vst.msk [vmem:[%s2 + $0x18] sm:$0xff] %vm831, %v826
  // Predicated region
  $region10: #{dgcnn_encoder.17} parent=0 // pred_check
    _
  $region11: #{dgcnn_encoder.17} parent=0 // pred_check_branch
    %837 = sbr.rel (0) target = $region13
  $region12: #{dgcnn_encoder.17} parent=0 // pred_region
    _
  $region13: #{dgcnn_encoder.17} parent=0 // pred_fallthru
    _
  // Predicated region
  $region14: #{dgcnn_encoder.17} parent=0 // pred_check
    _
  $region15: #{dgcnn_encoder.17} parent=0 // pred_check_branch
    %839 = sbr.rel (0) target = $region17
  $region16: #{dgcnn_encoder.17} parent=0 // pred_region
    _
  $region17: #{dgcnn_encoder.17} parent=0 // pred_fallthru
    _

// kernel: dgcnn_encoder.18
$region0: #{dgcnn_encoder.18}
  #allocation0 [shape = 'u32[]', space=smem, size = 0x4, offset = 0x4, fixed_abs, tag = 'smem constant byte address 0x4 - core index']
  #allocation1 [shape = 'u32[144,128]{1,0:T(1,128)}', space=vmem, size = 0x12000, scoped, tag = 'internal scratch']
  %s0 = inlined_call_operand.vmem [shape: f32[2,16,64], index: 0, kind: input, shape index: {}, may-alias: {0,1}]
  %s1 = inlined_call_operand.vmem [shape: f32[2,16,64], index: 1, kind: input, shape index: {}, may-alias: {0,1}]
  %s2 = inlined_call_operand.vmem [shape: f32[2,16,16], index: 2, kind: output, shape index: {}]
  %s3 = sld [smem:[#allocation0]]
  $region41: #{dgcnn_encoder.18} parent=0
    _
  %s5 = ssub.s32 1, %s3
  %s6 = scalar_select 0, %s5, %s3
  loop: start=0, step=1, limit=4
  $region2: #{dgcnn_encoder.18} parent=0 // loop_pre_header
    _
  $region3: #{dgcnn_encoder.18} parent=0 // loop_header
    %s8 = sphi 0, %s12
    %p9 = scmp.ge.s32.totalorder %s8, 4
    %s15 = sphi 0, %s27
    %s16 = sphi 0, %s23
    %s17 = sphi 0, %s15
    %s18 = sphi 0, %s16
    %s19 = sphi 0, %s17
    %s20 = sphi 0, %s18
    %s32 = sphi 0, %s34
    %s35 = sphi 0, %s32
    %s36 = sphi 0, %s35
    %s52 = sphi 0, %s36
    %s58 = sphi 0, %s60
    %s61 = sphi 0, %s58
    %s62 = sphi 0, %s61
    %s78 = sphi 0, %s62
    %s86 = sphi 0, %s88
    %s89 = sphi 0, %s86
    %s90 = sphi 0, %s89
    %s106 = sphi 0, %s90
  $region4: #{dgcnn_encoder.18} parent=0 // loop_header_branch
    %11 = sbr.rel (%p9) target = $region8
  $region5: #{dgcnn_encoder.18} parent=0 // loop_body
    %s13 = ssub.s32 %s8, 1
    %s14 = ssub.s32 %s8, 2
    %s21 = sadd.s32 1, %s16
    %p22 = scmp.ge.s32.totalorder %s21, 1
    %s23 = scalar_select %p22, 0, %s21
    %s24 = sadd.s32 1, %s15
    %s25 = scalar_select %p22, %s24, %s15
    %p26 = scmp.ge.s32.totalorder %s25, 2
    %s27 = scalar_select %p26, 0, %s25
    %s28 = ssub.s32 %s15, %s27
    %s29 = ssub.s32 %s16, %s23
    %s30 = sor.u32 %s28, %s29
    %p31 = scmp.eq.s32.totalorder %s30, 0
    %s33 = sadd.s32 %s32, 1
    %s34 = scalar_select %p31, %s32, %s33
    %p37 = pneg %p31
    %p38 = scmp.eq.s32.totalorder %s8, 1
    %p39 = por %p37, %p38
    %p40 = scmp.ne.s32.totalorder %s32, %s35
    %p41 = scmp.eq.s32.totalorder %s8, 0
    %p42 = por %p40, %p41
    %p43 = scmp.ne.s32.totalorder %s32, %s35
    %p44 = scmp.eq.s32.totalorder %s13, 1
    %p45 = por %p43, %p44
    %p46 = scmp.ne.s32.totalorder %s35, %s36
    %p47 = scmp.eq.s32.totalorder %s13, 0
    %p48 = por %p46, %p47
    %p49 = scmp.ne.s32.totalorder %s35, %s36
    %p50 = scmp.eq.s32.totalorder %s14, 1
    %p51 = por %p49, %p50
    %p53 = scmp.ne.s32.totalorder %s36, %s52
    %p54 = scmp.eq.s32.totalorder %s14, 0
    %p55 = por %p53, %p54
    %s56 = ssub.s32 %s15, %s27
    %p57 = scmp.eq.s32.totalorder %s56, 0
    %s59 = sadd.s32 %s58, 1
    %s60 = scalar_select %p57, %s58, %s59
    %p63 = pneg %p57
    %p64 = scmp.eq.s32.totalorder %s8, 1
    %p65 = por %p63, %p64
    %p66 = scmp.ne.s32.totalorder %s58, %s61
    %p67 = scmp.eq.s32.totalorder %s8, 0
    %p68 = por %p66, %p67
    %p69 = scmp.ne.s32.totalorder %s58, %s61
    %p70 = scmp.eq.s32.totalorder %s13, 1
    %p71 = por %p69, %p70
    %p72 = scmp.ne.s32.totalorder %s61, %s62
    %p73 = scmp.eq.s32.totalorder %s13, 0
    %p74 = por %p72, %p73
    %p75 = scmp.ne.s32.totalorder %s61, %s62
    %p76 = scmp.eq.s32.totalorder %s14, 1
    %p77 = por %p75, %p76
    %p79 = scmp.ne.s32.totalorder %s62, %s78
    %p80 = scmp.eq.s32.totalorder %s14, 0
    %p81 = por %p79, %p80
    %s82 = ssub.s32 %s15, %s27
    %s83 = ssub.s32 %s16, %s23
    %s84 = sor.u32 %s82, %s83
    %p85 = scmp.eq.s32.totalorder %s84, 0
    %s87 = sadd.s32 %s86, 1
    %s88 = scalar_select %p85, %s86, %s87
    %p91 = pneg %p85
    %p92 = scmp.eq.s32.totalorder %s8, 1
    %p93 = por %p91, %p92
    %p94 = scmp.ne.s32.totalorder %s86, %s89
    %p95 = scmp.eq.s32.totalorder %s8, 0
    %p96 = por %p94, %p95
    %p97 = scmp.ne.s32.totalorder %s86, %s89
    %p98 = scmp.eq.s32.totalorder %s13, 1
    %p99 = por %p97, %p98
    %p100 = scmp.ne.s32.totalorder %s89, %s90
    %p101 = scmp.eq.s32.totalorder %s13, 0
    %p102 = por %p100, %p101
    %p103 = scmp.ne.s32.totalorder %s89, %s90
    %p104 = scmp.eq.s32.totalorder %s14, 1
    %p105 = por %p103, %p104
    %p107 = scmp.ne.s32.totalorder %s90, %s106
    %p108 = scmp.eq.s32.totalorder %s14, 0
    %p109 = por %p107, %p108
    %p110 = scmp.le.s32.totalorder 1, %s8
    %p111 = scmp.lt.s32.totalorder %s8, 3
    %p112 = pnand %p110, %p111
    %p113 = pneg %p112
    // Predicated region
    $region9: #{dgcnn_encoder.18} parent=5 // pred_check
      _
    $region10: #{dgcnn_encoder.18} parent=5 // pred_check_branch
      %115 = sbr.rel (%p112) target = $region12
    $region11: #{dgcnn_encoder.18} parent=5 // pred_region
      %s116 = ssub.s32 %s8, 1
    $region12: #{dgcnn_encoder.18} parent=5 // pred_fallthru
      _
    %p117 = scmp.lt.s32.totalorder %s8, 2
    // Predicated region
    $region13: #{dgcnn_encoder.18} parent=5 // pred_check
      %p118 = pneg %p117
    $region14: #{dgcnn_encoder.18} parent=5 // pred_check_branch
      %120 = sbr.rel (%p118) target = $region16
    $region15: #{dgcnn_encoder.18} parent=5 // pred_region
      // Predicated region
      $region17: #{dgcnn_encoder.18} parent=15 // pred_check
        %p121 = pneg %p42
      $region18: #{dgcnn_encoder.18} parent=15 // pred_check_branch
        %123 = sbr.rel (%p121) target = $region20
      $region19: #{dgcnn_encoder.18} parent=15 // pred_region
        %s124 = smul.u32 2, %s16
        %p125 = scmp.lt.s32.totalorder %s15, 1
        %s126 = scalar_select %p125, %s15, 1
        %p127 = scmp.lt.s32.totalorder %s124, 1
        %s128 = scalar_select %p127, %s124, 1
        %s129 = smul.addr %s126, 2
        %s130 = sadd.s32 %s128, %s129
        %s131 = smul.addr %s130, 8
        %s132 = scalar_lea.vmem %s0, %s131
        %s133 = smul.u32 2, %s16
      $region20: #{dgcnn_encoder.18} parent=15 // pred_fallthru
        _
      // Predicated region
      $region21: #{dgcnn_encoder.18} parent=15 // pred_check
        %p134 = pneg %p68
      $region22: #{dgcnn_encoder.18} parent=15 // pred_check_branch
        %136 = sbr.rel (%p134) target = $region24
      $region23: #{dgcnn_encoder.18} parent=15 // pred_region
        %p137 = scmp.lt.s32.totalorder %s15, 1
        %s138 = scalar_select %p137, %s15, 1
        %s139 = smul.addr %s138, 2
        %s140 = smul.addr %s139, 8
        %s141 = scalar_lea.vmem %s1, %s140
      $region24: #{dgcnn_encoder.18} parent=15 // pred_fallthru
        _
    $region16: #{dgcnn_encoder.18} parent=5 // pred_fallthru
      _
    %p142 = scmp.le.s32.totalorder 1, %s8
    %p143 = scmp.lt.s32.totalorder %s8, 3
    %p144 = pnand %p142, %p143
    %p145 = pneg %p144
    // Predicated region
    $region25: #{dgcnn_encoder.18} parent=5 // pred_check
      _
    $region26: #{dgcnn_encoder.18} parent=5 // pred_check_branch
      %147 = sbr.rel (%p144) target = $region28
    $region27: #{dgcnn_encoder.18} parent=5 // pred_region
      %s148 = ssub.s32 %s8, 1
      %s149 = smul.u32 2, %s18
      %p150 = scmp.lt.s32.totalorder %s17, 1
      %s151 = scalar_select %p150, %s17, 1
      %p152 = scmp.lt.s32.totalorder %s149, 1
      %s153 = scalar_select %p152, %s149, 1
      %s154 = smul.addr %s151, 2
      %s155 = sadd.s32 %s153, %s154
      %s156 = smul.addr %s155, 8
      %s157 = scalar_lea.vmem %s0, %s156
      %p158 = pneg %p48
      %p159 = pneg %p45
      %p160 = scmp.lt.s32.totalorder %s17, 1
      %s161 = scalar_select %p160, %s17, 1
      %s162 = smul.addr %s161, 2
      %s163 = smul.addr %s162, 8
      %s164 = scalar_lea.vmem %s1, %s163
      %p165 = pneg %p74
      %p166 = pneg %p71
      %p167 = pneg %p102
      %p168 = pneg %p99
      %s169 = smul.u32 2, %s18
      %p170 = scmp.lt.s32.totalorder %s17, 1
      %s171 = scalar_select %p170, %s17, 1
      %p172 = scmp.lt.s32.totalorder %s169, 1
      %s173 = scalar_select %p172, %s169, 1
      %s174 = smul.addr %s171, 2
      %s175 = sadd.s32 %s173, %s174
      %s176 = smul.addr %s175, 8
      %s177 = scalar_lea.vmem %s2, %s176
      %s178 = smul.u32 2, %s18
      %p179 = scmp.lt.s32.totalorder %s17, 1
      %s180 = scalar_select %p179, %s17, 1
      %p181 = scmp.lt.s32.totalorder %s178, 1
      %s182 = scalar_select %p181, %s178, 1
      %s183 = smul.addr %s180, 2
      %s184 = sadd.s32 %s182, %s183
      %s185 = smul.addr %s184, 8
      %s186 = scalar_lea.vmem %s0, %s185
      %s187 = smul.u32 2, %s18
      %p188 = scmp.lt.s32.totalorder %s17, 1
      %s189 = scalar_select %p188, %s17, 1
      %s190 = smul.addr %s189, 2
      %s191 = smul.addr %s190, 8
      %s192 = scalar_lea.vmem %s1, %s191
      %s193 = smul.u32 2, %s18
      %p194 = scmp.lt.s32.totalorder %s17, 1
      %s195 = scalar_select %p194, %s17, 1
      %p196 = scmp.lt.s32.totalorder %s193, 1
      %s197 = scalar_select %p196, %s193, 1
      %s198 = smul.addr %s195, 2
      %s199 = sadd.s32 %s197, %s198
      %s200 = smul.addr %s199, 8
      %s201 = scalar_lea.vmem %s2, %s200
      %s202 = smul.u32 2, %s18
      %v203 = vld [vmem:[%s186] sm:$0xff]
      %v204 = vld [vmem:[%s186 + $0x8] sm:$0xff]
      %v205 = vld [vmem:[%s192] sm:$0xff]
      %v206 = vld [vmem:[%s192 + $0x8] sm:$0xff]
      %v207 = vmul.f32 %v203, %v203
      %v208 = vmul.f32 %v204, %v204
      %vm209 = vcmask 523264
      %v210 = vsel %vm209, %v207, 0.0
      %211 = vadd.xlane.f32.xlu0 %v210
      %v212 = vpop.xlane.xlu0 %211
      %v213 = vsel %vm209, %v208, 0.0
      %214 = vadd.xlane.f32.xlu0 %v213
      %v215 = vpop.xlane.xlu0 %214
      %v216 = vmul.f32 %v205, %v205
      %v217 = vmul.f32 %v206, %v206
      %v218 = vsel %vm209, %v216, 0.0
      %219 = vadd.xlane.f32.xlu0 %v218
      %v220 = vpop.xlane.xlu0 %219
      %v221 = vsel %vm209, %v217, 0.0
      %222 = vadd.xlane.f32.xlu0 %v221
      %v223 = vpop.xlane.xlu0 %222
      %v225 = vsel %vm209, %v203, 0
      %v228 = vsel %vm209, %v204, 0
      %v231 = vsel %vm209, %v205, 0
      %v234 = vsel %vm209, %v206, 0
      %236 = vmatprep.subr.mxu0 0.0
      %237 = vmatpush1.xpose.msra.mxu0 0.0
      %238 = vmatprep.subr.mxu0 0.0
      %239 = vmatpush1.xpose.msra.mxu0 0.0
      %240 = vmatprep.subr.mxu0 0.0
      %241 = vmatpush1.xpose.msra.mxu0 0.0
      %242 = vmatprep.subr.mxu0 0.0
      %243 = vmatpush1.xpose.msra.mxu0 0.0
      %244 = vmatprep.subr.mxu0 0.0
      %245 = vmatpush1.xpose.msra.mxu0 0.0
      %246 = vmatprep.subr.mxu0 0.0
      %247 = vmatpush1.xpose.msra.mxu0 0.0
      %248 = vmatprep.subr.mxu0 0.0
      %249 = vmatpush1.xpose.msra.mxu0 0.0
      %250 = vmatprep.subr.mxu0 0.0
      %251 = vmatpush1.xpose.msra.mxu0 0.0
      %252 = vmatprep.subr.mxu0 0.0
      %253 = vmatpush1.xpose.msra.mxu0 0.0
      %254 = vmatprep.subr.mxu0 0.0
      %255 = vmatpush1.xpose.msra.mxu0 0.0
      %256 = vmatprep.subr.mxu0 0.0
      %257 = vmatpush1.xpose.msra.mxu0 0.0
      %258 = vmatprep.subr.mxu0 0.0
      %259 = vmatpush1.xpose.msra.mxu0 0.0
      %260 = vmatprep.subr.mxu0 0.0
      %261 = vmatpush1.xpose.msra.mxu0 0.0
      %262 = vmatprep.subr.mxu0 0.0
      %263 = vmatpush1.xpose.msra.mxu0 0.0
      %264 = vmatprep.subr.mxu0 0.0
      %265 = vmatpush1.xpose.msra.mxu0 %v234
      %266 = vmatprep.subr.mxu0 0.0
      %267 = vmatpush1.xpose.msra.mxu0 %v231
      %268 = vmatprep.subr.mxu0 0.0
      %269 = vmatpush2.xpose.msra.mxu0 0.0
      %270 = vmatprep.subr.mxu0 0.0
      %271 = vmatpush2.xpose.msra.mxu0 0.0
      %272 = vmatprep.subr.mxu0 0.0
      %273 = vmatpush2.xpose.msra.mxu0 0.0
      %274 = vmatprep.subr.mxu0 0.0
      %275 = vmatpush2.xpose.msra.mxu0 0.0
      %276 = vmatprep.subr.mxu0 0.0
      %277 = vmatpush2.xpose.msra.mxu0 0.0
      %278 = vmatprep.subr.mxu0 0.0
      %279 = vmatpush2.xpose.msra.mxu0 0.0
      %280 = vmatprep.subr.mxu0 0.0
      %281 = vmatpush2.xpose.msra.mxu0 0.0
      %282 = vmatprep.subr.mxu0 0.0
      %283 = vmatpush2.xpose.msra.mxu0 0.0
      %284 = vmatprep.subr.mxu0 0.0
      %285 = vmatpush2.xpose.msra.mxu0 0.0
      %286 = vmatprep.subr.mxu0 0.0
      %287 = vmatpush2.xpose.msra.mxu0 0.0
      %288 = vmatprep.subr.mxu0 0.0
      %289 = vmatpush2.xpose.msra.mxu0 0.0
      %290 = vmatprep.subr.mxu0 0.0
      %291 = vmatpush2.xpose.msra.mxu0 0.0
      %292 = vmatprep.subr.mxu0 0.0
      %293 = vmatpush2.xpose.msra.mxu0 0.0
      %294 = vmatprep.subr.mxu0 0.0
      %295 = vmatpush2.xpose.msra.mxu0 0.0
      %296 = vmatprep.subr.mxu0 0.0
      %297 = vmatpush2.xpose.msra.mxu0 0.0
      %298 = vmatprep.subr.mxu0 0.0
      %299 = vmatpush2.xpose.msra.mxu0 0.0
      %300 = vmatprep.mubr.f32.mxu0 0.0
      %301 = vmatmul.mubr.f32.gmra.mxu0 %v225
      %v302 = vpop.f32.mrf.mxu0
      %v303 = vadd.f32 0.0, %v302
      %v304 = vpop.f32.mrf.mxu0
      %305 = vmatprep.mubr.f32.mxu0 0.0
      %306 = vmatmul.mubr.f32.gmra.mxu0 %v228
      %v307 = vpop.f32.mrf.mxu0
      %v308 = vadd.f32 0.0, %v307
      %v309 = vpop.f32.mrf.mxu0
      %310 = vdwg.mxu0
      %v311 = vmul.f32 %v303, 2.0
      %v312 = vmul.f32 %v308, 2.0
      %v313 = vsub.f32 %v311, %v212
      %v314 = vsub.f32 %v312, %v215
      %v317 = vlaneseq
      %v318 = vand.u32 %v317, 127
      %v319 = vlaneseq
      %v320 = vshrl.u32 %v319, 7
      %v321 = vsub.s32 %v318, %v320
      %v322 = vrot.slane %v220, %v321
      %v323 = vadd.s32 %v318, 4294967288
      %v324 = vlaneseq
      %v325 = vshrl.u32 %v324, 7
      %v326 = vsub.s32 %v323, %v325
      %v327 = vrot.slane %v223, %v326
      %vm328 = vcmask 130112
      %v329 = vsel %vm328, %v327, %v322
      %vm330 = vcmask 1042434
      %v331 = vsel %vm330, %v329, %v329
      %vm332 = vcmask 1043459
      %v333 = vsel %vm332, %v329, %v331
      %vm334 = vcmask 1044484
      %v335 = vsel %vm334, %v329, %v333
      %vm336 = vcmask 1045509
      %v337 = vsel %vm336, %v329, %v335
      %vm338 = vcmask 1046534
      %v339 = vsel %vm338, %v329, %v337
      %vm340 = vcmask 1047559
      %v341 = vsel %vm340, %v329, %v339
      %v343 = vsub.f32 %v313, %v341
      %v344 = vsub.f32 %v314, %v341
      %vm345 = vcmask 130048
      %346 = vst.msk [vmem:[%s201] sm:$0xff] %vm345, %v343
      %347 = vst.msk [vmem:[%s201 + $0x8] sm:$0xff] %vm345, %v344
      %s348 = smul.u32 2, %s18
      %p349 = scmp.lt.s32.totalorder %s17, 1
      %s350 = scalar_select %p349, %s17, 1
      %p351 = scmp.lt.s32.totalorder %s348, 1
      %s352 = scalar_select %p351, %s348, 1
      %s353 = smul.addr %s350, 2
      %s354 = sadd.s32 %s352, %s353
      %s355 = smul.addr %s354, 8
      %s356 = scalar_lea.vmem %s2, %s355
      // Predicated region
      $region29: #{dgcnn_encoder.18} parent=27 // pred_check
        %p357 = pneg %p99
      $region30: #{dgcnn_encoder.18} parent=27 // pred_check_branch
        %359 = sbr.rel (%p357) target = $region32
      $region31: #{dgcnn_encoder.18} parent=27 // pred_region
        %s360 = smul.u32 2, %s18
      $region32: #{dgcnn_encoder.18} parent=27 // pred_fallthru
        _
    $region28: #{dgcnn_encoder.18} parent=5 // pred_fallthru
      _
    %p361 = scmp.le.s32.totalorder 2, %s8
    // Predicated region
    $region33: #{dgcnn_encoder.18} parent=5 // pred_check
      %p362 = pneg %p361
    $region34: #{dgcnn_encoder.18} parent=5 // pred_check_branch
      %364 = sbr.rel (%p362) target = $region36
    $region35: #{dgcnn_encoder.18} parent=5 // pred_region
      %s365 = ssub.s32 %s8, 2
      // Predicated region
      $region37: #{dgcnn_encoder.18} parent=35 // pred_check
        %p366 = pneg %p105
      $region38: #{dgcnn_encoder.18} parent=35 // pred_check_branch
        %368 = sbr.rel (%p366) target = $region40
      $region39: #{dgcnn_encoder.18} parent=35 // pred_region
        %s369 = smul.u32 2, %s20
        %p370 = scmp.lt.s32.totalorder %s19, 1
        %s371 = scalar_select %p370, %s19, 1
        %p372 = scmp.lt.s32.totalorder %s369, 1
        %s373 = scalar_select %p372, %s369, 1
        %s374 = smul.addr %s371, 2
        %s375 = sadd.s32 %s373, %s374
        %s376 = smul.addr %s375, 8
        %s377 = scalar_lea.vmem %s2, %s376
      $region40: #{dgcnn_encoder.18} parent=35 // pred_fallthru
        _
    $region36: #{dgcnn_encoder.18} parent=5 // pred_fallthru
      _
  $region6: #{dgcnn_encoder.18} parent=0 // loop_footer
    %s12 = sadd.s32 1, %s8
  $region7: #{dgcnn_encoder.18} parent=0 // loop_footer_branch
    %7 = sbr.rel target = $region3
  $region8: #{dgcnn_encoder.18} parent=0 // loop_exit
    _

// kernel: dgcnn_encoder.22
$region0: #{dgcnn_encoder.22}
  #allocation0 [shape = 'u32[]', space=smem, size = 0x4, offset = 0x4, fixed_abs, tag = 'smem constant byte address 0x4 - core index']
  #allocation1 [shape = 'u32[144,128]{1,0:T(1,128)}', space=vmem, size = 0x12000, scoped, tag = 'internal scratch']
  %s0 = inlined_call_operand.vmem [shape: f32[32,64], index: 0, kind: input, shape index: {}]
  %s1 = inlined_call_operand.vmem [shape: f32[64,256], index: 1, kind: input, shape index: {}]
  %s2 = inlined_call_operand.vmem [shape: f32[1,256], index: 2, kind: input, shape index: {}]
  %s3 = inlined_call_operand.vmem [shape: f32[1,256], index: 3, kind: input, shape index: {}]
  %s4 = inlined_call_operand.vmem [shape: f32[32,256], index: 4, kind: output, shape index: {}]
  %s5 = sld [smem:[#allocation0]]
  $region26: #{dgcnn_encoder.22} parent=0
    _
  %s7 = ssub.s32 1, %s5
  %s8 = scalar_select 0, %s7, %s5
  // Predicated region
  $region2: #{dgcnn_encoder.22} parent=0 // pred_check
    _
  $region3: #{dgcnn_encoder.22} parent=0 // pred_check_branch
    %10 = sbr.rel (0) target = $region5
  $region4: #{dgcnn_encoder.22} parent=0 // pred_region
    _
  $region5: #{dgcnn_encoder.22} parent=0 // pred_fallthru
    _
  // Predicated region
  $region6: #{dgcnn_encoder.22} parent=0 // pred_check
    _
  $region7: #{dgcnn_encoder.22} parent=0 // pred_check_branch
    %12 = sbr.rel (0) target = $region9
  $region8: #{dgcnn_encoder.22} parent=0 // pred_region
    _
  $region9: #{dgcnn_encoder.22} parent=0 // pred_fallthru
    _
  // Predicated region
  $region10: #{dgcnn_encoder.22} parent=0 // pred_check
    _
  $region11: #{dgcnn_encoder.22} parent=0 // pred_check_branch
    %14 = sbr.rel (0) target = $region13
  $region12: #{dgcnn_encoder.22} parent=0 // pred_region
    _
  $region13: #{dgcnn_encoder.22} parent=0 // pred_fallthru
    _
  // Predicated region
  $region14: #{dgcnn_encoder.22} parent=0 // pred_check
    _
  $region15: #{dgcnn_encoder.22} parent=0 // pred_check_branch
    %16 = sbr.rel (0) target = $region17
  $region16: #{dgcnn_encoder.22} parent=0 // pred_region
    _
  $region17: #{dgcnn_encoder.22} parent=0 // pred_fallthru
    _
  %v17 = vld [vmem:[%s0] sm:$0xff]
  %v18 = vld [vmem:[%s0 + $0x8] sm:$0xff]
  %v19 = vld [vmem:[%s0 + $0x10] sm:$0xff]
  %v20 = vld [vmem:[%s0 + $0x18] sm:$0xff]
  %v21 = vld [vmem:[%s1] sm:$0xff]
  %v22 = vld [vmem:[%s1 + $0x8] sm:$0xff]
  %v23 = vld [vmem:[%s1 + $0x10] sm:$0xff]
  %v24 = vld [vmem:[%s1 + $0x18] sm:$0xff]
  %v25 = vld [vmem:[%s1 + $0x20] sm:$0xff]
  %v26 = vld [vmem:[%s1 + $0x28] sm:$0xff]
  %v27 = vld [vmem:[%s1 + $0x30] sm:$0xff]
  %v28 = vld [vmem:[%s1 + $0x38] sm:$0xff]
  %v29 = vld [vmem:[%s1 + $0x40] sm:$0xff]
  %v30 = vld [vmem:[%s1 + $0x48] sm:$0xff]
  %v31 = vld [vmem:[%s1 + $0x50] sm:$0xff]
  %v32 = vld [vmem:[%s1 + $0x58] sm:$0xff]
  %v33 = vld [vmem:[%s1 + $0x60] sm:$0xff]
  %v34 = vld [vmem:[%s1 + $0x68] sm:$0xff]
  %v35 = vld [vmem:[%s1 + $0x70] sm:$0xff]
  %v36 = vld [vmem:[%s1 + $0x78] sm:$0xff]
  %vm37 = vcmask 523264
  %v39 = vsel %vm37, %v17, 0
  %v42 = vsel %vm37, %v18, 0
  %v45 = vsel %vm37, %v19, 0
  %v48 = vsel %vm37, %v20, 0
  %50 = vmatprep.subr.mxu0 0.0
  %51 = vmatpush1.msra.mxu0 0.0
  %52 = vmatprep.subr.mxu0 0.0
  %53 = vmatpush1.msra.mxu0 0.0
  %54 = vmatprep.subr.mxu0 0.0
  %55 = vmatpush1.msra.mxu0 0.0
  %56 = vmatprep.subr.mxu0 0.0
  %57 = vmatpush1.msra.mxu0 0.0
  %58 = vmatprep.subr.mxu0 0.0
  %59 = vmatpush1.msra.mxu0 0.0
  %60 = vmatprep.subr.mxu0 0.0
  %61 = vmatpush1.msra.mxu0 0.0
  %62 = vmatprep.subr.mxu0 0.0
  %63 = vmatpush1.msra.mxu0 0.0
  %64 = vmatprep.subr.mxu0 0.0
  %65 = vmatpush1.msra.mxu0 0.0
  %66 = vmatprep.subr.mxu0 %v36
  %67 = vmatpush1.msra.mxu0 %v35
  %68 = vmatprep.subr.mxu0 %v34
  %69 = vmatpush1.msra.mxu0 %v33
  %70 = vmatprep.subr.mxu0 %v32
  %71 = vmatpush1.msra.mxu0 %v31
  %72 = vmatprep.subr.mxu0 %v30
  %73 = vmatpush1.msra.mxu0 %v29
  %74 = vmatprep.subr.mxu0 %v28
  %75 = vmatpush1.msra.mxu0 %v27
  %76 = vmatprep.subr.mxu0 %v26
  %77 = vmatpush1.msra.mxu0 %v25
  %78 = vmatprep.subr.mxu0 %v24
  %79 = vmatpush1.msra.mxu0 %v23
  %80 = vmatprep.subr.mxu0 %v22
  %81 = vmatpush1.msra.mxu0 %v21
  %82 = vmatprep.subr.mxu0 0.0
  %83 = vmatpush2.msra.mxu0 0.0
  %84 = vmatprep.subr.mxu0 0.0
  %85 = vmatpush2.msra.mxu0 0.0
  %86 = vmatprep.subr.mxu0 0.0
  %87 = vmatpush2.msra.mxu0 0.0
  %88 = vmatprep.subr.mxu0 0.0
  %89 = vmatpush2.msra.mxu0 0.0
  %90 = vmatprep.subr.mxu0 0.0
  %91 = vmatpush2.msra.mxu0 0.0
  %92 = vmatprep.subr.mxu0 0.0
  %93 = vmatpush2.msra.mxu0 0.0
  %94 = vmatprep.subr.mxu0 0.0
  %95 = vmatpush2.msra.mxu0 0.0
  %96 = vmatprep.subr.mxu0 0.0
  %97 = vmatpush2.msra.mxu0 0.0
  %98 = vmatprep.subr.mxu0 0.0
  %99 = vmatpush2.msra.mxu0 0.0
  %100 = vmatprep.subr.mxu0 0.0
  %101 = vmatpush2.msra.mxu0 0.0
  %102 = vmatprep.subr.mxu0 0.0
  %103 = vmatpush2.msra.mxu0 0.0
  %104 = vmatprep.subr.mxu0 0.0
  %105 = vmatpush2.msra.mxu0 0.0
  %106 = vmatprep.subr.mxu0 0.0
  %107 = vmatpush2.msra.mxu0 0.0
  %108 = vmatprep.subr.mxu0 0.0
  %109 = vmatpush2.msra.mxu0 0.0
  %110 = vmatprep.subr.mxu0 0.0
  %111 = vmatpush2.msra.mxu0 0.0
  %112 = vmatprep.subr.mxu0 0.0
  %113 = vmatpush2.msra.mxu0 0.0
  %114 = vmatprep.mubr.f32.mxu0 0.0
  %115 = vmatmul.mubr.f32.gmra.mxu0 %v39
  %v116 = vpop.f32.mrf.mxu0
  %v117 = vadd.f32 0.0, %v116
  %v118 = vpop.f32.mrf.mxu0
  %v119 = vadd.f32 0.0, %v118
  %120 = vmatprep.mubr.f32.mxu0 0.0
  %121 = vmatmul.mubr.f32.gmra.mxu0 %v42
  %v122 = vpop.f32.mrf.mxu0
  %v123 = vadd.f32 0.0, %v122
  %v124 = vpop.f32.mrf.mxu0
  %v125 = vadd.f32 0.0, %v124
  %126 = vmatprep.mubr.f32.mxu0 0.0
  %127 = vmatmul.mubr.f32.gmra.mxu0 %v45
  %v128 = vpop.f32.mrf.mxu0
  %v129 = vadd.f32 0.0, %v128
  %v130 = vpop.f32.mrf.mxu0
  %v131 = vadd.f32 0.0, %v130
  %132 = vmatprep.mubr.f32.mxu0 0.0
  %133 = vmatmul.mubr.f32.gmra.mxu0 %v48
  %v134 = vpop.f32.mrf.mxu0
  %v135 = vadd.f32 0.0, %v134
  %v136 = vpop.f32.mrf.mxu0
  %v137 = vadd.f32 0.0, %v136
  %138 = vdwg.mxu0
  %v139 = vld [vmem:[%s2] sm:$0x3]
  %v141 = vlaneseq
  %v142 = vshrl.u32 %v141, 7
  %v143 = vsub.s32 0, %v142
  %v144 = vrot.slane %v139, %v143
  %v145 = vlaneseq
  %v146 = vshrl.u32 %v145, 7
  %v147 = vsub.s32 1, %v146
  %v148 = vrot.slane %v139, %v147
  %v151 = vmul.f32 %v117, %v144
  %v152 = vmul.f32 %v119, %v148
  %v153 = vmul.f32 %v123, %v144
  %v154 = vmul.f32 %v125, %v148
  %v155 = vmul.f32 %v129, %v144
  %v156 = vmul.f32 %v131, %v148
  %v157 = vmul.f32 %v135, %v144
  %v158 = vmul.f32 %v137, %v148
  %v159 = vld [vmem:[%s3] sm:$0x3]
  %v161 = vlaneseq
  %v162 = vshrl.u32 %v161, 7
  %v163 = vsub.s32 0, %v162
  %v164 = vrot.slane %v159, %v163
  %v165 = vlaneseq
  %v166 = vshrl.u32 %v165, 7
  %v167 = vsub.s32 1, %v166
  %v168 = vrot.slane %v159, %v167
  %v171 = vadd.f32 %v151, %v164
  %v172 = vadd.f32 %v152, %v168
  %v173 = vadd.f32 %v153, %v164
  %v174 = vadd.f32 %v154, %v168
  %v175 = vadd.f32 %v155, %v164
  %v176 = vadd.f32 %v156, %v168
  %v177 = vadd.f32 %v157, %v164
  %v178 = vadd.f32 %v158, %v168
  %179 = vst [vmem:[%s4] sm:$0xff] %v171
  %180 = vst [vmem:[%s4 + $0x8] sm:$0xff] %v172
  %181 = vst [vmem:[%s4 + $0x10] sm:$0xff] %v173
  %182 = vst [vmem:[%s4 + $0x18] sm:$0xff] %v174
  %183 = vst [vmem:[%s4 + $0x20] sm:$0xff] %v175
  %184 = vst [vmem:[%s4 + $0x28] sm:$0xff] %v176
  %185 = vst [vmem:[%s4 + $0x30] sm:$0xff] %v177
  %186 = vst [vmem:[%s4 + $0x38] sm:$0xff] %v178
  // Predicated region
  $region18: #{dgcnn_encoder.22} parent=0 // pred_check
    _
  $region19: #{dgcnn_encoder.22} parent=0 // pred_check_branch
    %188 = sbr.rel (0) target = $region21
  $region20: #{dgcnn_encoder.22} parent=0 // pred_region
    _
  $region21: #{dgcnn_encoder.22} parent=0 // pred_fallthru
    _
  // Predicated region
  $region22: #{dgcnn_encoder.22} parent=0 // pred_check
    _
  $region23: #{dgcnn_encoder.22} parent=0 // pred_check_branch
    %190 = sbr.rel (0) target = $region25
  $region24: #{dgcnn_encoder.22} parent=0 // pred_region
    _
  $region25: #{dgcnn_encoder.22} parent=0 // pred_fallthru
    _

// kernel: dgcnn_encoder.23
$region0: #{dgcnn_encoder.23}
  #allocation0 [shape = 'u32[]', space=smem, size = 0x4, offset = 0x4, fixed_abs, tag = 'smem constant byte address 0x4 - core index']
  #allocation1 [shape = 'u32[144,128]{1,0:T(1,128)}', space=vmem, size = 0x12000, scoped, tag = 'internal scratch']
  %s0 = inlined_call_operand.vmem [shape: f32[32,4,128], index: 0, kind: input, shape index: {}]
  %s1 = inlined_call_operand.vmem [shape: f32[32,128], index: 1, kind: input, shape index: {}]
  %s2 = inlined_call_operand.vmem [shape: f32[32,128], index: 2, kind: output, shape index: {}]
  %s3 = sld [smem:[#allocation0]]
  $region18: #{dgcnn_encoder.23} parent=0
    _
  %s5 = ssub.s32 1, %s3
  %s6 = scalar_select 0, %s5, %s3
  // Predicated region
  $region2: #{dgcnn_encoder.23} parent=0 // pred_check
    _
  $region3: #{dgcnn_encoder.23} parent=0 // pred_check_branch
    %8 = sbr.rel (0) target = $region5
  $region4: #{dgcnn_encoder.23} parent=0 // pred_region
    _
  $region5: #{dgcnn_encoder.23} parent=0 // pred_fallthru
    _
  // Predicated region
  $region6: #{dgcnn_encoder.23} parent=0 // pred_check
    _
  $region7: #{dgcnn_encoder.23} parent=0 // pred_check_branch
    %10 = sbr.rel (0) target = $region9
  $region8: #{dgcnn_encoder.23} parent=0 // pred_region
    _
  $region9: #{dgcnn_encoder.23} parent=0 // pred_fallthru
    _
  %v11 = vld [vmem:[%s0] sm:$0xf]
  %v12 = vld [vmem:[%s0 + $0x4] sm:$0xf]
  %v13 = vld [vmem:[%s0 + $0x8] sm:$0xf]
  %v14 = vld [vmem:[%s0 + $0xc] sm:$0xf]
  %v15 = vld [vmem:[%s0 + $0x10] sm:$0xf]
  %v16 = vld [vmem:[%s0 + $0x14] sm:$0xf]
  %v17 = vld [vmem:[%s0 + $0x18] sm:$0xf]
  %v18 = vld [vmem:[%s0 + $0x1c] sm:$0xf]
  %v19 = vld [vmem:[%s0 + $0x20] sm:$0xf]
  %v20 = vld [vmem:[%s0 + $0x24] sm:$0xf]
  %v21 = vld [vmem:[%s0 + $0x28] sm:$0xf]
  %v22 = vld [vmem:[%s0 + $0x2c] sm:$0xf]
  %v23 = vld [vmem:[%s0 + $0x30] sm:$0xf]
  %v24 = vld [vmem:[%s0 + $0x34] sm:$0xf]
  %v25 = vld [vmem:[%s0 + $0x38] sm:$0xf]
  %v26 = vld [vmem:[%s0 + $0x3c] sm:$0xf]
  %v27 = vld [vmem:[%s0 + $0x40] sm:$0xf]
  %v28 = vld [vmem:[%s0 + $0x44] sm:$0xf]
  %v29 = vld [vmem:[%s0 + $0x48] sm:$0xf]
  %v30 = vld [vmem:[%s0 + $0x4c] sm:$0xf]
  %v31 = vld [vmem:[%s0 + $0x50] sm:$0xf]
  %v32 = vld [vmem:[%s0 + $0x54] sm:$0xf]
  %v33 = vld [vmem:[%s0 + $0x58] sm:$0xf]
  %v34 = vld [vmem:[%s0 + $0x5c] sm:$0xf]
  %v35 = vld [vmem:[%s0 + $0x60] sm:$0xf]
  %v36 = vld [vmem:[%s0 + $0x64] sm:$0xf]
  %v37 = vld [vmem:[%s0 + $0x68] sm:$0xf]
  %v38 = vld [vmem:[%s0 + $0x6c] sm:$0xf]
  %v39 = vld [vmem:[%s0 + $0x70] sm:$0xf]
  %v40 = vld [vmem:[%s0 + $0x74] sm:$0xf]
  %v41 = vld [vmem:[%s0 + $0x78] sm:$0xf]
  %v42 = vld [vmem:[%s0 + $0x7c] sm:$0xf]
  %v43 = vld [vmem:[%s1] sm:$0xff]
  %v44 = vld [vmem:[%s1 + $0x8] sm:$0xff]
  %v45 = vld [vmem:[%s1 + $0x10] sm:$0xff]
  %v46 = vld [vmem:[%s1 + $0x18] sm:$0xff]
  %v51 = vcombine.high %v43, %v43
  %v53 = vunpack.c.l.s4 1966171168
  %v54 = vunpack.c.0.s8 %v53
  %v55 = vlaneseq
  %v56 = vshrl.u32 %v55, 7
  %v57 = vsub.s32 %v54, %v56
  %v58 = vrot.slane %v43, %v57
  %v60 = vunpack.c.l.s4 1966171168
  %v61 = vunpack.c.0.s8 %v60
  %v62 = vlaneseq
  %v63 = vshrl.u32 %v62, 7
  %v64 = vsub.s32 %v61, %v63
  %v65 = vrot.slane %v51, %v64
  %v66 = vcombine.high %v58, %v58
  %v67 = vcombine.high %v65, %v65
  %v69 = vunpack.c.l.s4 1966171168
  %v70 = vunpack.c.0.s8 %v69
  %v71 = vlaneseq
  %v72 = vshrl.u32 %v71, 7
  %v73 = vsub.s32 %v70, %v72
  %v74 = vrot.slane %v58, %v73
  %v76 = vunpack.c.l.s4 1966171168
  %v77 = vunpack.c.0.s8 %v76
  %v78 = vlaneseq
  %v79 = vshrl.u32 %v78, 7
  %v80 = vsub.s32 %v77, %v79
  %v81 = vrot.slane %v65, %v80
  %v83 = vunpack.c.l.s4 1966171168
  %v84 = vunpack.c.0.s8 %v83
  %v85 = vlaneseq
  %v86 = vshrl.u32 %v85, 7
  %v87 = vsub.s32 %v84, %v86
  %v88 = vrot.slane %v66, %v87
  %v90 = vunpack.c.l.s4 1966171168
  %v91 = vunpack.c.0.s8 %v90
  %v92 = vlaneseq
  %v93 = vshrl.u32 %v92, 7
  %v94 = vsub.s32 %v91, %v93
  %v95 = vrot.slane %v67, %v94
  %v96 = vcombine.high %v74, %v74
  %v97 = vcombine.high %v81, %v81
  %v98 = vcombine.high %v88, %v88
  %v99 = vcombine.high %v95, %v95
  %v100 = vcombine.high %v44, %v44
  %v102 = vunpack.c.l.s4 1966171168
  %v103 = vunpack.c.0.s8 %v102
  %v104 = vlaneseq
  %v105 = vshrl.u32 %v104, 7
  %v106 = vsub.s32 %v103, %v105
  %v107 = vrot.slane %v44, %v106
  %v109 = vunpack.c.l.s4 1966171168
  %v110 = vunpack.c.0.s8 %v109
  %v111 = vlaneseq
  %v112 = vshrl.u32 %v111, 7
  %v113 = vsub.s32 %v110, %v112
  %v114 = vrot.slane %v100, %v113
  %v115 = vcombine.high %v107, %v107
  %v116 = vcombine.high %v114, %v114
  %v118 = vunpack.c.l.s4 1966171168
  %v119 = vunpack.c.0.s8 %v118
  %v120 = vlaneseq
  %v121 = vshrl.u32 %v120, 7
  %v122 = vsub.s32 %v119, %v121
  %v123 = vrot.slane %v107, %v122
  %v125 = vunpack.c.l.s4 1966171168
  %v126 = vunpack.c.0.s8 %v125
  %v127 = vlaneseq
  %v128 = vshrl.u32 %v127, 7
  %v129 = vsub.s32 %v126, %v128
  %v130 = vrot.slane %v114, %v129
  %v132 = vunpack.c.l.s4 1966171168
  %v133 = vunpack.c.0.s8 %v132
  %v134 = vlaneseq
  %v135 = vshrl.u32 %v134, 7
  %v136 = vsub.s32 %v133, %v135
  %v137 = vrot.slane %v115, %v136
  %v139 = vunpack.c.l.s4 1966171168
  %v140 = vunpack.c.0.s8 %v139
  %v141 = vlaneseq
  %v142 = vshrl.u32 %v141, 7
  %v143 = vsub.s32 %v140, %v142
  %v144 = vrot.slane %v116, %v143
  %v145 = vcombine.high %v123, %v123
  %v146 = vcombine.high %v130, %v130
  %v147 = vcombine.high %v137, %v137
  %v148 = vcombine.high %v144, %v144
  %v149 = vcombine.high %v45, %v45
  %v151 = vunpack.c.l.s4 1966171168
  %v152 = vunpack.c.0.s8 %v151
  %v153 = vlaneseq
  %v154 = vshrl.u32 %v153, 7
  %v155 = vsub.s32 %v152, %v154
  %v156 = vrot.slane %v45, %v155
  %v158 = vunpack.c.l.s4 1966171168
  %v159 = vunpack.c.0.s8 %v158
  %v160 = vlaneseq
  %v161 = vshrl.u32 %v160, 7
  %v162 = vsub.s32 %v159, %v161
  %v163 = vrot.slane %v149, %v162
  %v164 = vcombine.high %v156, %v156
  %v165 = vcombine.high %v163, %v163
  %v167 = vunpack.c.l.s4 1966171168
  %v168 = vunpack.c.0.s8 %v167
  %v169 = vlaneseq
  %v170 = vshrl.u32 %v169, 7
  %v171 = vsub.s32 %v168, %v170
  %v172 = vrot.slane %v156, %v171
  %v174 = vunpack.c.l.s4 1966171168
  %v175 = vunpack.c.0.s8 %v174
  %v176 = vlaneseq
  %v177 = vshrl.u32 %v176, 7
  %v178 = vsub.s32 %v175, %v177
  %v179 = vrot.slane %v163, %v178
  %v181 = vunpack.c.l.s4 1966171168
  %v182 = vunpack.c.0.s8 %v181
  %v183 = vlaneseq
  %v184 = vshrl.u32 %v183, 7
  %v185 = vsub.s32 %v182, %v184
  %v186 = vrot.slane %v164, %v185
  %v188 = vunpack.c.l.s4 1966171168
  %v189 = vunpack.c.0.s8 %v188
  %v190 = vlaneseq
  %v191 = vshrl.u32 %v190, 7
  %v192 = vsub.s32 %v189, %v191
  %v193 = vrot.slane %v165, %v192
  %v194 = vcombine.high %v172, %v172
  %v195 = vcombine.high %v179, %v179
  %v196 = vcombine.high %v186, %v186
  %v197 = vcombine.high %v193, %v193
  %v198 = vcombine.high %v46, %v46
  %v200 = vunpack.c.l.s4 1966171168
  %v201 = vunpack.c.0.s8 %v200
  %v202 = vlaneseq
  %v203 = vshrl.u32 %v202, 7
  %v204 = vsub.s32 %v201, %v203
  %v205 = vrot.slane %v46, %v204
  %v207 = vunpack.c.l.s4 1966171168
  %v208 = vunpack.c.0.s8 %v207
  %v209 = vlaneseq
  %v210 = vshrl.u32 %v209, 7
  %v211 = vsub.s32 %v208, %v210
  %v212 = vrot.slane %v198, %v211
  %v213 = vcombine.high %v205, %v205
  %v214 = vcombine.high %v212, %v212
  %v216 = vunpack.c.l.s4 1966171168
  %v217 = vunpack.c.0.s8 %v216
  %v218 = vlaneseq
  %v219 = vshrl.u32 %v218, 7
  %v220 = vsub.s32 %v217, %v219
  %v221 = vrot.slane %v205, %v220
  %v223 = vunpack.c.l.s4 1966171168
  %v224 = vunpack.c.0.s8 %v223
  %v225 = vlaneseq
  %v226 = vshrl.u32 %v225, 7
  %v227 = vsub.s32 %v224, %v226
  %v228 = vrot.slane %v212, %v227
  %v230 = vunpack.c.l.s4 1966171168
  %v231 = vunpack.c.0.s8 %v230
  %v232 = vlaneseq
  %v233 = vshrl.u32 %v232, 7
  %v234 = vsub.s32 %v231, %v233
  %v235 = vrot.slane %v213, %v234
  %v237 = vunpack.c.l.s4 1966171168
  %v238 = vunpack.c.0.s8 %v237
  %v239 = vlaneseq
  %v240 = vshrl.u32 %v239, 7
  %v241 = vsub.s32 %v238, %v240
  %v242 = vrot.slane %v214, %v241
  %v243 = vcombine.high %v221, %v221
  %v244 = vcombine.high %v228, %v228
  %v245 = vcombine.high %v235, %v235
  %v246 = vcombine.high %v242, %v242
  %v247 = vlaneseq
  %v248 = vshrl.u32 %v247, 7
  %v249 = vsub.s32 0, %v248
  %v250 = vrot.slane %v74, %v249
  %v251 = vlaneseq
  %v252 = vshrl.u32 %v251, 7
  %v253 = vsub.s32 0, %v252
  %v254 = vrot.slane %v88, %v253
  %v255 = vlaneseq
  %v256 = vshrl.u32 %v255, 7
  %v257 = vsub.s32 0, %v256
  %v258 = vrot.slane %v96, %v257
  %v259 = vlaneseq
  %v260 = vshrl.u32 %v259, 7
  %v261 = vsub.s32 0, %v260
  %v262 = vrot.slane %v98, %v261
  %v263 = vlaneseq
  %v264 = vshrl.u32 %v263, 7
  %v265 = vsub.s32 0, %v264
  %v266 = vrot.slane %v81, %v265
  %v267 = vlaneseq
  %v268 = vshrl.u32 %v267, 7
  %v269 = vsub.s32 0, %v268
  %v270 = vrot.slane %v95, %v269
  %v271 = vlaneseq
  %v272 = vshrl.u32 %v271, 7
  %v273 = vsub.s32 0, %v272
  %v274 = vrot.slane %v97, %v273
  %v275 = vlaneseq
  %v276 = vshrl.u32 %v275, 7
  %v277 = vsub.s32 0, %v276
  %v278 = vrot.slane %v99, %v277
  %v279 = vlaneseq
  %v280 = vshrl.u32 %v279, 7
  %v281 = vsub.s32 0, %v280
  %v282 = vrot.slane %v123, %v281
  %v283 = vlaneseq
  %v284 = vshrl.u32 %v283, 7
  %v285 = vsub.s32 0, %v284
  %v286 = vrot.slane %v137, %v285
  %v287 = vlaneseq
  %v288 = vshrl.u32 %v287, 7
  %v289 = vsub.s32 0, %v288
  %v290 = vrot.slane %v145, %v289
  %v291 = vlaneseq
  %v292 = vshrl.u32 %v291, 7
  %v293 = vsub.s32 0, %v292
  %v294 = vrot.slane %v147, %v293
  %v295 = vlaneseq
  %v296 = vshrl.u32 %v295, 7
  %v297 = vsub.s32 0, %v296
  %v298 = vrot.slane %v130, %v297
  %v299 = vlaneseq
  %v300 = vshrl.u32 %v299, 7
  %v301 = vsub.s32 0, %v300
  %v302 = vrot.slane %v144, %v301
  %v303 = vlaneseq
  %v304 = vshrl.u32 %v303, 7
  %v305 = vsub.s32 0, %v304
  %v306 = vrot.slane %v146, %v305
  %v307 = vlaneseq
  %v308 = vshrl.u32 %v307, 7
  %v309 = vsub.s32 0, %v308
  %v310 = vrot.slane %v148, %v309
  %v311 = vlaneseq
  %v312 = vshrl.u32 %v311, 7
  %v313 = vsub.s32 0, %v312
  %v314 = vrot.slane %v172, %v313
  %v315 = vlaneseq
  %v316 = vshrl.u32 %v315, 7
  %v317 = vsub.s32 0, %v316
  %v318 = vrot.slane %v186, %v317
  %v319 = vlaneseq
  %v320 = vshrl.u32 %v319, 7
  %v321 = vsub.s32 0, %v320
  %v322 = vrot.slane %v194, %v321
  %v323 = vlaneseq
  %v324 = vshrl.u32 %v323, 7
  %v325 = vsub.s32 0, %v324
  %v326 = vrot.slane %v196, %v325
  %v327 = vlaneseq
  %v328 = vshrl.u32 %v327, 7
  %v329 = vsub.s32 0, %v328
  %v330 = vrot.slane %v179, %v329
  %v331 = vlaneseq
  %v332 = vshrl.u32 %v331, 7
  %v333 = vsub.s32 0, %v332
  %v334 = vrot.slane %v193, %v333
  %v335 = vlaneseq
  %v336 = vshrl.u32 %v335, 7
  %v337 = vsub.s32 0, %v336
  %v338 = vrot.slane %v195, %v337
  %v339 = vlaneseq
  %v340 = vshrl.u32 %v339, 7
  %v341 = vsub.s32 0, %v340
  %v342 = vrot.slane %v197, %v341
  %v343 = vlaneseq
  %v344 = vshrl.u32 %v343, 7
  %v345 = vsub.s32 0, %v344
  %v346 = vrot.slane %v221, %v345
  %v347 = vlaneseq
  %v348 = vshrl.u32 %v347, 7
  %v349 = vsub.s32 0, %v348
  %v350 = vrot.slane %v235, %v349
  %v351 = vlaneseq
  %v352 = vshrl.u32 %v351, 7
  %v353 = vsub.s32 0, %v352
  %v354 = vrot.slane %v243, %v353
  %v355 = vlaneseq
  %v356 = vshrl.u32 %v355, 7
  %v357 = vsub.s32 0, %v356
  %v358 = vrot.slane %v245, %v357
  %v359 = vlaneseq
  %v360 = vshrl.u32 %v359, 7
  %v361 = vsub.s32 0, %v360
  %v362 = vrot.slane %v228, %v361
  %v363 = vlaneseq
  %v364 = vshrl.u32 %v363, 7
  %v365 = vsub.s32 0, %v364
  %v366 = vrot.slane %v242, %v365
  %v367 = vlaneseq
  %v368 = vshrl.u32 %v367, 7
  %v369 = vsub.s32 0, %v368
  %v370 = vrot.slane %v244, %v369
  %v371 = vlaneseq
  %v372 = vshrl.u32 %v371, 7
  %v373 = vsub.s32 0, %v372
  %v374 = vrot.slane %v246, %v373
  %v407 = vadd.f32 %v11, %v250
  %v408 = vadd.f32 %v12, %v254
  %v409 = vadd.f32 %v13, %v258
  %v410 = vadd.f32 %v14, %v262
  %v411 = vadd.f32 %v15, %v266
  %v412 = vadd.f32 %v16, %v270
  %v413 = vadd.f32 %v17, %v274
  %v414 = vadd.f32 %v18, %v278
  %v415 = vadd.f32 %v19, %v282
  %v416 = vadd.f32 %v20, %v286
  %v417 = vadd.f32 %v21, %v290
  %v418 = vadd.f32 %v22, %v294
  %v419 = vadd.f32 %v23, %v298
  %v420 = vadd.f32 %v24, %v302
  %v421 = vadd.f32 %v25, %v306
  %v422 = vadd.f32 %v26, %v310
  %v423 = vadd.f32 %v27, %v314
  %v424 = vadd.f32 %v28, %v318
  %v425 = vadd.f32 %v29, %v322
  %v426 = vadd.f32 %v30, %v326
  %v427 = vadd.f32 %v31, %v330
  %v428 = vadd.f32 %v32, %v334
  %v429 = vadd.f32 %v33, %v338
  %v430 = vadd.f32 %v34, %v342
  %v431 = vadd.f32 %v35, %v346
  %v432 = vadd.f32 %v36, %v350
  %v433 = vadd.f32 %v37, %v354
  %v434 = vadd.f32 %v38, %v358
  %v435 = vadd.f32 %v39, %v362
  %v436 = vadd.f32 %v40, %v366
  %v437 = vadd.f32 %v41, %v370
  %v438 = vadd.f32 %v42, %v374
  %vm439 = vcmp.gt.f32.partialorder %v407, 0.0
  %vm440 = vcmp.gt.f32.partialorder %v408, 0.0
  %vm441 = vcmp.gt.f32.partialorder %v409, 0.0
  %vm442 = vcmp.gt.f32.partialorder %v410, 0.0
  %vm443 = vcmp.gt.f32.partialorder %v411, 0.0
  %vm444 = vcmp.gt.f32.partialorder %v412, 0.0
  %vm445 = vcmp.gt.f32.partialorder %v413, 0.0
  %vm446 = vcmp.gt.f32.partialorder %v414, 0.0
  %vm447 = vcmp.gt.f32.partialorder %v415, 0.0
  %vm448 = vcmp.gt.f32.partialorder %v416, 0.0
  %vm449 = vcmp.gt.f32.partialorder %v417, 0.0
  %vm450 = vcmp.gt.f32.partialorder %v418, 0.0
  %vm451 = vcmp.gt.f32.partialorder %v419, 0.0
  %vm452 = vcmp.gt.f32.partialorder %v420, 0.0
  %vm453 = vcmp.gt.f32.partialorder %v421, 0.0
  %vm454 = vcmp.gt.f32.partialorder %v422, 0.0
  %vm455 = vcmp.gt.f32.partialorder %v423, 0.0
  %vm456 = vcmp.gt.f32.partialorder %v424, 0.0
  %vm457 = vcmp.gt.f32.partialorder %v425, 0.0
  %vm458 = vcmp.gt.f32.partialorder %v426, 0.0
  %vm459 = vcmp.gt.f32.partialorder %v427, 0.0
  %vm460 = vcmp.gt.f32.partialorder %v428, 0.0
  %vm461 = vcmp.gt.f32.partialorder %v429, 0.0
  %vm462 = vcmp.gt.f32.partialorder %v430, 0.0
  %vm463 = vcmp.gt.f32.partialorder %v431, 0.0
  %vm464 = vcmp.gt.f32.partialorder %v432, 0.0
  %vm465 = vcmp.gt.f32.partialorder %v433, 0.0
  %vm466 = vcmp.gt.f32.partialorder %v434, 0.0
  %vm467 = vcmp.gt.f32.partialorder %v435, 0.0
  %vm468 = vcmp.gt.f32.partialorder %v436, 0.0
  %vm469 = vcmp.gt.f32.partialorder %v437, 0.0
  %vm470 = vcmp.gt.f32.partialorder %v438, 0.0
  %v471 = vmul.f32 %v407, 0.2
  %v472 = vmul.f32 %v408, 0.2
  %v473 = vmul.f32 %v409, 0.2
  %v474 = vmul.f32 %v410, 0.2
  %v475 = vmul.f32 %v411, 0.2
  %v476 = vmul.f32 %v412, 0.2
  %v477 = vmul.f32 %v413, 0.2
  %v478 = vmul.f32 %v414, 0.2
  %v479 = vmul.f32 %v415, 0.2
  %v480 = vmul.f32 %v416, 0.2
  %v481 = vmul.f32 %v417, 0.2
  %v482 = vmul.f32 %v418, 0.2
  %v483 = vmul.f32 %v419, 0.2
  %v484 = vmul.f32 %v420, 0.2
  %v485 = vmul.f32 %v421, 0.2
  %v486 = vmul.f32 %v422, 0.2
  %v487 = vmul.f32 %v423, 0.2
  %v488 = vmul.f32 %v424, 0.2
  %v489 = vmul.f32 %v425, 0.2
  %v490 = vmul.f32 %v426, 0.2
  %v491 = vmul.f32 %v427, 0.2
  %v492 = vmul.f32 %v428, 0.2
  %v493 = vmul.f32 %v429, 0.2
  %v494 = vmul.f32 %v430, 0.2
  %v495 = vmul.f32 %v431, 0.2
  %v496 = vmul.f32 %v432, 0.2
  %v497 = vmul.f32 %v433, 0.2
  %v498 = vmul.f32 %v434, 0.2
  %v499 = vmul.f32 %v435, 0.2
  %v500 = vmul.f32 %v436, 0.2
  %v501 = vmul.f32 %v437, 0.2
  %v502 = vmul.f32 %v438, 0.2
  %v503 = vsel %vm439, %v407, %v471
  %v504 = vsel %vm440, %v408, %v472
  %v505 = vsel %vm441, %v409, %v473
  %v506 = vsel %vm442, %v410, %v474
  %v507 = vsel %vm443, %v411, %v475
  %v508 = vsel %vm444, %v412, %v476
  %v509 = vsel %vm445, %v413, %v477
  %v510 = vsel %vm446, %v414, %v478
  %v511 = vsel %vm447, %v415, %v479
  %v512 = vsel %vm448, %v416, %v480
  %v513 = vsel %vm449, %v417, %v481
  %v514 = vsel %vm450, %v418, %v482
  %v515 = vsel %vm451, %v419, %v483
  %v516 = vsel %vm452, %v420, %v484
  %v517 = vsel %vm453, %v421, %v485
  %v518 = vsel %vm454, %v422, %v486
  %v519 = vsel %vm455, %v423, %v487
  %v520 = vsel %vm456, %v424, %v488
  %v521 = vsel %vm457, %v425, %v489
  %v522 = vsel %vm458, %v426, %v490
  %v523 = vsel %vm459, %v427, %v491
  %v524 = vsel %vm460, %v428, %v492
  %v525 = vsel %vm461, %v429, %v493
  %v526 = vsel %vm462, %v430, %v494
  %v527 = vsel %vm463, %v431, %v495
  %v528 = vsel %vm464, %v432, %v496
  %v529 = vsel %vm465, %v433, %v497
  %v530 = vsel %vm466, %v434, %v498
  %v531 = vsel %vm467, %v435, %v499
  %v532 = vsel %vm468, %v436, %v500
  %v533 = vsel %vm469, %v437, %v501
  %v534 = vsel %vm470, %v438, %v502
  %vm535 = vcmask 1043456
  %v536 = vsel %vm535, %v503, -inf
  %v537 = vrot.slane %v536, 4
  %v538 = vmax.f32 %v536, %v537
  %v539 = vrot.slane %v538, 2
  %v540 = vmax.f32 %v538, %v539
  %v541 = vrot.slane %v540, 1
  %v542 = vmax.f32 %v540, %v541
  %v543 = vsel %vm535, %v504, -inf
  %v544 = vrot.slane %v543, 4
  %v545 = vmax.f32 %v543, %v544
  %v546 = vrot.slane %v545, 2
  %v547 = vmax.f32 %v545, %v546
  %v548 = vrot.slane %v547, 1
  %v549 = vmax.f32 %v547, %v548
  %v550 = vsel %vm535, %v505, -inf
  %v551 = vrot.slane %v550, 4
  %v552 = vmax.f32 %v550, %v551
  %v553 = vrot.slane %v552, 2
  %v554 = vmax.f32 %v552, %v553
  %v555 = vrot.slane %v554, 1
  %v556 = vmax.f32 %v554, %v555
  %v557 = vsel %vm535, %v506, -inf
  %v558 = vrot.slane %v557, 4
  %v559 = vmax.f32 %v557, %v558
  %v560 = vrot.slane %v559, 2
  %v561 = vmax.f32 %v559, %v560
  %v562 = vrot.slane %v561, 1
  %v563 = vmax.f32 %v561, %v562
  %v564 = vsel %vm535, %v507, -inf
  %v565 = vrot.slane %v564, 4
  %v566 = vmax.f32 %v564, %v565
  %v567 = vrot.slane %v566, 2
  %v568 = vmax.f32 %v566, %v567
  %v569 = vrot.slane %v568, 1
  %v570 = vmax.f32 %v568, %v569
  %v571 = vsel %vm535, %v508, -inf
  %v572 = vrot.slane %v571, 4
  %v573 = vmax.f32 %v571, %v572
  %v574 = vrot.slane %v573, 2
  %v575 = vmax.f32 %v573, %v574
  %v576 = vrot.slane %v575, 1
  %v577 = vmax.f32 %v575, %v576
  %v578 = vsel %vm535, %v509, -inf
  %v579 = vrot.slane %v578, 4
  %v580 = vmax.f32 %v578, %v579
  %v581 = vrot.slane %v580, 2
  %v582 = vmax.f32 %v580, %v581
  %v583 = vrot.slane %v582, 1
  %v584 = vmax.f32 %v582, %v583
  %v585 = vsel %vm535, %v510, -inf
  %v586 = vrot.slane %v585, 4
  %v587 = vmax.f32 %v585, %v586
  %v588 = vrot.slane %v587, 2
  %v589 = vmax.f32 %v587, %v588
  %v590 = vrot.slane %v589, 1
  %v591 = vmax.f32 %v589, %v590
  %v592 = vsel %vm535, %v511, -inf
  %v593 = vrot.slane %v592, 4
  %v594 = vmax.f32 %v592, %v593
  %v595 = vrot.slane %v594, 2
  %v596 = vmax.f32 %v594, %v595
  %v597 = vrot.slane %v596, 1
  %v598 = vmax.f32 %v596, %v597
  %v599 = vsel %vm535, %v512, -inf
  %v600 = vrot.slane %v599, 4
  %v601 = vmax.f32 %v599, %v600
  %v602 = vrot.slane %v601, 2
  %v603 = vmax.f32 %v601, %v602
  %v604 = vrot.slane %v603, 1
  %v605 = vmax.f32 %v603, %v604
  %v606 = vsel %vm535, %v513, -inf
  %v607 = vrot.slane %v606, 4
  %v608 = vmax.f32 %v606, %v607
  %v609 = vrot.slane %v608, 2
  %v610 = vmax.f32 %v608, %v609
  %v611 = vrot.slane %v610, 1
  %v612 = vmax.f32 %v610, %v611
  %v613 = vsel %vm535, %v514, -inf
  %v614 = vrot.slane %v613, 4
  %v615 = vmax.f32 %v613, %v614
  %v616 = vrot.slane %v615, 2
  %v617 = vmax.f32 %v615, %v616
  %v618 = vrot.slane %v617, 1
  %v619 = vmax.f32 %v617, %v618
  %v620 = vsel %vm535, %v515, -inf
  %v621 = vrot.slane %v620, 4
  %v622 = vmax.f32 %v620, %v621
  %v623 = vrot.slane %v622, 2
  %v624 = vmax.f32 %v622, %v623
  %v625 = vrot.slane %v624, 1
  %v626 = vmax.f32 %v624, %v625
  %v627 = vsel %vm535, %v516, -inf
  %v628 = vrot.slane %v627, 4
  %v629 = vmax.f32 %v627, %v628
  %v630 = vrot.slane %v629, 2
  %v631 = vmax.f32 %v629, %v630
  %v632 = vrot.slane %v631, 1
  %v633 = vmax.f32 %v631, %v632
  %v634 = vsel %vm535, %v517, -inf
  %v635 = vrot.slane %v634, 4
  %v636 = vmax.f32 %v634, %v635
  %v637 = vrot.slane %v636, 2
  %v638 = vmax.f32 %v636, %v637
  %v639 = vrot.slane %v638, 1
  %v640 = vmax.f32 %v638, %v639
  %v641 = vsel %vm535, %v518, -inf
  %v642 = vrot.slane %v641, 4
  %v643 = vmax.f32 %v641, %v642
  %v644 = vrot.slane %v643, 2
  %v645 = vmax.f32 %v643, %v644
  %v646 = vrot.slane %v645, 1
  %v647 = vmax.f32 %v645, %v646
  %v648 = vsel %vm535, %v519, -inf
  %v649 = vrot.slane %v648, 4
  %v650 = vmax.f32 %v648, %v649
  %v651 = vrot.slane %v650, 2
  %v652 = vmax.f32 %v650, %v651
  %v653 = vrot.slane %v652, 1
  %v654 = vmax.f32 %v652, %v653
  %v655 = vsel %vm535, %v520, -inf
  %v656 = vrot.slane %v655, 4
  %v657 = vmax.f32 %v655, %v656
  %v658 = vrot.slane %v657, 2
  %v659 = vmax.f32 %v657, %v658
  %v660 = vrot.slane %v659, 1
  %v661 = vmax.f32 %v659, %v660
  %v662 = vsel %vm535, %v521, -inf
  %v663 = vrot.slane %v662, 4
  %v664 = vmax.f32 %v662, %v663
  %v665 = vrot.slane %v664, 2
  %v666 = vmax.f32 %v664, %v665
  %v667 = vrot.slane %v666, 1
  %v668 = vmax.f32 %v666, %v667
  %v669 = vsel %vm535, %v522, -inf
  %v670 = vrot.slane %v669, 4
  %v671 = vmax.f32 %v669, %v670
  %v672 = vrot.slane %v671, 2
  %v673 = vmax.f32 %v671, %v672
  %v674 = vrot.slane %v673, 1
  %v675 = vmax.f32 %v673, %v674
  %v676 = vsel %vm535, %v523, -inf
  %v677 = vrot.slane %v676, 4
  %v678 = vmax.f32 %v676, %v677
  %v679 = vrot.slane %v678, 2
  %v680 = vmax.f32 %v678, %v679
  %v681 = vrot.slane %v680, 1
  %v682 = vmax.f32 %v680, %v681
  %v683 = vsel %vm535, %v524, -inf
  %v684 = vrot.slane %v683, 4
  %v685 = vmax.f32 %v683, %v684
  %v686 = vrot.slane %v685, 2
  %v687 = vmax.f32 %v685, %v686
  %v688 = vrot.slane %v687, 1
  %v689 = vmax.f32 %v687, %v688
  %v690 = vsel %vm535, %v525, -inf
  %v691 = vrot.slane %v690, 4
  %v692 = vmax.f32 %v690, %v691
  %v693 = vrot.slane %v692, 2
  %v694 = vmax.f32 %v692, %v693
  %v695 = vrot.slane %v694, 1
  %v696 = vmax.f32 %v694, %v695
  %v697 = vsel %vm535, %v526, -inf
  %v698 = vrot.slane %v697, 4
  %v699 = vmax.f32 %v697, %v698
  %v700 = vrot.slane %v699, 2
  %v701 = vmax.f32 %v699, %v700
  %v702 = vrot.slane %v701, 1
  %v703 = vmax.f32 %v701, %v702
  %v704 = vsel %vm535, %v527, -inf
  %v705 = vrot.slane %v704, 4
  %v706 = vmax.f32 %v704, %v705
  %v707 = vrot.slane %v706, 2
  %v708 = vmax.f32 %v706, %v707
  %v709 = vrot.slane %v708, 1
  %v710 = vmax.f32 %v708, %v709
  %v711 = vsel %vm535, %v528, -inf
  %v712 = vrot.slane %v711, 4
  %v713 = vmax.f32 %v711, %v712
  %v714 = vrot.slane %v713, 2
  %v715 = vmax.f32 %v713, %v714
  %v716 = vrot.slane %v715, 1
  %v717 = vmax.f32 %v715, %v716
  %v718 = vsel %vm535, %v529, -inf
  %v719 = vrot.slane %v718, 4
  %v720 = vmax.f32 %v718, %v719
  %v721 = vrot.slane %v720, 2
  %v722 = vmax.f32 %v720, %v721
  %v723 = vrot.slane %v722, 1
  %v724 = vmax.f32 %v722, %v723
  %v725 = vsel %vm535, %v530, -inf
  %v726 = vrot.slane %v725, 4
  %v727 = vmax.f32 %v725, %v726
  %v728 = vrot.slane %v727, 2
  %v729 = vmax.f32 %v727, %v728
  %v730 = vrot.slane %v729, 1
  %v731 = vmax.f32 %v729, %v730
  %v732 = vsel %vm535, %v531, -inf
  %v733 = vrot.slane %v732, 4
  %v734 = vmax.f32 %v732, %v733
  %v735 = vrot.slane %v734, 2
  %v736 = vmax.f32 %v734, %v735
  %v737 = vrot.slane %v736, 1
  %v738 = vmax.f32 %v736, %v737
  %v739 = vsel %vm535, %v532, -inf
  %v740 = vrot.slane %v739, 4
  %v741 = vmax.f32 %v739, %v740
  %v742 = vrot.slane %v741, 2
  %v743 = vmax.f32 %v741, %v742
  %v744 = vrot.slane %v743, 1
  %v745 = vmax.f32 %v743, %v744
  %v746 = vsel %vm535, %v533, -inf
  %v747 = vrot.slane %v746, 4
  %v748 = vmax.f32 %v746, %v747
  %v749 = vrot.slane %v748, 2
  %v750 = vmax.f32 %v748, %v749
  %v751 = vrot.slane %v750, 1
  %v752 = vmax.f32 %v750, %v751
  %v753 = vsel %vm535, %v534, -inf
  %v754 = vrot.slane %v753, 4
  %v755 = vmax.f32 %v753, %v754
  %v756 = vrot.slane %v755, 2
  %v757 = vmax.f32 %v755, %v756
  %v758 = vrot.slane %v757, 1
  %v759 = vmax.f32 %v757, %v758
  %vm792 = vcmask 1041409
  %v793 = vsel %vm792, %v549, %v542
  %vm794 = vcmask 1042434
  %v795 = vsel %vm794, %v556, %v793
  %vm796 = vcmask 1043459
  %v797 = vsel %vm796, %v563, %v795
  %vm798 = vcmask 1044484
  %v799 = vsel %vm798, %v570, %v797
  %vm800 = vcmask 1045509
  %v801 = vsel %vm800, %v577, %v799
  %vm802 = vcmask 1046534
  %v803 = vsel %vm802, %v584, %v801
  %vm804 = vcmask 1047559
  %v805 = vsel %vm804, %v591, %v803
  %v806 = vsel %vm792, %v605, %v598
  %v807 = vsel %vm794, %v612, %v806
  %v808 = vsel %vm796, %v619, %v807
  %v809 = vsel %vm798, %v626, %v808
  %v810 = vsel %vm800, %v633, %v809
  %v811 = vsel %vm802, %v640, %v810
  %v812 = vsel %vm804, %v647, %v811
  %v813 = vsel %vm792, %v661, %v654
  %v814 = vsel %vm794, %v668, %v813
  %v815 = vsel %vm796, %v675, %v814
  %v816 = vsel %vm798, %v682, %v815
  %v817 = vsel %vm800, %v689, %v816
  %v818 = vsel %vm802, %v696, %v817
  %v819 = vsel %vm804, %v703, %v818
  %v820 = vsel %vm792, %v717, %v710
  %v821 = vsel %vm794, %v724, %v820
  %v822 = vsel %vm796, %v731, %v821
  %v823 = vsel %vm798, %v738, %v822
  %v824 = vsel %vm800, %v745, %v823
  %v825 = vsel %vm802, %v752, %v824
  %v826 = vsel %vm804, %v759, %v825
  %831 = vst [vmem:[%s2] sm:$0xff] %v805
  %832 = vst [vmem:[%s2 + $0x8] sm:$0xff] %v812
  %833 = vst [vmem:[%s2 + $0x10] sm:$0xff] %v819
  %834 = vst [vmem:[%s2 + $0x18] sm:$0xff] %v826
  // Predicated region
  $region10: #{dgcnn_encoder.23} parent=0 // pred_check
    _
  $region11: #{dgcnn_encoder.23} parent=0 // pred_check_branch
    %836 = sbr.rel (0) target = $region13
  $region12: #{dgcnn_encoder.23} parent=0 // pred_region
    _
  $region13: #{dgcnn_encoder.23} parent=0 // pred_fallthru
    _
  // Predicated region
  $region14: #{dgcnn_encoder.23} parent=0 // pred_check
    _
  $region15: #{dgcnn_encoder.23} parent=0 // pred_check_branch
    %838 = sbr.rel (0) target = $region17
  $region16: #{dgcnn_encoder.23} parent=0 // pred_region
    _
  $region17: #{dgcnn_encoder.23} parent=0 // pred_fallthru
    _

// kernel: dgcnn_encoder.25
$region0: #{dgcnn_encoder.25}
  #allocation0 [shape = 'u32[]', space=smem, size = 0x4, offset = 0x4, fixed_abs, tag = 'smem constant byte address 0x4 - core index']
  #allocation1 [shape = 'u32[144,128]{1,0:T(1,128)}', space=vmem, size = 0x12000, scoped, tag = 'internal scratch']
  %s0 = inlined_call_operand.vmem [shape: f32[32,128], index: 0, kind: input, shape index: {}]
  %s1 = inlined_call_operand.vmem [shape: f32[128,512], index: 1, kind: input, shape index: {}]
  %s2 = inlined_call_operand.vmem [shape: f32[1,512], index: 2, kind: input, shape index: {}]
  %s3 = inlined_call_operand.vmem [shape: f32[1,512], index: 3, kind: input, shape index: {}]
  %s4 = inlined_call_operand.vmem [shape: f32[32,512], index: 4, kind: output, shape index: {}]
  %s5 = sld [smem:[#allocation0]]
  $region26: #{dgcnn_encoder.25} parent=0
    _
  %s7 = ssub.s32 1, %s5
  %s8 = scalar_select 0, %s7, %s5
  // Predicated region
  $region2: #{dgcnn_encoder.25} parent=0 // pred_check
    _
  $region3: #{dgcnn_encoder.25} parent=0 // pred_check_branch
    %10 = sbr.rel (0) target = $region5
  $region4: #{dgcnn_encoder.25} parent=0 // pred_region
    _
  $region5: #{dgcnn_encoder.25} parent=0 // pred_fallthru
    _
  // Predicated region
  $region6: #{dgcnn_encoder.25} parent=0 // pred_check
    _
  $region7: #{dgcnn_encoder.25} parent=0 // pred_check_branch
    %12 = sbr.rel (0) target = $region9
  $region8: #{dgcnn_encoder.25} parent=0 // pred_region
    _
  $region9: #{dgcnn_encoder.25} parent=0 // pred_fallthru
    _
  // Predicated region
  $region10: #{dgcnn_encoder.25} parent=0 // pred_check
    _
  $region11: #{dgcnn_encoder.25} parent=0 // pred_check_branch
    %14 = sbr.rel (0) target = $region13
  $region12: #{dgcnn_encoder.25} parent=0 // pred_region
    _
  $region13: #{dgcnn_encoder.25} parent=0 // pred_fallthru
    _
  // Predicated region
  $region14: #{dgcnn_encoder.25} parent=0 // pred_check
    _
  $region15: #{dgcnn_encoder.25} parent=0 // pred_check_branch
    %16 = sbr.rel (0) target = $region17
  $region16: #{dgcnn_encoder.25} parent=0 // pred_region
    _
  $region17: #{dgcnn_encoder.25} parent=0 // pred_fallthru
    _
  %v17 = vld [vmem:[%s0] sm:$0xff]
  %v18 = vld [vmem:[%s0 + $0x8] sm:$0xff]
  %v19 = vld [vmem:[%s0 + $0x10] sm:$0xff]
  %v20 = vld [vmem:[%s0 + $0x18] sm:$0xff]
  %v21 = vld [vmem:[%s1] sm:$0xff]
  %v22 = vld [vmem:[%s1 + $0x8] sm:$0xff]
  %v23 = vld [vmem:[%s1 + $0x10] sm:$0xff]
  %v24 = vld [vmem:[%s1 + $0x18] sm:$0xff]
  %v25 = vld [vmem:[%s1 + $0x20] sm:$0xff]
  %v26 = vld [vmem:[%s1 + $0x28] sm:$0xff]
  %v27 = vld [vmem:[%s1 + $0x30] sm:$0xff]
  %v28 = vld [vmem:[%s1 + $0x38] sm:$0xff]
  %v29 = vld [vmem:[%s1 + $0x40] sm:$0xff]
  %v30 = vld [vmem:[%s1 + $0x48] sm:$0xff]
  %v31 = vld [vmem:[%s1 + $0x50] sm:$0xff]
  %v32 = vld [vmem:[%s1 + $0x58] sm:$0xff]
  %v33 = vld [vmem:[%s1 + $0x60] sm:$0xff]
  %v34 = vld [vmem:[%s1 + $0x68] sm:$0xff]
  %v35 = vld [vmem:[%s1 + $0x70] sm:$0xff]
  %v36 = vld [vmem:[%s1 + $0x78] sm:$0xff]
  %v37 = vld [vmem:[%s1 + $0x80] sm:$0xff]
  %v38 = vld [vmem:[%s1 + $0x88] sm:$0xff]
  %v39 = vld [vmem:[%s1 + $0x90] sm:$0xff]
  %v40 = vld [vmem:[%s1 + $0x98] sm:$0xff]
  %v41 = vld [vmem:[%s1 + $0xa0] sm:$0xff]
  %v42 = vld [vmem:[%s1 + $0xa8] sm:$0xff]
  %v43 = vld [vmem:[%s1 + $0xb0] sm:$0xff]
  %v44 = vld [vmem:[%s1 + $0xb8] sm:$0xff]
  %v45 = vld [vmem:[%s1 + $0xc0] sm:$0xff]
  %v46 = vld [vmem:[%s1 + $0xc8] sm:$0xff]
  %v47 = vld [vmem:[%s1 + $0xd0] sm:$0xff]
  %v48 = vld [vmem:[%s1 + $0xd8] sm:$0xff]
  %v49 = vld [vmem:[%s1 + $0xe0] sm:$0xff]
  %v50 = vld [vmem:[%s1 + $0xe8] sm:$0xff]
  %v51 = vld [vmem:[%s1 + $0xf0] sm:$0xff]
  %v52 = vld [vmem:[%s1 + $0xf8] sm:$0xff]
  %v53 = vld [vmem:[%s1 + $0x100] sm:$0xff]
  %v54 = vld [vmem:[%s1 + $0x108] sm:$0xff]
  %v55 = vld [vmem:[%s1 + $0x110] sm:$0xff]
  %v56 = vld [vmem:[%s1 + $0x118] sm:$0xff]
  %v57 = vld [vmem:[%s1 + $0x120] sm:$0xff]
  %v58 = vld [vmem:[%s1 + $0x128] sm:$0xff]
  %v59 = vld [vmem:[%s1 + $0x130] sm:$0xff]
  %v60 = vld [vmem:[%s1 + $0x138] sm:$0xff]
  %v61 = vld [vmem:[%s1 + $0x140] sm:$0xff]
  %v62 = vld [vmem:[%s1 + $0x148] sm:$0xff]
  %v63 = vld [vmem:[%s1 + $0x150] sm:$0xff]
  %v64 = vld [vmem:[%s1 + $0x158] sm:$0xff]
  %v65 = vld [vmem:[%s1 + $0x160] sm:$0xff]
  %v66 = vld [vmem:[%s1 + $0x168] sm:$0xff]
  %v67 = vld [vmem:[%s1 + $0x170] sm:$0xff]
  %v68 = vld [vmem:[%s1 + $0x178] sm:$0xff]
  %v69 = vld [vmem:[%s1 + $0x180] sm:$0xff]
  %v70 = vld [vmem:[%s1 + $0x188] sm:$0xff]
  %v71 = vld [vmem:[%s1 + $0x190] sm:$0xff]
  %v72 = vld [vmem:[%s1 + $0x198] sm:$0xff]
  %v73 = vld [vmem:[%s1 + $0x1a0] sm:$0xff]
  %v74 = vld [vmem:[%s1 + $0x1a8] sm:$0xff]
  %v75 = vld [vmem:[%s1 + $0x1b0] sm:$0xff]
  %v76 = vld [vmem:[%s1 + $0x1b8] sm:$0xff]
  %v77 = vld [vmem:[%s1 + $0x1c0] sm:$0xff]
  %v78 = vld [vmem:[%s1 + $0x1c8] sm:$0xff]
  %v79 = vld [vmem:[%s1 + $0x1d0] sm:$0xff]
  %v80 = vld [vmem:[%s1 + $0x1d8] sm:$0xff]
  %v81 = vld [vmem:[%s1 + $0x1e0] sm:$0xff]
  %v82 = vld [vmem:[%s1 + $0x1e8] sm:$0xff]
  %v83 = vld [vmem:[%s1 + $0x1f0] sm:$0xff]
  %v84 = vld [vmem:[%s1 + $0x1f8] sm:$0xff]
  %85 = vmatprep.subr.mxu0 %v82
  %86 = vmatpush1.msra.mxu0 %v81
  %87 = vmatprep.subr.mxu0 %v78
  %88 = vmatpush1.msra.mxu0 %v77
  %89 = vmatprep.subr.mxu0 %v74
  %90 = vmatpush1.msra.mxu0 %v73
  %91 = vmatprep.subr.mxu0 %v70
  %92 = vmatpush1.msra.mxu0 %v69
  %93 = vmatprep.subr.mxu0 %v66
  %94 = vmatpush1.msra.mxu0 %v65
  %95 = vmatprep.subr.mxu0 %v62
  %96 = vmatpush1.msra.mxu0 %v61
  %97 = vmatprep.subr.mxu0 %v58
  %98 = vmatpush1.msra.mxu0 %v57
  %99 = vmatprep.subr.mxu0 %v54
  %100 = vmatpush1.msra.mxu0 %v53
  %101 = vmatprep.subr.mxu0 %v50
  %102 = vmatpush1.msra.mxu0 %v49
  %103 = vmatprep.subr.mxu0 %v46
  %104 = vmatpush1.msra.mxu0 %v45
  %105 = vmatprep.subr.mxu0 %v42
  %106 = vmatpush1.msra.mxu0 %v41
  %107 = vmatprep.subr.mxu0 %v38
  %108 = vmatpush1.msra.mxu0 %v37
  %109 = vmatprep.subr.mxu0 %v34
  %110 = vmatpush1.msra.mxu0 %v33
  %111 = vmatprep.subr.mxu0 %v30
  %112 = vmatpush1.msra.mxu0 %v29
  %113 = vmatprep.subr.mxu0 %v26
  %114 = vmatpush1.msra.mxu0 %v25
  %115 = vmatprep.subr.mxu0 %v22
  %116 = vmatpush1.msra.mxu0 %v21
  %117 = vmatprep.subr.mxu0 0.0
  %118 = vmatpush2.msra.mxu0 0.0
  %119 = vmatprep.subr.mxu0 0.0
  %120 = vmatpush2.msra.mxu0 0.0
  %121 = vmatprep.subr.mxu0 0.0
  %122 = vmatpush2.msra.mxu0 0.0
  %123 = vmatprep.subr.mxu0 0.0
  %124 = vmatpush2.msra.mxu0 0.0
  %125 = vmatprep.subr.mxu0 0.0
  %126 = vmatpush2.msra.mxu0 0.0
  %127 = vmatprep.subr.mxu0 0.0
  %128 = vmatpush2.msra.mxu0 0.0
  %129 = vmatprep.subr.mxu0 0.0
  %130 = vmatpush2.msra.mxu0 0.0
  %131 = vmatprep.subr.mxu0 0.0
  %132 = vmatpush2.msra.mxu0 0.0
  %133 = vmatprep.subr.mxu0 0.0
  %134 = vmatpush2.msra.mxu0 0.0
  %135 = vmatprep.subr.mxu0 0.0
  %136 = vmatpush2.msra.mxu0 0.0
  %137 = vmatprep.subr.mxu0 0.0
  %138 = vmatpush2.msra.mxu0 0.0
  %139 = vmatprep.subr.mxu0 0.0
  %140 = vmatpush2.msra.mxu0 0.0
  %141 = vmatprep.subr.mxu0 0.0
  %142 = vmatpush2.msra.mxu0 0.0
  %143 = vmatprep.subr.mxu0 0.0
  %144 = vmatpush2.msra.mxu0 0.0
  %145 = vmatprep.subr.mxu0 0.0
  %146 = vmatpush2.msra.mxu0 0.0
  %147 = vmatprep.subr.mxu0 0.0
  %148 = vmatpush2.msra.mxu0 0.0
  %149 = vmatprep.mubr.f32.mxu0 0.0
  %150 = vmatmul.mubr.f32.gmra.mxu0 %v17
  %v151 = vpop.f32.mrf.mxu0
  %v152 = vadd.f32 0.0, %v151
  %v153 = vpop.f32.mrf.mxu0
  %v154 = vadd.f32 0.0, %v153
  %155 = vmatprep.mubr.f32.mxu0 0.0
  %156 = vmatmul.mubr.f32.gmra.mxu0 %v18
  %v157 = vpop.f32.mrf.mxu0
  %v158 = vadd.f32 0.0, %v157
  %v159 = vpop.f32.mrf.mxu0
  %v160 = vadd.f32 0.0, %v159
  %161 = vmatprep.mubr.f32.mxu0 0.0
  %162 = vmatmul.mubr.f32.gmra.mxu0 %v19
  %v163 = vpop.f32.mrf.mxu0
  %v164 = vadd.f32 0.0, %v163
  %v165 = vpop.f32.mrf.mxu0
  %v166 = vadd.f32 0.0, %v165
  %167 = vmatprep.mubr.f32.mxu0 0.0
  %168 = vmatmul.mubr.f32.gmra.mxu0 %v20
  %v169 = vpop.f32.mrf.mxu0
  %v170 = vadd.f32 0.0, %v169
  %v171 = vpop.f32.mrf.mxu0
  %v172 = vadd.f32 0.0, %v171
  %173 = vdwg.mxu0
  %174 = vmatprep.subr.mxu0 %v84
  %175 = vmatpush1.msra.mxu0 %v83
  %176 = vmatprep.subr.mxu0 %v80
  %177 = vmatpush1.msra.mxu0 %v79
  %178 = vmatprep.subr.mxu0 %v76
  %179 = vmatpush1.msra.mxu0 %v75
  %180 = vmatprep.subr.mxu0 %v72
  %181 = vmatpush1.msra.mxu0 %v71
  %182 = vmatprep.subr.mxu0 %v68
  %183 = vmatpush1.msra.mxu0 %v67
  %184 = vmatprep.subr.mxu0 %v64
  %185 = vmatpush1.msra.mxu0 %v63
  %186 = vmatprep.subr.mxu0 %v60
  %187 = vmatpush1.msra.mxu0 %v59
  %188 = vmatprep.subr.mxu0 %v56
  %189 = vmatpush1.msra.mxu0 %v55
  %190 = vmatprep.subr.mxu0 %v52
  %191 = vmatpush1.msra.mxu0 %v51
  %192 = vmatprep.subr.mxu0 %v48
  %193 = vmatpush1.msra.mxu0 %v47
  %194 = vmatprep.subr.mxu0 %v44
  %195 = vmatpush1.msra.mxu0 %v43
  %196 = vmatprep.subr.mxu0 %v40
  %197 = vmatpush1.msra.mxu0 %v39
  %198 = vmatprep.subr.mxu0 %v36
  %199 = vmatpush1.msra.mxu0 %v35
  %200 = vmatprep.subr.mxu0 %v32
  %201 = vmatpush1.msra.mxu0 %v31
  %202 = vmatprep.subr.mxu0 %v28
  %203 = vmatpush1.msra.mxu0 %v27
  %204 = vmatprep.subr.mxu0 %v24
  %205 = vmatpush1.msra.mxu0 %v23
  %206 = vmatprep.subr.mxu0 0.0
  %207 = vmatpush2.msra.mxu0 0.0
  %208 = vmatprep.subr.mxu0 0.0
  %209 = vmatpush2.msra.mxu0 0.0
  %210 = vmatprep.subr.mxu0 0.0
  %211 = vmatpush2.msra.mxu0 0.0
  %212 = vmatprep.subr.mxu0 0.0
  %213 = vmatpush2.msra.mxu0 0.0
  %214 = vmatprep.subr.mxu0 0.0
  %215 = vmatpush2.msra.mxu0 0.0
  %216 = vmatprep.subr.mxu0 0.0
  %217 = vmatpush2.msra.mxu0 0.0
  %218 = vmatprep.subr.mxu0 0.0
  %219 = vmatpush2.msra.mxu0 0.0
  %220 = vmatprep.subr.mxu0 0.0
  %221 = vmatpush2.msra.mxu0 0.0
  %222 = vmatprep.subr.mxu0 0.0
  %223 = vmatpush2.msra.mxu0 0.0
  %224 = vmatprep.subr.mxu0 0.0
  %225 = vmatpush2.msra.mxu0 0.0
  %226 = vmatprep.subr.mxu0 0.0
  %227 = vmatpush2.msra.mxu0 0.0
  %228 = vmatprep.subr.mxu0 0.0
  %229 = vmatpush2.msra.mxu0 0.0
  %230 = vmatprep.subr.mxu0 0.0
  %231 = vmatpush2.msra.mxu0 0.0
  %232 = vmatprep.subr.mxu0 0.0
  %233 = vmatpush2.msra.mxu0 0.0
  %234 = vmatprep.subr.mxu0 0.0
  %235 = vmatpush2.msra.mxu0 0.0
  %236 = vmatprep.subr.mxu0 0.0
  %237 = vmatpush2.msra.mxu0 0.0
  %238 = vmatprep.mubr.f32.mxu0 0.0
  %239 = vmatmul.mubr.f32.gmra.mxu0 %v17
  %v240 = vpop.f32.mrf.mxu0
  %v241 = vadd.f32 0.0, %v240
  %v242 = vpop.f32.mrf.mxu0
  %v243 = vadd.f32 0.0, %v242
  %244 = vmatprep.mubr.f32.mxu0 0.0
  %245 = vmatmul.mubr.f32.gmra.mxu0 %v18
  %v246 = vpop.f32.mrf.mxu0
  %v247 = vadd.f32 0.0, %v246
  %v248 = vpop.f32.mrf.mxu0
  %v249 = vadd.f32 0.0, %v248
  %250 = vmatprep.mubr.f32.mxu0 0.0
  %251 = vmatmul.mubr.f32.gmra.mxu0 %v19
  %v252 = vpop.f32.mrf.mxu0
  %v253 = vadd.f32 0.0, %v252
  %v254 = vpop.f32.mrf.mxu0
  %v255 = vadd.f32 0.0, %v254
  %256 = vmatprep.mubr.f32.mxu0 0.0
  %257 = vmatmul.mubr.f32.gmra.mxu0 %v20
  %v258 = vpop.f32.mrf.mxu0
  %v259 = vadd.f32 0.0, %v258
  %v260 = vpop.f32.mrf.mxu0
  %v261 = vadd.f32 0.0, %v260
  %262 = vdwg.mxu0
  %v263 = vld [vmem:[%s2] sm:$0xf]
  %v265 = vlaneseq
  %v266 = vshrl.u32 %v265, 7
  %v267 = vsub.s32 0, %v266
  %v268 = vrot.slane %v263, %v267
  %v269 = vlaneseq
  %v270 = vshrl.u32 %v269, 7
  %v271 = vsub.s32 1, %v270
  %v272 = vrot.slane %v263, %v271
  %v273 = vlaneseq
  %v274 = vshrl.u32 %v273, 7
  %v275 = vsub.s32 2, %v274
  %v276 = vrot.slane %v263, %v275
  %v277 = vlaneseq
  %v278 = vshrl.u32 %v277, 7
  %v279 = vsub.s32 3, %v278
  %v280 = vrot.slane %v263, %v279
  %v285 = vmul.f32 %v152, %v268
  %v286 = vmul.f32 %v154, %v272
  %v287 = vmul.f32 %v241, %v276
  %v288 = vmul.f32 %v243, %v280
  %v289 = vmul.f32 %v158, %v268
  %v290 = vmul.f32 %v160, %v272
  %v291 = vmul.f32 %v247, %v276
  %v292 = vmul.f32 %v249, %v280
  %v293 = vmul.f32 %v164, %v268
  %v294 = vmul.f32 %v166, %v272
  %v295 = vmul.f32 %v253, %v276
  %v296 = vmul.f32 %v255, %v280
  %v297 = vmul.f32 %v170, %v268
  %v298 = vmul.f32 %v172, %v272
  %v299 = vmul.f32 %v259, %v276
  %v300 = vmul.f32 %v261, %v280
  %v301 = vld [vmem:[%s3] sm:$0xf]
  %v303 = vlaneseq
  %v304 = vshrl.u32 %v303, 7
  %v305 = vsub.s32 0, %v304
  %v306 = vrot.slane %v301, %v305
  %v307 = vlaneseq
  %v308 = vshrl.u32 %v307, 7
  %v309 = vsub.s32 1, %v308
  %v310 = vrot.slane %v301, %v309
  %v311 = vlaneseq
  %v312 = vshrl.u32 %v311, 7
  %v313 = vsub.s32 2, %v312
  %v314 = vrot.slane %v301, %v313
  %v315 = vlaneseq
  %v316 = vshrl.u32 %v315, 7
  %v317 = vsub.s32 3, %v316
  %v318 = vrot.slane %v301, %v317
  %v323 = vadd.f32 %v285, %v306
  %v324 = vadd.f32 %v286, %v310
  %v325 = vadd.f32 %v287, %v314
  %v326 = vadd.f32 %v288, %v318
  %v327 = vadd.f32 %v289, %v306
  %v328 = vadd.f32 %v290, %v310
  %v329 = vadd.f32 %v291, %v314
  %v330 = vadd.f32 %v292, %v318
  %v331 = vadd.f32 %v293, %v306
  %v332 = vadd.f32 %v294, %v310
  %v333 = vadd.f32 %v295, %v314
  %v334 = vadd.f32 %v296, %v318
  %v335 = vadd.f32 %v297, %v306
  %v336 = vadd.f32 %v298, %v310
  %v337 = vadd.f32 %v299, %v314
  %v338 = vadd.f32 %v300, %v318
  %339 = vst [vmem:[%s4] sm:$0xff] %v323
  %340 = vst [vmem:[%s4 + $0x8] sm:$0xff] %v324
  %341 = vst [vmem:[%s4 + $0x10] sm:$0xff] %v325
  %342 = vst [vmem:[%s4 + $0x18] sm:$0xff] %v326
  %343 = vst [vmem:[%s4 + $0x20] sm:$0xff] %v327
  %344 = vst [vmem:[%s4 + $0x28] sm:$0xff] %v328
  %345 = vst [vmem:[%s4 + $0x30] sm:$0xff] %v329
  %346 = vst [vmem:[%s4 + $0x38] sm:$0xff] %v330
  %347 = vst [vmem:[%s4 + $0x40] sm:$0xff] %v331
  %348 = vst [vmem:[%s4 + $0x48] sm:$0xff] %v332
  %349 = vst [vmem:[%s4 + $0x50] sm:$0xff] %v333
  %350 = vst [vmem:[%s4 + $0x58] sm:$0xff] %v334
  %351 = vst [vmem:[%s4 + $0x60] sm:$0xff] %v335
  %352 = vst [vmem:[%s4 + $0x68] sm:$0xff] %v336
  %353 = vst [vmem:[%s4 + $0x70] sm:$0xff] %v337
  %354 = vst [vmem:[%s4 + $0x78] sm:$0xff] %v338
  // Predicated region
  $region18: #{dgcnn_encoder.25} parent=0 // pred_check
    _
  $region19: #{dgcnn_encoder.25} parent=0 // pred_check_branch
    %356 = sbr.rel (0) target = $region21
  $region20: #{dgcnn_encoder.25} parent=0 // pred_region
    _
  $region21: #{dgcnn_encoder.25} parent=0 // pred_fallthru
    _
  // Predicated region
  $region22: #{dgcnn_encoder.25} parent=0 // pred_check
    _
  $region23: #{dgcnn_encoder.25} parent=0 // pred_check_branch
    %358 = sbr.rel (0) target = $region25
  $region24: #{dgcnn_encoder.25} parent=0 // pred_region
    _
  $region25: #{dgcnn_encoder.25} parent=0 // pred_fallthru
    _

// kernel: dgcnn_encoder.24
$region0: #{dgcnn_encoder.24}
  #allocation0 [shape = 'u32[]', space=smem, size = 0x4, offset = 0x4, fixed_abs, tag = 'smem constant byte address 0x4 - core index']
  #allocation1 [shape = 'u32[144,128]{1,0:T(1,128)}', space=vmem, size = 0x12000, scoped, tag = 'internal scratch']
  %s0 = inlined_call_operand.vmem [shape: f32[2,16,128], index: 0, kind: input, shape index: {}, may-alias: {0,1}]
  %s1 = inlined_call_operand.vmem [shape: f32[2,16,128], index: 1, kind: input, shape index: {}, may-alias: {0,1}]
  %s2 = inlined_call_operand.vmem [shape: f32[2,16,16], index: 2, kind: output, shape index: {}]
  %s3 = sld [smem:[#allocation0]]
  $region41: #{dgcnn_encoder.24} parent=0
    _
  %s5 = ssub.s32 1, %s3
  %s6 = scalar_select 0, %s5, %s3
  loop: start=0, step=1, limit=4
  $region2: #{dgcnn_encoder.24} parent=0 // loop_pre_header
    _
  $region3: #{dgcnn_encoder.24} parent=0 // loop_header
    %s8 = sphi 0, %s12
    %p9 = scmp.ge.s32.totalorder %s8, 4
    %s15 = sphi 0, %s27
    %s16 = sphi 0, %s23
    %s17 = sphi 0, %s15
    %s18 = sphi 0, %s16
    %s19 = sphi 0, %s17
    %s20 = sphi 0, %s18
    %s32 = sphi 0, %s34
    %s35 = sphi 0, %s32
    %s36 = sphi 0, %s35
    %s52 = sphi 0, %s36
    %s58 = sphi 0, %s60
    %s61 = sphi 0, %s58
    %s62 = sphi 0, %s61
    %s78 = sphi 0, %s62
    %s86 = sphi 0, %s88
    %s89 = sphi 0, %s86
    %s90 = sphi 0, %s89
    %s106 = sphi 0, %s90
  $region4: #{dgcnn_encoder.24} parent=0 // loop_header_branch
    %11 = sbr.rel (%p9) target = $region8
  $region5: #{dgcnn_encoder.24} parent=0 // loop_body
    %s13 = ssub.s32 %s8, 1
    %s14 = ssub.s32 %s8, 2
    %s21 = sadd.s32 1, %s16
    %p22 = scmp.ge.s32.totalorder %s21, 1
    %s23 = scalar_select %p22, 0, %s21
    %s24 = sadd.s32 1, %s15
    %s25 = scalar_select %p22, %s24, %s15
    %p26 = scmp.ge.s32.totalorder %s25, 2
    %s27 = scalar_select %p26, 0, %s25
    %s28 = ssub.s32 %s15, %s27
    %s29 = ssub.s32 %s16, %s23
    %s30 = sor.u32 %s28, %s29
    %p31 = scmp.eq.s32.totalorder %s30, 0
    %s33 = sadd.s32 %s32, 1
    %s34 = scalar_select %p31, %s32, %s33
    %p37 = pneg %p31
    %p38 = scmp.eq.s32.totalorder %s8, 1
    %p39 = por %p37, %p38
    %p40 = scmp.ne.s32.totalorder %s32, %s35
    %p41 = scmp.eq.s32.totalorder %s8, 0
    %p42 = por %p40, %p41
    %p43 = scmp.ne.s32.totalorder %s32, %s35
    %p44 = scmp.eq.s32.totalorder %s13, 1
    %p45 = por %p43, %p44
    %p46 = scmp.ne.s32.totalorder %s35, %s36
    %p47 = scmp.eq.s32.totalorder %s13, 0
    %p48 = por %p46, %p47
    %p49 = scmp.ne.s32.totalorder %s35, %s36
    %p50 = scmp.eq.s32.totalorder %s14, 1
    %p51 = por %p49, %p50
    %p53 = scmp.ne.s32.totalorder %s36, %s52
    %p54 = scmp.eq.s32.totalorder %s14, 0
    %p55 = por %p53, %p54
    %s56 = ssub.s32 %s15, %s27
    %p57 = scmp.eq.s32.totalorder %s56, 0
    %s59 = sadd.s32 %s58, 1
    %s60 = scalar_select %p57, %s58, %s59
    %p63 = pneg %p57
    %p64 = scmp.eq.s32.totalorder %s8, 1
    %p65 = por %p63, %p64
    %p66 = scmp.ne.s32.totalorder %s58, %s61
    %p67 = scmp.eq.s32.totalorder %s8, 0
    %p68 = por %p66, %p67
    %p69 = scmp.ne.s32.totalorder %s58, %s61
    %p70 = scmp.eq.s32.totalorder %s13, 1
    %p71 = por %p69, %p70
    %p72 = scmp.ne.s32.totalorder %s61, %s62
    %p73 = scmp.eq.s32.totalorder %s13, 0
    %p74 = por %p72, %p73
    %p75 = scmp.ne.s32.totalorder %s61, %s62
    %p76 = scmp.eq.s32.totalorder %s14, 1
    %p77 = por %p75, %p76
    %p79 = scmp.ne.s32.totalorder %s62, %s78
    %p80 = scmp.eq.s32.totalorder %s14, 0
    %p81 = por %p79, %p80
    %s82 = ssub.s32 %s15, %s27
    %s83 = ssub.s32 %s16, %s23
    %s84 = sor.u32 %s82, %s83
    %p85 = scmp.eq.s32.totalorder %s84, 0
    %s87 = sadd.s32 %s86, 1
    %s88 = scalar_select %p85, %s86, %s87
    %p91 = pneg %p85
    %p92 = scmp.eq.s32.totalorder %s8, 1
    %p93 = por %p91, %p92
    %p94 = scmp.ne.s32.totalorder %s86, %s89
    %p95 = scmp.eq.s32.totalorder %s8, 0
    %p96 = por %p94, %p95
    %p97 = scmp.ne.s32.totalorder %s86, %s89
    %p98 = scmp.eq.s32.totalorder %s13, 1
    %p99 = por %p97, %p98
    %p100 = scmp.ne.s32.totalorder %s89, %s90
    %p101 = scmp.eq.s32.totalorder %s13, 0
    %p102 = por %p100, %p101
    %p103 = scmp.ne.s32.totalorder %s89, %s90
    %p104 = scmp.eq.s32.totalorder %s14, 1
    %p105 = por %p103, %p104
    %p107 = scmp.ne.s32.totalorder %s90, %s106
    %p108 = scmp.eq.s32.totalorder %s14, 0
    %p109 = por %p107, %p108
    %p110 = scmp.le.s32.totalorder 1, %s8
    %p111 = scmp.lt.s32.totalorder %s8, 3
    %p112 = pnand %p110, %p111
    %p113 = pneg %p112
    // Predicated region
    $region9: #{dgcnn_encoder.24} parent=5 // pred_check
      _
    $region10: #{dgcnn_encoder.24} parent=5 // pred_check_branch
      %115 = sbr.rel (%p112) target = $region12
    $region11: #{dgcnn_encoder.24} parent=5 // pred_region
      %s116 = ssub.s32 %s8, 1
    $region12: #{dgcnn_encoder.24} parent=5 // pred_fallthru
      _
    %p117 = scmp.lt.s32.totalorder %s8, 2
    // Predicated region
    $region13: #{dgcnn_encoder.24} parent=5 // pred_check
      %p118 = pneg %p117
    $region14: #{dgcnn_encoder.24} parent=5 // pred_check_branch
      %120 = sbr.rel (%p118) target = $region16
    $region15: #{dgcnn_encoder.24} parent=5 // pred_region
      // Predicated region
      $region17: #{dgcnn_encoder.24} parent=15 // pred_check
        %p121 = pneg %p42
      $region18: #{dgcnn_encoder.24} parent=15 // pred_check_branch
        %123 = sbr.rel (%p121) target = $region20
      $region19: #{dgcnn_encoder.24} parent=15 // pred_region
        %s124 = smul.u32 2, %s16
        %p125 = scmp.lt.s32.totalorder %s15, 1
        %s126 = scalar_select %p125, %s15, 1
        %p127 = scmp.lt.s32.totalorder %s124, 1
        %s128 = scalar_select %p127, %s124, 1
        %s129 = smul.addr %s126, 2
        %s130 = sadd.s32 %s128, %s129
        %s131 = smul.addr %s130, 8
        %s132 = scalar_lea.vmem %s0, %s131
        %s133 = smul.u32 2, %s16
      $region20: #{dgcnn_encoder.24} parent=15 // pred_fallthru
        _
      // Predicated region
      $region21: #{dgcnn_encoder.24} parent=15 // pred_check
        %p134 = pneg %p68
      $region22: #{dgcnn_encoder.24} parent=15 // pred_check_branch
        %136 = sbr.rel (%p134) target = $region24
      $region23: #{dgcnn_encoder.24} parent=15 // pred_region
        %p137 = scmp.lt.s32.totalorder %s15, 1
        %s138 = scalar_select %p137, %s15, 1
        %s139 = smul.addr %s138, 2
        %s140 = smul.addr %s139, 8
        %s141 = scalar_lea.vmem %s1, %s140
      $region24: #{dgcnn_encoder.24} parent=15 // pred_fallthru
        _
    $region16: #{dgcnn_encoder.24} parent=5 // pred_fallthru
      _
    %p142 = scmp.le.s32.totalorder 1, %s8
    %p143 = scmp.lt.s32.totalorder %s8, 3
    %p144 = pnand %p142, %p143
    %p145 = pneg %p144
    // Predicated region
    $region25: #{dgcnn_encoder.24} parent=5 // pred_check
      _
    $region26: #{dgcnn_encoder.24} parent=5 // pred_check_branch
      %147 = sbr.rel (%p144) target = $region28
    $region27: #{dgcnn_encoder.24} parent=5 // pred_region
      %s148 = ssub.s32 %s8, 1
      %s149 = smul.u32 2, %s18
      %p150 = scmp.lt.s32.totalorder %s17, 1
      %s151 = scalar_select %p150, %s17, 1
      %p152 = scmp.lt.s32.totalorder %s149, 1
      %s153 = scalar_select %p152, %s149, 1
      %s154 = smul.addr %s151, 2
      %s155 = sadd.s32 %s153, %s154
      %s156 = smul.addr %s155, 8
      %s157 = scalar_lea.vmem %s0, %s156
      %p158 = pneg %p48
      %p159 = pneg %p45
      %p160 = scmp.lt.s32.totalorder %s17, 1
      %s161 = scalar_select %p160, %s17, 1
      %s162 = smul.addr %s161, 2
      %s163 = smul.addr %s162, 8
      %s164 = scalar_lea.vmem %s1, %s163
      %p165 = pneg %p74
      %p166 = pneg %p71
      %p167 = pneg %p102
      %p168 = pneg %p99
      %s169 = smul.u32 2, %s18
      %p170 = scmp.lt.s32.totalorder %s17, 1
      %s171 = scalar_select %p170, %s17, 1
      %p172 = scmp.lt.s32.totalorder %s169, 1
      %s173 = scalar_select %p172, %s169, 1
      %s174 = smul.addr %s171, 2
      %s175 = sadd.s32 %s173, %s174
      %s176 = smul.addr %s175, 8
      %s177 = scalar_lea.vmem %s2, %s176
      %s178 = smul.u32 2, %s18
      %p179 = scmp.lt.s32.totalorder %s17, 1
      %s180 = scalar_select %p179, %s17, 1
      %p181 = scmp.lt.s32.totalorder %s178, 1
      %s182 = scalar_select %p181, %s178, 1
      %s183 = smul.addr %s180, 2
      %s184 = sadd.s32 %s182, %s183
      %s185 = smul.addr %s184, 8
      %s186 = scalar_lea.vmem %s0, %s185
      %s187 = smul.u32 2, %s18
      %p188 = scmp.lt.s32.totalorder %s17, 1
      %s189 = scalar_select %p188, %s17, 1
      %s190 = smul.addr %s189, 2
      %s191 = smul.addr %s190, 8
      %s192 = scalar_lea.vmem %s1, %s191
      %s193 = smul.u32 2, %s18
      %p194 = scmp.lt.s32.totalorder %s17, 1
      %s195 = scalar_select %p194, %s17, 1
      %p196 = scmp.lt.s32.totalorder %s193, 1
      %s197 = scalar_select %p196, %s193, 1
      %s198 = smul.addr %s195, 2
      %s199 = sadd.s32 %s197, %s198
      %s200 = smul.addr %s199, 8
      %s201 = scalar_lea.vmem %s2, %s200
      %s202 = smul.u32 2, %s18
      %v203 = vld [vmem:[%s186] sm:$0xff]
      %v204 = vld [vmem:[%s186 + $0x8] sm:$0xff]
      %v205 = vld [vmem:[%s192] sm:$0xff]
      %v206 = vld [vmem:[%s192 + $0x8] sm:$0xff]
      %v207 = vmul.f32 %v203, %v203
      %v208 = vmul.f32 %v204, %v204
      %209 = vadd.xlane.f32.xlu0 %v207
      %v210 = vpop.xlane.xlu0 %209
      %211 = vadd.xlane.f32.xlu0 %v208
      %v212 = vpop.xlane.xlu0 %211
      %v213 = vmul.f32 %v205, %v205
      %v214 = vmul.f32 %v206, %v206
      %215 = vadd.xlane.f32.xlu0 %v213
      %v216 = vpop.xlane.xlu0 %215
      %217 = vadd.xlane.f32.xlu0 %v214
      %v218 = vpop.xlane.xlu0 %217
      %219 = vmatprep.subr.mxu0 0.0
      %220 = vmatpush1.xpose.msra.mxu0 0.0
      %221 = vmatprep.subr.mxu0 0.0
      %222 = vmatpush1.xpose.msra.mxu0 0.0
      %223 = vmatprep.subr.mxu0 0.0
      %224 = vmatpush1.xpose.msra.mxu0 0.0
      %225 = vmatprep.subr.mxu0 0.0
      %226 = vmatpush1.xpose.msra.mxu0 0.0
      %227 = vmatprep.subr.mxu0 0.0
      %228 = vmatpush1.xpose.msra.mxu0 0.0
      %229 = vmatprep.subr.mxu0 0.0
      %230 = vmatpush1.xpose.msra.mxu0 0.0
      %231 = vmatprep.subr.mxu0 0.0
      %232 = vmatpush1.xpose.msra.mxu0 0.0
      %233 = vmatprep.subr.mxu0 0.0
      %234 = vmatpush1.xpose.msra.mxu0 0.0
      %235 = vmatprep.subr.mxu0 0.0
      %236 = vmatpush1.xpose.msra.mxu0 0.0
      %237 = vmatprep.subr.mxu0 0.0
      %238 = vmatpush1.xpose.msra.mxu0 0.0
      %239 = vmatprep.subr.mxu0 0.0
      %240 = vmatpush1.xpose.msra.mxu0 0.0
      %241 = vmatprep.subr.mxu0 0.0
      %242 = vmatpush1.xpose.msra.mxu0 0.0
      %243 = vmatprep.subr.mxu0 0.0
      %244 = vmatpush1.xpose.msra.mxu0 0.0
      %245 = vmatprep.subr.mxu0 0.0
      %246 = vmatpush1.xpose.msra.mxu0 0.0
      %247 = vmatprep.subr.mxu0 0.0
      %248 = vmatpush1.xpose.msra.mxu0 %v206
      %249 = vmatprep.subr.mxu0 0.0
      %250 = vmatpush1.xpose.msra.mxu0 %v205
      %251 = vmatprep.subr.mxu0 0.0
      %252 = vmatpush2.xpose.msra.mxu0 0.0
      %253 = vmatprep.subr.mxu0 0.0
      %254 = vmatpush2.xpose.msra.mxu0 0.0
      %255 = vmatprep.subr.mxu0 0.0
      %256 = vmatpush2.xpose.msra.mxu0 0.0
      %257 = vmatprep.subr.mxu0 0.0
      %258 = vmatpush2.xpose.msra.mxu0 0.0
      %259 = vmatprep.subr.mxu0 0.0
      %260 = vmatpush2.xpose.msra.mxu0 0.0
      %261 = vmatprep.subr.mxu0 0.0
      %262 = vmatpush2.xpose.msra.mxu0 0.0
      %263 = vmatprep.subr.mxu0 0.0
      %264 = vmatpush2.xpose.msra.mxu0 0.0
      %265 = vmatprep.subr.mxu0 0.0
      %266 = vmatpush2.xpose.msra.mxu0 0.0
      %267 = vmatprep.subr.mxu0 0.0
      %268 = vmatpush2.xpose.msra.mxu0 0.0
      %269 = vmatprep.subr.mxu0 0.0
      %270 = vmatpush2.xpose.msra.mxu0 0.0
      %271 = vmatprep.subr.mxu0 0.0
      %272 = vmatpush2.xpose.msra.mxu0 0.0
      %273 = vmatprep.subr.mxu0 0.0
      %274 = vmatpush2.xpose.msra.mxu0 0.0
      %275 = vmatprep.subr.mxu0 0.0
      %276 = vmatpush2.xpose.msra.mxu0 0.0
      %277 = vmatprep.subr.mxu0 0.0
      %278 = vmatpush2.xpose.msra.mxu0 0.0
      %279 = vmatprep.subr.mxu0 0.0
      %280 = vmatpush2.xpose.msra.mxu0 0.0
      %281 = vmatprep.subr.mxu0 0.0
      %282 = vmatpush2.xpose.msra.mxu0 0.0
      %283 = vmatprep.mubr.f32.mxu0 0.0
      %284 = vmatmul.mubr.f32.gmra.mxu0 %v203
      %v285 = vpop.f32.mrf.mxu0
      %v286 = vadd.f32 0.0, %v285
      %v287 = vpop.f32.mrf.mxu0
      %288 = vmatprep.mubr.f32.mxu0 0.0
      %289 = vmatmul.mubr.f32.gmra.mxu0 %v204
      %v290 = vpop.f32.mrf.mxu0
      %v291 = vadd.f32 0.0, %v290
      %v292 = vpop.f32.mrf.mxu0
      %293 = vdwg.mxu0
      %v294 = vmul.f32 %v286, 2.0
      %v295 = vmul.f32 %v291, 2.0
      %v296 = vsub.f32 %v294, %v210
      %v297 = vsub.f32 %v295, %v212
      %v300 = vlaneseq
      %v301 = vand.u32 %v300, 127
      %v302 = vlaneseq
      %v303 = vshrl.u32 %v302, 7
      %v304 = vsub.s32 %v301, %v303
      %v305 = vrot.slane %v216, %v304
      %v306 = vadd.s32 %v301, 4294967288
      %v307 = vlaneseq
      %v308 = vshrl.u32 %v307, 7
      %v309 = vsub.s32 %v306, %v308
      %v310 = vrot.slane %v218, %v309
      %vm311 = vcmask 130112
      %v312 = vsel %vm311, %v310, %v305
      %vm313 = vcmask 1042434
      %v314 = vsel %vm313, %v312, %v312
      %vm315 = vcmask 1043459
      %v316 = vsel %vm315, %v312, %v314
      %vm317 = vcmask 1044484
      %v318 = vsel %vm317, %v312, %v316
      %vm319 = vcmask 1045509
      %v320 = vsel %vm319, %v312, %v318
      %vm321 = vcmask 1046534
      %v322 = vsel %vm321, %v312, %v320
      %vm323 = vcmask 1047559
      %v324 = vsel %vm323, %v312, %v322
      %v326 = vsub.f32 %v296, %v324
      %v327 = vsub.f32 %v297, %v324
      %vm328 = vcmask 130048
      %329 = vst.msk [vmem:[%s201] sm:$0xff] %vm328, %v326
      %330 = vst.msk [vmem:[%s201 + $0x8] sm:$0xff] %vm328, %v327
      %s331 = smul.u32 2, %s18
      %p332 = scmp.lt.s32.totalorder %s17, 1
      %s333 = scalar_select %p332, %s17, 1
      %p334 = scmp.lt.s32.totalorder %s331, 1
      %s335 = scalar_select %p334, %s331, 1
      %s336 = smul.addr %s333, 2
      %s337 = sadd.s32 %s335, %s336
      %s338 = smul.addr %s337, 8
      %s339 = scalar_lea.vmem %s2, %s338
      // Predicated region
      $region29: #{dgcnn_encoder.24} parent=27 // pred_check
        %p340 = pneg %p99
      $region30: #{dgcnn_encoder.24} parent=27 // pred_check_branch
        %342 = sbr.rel (%p340) target = $region32
      $region31: #{dgcnn_encoder.24} parent=27 // pred_region
        %s343 = smul.u32 2, %s18
      $region32: #{dgcnn_encoder.24} parent=27 // pred_fallthru
        _
    $region28: #{dgcnn_encoder.24} parent=5 // pred_fallthru
      _
    %p344 = scmp.le.s32.totalorder 2, %s8
    // Predicated region
    $region33: #{dgcnn_encoder.24} parent=5 // pred_check
      %p345 = pneg %p344
    $region34: #{dgcnn_encoder.24} parent=5 // pred_check_branch
      %347 = sbr.rel (%p345) target = $region36
    $region35: #{dgcnn_encoder.24} parent=5 // pred_region
      %s348 = ssub.s32 %s8, 2
      // Predicated region
      $region37: #{dgcnn_encoder.24} parent=35 // pred_check
        %p349 = pneg %p105
      $region38: #{dgcnn_encoder.24} parent=35 // pred_check_branch
        %351 = sbr.rel (%p349) target = $region40
      $region39: #{dgcnn_encoder.24} parent=35 // pred_region
        %s352 = smul.u32 2, %s20
        %p353 = scmp.lt.s32.totalorder %s19, 1
        %s354 = scalar_select %p353, %s19, 1
        %p355 = scmp.lt.s32.totalorder %s352, 1
        %s356 = scalar_select %p355, %s352, 1
        %s357 = smul.addr %s354, 2
        %s358 = sadd.s32 %s356, %s357
        %s359 = smul.addr %s358, 8
        %s360 = scalar_lea.vmem %s2, %s359
      $region40: #{dgcnn_encoder.24} parent=35 // pred_fallthru
        _
    $region36: #{dgcnn_encoder.24} parent=5 // pred_fallthru
      _
  $region6: #{dgcnn_encoder.24} parent=0 // loop_footer
    %s12 = sadd.s32 1, %s8
  $region7: #{dgcnn_encoder.24} parent=0 // loop_footer_branch
    %7 = sbr.rel target = $region3
  $region8: #{dgcnn_encoder.24} parent=0 // loop_exit
    _

// kernel: dgcnn_encoder.26
$region0: #{dgcnn_encoder.26}
  #allocation0 [shape = 'u32[]', space=smem, size = 0x4, offset = 0x4, fixed_abs, tag = 'smem constant byte address 0x4 - core index']
  #allocation1 [shape = 'u32[144,128]{1,0:T(1,128)}', space=vmem, size = 0x12000, scoped, tag = 'internal scratch']
  %s0 = inlined_call_operand.vmem [shape: f32[32,4,256], index: 0, kind: input, shape index: {}]
  %s1 = inlined_call_operand.vmem [shape: f32[32,256], index: 1, kind: input, shape index: {}]
  %s2 = inlined_call_operand.vmem [shape: f32[32,256], index: 2, kind: output, shape index: {}]
  %s3 = sld [smem:[#allocation0]]
  $region18: #{dgcnn_encoder.26} parent=0
    _
  %s5 = ssub.s32 1, %s3
  %s6 = scalar_select 0, %s5, %s3
  // Predicated region
  $region2: #{dgcnn_encoder.26} parent=0 // pred_check
    _
  $region3: #{dgcnn_encoder.26} parent=0 // pred_check_branch
    %8 = sbr.rel (0) target = $region5
  $region4: #{dgcnn_encoder.26} parent=0 // pred_region
    _
  $region5: #{dgcnn_encoder.26} parent=0 // pred_fallthru
    _
  // Predicated region
  $region6: #{dgcnn_encoder.26} parent=0 // pred_check
    _
  $region7: #{dgcnn_encoder.26} parent=0 // pred_check_branch
    %10 = sbr.rel (0) target = $region9
  $region8: #{dgcnn_encoder.26} parent=0 // pred_region
    _
  $region9: #{dgcnn_encoder.26} parent=0 // pred_fallthru
    _
  %v11 = vld [vmem:[%s0] sm:$0xff]
  %v12 = vld [vmem:[%s0 + $0x8] sm:$0xff]
  %v13 = vld [vmem:[%s0 + $0x10] sm:$0xff]
  %v14 = vld [vmem:[%s0 + $0x18] sm:$0xff]
  %v15 = vld [vmem:[%s0 + $0x20] sm:$0xff]
  %v16 = vld [vmem:[%s0 + $0x28] sm:$0xff]
  %v17 = vld [vmem:[%s0 + $0x30] sm:$0xff]
  %v18 = vld [vmem:[%s0 + $0x38] sm:$0xff]
  %v19 = vld [vmem:[%s0 + $0x40] sm:$0xff]
  %v20 = vld [vmem:[%s0 + $0x48] sm:$0xff]
  %v21 = vld [vmem:[%s0 + $0x50] sm:$0xff]
  %v22 = vld [vmem:[%s0 + $0x58] sm:$0xff]
  %v23 = vld [vmem:[%s0 + $0x60] sm:$0xff]
  %v24 = vld [vmem:[%s0 + $0x68] sm:$0xff]
  %v25 = vld [vmem:[%s0 + $0x70] sm:$0xff]
  %v26 = vld [vmem:[%s0 + $0x78] sm:$0xff]
  %v27 = vld [vmem:[%s0 + $0x80] sm:$0xff]
  %v28 = vld [vmem:[%s0 + $0x88] sm:$0xff]
  %v29 = vld [vmem:[%s0 + $0x90] sm:$0xff]
  %v30 = vld [vmem:[%s0 + $0x98] sm:$0xff]
  %v31 = vld [vmem:[%s0 + $0xa0] sm:$0xff]
  %v32 = vld [vmem:[%s0 + $0xa8] sm:$0xff]
  %v33 = vld [vmem:[%s0 + $0xb0] sm:$0xff]
  %v34 = vld [vmem:[%s0 + $0xb8] sm:$0xff]
  %v35 = vld [vmem:[%s0 + $0xc0] sm:$0xff]
  %v36 = vld [vmem:[%s0 + $0xc8] sm:$0xff]
  %v37 = vld [vmem:[%s0 + $0xd0] sm:$0xff]
  %v38 = vld [vmem:[%s0 + $0xd8] sm:$0xff]
  %v39 = vld [vmem:[%s0 + $0xe0] sm:$0xff]
  %v40 = vld [vmem:[%s0 + $0xe8] sm:$0xff]
  %v41 = vld [vmem:[%s0 + $0xf0] sm:$0xff]
  %v42 = vld [vmem:[%s0 + $0xf8] sm:$0xff]
  %v43 = vld [vmem:[%s1] sm:$0xff]
  %v44 = vld [vmem:[%s1 + $0x8] sm:$0xff]
  %v45 = vld [vmem:[%s1 + $0x10] sm:$0xff]
  %v46 = vld [vmem:[%s1 + $0x18] sm:$0xff]
  %v47 = vld [vmem:[%s1 + $0x20] sm:$0xff]
  %v48 = vld [vmem:[%s1 + $0x28] sm:$0xff]
  %v49 = vld [vmem:[%s1 + $0x30] sm:$0xff]
  %v50 = vld [vmem:[%s1 + $0x38] sm:$0xff]
  %v59 = vcombine.low %v43, %v44
  %v60 = vcombine.high %v43, %v44
  %v62 = vunpack.c.l.s4 1966171168
  %v63 = vunpack.c.0.s8 %v62
  %v64 = vlaneseq
  %v65 = vshrl.u32 %v64, 7
  %v66 = vsub.s32 %v63, %v65
  %v67 = vrot.slane %v59, %v66
  %v69 = vunpack.c.l.s4 1966171168
  %v70 = vunpack.c.0.s8 %v69
  %v71 = vlaneseq
  %v72 = vshrl.u32 %v71, 7
  %v73 = vsub.s32 %v70, %v72
  %v74 = vrot.slane %v60, %v73
  %v75 = vcombine.high %v67, %v67
  %v76 = vcombine.high %v74, %v74
  %v78 = vunpack.c.l.s4 1966171168
  %v79 = vunpack.c.0.s8 %v78
  %v80 = vlaneseq
  %v81 = vshrl.u32 %v80, 7
  %v82 = vsub.s32 %v79, %v81
  %v83 = vrot.slane %v67, %v82
  %v85 = vunpack.c.l.s4 1966171168
  %v86 = vunpack.c.0.s8 %v85
  %v87 = vlaneseq
  %v88 = vshrl.u32 %v87, 7
  %v89 = vsub.s32 %v86, %v88
  %v90 = vrot.slane %v74, %v89
  %v92 = vunpack.c.l.s4 1966171168
  %v93 = vunpack.c.0.s8 %v92
  %v94 = vlaneseq
  %v95 = vshrl.u32 %v94, 7
  %v96 = vsub.s32 %v93, %v95
  %v97 = vrot.slane %v75, %v96
  %v99 = vunpack.c.l.s4 1966171168
  %v100 = vunpack.c.0.s8 %v99
  %v101 = vlaneseq
  %v102 = vshrl.u32 %v101, 7
  %v103 = vsub.s32 %v100, %v102
  %v104 = vrot.slane %v76, %v103
  %v105 = vcombine.high %v83, %v83
  %v106 = vcombine.high %v90, %v90
  %v107 = vcombine.high %v97, %v97
  %v108 = vcombine.high %v104, %v104
  %v109 = vcombine.low %v45, %v46
  %v110 = vcombine.high %v45, %v46
  %v112 = vunpack.c.l.s4 1966171168
  %v113 = vunpack.c.0.s8 %v112
  %v114 = vlaneseq
  %v115 = vshrl.u32 %v114, 7
  %v116 = vsub.s32 %v113, %v115
  %v117 = vrot.slane %v109, %v116
  %v119 = vunpack.c.l.s4 1966171168
  %v120 = vunpack.c.0.s8 %v119
  %v121 = vlaneseq
  %v122 = vshrl.u32 %v121, 7
  %v123 = vsub.s32 %v120, %v122
  %v124 = vrot.slane %v110, %v123
  %v125 = vcombine.high %v117, %v117
  %v126 = vcombine.high %v124, %v124
  %v128 = vunpack.c.l.s4 1966171168
  %v129 = vunpack.c.0.s8 %v128
  %v130 = vlaneseq
  %v131 = vshrl.u32 %v130, 7
  %v132 = vsub.s32 %v129, %v131
  %v133 = vrot.slane %v117, %v132
  %v135 = vunpack.c.l.s4 1966171168
  %v136 = vunpack.c.0.s8 %v135
  %v137 = vlaneseq
  %v138 = vshrl.u32 %v137, 7
  %v139 = vsub.s32 %v136, %v138
  %v140 = vrot.slane %v124, %v139
  %v142 = vunpack.c.l.s4 1966171168
  %v143 = vunpack.c.0.s8 %v142
  %v144 = vlaneseq
  %v145 = vshrl.u32 %v144, 7
  %v146 = vsub.s32 %v143, %v145
  %v147 = vrot.slane %v125, %v146
  %v149 = vunpack.c.l.s4 1966171168
  %v150 = vunpack.c.0.s8 %v149
  %v151 = vlaneseq
  %v152 = vshrl.u32 %v151, 7
  %v153 = vsub.s32 %v150, %v152
  %v154 = vrot.slane %v126, %v153
  %v155 = vcombine.high %v133, %v133
  %v156 = vcombine.high %v140, %v140
  %v157 = vcombine.high %v147, %v147
  %v158 = vcombine.high %v154, %v154
  %v159 = vcombine.low %v47, %v48
  %v160 = vcombine.high %v47, %v48
  %v162 = vunpack.c.l.s4 1966171168
  %v163 = vunpack.c.0.s8 %v162
  %v164 = vlaneseq
  %v165 = vshrl.u32 %v164, 7
  %v166 = vsub.s32 %v163, %v165
  %v167 = vrot.slane %v159, %v166
  %v169 = vunpack.c.l.s4 1966171168
  %v170 = vunpack.c.0.s8 %v169
  %v171 = vlaneseq
  %v172 = vshrl.u32 %v171, 7
  %v173 = vsub.s32 %v170, %v172
  %v174 = vrot.slane %v160, %v173
  %v175 = vcombine.high %v167, %v167
  %v176 = vcombine.high %v174, %v174
  %v178 = vunpack.c.l.s4 1966171168
  %v179 = vunpack.c.0.s8 %v178
  %v180 = vlaneseq
  %v181 = vshrl.u32 %v180, 7
  %v182 = vsub.s32 %v179, %v181
  %v183 = vrot.slane %v167, %v182
  %v185 = vunpack.c.l.s4 1966171168
  %v186 = vunpack.c.0.s8 %v185
  %v187 = vlaneseq
  %v188 = vshrl.u32 %v187, 7
  %v189 = vsub.s32 %v186, %v188
  %v190 = vrot.slane %v174, %v189
  %v192 = vunpack.c.l.s4 1966171168
  %v193 = vunpack.c.0.s8 %v192
  %v194 = vlaneseq
  %v195 = vshrl.u32 %v194, 7
  %v196 = vsub.s32 %v193, %v195
  %v197 = vrot.slane %v175, %v196
  %v199 = vunpack.c.l.s4 1966171168
  %v200 = vunpack.c.0.s8 %v199
  %v201 = vlaneseq
  %v202 = vshrl.u32 %v201, 7
  %v203 = vsub.s32 %v200, %v202
  %v204 = vrot.slane %v176, %v203
  %v205 = vcombine.high %v183, %v183
  %v206 = vcombine.high %v190, %v190
  %v207 = vcombine.high %v197, %v197
  %v208 = vcombine.high %v204, %v204
  %v209 = vcombine.low %v49, %v50
  %v210 = vcombine.high %v49, %v50
  %v212 = vunpack.c.l.s4 1966171168
  %v213 = vunpack.c.0.s8 %v212
  %v214 = vlaneseq
  %v215 = vshrl.u32 %v214, 7
  %v216 = vsub.s32 %v213, %v215
  %v217 = vrot.slane %v209, %v216
  %v219 = vunpack.c.l.s4 1966171168
  %v220 = vunpack.c.0.s8 %v219
  %v221 = vlaneseq
  %v222 = vshrl.u32 %v221, 7
  %v223 = vsub.s32 %v220, %v222
  %v224 = vrot.slane %v210, %v223
  %v225 = vcombine.high %v217, %v217
  %v226 = vcombine.high %v224, %v224
  %v228 = vunpack.c.l.s4 1966171168
  %v229 = vunpack.c.0.s8 %v228
  %v230 = vlaneseq
  %v231 = vshrl.u32 %v230, 7
  %v232 = vsub.s32 %v229, %v231
  %v233 = vrot.slane %v217, %v232
  %v235 = vunpack.c.l.s4 1966171168
  %v236 = vunpack.c.0.s8 %v235
  %v237 = vlaneseq
  %v238 = vshrl.u32 %v237, 7
  %v239 = vsub.s32 %v236, %v238
  %v240 = vrot.slane %v224, %v239
  %v242 = vunpack.c.l.s4 1966171168
  %v243 = vunpack.c.0.s8 %v242
  %v244 = vlaneseq
  %v245 = vshrl.u32 %v244, 7
  %v246 = vsub.s32 %v243, %v245
  %v247 = vrot.slane %v225, %v246
  %v249 = vunpack.c.l.s4 1966171168
  %v250 = vunpack.c.0.s8 %v249
  %v251 = vlaneseq
  %v252 = vshrl.u32 %v251, 7
  %v253 = vsub.s32 %v250, %v252
  %v254 = vrot.slane %v226, %v253
  %v255 = vcombine.high %v233, %v233
  %v256 = vcombine.high %v240, %v240
  %v257 = vcombine.high %v247, %v247
  %v258 = vcombine.high %v254, %v254
  %v259 = vlaneseq
  %v260 = vshrl.u32 %v259, 7
  %v261 = vsub.s32 0, %v260
  %v262 = vrot.slane %v83, %v261
  %v263 = vlaneseq
  %v264 = vshrl.u32 %v263, 7
  %v265 = vsub.s32 1, %v264
  %v266 = vrot.slane %v83, %v265
  %v267 = vlaneseq
  %v268 = vshrl.u32 %v267, 7
  %v269 = vsub.s32 0, %v268
  %v270 = vrot.slane %v97, %v269
  %v271 = vlaneseq
  %v272 = vshrl.u32 %v271, 7
  %v273 = vsub.s32 1, %v272
  %v274 = vrot.slane %v97, %v273
  %v275 = vlaneseq
  %v276 = vshrl.u32 %v275, 7
  %v277 = vsub.s32 0, %v276
  %v278 = vrot.slane %v105, %v277
  %v279 = vlaneseq
  %v280 = vshrl.u32 %v279, 7
  %v281 = vsub.s32 1, %v280
  %v282 = vrot.slane %v105, %v281
  %v283 = vlaneseq
  %v284 = vshrl.u32 %v283, 7
  %v285 = vsub.s32 0, %v284
  %v286 = vrot.slane %v107, %v285
  %v287 = vlaneseq
  %v288 = vshrl.u32 %v287, 7
  %v289 = vsub.s32 1, %v288
  %v290 = vrot.slane %v107, %v289
  %v291 = vlaneseq
  %v292 = vshrl.u32 %v291, 7
  %v293 = vsub.s32 0, %v292
  %v294 = vrot.slane %v90, %v293
  %v295 = vlaneseq
  %v296 = vshrl.u32 %v295, 7
  %v297 = vsub.s32 1, %v296
  %v298 = vrot.slane %v90, %v297
  %v299 = vlaneseq
  %v300 = vshrl.u32 %v299, 7
  %v301 = vsub.s32 0, %v300
  %v302 = vrot.slane %v104, %v301
  %v303 = vlaneseq
  %v304 = vshrl.u32 %v303, 7
  %v305 = vsub.s32 1, %v304
  %v306 = vrot.slane %v104, %v305
  %v307 = vlaneseq
  %v308 = vshrl.u32 %v307, 7
  %v309 = vsub.s32 0, %v308
  %v310 = vrot.slane %v106, %v309
  %v311 = vlaneseq
  %v312 = vshrl.u32 %v311, 7
  %v313 = vsub.s32 1, %v312
  %v314 = vrot.slane %v106, %v313
  %v315 = vlaneseq
  %v316 = vshrl.u32 %v315, 7
  %v317 = vsub.s32 0, %v316
  %v318 = vrot.slane %v108, %v317
  %v319 = vlaneseq
  %v320 = vshrl.u32 %v319, 7
  %v321 = vsub.s32 1, %v320
  %v322 = vrot.slane %v108, %v321
  %v323 = vlaneseq
  %v324 = vshrl.u32 %v323, 7
  %v325 = vsub.s32 0, %v324
  %v326 = vrot.slane %v133, %v325
  %v327 = vlaneseq
  %v328 = vshrl.u32 %v327, 7
  %v329 = vsub.s32 1, %v328
  %v330 = vrot.slane %v133, %v329
  %v331 = vlaneseq
  %v332 = vshrl.u32 %v331, 7
  %v333 = vsub.s32 0, %v332
  %v334 = vrot.slane %v147, %v333
  %v335 = vlaneseq
  %v336 = vshrl.u32 %v335, 7
  %v337 = vsub.s32 1, %v336
  %v338 = vrot.slane %v147, %v337
  %v339 = vlaneseq
  %v340 = vshrl.u32 %v339, 7
  %v341 = vsub.s32 0, %v340
  %v342 = vrot.slane %v155, %v341
  %v343 = vlaneseq
  %v344 = vshrl.u32 %v343, 7
  %v345 = vsub.s32 1, %v344
  %v346 = vrot.slane %v155, %v345
  %v347 = vlaneseq
  %v348 = vshrl.u32 %v347, 7
  %v349 = vsub.s32 0, %v348
  %v350 = vrot.slane %v157, %v349
  %v351 = vlaneseq
  %v352 = vshrl.u32 %v351, 7
  %v353 = vsub.s32 1, %v352
  %v354 = vrot.slane %v157, %v353
  %v355 = vlaneseq
  %v356 = vshrl.u32 %v355, 7
  %v357 = vsub.s32 0, %v356
  %v358 = vrot.slane %v140, %v357
  %v359 = vlaneseq
  %v360 = vshrl.u32 %v359, 7
  %v361 = vsub.s32 1, %v360
  %v362 = vrot.slane %v140, %v361
  %v363 = vlaneseq
  %v364 = vshrl.u32 %v363, 7
  %v365 = vsub.s32 0, %v364
  %v366 = vrot.slane %v154, %v365
  %v367 = vlaneseq
  %v368 = vshrl.u32 %v367, 7
  %v369 = vsub.s32 1, %v368
  %v370 = vrot.slane %v154, %v369
  %v371 = vlaneseq
  %v372 = vshrl.u32 %v371, 7
  %v373 = vsub.s32 0, %v372
  %v374 = vrot.slane %v156, %v373
  %v375 = vlaneseq
  %v376 = vshrl.u32 %v375, 7
  %v377 = vsub.s32 1, %v376
  %v378 = vrot.slane %v156, %v377
  %v379 = vlaneseq
  %v380 = vshrl.u32 %v379, 7
  %v381 = vsub.s32 0, %v380
  %v382 = vrot.slane %v158, %v381
  %v383 = vlaneseq
  %v384 = vshrl.u32 %v383, 7
  %v385 = vsub.s32 1, %v384
  %v386 = vrot.slane %v158, %v385
  %v387 = vlaneseq
  %v388 = vshrl.u32 %v387, 7
  %v389 = vsub.s32 0, %v388
  %v390 = vrot.slane %v183, %v389
  %v391 = vlaneseq
  %v392 = vshrl.u32 %v391, 7
  %v393 = vsub.s32 1, %v392
  %v394 = vrot.slane %v183, %v393
  %v395 = vlaneseq
  %v396 = vshrl.u32 %v395, 7
  %v397 = vsub.s32 0, %v396
  %v398 = vrot.slane %v197, %v397
  %v399 = vlaneseq
  %v400 = vshrl.u32 %v399, 7
  %v401 = vsub.s32 1, %v400
  %v402 = vrot.slane %v197, %v401
  %v403 = vlaneseq
  %v404 = vshrl.u32 %v403, 7
  %v405 = vsub.s32 0, %v404
  %v406 = vrot.slane %v205, %v405
  %v407 = vlaneseq
  %v408 = vshrl.u32 %v407, 7
  %v409 = vsub.s32 1, %v408
  %v410 = vrot.slane %v205, %v409
  %v411 = vlaneseq
  %v412 = vshrl.u32 %v411, 7
  %v413 = vsub.s32 0, %v412
  %v414 = vrot.slane %v207, %v413
  %v415 = vlaneseq
  %v416 = vshrl.u32 %v415, 7
  %v417 = vsub.s32 1, %v416
  %v418 = vrot.slane %v207, %v417
  %v419 = vlaneseq
  %v420 = vshrl.u32 %v419, 7
  %v421 = vsub.s32 0, %v420
  %v422 = vrot.slane %v190, %v421
  %v423 = vlaneseq
  %v424 = vshrl.u32 %v423, 7
  %v425 = vsub.s32 1, %v424
  %v426 = vrot.slane %v190, %v425
  %v427 = vlaneseq
  %v428 = vshrl.u32 %v427, 7
  %v429 = vsub.s32 0, %v428
  %v430 = vrot.slane %v204, %v429
  %v431 = vlaneseq
  %v432 = vshrl.u32 %v431, 7
  %v433 = vsub.s32 1, %v432
  %v434 = vrot.slane %v204, %v433
  %v435 = vlaneseq
  %v436 = vshrl.u32 %v435, 7
  %v437 = vsub.s32 0, %v436
  %v438 = vrot.slane %v206, %v437
  %v439 = vlaneseq
  %v440 = vshrl.u32 %v439, 7
  %v441 = vsub.s32 1, %v440
  %v442 = vrot.slane %v206, %v441
  %v443 = vlaneseq
  %v444 = vshrl.u32 %v443, 7
  %v445 = vsub.s32 0, %v444
  %v446 = vrot.slane %v208, %v445
  %v447 = vlaneseq
  %v448 = vshrl.u32 %v447, 7
  %v449 = vsub.s32 1, %v448
  %v450 = vrot.slane %v208, %v449
  %v451 = vlaneseq
  %v452 = vshrl.u32 %v451, 7
  %v453 = vsub.s32 0, %v452
  %v454 = vrot.slane %v233, %v453
  %v455 = vlaneseq
  %v456 = vshrl.u32 %v455, 7
  %v457 = vsub.s32 1, %v456
  %v458 = vrot.slane %v233, %v457
  %v459 = vlaneseq
  %v460 = vshrl.u32 %v459, 7
  %v461 = vsub.s32 0, %v460
  %v462 = vrot.slane %v247, %v461
  %v463 = vlaneseq
  %v464 = vshrl.u32 %v463, 7
  %v465 = vsub.s32 1, %v464
  %v466 = vrot.slane %v247, %v465
  %v467 = vlaneseq
  %v468 = vshrl.u32 %v467, 7
  %v469 = vsub.s32 0, %v468
  %v470 = vrot.slane %v255, %v469
  %v471 = vlaneseq
  %v472 = vshrl.u32 %v471, 7
  %v473 = vsub.s32 1, %v472
  %v474 = vrot.slane %v255, %v473
  %v475 = vlaneseq
  %v476 = vshrl.u32 %v475, 7
  %v477 = vsub.s32 0, %v476
  %v478 = vrot.slane %v257, %v477
  %v479 = vlaneseq
  %v480 = vshrl.u32 %v479, 7
  %v481 = vsub.s32 1, %v480
  %v482 = vrot.slane %v257, %v481
  %v483 = vlaneseq
  %v484 = vshrl.u32 %v483, 7
  %v485 = vsub.s32 0, %v484
  %v486 = vrot.slane %v240, %v485
  %v487 = vlaneseq
  %v488 = vshrl.u32 %v487, 7
  %v489 = vsub.s32 1, %v488
  %v490 = vrot.slane %v240, %v489
  %v491 = vlaneseq
  %v492 = vshrl.u32 %v491, 7
  %v493 = vsub.s32 0, %v492
  %v494 = vrot.slane %v254, %v493
  %v495 = vlaneseq
  %v496 = vshrl.u32 %v495, 7
  %v497 = vsub.s32 1, %v496
  %v498 = vrot.slane %v254, %v497
  %v499 = vlaneseq
  %v500 = vshrl.u32 %v499, 7
  %v501 = vsub.s32 0, %v500
  %v502 = vrot.slane %v256, %v501
  %v503 = vlaneseq
  %v504 = vshrl.u32 %v503, 7
  %v505 = vsub.s32 1, %v504
  %v506 = vrot.slane %v256, %v505
  %v507 = vlaneseq
  %v508 = vshrl.u32 %v507, 7
  %v509 = vsub.s32 0, %v508
  %v510 = vrot.slane %v258, %v509
  %v511 = vlaneseq
  %v512 = vshrl.u32 %v511, 7
  %v513 = vsub.s32 1, %v512
  %v514 = vrot.slane %v258, %v513
  %v515 = vcombine.low %v262, %v266
  %v516 = vcombine.low %v270, %v274
  %v517 = vcombine.low %v278, %v282
  %v518 = vcombine.low %v286, %v290
  %v519 = vcombine.low %v294, %v298
  %v520 = vcombine.low %v302, %v306
  %v521 = vcombine.low %v310, %v314
  %v522 = vcombine.low %v318, %v322
  %v523 = vcombine.low %v326, %v330
  %v524 = vcombine.low %v334, %v338
  %v525 = vcombine.low %v342, %v346
  %v526 = vcombine.low %v350, %v354
  %v527 = vcombine.low %v358, %v362
  %v528 = vcombine.low %v366, %v370
  %v529 = vcombine.low %v374, %v378
  %v530 = vcombine.low %v382, %v386
  %v531 = vcombine.low %v390, %v394
  %v532 = vcombine.low %v398, %v402
  %v533 = vcombine.low %v406, %v410
  %v534 = vcombine.low %v414, %v418
  %v535 = vcombine.low %v422, %v426
  %v536 = vcombine.low %v430, %v434
  %v537 = vcombine.low %v438, %v442
  %v538 = vcombine.low %v446, %v450
  %v539 = vcombine.low %v454, %v458
  %v540 = vcombine.low %v462, %v466
  %v541 = vcombine.low %v470, %v474
  %v542 = vcombine.low %v478, %v482
  %v543 = vcombine.low %v486, %v490
  %v544 = vcombine.low %v494, %v498
  %v545 = vcombine.low %v502, %v506
  %v546 = vcombine.low %v510, %v514
  %v579 = vadd.f32 %v11, %v515
  %v580 = vadd.f32 %v12, %v516
  %v581 = vadd.f32 %v13, %v517
  %v582 = vadd.f32 %v14, %v518
  %v583 = vadd.f32 %v15, %v519
  %v584 = vadd.f32 %v16, %v520
  %v585 = vadd.f32 %v17, %v521
  %v586 = vadd.f32 %v18, %v522
  %v587 = vadd.f32 %v19, %v523
  %v588 = vadd.f32 %v20, %v524
  %v589 = vadd.f32 %v21, %v525
  %v590 = vadd.f32 %v22, %v526
  %v591 = vadd.f32 %v23, %v527
  %v592 = vadd.f32 %v24, %v528
  %v593 = vadd.f32 %v25, %v529
  %v594 = vadd.f32 %v26, %v530
  %v595 = vadd.f32 %v27, %v531
  %v596 = vadd.f32 %v28, %v532
  %v597 = vadd.f32 %v29, %v533
  %v598 = vadd.f32 %v30, %v534
  %v599 = vadd.f32 %v31, %v535
  %v600 = vadd.f32 %v32, %v536
  %v601 = vadd.f32 %v33, %v537
  %v602 = vadd.f32 %v34, %v538
  %v603 = vadd.f32 %v35, %v539
  %v604 = vadd.f32 %v36, %v540
  %v605 = vadd.f32 %v37, %v541
  %v606 = vadd.f32 %v38, %v542
  %v607 = vadd.f32 %v39, %v543
  %v608 = vadd.f32 %v40, %v544
  %v609 = vadd.f32 %v41, %v545
  %v610 = vadd.f32 %v42, %v546
  %vm611 = vcmp.gt.f32.partialorder %v579, 0.0
  %vm612 = vcmp.gt.f32.partialorder %v580, 0.0
  %vm613 = vcmp.gt.f32.partialorder %v581, 0.0
  %vm614 = vcmp.gt.f32.partialorder %v582, 0.0
  %vm615 = vcmp.gt.f32.partialorder %v583, 0.0
  %vm616 = vcmp.gt.f32.partialorder %v584, 0.0
  %vm617 = vcmp.gt.f32.partialorder %v585, 0.0
  %vm618 = vcmp.gt.f32.partialorder %v586, 0.0
  %vm619 = vcmp.gt.f32.partialorder %v587, 0.0
  %vm620 = vcmp.gt.f32.partialorder %v588, 0.0
  %vm621 = vcmp.gt.f32.partialorder %v589, 0.0
  %vm622 = vcmp.gt.f32.partialorder %v590, 0.0
  %vm623 = vcmp.gt.f32.partialorder %v591, 0.0
  %vm624 = vcmp.gt.f32.partialorder %v592, 0.0
  %vm625 = vcmp.gt.f32.partialorder %v593, 0.0
  %vm626 = vcmp.gt.f32.partialorder %v594, 0.0
  %vm627 = vcmp.gt.f32.partialorder %v595, 0.0
  %vm628 = vcmp.gt.f32.partialorder %v596, 0.0
  %vm629 = vcmp.gt.f32.partialorder %v597, 0.0
  %vm630 = vcmp.gt.f32.partialorder %v598, 0.0
  %vm631 = vcmp.gt.f32.partialorder %v599, 0.0
  %vm632 = vcmp.gt.f32.partialorder %v600, 0.0
  %vm633 = vcmp.gt.f32.partialorder %v601, 0.0
  %vm634 = vcmp.gt.f32.partialorder %v602, 0.0
  %vm635 = vcmp.gt.f32.partialorder %v603, 0.0
  %vm636 = vcmp.gt.f32.partialorder %v604, 0.0
  %vm637 = vcmp.gt.f32.partialorder %v605, 0.0
  %vm638 = vcmp.gt.f32.partialorder %v606, 0.0
  %vm639 = vcmp.gt.f32.partialorder %v607, 0.0
  %vm640 = vcmp.gt.f32.partialorder %v608, 0.0
  %vm641 = vcmp.gt.f32.partialorder %v609, 0.0
  %vm642 = vcmp.gt.f32.partialorder %v610, 0.0
  %v643 = vmul.f32 %v579, 0.2
  %v644 = vmul.f32 %v580, 0.2
  %v645 = vmul.f32 %v581, 0.2
  %v646 = vmul.f32 %v582, 0.2
  %v647 = vmul.f32 %v583, 0.2
  %v648 = vmul.f32 %v584, 0.2
  %v649 = vmul.f32 %v585, 0.2
  %v650 = vmul.f32 %v586, 0.2
  %v651 = vmul.f32 %v587, 0.2
  %v652 = vmul.f32 %v588, 0.2
  %v653 = vmul.f32 %v589, 0.2
  %v654 = vmul.f32 %v590, 0.2
  %v655 = vmul.f32 %v591, 0.2
  %v656 = vmul.f32 %v592, 0.2
  %v657 = vmul.f32 %v593, 0.2
  %v658 = vmul.f32 %v594, 0.2
  %v659 = vmul.f32 %v595, 0.2
  %v660 = vmul.f32 %v596, 0.2
  %v661 = vmul.f32 %v597, 0.2
  %v662 = vmul.f32 %v598, 0.2
  %v663 = vmul.f32 %v599, 0.2
  %v664 = vmul.f32 %v600, 0.2
  %v665 = vmul.f32 %v601, 0.2
  %v666 = vmul.f32 %v602, 0.2
  %v667 = vmul.f32 %v603, 0.2
  %v668 = vmul.f32 %v604, 0.2
  %v669 = vmul.f32 %v605, 0.2
  %v670 = vmul.f32 %v606, 0.2
  %v671 = vmul.f32 %v607, 0.2
  %v672 = vmul.f32 %v608, 0.2
  %v673 = vmul.f32 %v609, 0.2
  %v674 = vmul.f32 %v610, 0.2
  %v675 = vsel %vm611, %v579, %v643
  %v676 = vsel %vm612, %v580, %v644
  %v677 = vsel %vm613, %v581, %v645
  %v678 = vsel %vm614, %v582, %v646
  %v679 = vsel %vm615, %v583, %v647
  %v680 = vsel %vm616, %v584, %v648
  %v681 = vsel %vm617, %v585, %v649
  %v682 = vsel %vm618, %v586, %v650
  %v683 = vsel %vm619, %v587, %v651
  %v684 = vsel %vm620, %v588, %v652
  %v685 = vsel %vm621, %v589, %v653
  %v686 = vsel %vm622, %v590, %v654
  %v687 = vsel %vm623, %v591, %v655
  %v688 = vsel %vm624, %v592, %v656
  %v689 = vsel %vm625, %v593, %v657
  %v690 = vsel %vm626, %v594, %v658
  %v691 = vsel %vm627, %v595, %v659
  %v692 = vsel %vm628, %v596, %v660
  %v693 = vsel %vm629, %v597, %v661
  %v694 = vsel %vm630, %v598, %v662
  %v695 = vsel %vm631, %v599, %v663
  %v696 = vsel %vm632, %v600, %v664
  %v697 = vsel %vm633, %v601, %v665
  %v698 = vsel %vm634, %v602, %v666
  %v699 = vsel %vm635, %v603, %v667
  %v700 = vsel %vm636, %v604, %v668
  %v701 = vsel %vm637, %v605, %v669
  %v702 = vsel %vm638, %v606, %v670
  %v703 = vsel %vm639, %v607, %v671
  %v704 = vsel %vm640, %v608, %v672
  %v705 = vsel %vm641, %v609, %v673
  %v706 = vsel %vm642, %v610, %v674
  %v739 = vcombine.high %v675, %v675
  %v740 = vcombine.high %v676, %v676
  %v741 = vcombine.high %v677, %v677
  %v742 = vcombine.high %v678, %v678
  %v743 = vcombine.high %v679, %v679
  %v744 = vcombine.high %v680, %v680
  %v745 = vcombine.high %v681, %v681
  %v746 = vcombine.high %v682, %v682
  %v747 = vcombine.high %v683, %v683
  %v748 = vcombine.high %v684, %v684
  %v749 = vcombine.high %v685, %v685
  %v750 = vcombine.high %v686, %v686
  %v751 = vcombine.high %v687, %v687
  %v752 = vcombine.high %v688, %v688
  %v753 = vcombine.high %v689, %v689
  %v754 = vcombine.high %v690, %v690
  %v755 = vcombine.high %v691, %v691
  %v756 = vcombine.high %v692, %v692
  %v757 = vcombine.high %v693, %v693
  %v758 = vcombine.high %v694, %v694
  %v759 = vcombine.high %v695, %v695
  %v760 = vcombine.high %v696, %v696
  %v761 = vcombine.high %v697, %v697
  %v762 = vcombine.high %v698, %v698
  %v763 = vcombine.high %v699, %v699
  %v764 = vcombine.high %v700, %v700
  %v765 = vcombine.high %v701, %v701
  %v766 = vcombine.high %v702, %v702
  %v767 = vcombine.high %v703, %v703
  %v768 = vcombine.high %v704, %v704
  %v769 = vcombine.high %v705, %v705
  %v770 = vcombine.high %v706, %v706
  %vm803 = vcmask 1043456
  %v804 = vsel %vm803, %v675, -inf
  %v805 = vrot.slane %v804, 4
  %v806 = vmax.f32 %v804, %v805
  %v807 = vrot.slane %v806, 2
  %v808 = vmax.f32 %v806, %v807
  %v809 = vrot.slane %v808, 1
  %v810 = vmax.f32 %v808, %v809
  %v811 = vsel %vm803, %v739, -inf
  %v812 = vrot.slane %v811, 4
  %v813 = vmax.f32 %v811, %v812
  %v814 = vrot.slane %v813, 2
  %v815 = vmax.f32 %v813, %v814
  %v816 = vrot.slane %v815, 1
  %v817 = vmax.f32 %v815, %v816
  %v818 = vsel %vm803, %v676, -inf
  %v819 = vrot.slane %v818, 4
  %v820 = vmax.f32 %v818, %v819
  %v821 = vrot.slane %v820, 2
  %v822 = vmax.f32 %v820, %v821
  %v823 = vrot.slane %v822, 1
  %v824 = vmax.f32 %v822, %v823
  %v825 = vsel %vm803, %v740, -inf
  %v826 = vrot.slane %v825, 4
  %v827 = vmax.f32 %v825, %v826
  %v828 = vrot.slane %v827, 2
  %v829 = vmax.f32 %v827, %v828
  %v830 = vrot.slane %v829, 1
  %v831 = vmax.f32 %v829, %v830
  %v832 = vsel %vm803, %v677, -inf
  %v833 = vrot.slane %v832, 4
  %v834 = vmax.f32 %v832, %v833
  %v835 = vrot.slane %v834, 2
  %v836 = vmax.f32 %v834, %v835
  %v837 = vrot.slane %v836, 1
  %v838 = vmax.f32 %v836, %v837
  %v839 = vsel %vm803, %v741, -inf
  %v840 = vrot.slane %v839, 4
  %v841 = vmax.f32 %v839, %v840
  %v842 = vrot.slane %v841, 2
  %v843 = vmax.f32 %v841, %v842
  %v844 = vrot.slane %v843, 1
  %v845 = vmax.f32 %v843, %v844
  %v846 = vsel %vm803, %v678, -inf
  %v847 = vrot.slane %v846, 4
  %v848 = vmax.f32 %v846, %v847
  %v849 = vrot.slane %v848, 2
  %v850 = vmax.f32 %v848, %v849
  %v851 = vrot.slane %v850, 1
  %v852 = vmax.f32 %v850, %v851
  %v853 = vsel %vm803, %v742, -inf
  %v854 = vrot.slane %v853, 4
  %v855 = vmax.f32 %v853, %v854
  %v856 = vrot.slane %v855, 2
  %v857 = vmax.f32 %v855, %v856
  %v858 = vrot.slane %v857, 1
  %v859 = vmax.f32 %v857, %v858
  %v860 = vsel %vm803, %v679, -inf
  %v861 = vrot.slane %v860, 4
  %v862 = vmax.f32 %v860, %v861
  %v863 = vrot.slane %v862, 2
  %v864 = vmax.f32 %v862, %v863
  %v865 = vrot.slane %v864, 1
  %v866 = vmax.f32 %v864, %v865
  %v867 = vsel %vm803, %v743, -inf
  %v868 = vrot.slane %v867, 4
  %v869 = vmax.f32 %v867, %v868
  %v870 = vrot.slane %v869, 2
  %v871 = vmax.f32 %v869, %v870
  %v872 = vrot.slane %v871, 1
  %v873 = vmax.f32 %v871, %v872
  %v874 = vsel %vm803, %v680, -inf
  %v875 = vrot.slane %v874, 4
  %v876 = vmax.f32 %v874, %v875
  %v877 = vrot.slane %v876, 2
  %v878 = vmax.f32 %v876, %v877
  %v879 = vrot.slane %v878, 1
  %v880 = vmax.f32 %v878, %v879
  %v881 = vsel %vm803, %v744, -inf
  %v882 = vrot.slane %v881, 4
  %v883 = vmax.f32 %v881, %v882
  %v884 = vrot.slane %v883, 2
  %v885 = vmax.f32 %v883, %v884
  %v886 = vrot.slane %v885, 1
  %v887 = vmax.f32 %v885, %v886
  %v888 = vsel %vm803, %v681, -inf
  %v889 = vrot.slane %v888, 4
  %v890 = vmax.f32 %v888, %v889
  %v891 = vrot.slane %v890, 2
  %v892 = vmax.f32 %v890, %v891
  %v893 = vrot.slane %v892, 1
  %v894 = vmax.f32 %v892, %v893
  %v895 = vsel %vm803, %v745, -inf
  %v896 = vrot.slane %v895, 4
  %v897 = vmax.f32 %v895, %v896
  %v898 = vrot.slane %v897, 2
  %v899 = vmax.f32 %v897, %v898
  %v900 = vrot.slane %v899, 1
  %v901 = vmax.f32 %v899, %v900
  %v902 = vsel %vm803, %v682, -inf
  %v903 = vrot.slane %v902, 4
  %v904 = vmax.f32 %v902, %v903
  %v905 = vrot.slane %v904, 2
  %v906 = vmax.f32 %v904, %v905
  %v907 = vrot.slane %v906, 1
  %v908 = vmax.f32 %v906, %v907
  %v909 = vsel %vm803, %v746, -inf
  %v910 = vrot.slane %v909, 4
  %v911 = vmax.f32 %v909, %v910
  %v912 = vrot.slane %v911, 2
  %v913 = vmax.f32 %v911, %v912
  %v914 = vrot.slane %v913, 1
  %v915 = vmax.f32 %v913, %v914
  %v916 = vsel %vm803, %v683, -inf
  %v917 = vrot.slane %v916, 4
  %v918 = vmax.f32 %v916, %v917
  %v919 = vrot.slane %v918, 2
  %v920 = vmax.f32 %v918, %v919
  %v921 = vrot.slane %v920, 1
  %v922 = vmax.f32 %v920, %v921
  %v923 = vsel %vm803, %v747, -inf
  %v924 = vrot.slane %v923, 4
  %v925 = vmax.f32 %v923, %v924
  %v926 = vrot.slane %v925, 2
  %v927 = vmax.f32 %v925, %v926
  %v928 = vrot.slane %v927, 1
  %v929 = vmax.f32 %v927, %v928
  %v930 = vsel %vm803, %v684, -inf
  %v931 = vrot.slane %v930, 4
  %v932 = vmax.f32 %v930, %v931
  %v933 = vrot.slane %v932, 2
  %v934 = vmax.f32 %v932, %v933
  %v935 = vrot.slane %v934, 1
  %v936 = vmax.f32 %v934, %v935
  %v937 = vsel %vm803, %v748, -inf
  %v938 = vrot.slane %v937, 4
  %v939 = vmax.f32 %v937, %v938
  %v940 = vrot.slane %v939, 2
  %v941 = vmax.f32 %v939, %v940
  %v942 = vrot.slane %v941, 1
  %v943 = vmax.f32 %v941, %v942
  %v944 = vsel %vm803, %v685, -inf
  %v945 = vrot.slane %v944, 4
  %v946 = vmax.f32 %v944, %v945
  %v947 = vrot.slane %v946, 2
  %v948 = vmax.f32 %v946, %v947
  %v949 = vrot.slane %v948, 1
  %v950 = vmax.f32 %v948, %v949
  %v951 = vsel %vm803, %v749, -inf
  %v952 = vrot.slane %v951, 4
  %v953 = vmax.f32 %v951, %v952
  %v954 = vrot.slane %v953, 2
  %v955 = vmax.f32 %v953, %v954
  %v956 = vrot.slane %v955, 1
  %v957 = vmax.f32 %v955, %v956
  %v958 = vsel %vm803, %v686, -inf
  %v959 = vrot.slane %v958, 4
  %v960 = vmax.f32 %v958, %v959
  %v961 = vrot.slane %v960, 2
  %v962 = vmax.f32 %v960, %v961
  %v963 = vrot.slane %v962, 1
  %v964 = vmax.f32 %v962, %v963
  %v965 = vsel %vm803, %v750, -inf
  %v966 = vrot.slane %v965, 4
  %v967 = vmax.f32 %v965, %v966
  %v968 = vrot.slane %v967, 2
  %v969 = vmax.f32 %v967, %v968
  %v970 = vrot.slane %v969, 1
  %v971 = vmax.f32 %v969, %v970
  %v972 = vsel %vm803, %v687, -inf
  %v973 = vrot.slane %v972, 4
  %v974 = vmax.f32 %v972, %v973
  %v975 = vrot.slane %v974, 2
  %v976 = vmax.f32 %v974, %v975
  %v977 = vrot.slane %v976, 1
  %v978 = vmax.f32 %v976, %v977
  %v979 = vsel %vm803, %v751, -inf
  %v980 = vrot.slane %v979, 4
  %v981 = vmax.f32 %v979, %v980
  %v982 = vrot.slane %v981, 2
  %v983 = vmax.f32 %v981, %v982
  %v984 = vrot.slane %v983, 1
  %v985 = vmax.f32 %v983, %v984
  %v986 = vsel %vm803, %v688, -inf
  %v987 = vrot.slane %v986, 4
  %v988 = vmax.f32 %v986, %v987
  %v989 = vrot.slane %v988, 2
  %v990 = vmax.f32 %v988, %v989
  %v991 = vrot.slane %v990, 1
  %v992 = vmax.f32 %v990, %v991
  %v993 = vsel %vm803, %v752, -inf
  %v994 = vrot.slane %v993, 4
  %v995 = vmax.f32 %v993, %v994
  %v996 = vrot.slane %v995, 2
  %v997 = vmax.f32 %v995, %v996
  %v998 = vrot.slane %v997, 1
  %v999 = vmax.f32 %v997, %v998
  %v1000 = vsel %vm803, %v689, -inf
  %v1001 = vrot.slane %v1000, 4
  %v1002 = vmax.f32 %v1000, %v1001
  %v1003 = vrot.slane %v1002, 2
  %v1004 = vmax.f32 %v1002, %v1003
  %v1005 = vrot.slane %v1004, 1
  %v1006 = vmax.f32 %v1004, %v1005
  %v1007 = vsel %vm803, %v753, -inf
  %v1008 = vrot.slane %v1007, 4
  %v1009 = vmax.f32 %v1007, %v1008
  %v1010 = vrot.slane %v1009, 2
  %v1011 = vmax.f32 %v1009, %v1010
  %v1012 = vrot.slane %v1011, 1
  %v1013 = vmax.f32 %v1011, %v1012
  %v1014 = vsel %vm803, %v690, -inf
  %v1015 = vrot.slane %v1014, 4
  %v1016 = vmax.f32 %v1014, %v1015
  %v1017 = vrot.slane %v1016, 2
  %v1018 = vmax.f32 %v1016, %v1017
  %v1019 = vrot.slane %v1018, 1
  %v1020 = vmax.f32 %v1018, %v1019
  %v1021 = vsel %vm803, %v754, -inf
  %v1022 = vrot.slane %v1021, 4
  %v1023 = vmax.f32 %v1021, %v1022
  %v1024 = vrot.slane %v1023, 2
  %v1025 = vmax.f32 %v1023, %v1024
  %v1026 = vrot.slane %v1025, 1
  %v1027 = vmax.f32 %v1025, %v1026
  %v1028 = vsel %vm803, %v691, -inf
  %v1029 = vrot.slane %v1028, 4
  %v1030 = vmax.f32 %v1028, %v1029
  %v1031 = vrot.slane %v1030, 2
  %v1032 = vmax.f32 %v1030, %v1031
  %v1033 = vrot.slane %v1032, 1
  %v1034 = vmax.f32 %v1032, %v1033
  %v1035 = vsel %vm803, %v755, -inf
  %v1036 = vrot.slane %v1035, 4
  %v1037 = vmax.f32 %v1035, %v1036
  %v1038 = vrot.slane %v1037, 2
  %v1039 = vmax.f32 %v1037, %v1038
  %v1040 = vrot.slane %v1039, 1
  %v1041 = vmax.f32 %v1039, %v1040
  %v1042 = vsel %vm803, %v692, -inf
  %v1043 = vrot.slane %v1042, 4
  %v1044 = vmax.f32 %v1042, %v1043
  %v1045 = vrot.slane %v1044, 2
  %v1046 = vmax.f32 %v1044, %v1045
  %v1047 = vrot.slane %v1046, 1
  %v1048 = vmax.f32 %v1046, %v1047
  %v1049 = vsel %vm803, %v756, -inf
  %v1050 = vrot.slane %v1049, 4
  %v1051 = vmax.f32 %v1049, %v1050
  %v1052 = vrot.slane %v1051, 2
  %v1053 = vmax.f32 %v1051, %v1052
  %v1054 = vrot.slane %v1053, 1
  %v1055 = vmax.f32 %v1053, %v1054
  %v1056 = vsel %vm803, %v693, -inf
  %v1057 = vrot.slane %v1056, 4
  %v1058 = vmax.f32 %v1056, %v1057
  %v1059 = vrot.slane %v1058, 2
  %v1060 = vmax.f32 %v1058, %v1059
  %v1061 = vrot.slane %v1060, 1
  %v1062 = vmax.f32 %v1060, %v1061
  %v1063 = vsel %vm803, %v757, -inf
  %v1064 = vrot.slane %v1063, 4
  %v1065 = vmax.f32 %v1063, %v1064
  %v1066 = vrot.slane %v1065, 2
  %v1067 = vmax.f32 %v1065, %v1066
  %v1068 = vrot.slane %v1067, 1
  %v1069 = vmax.f32 %v1067, %v1068
  %v1070 = vsel %vm803, %v694, -inf
  %v1071 = vrot.slane %v1070, 4
  %v1072 = vmax.f32 %v1070, %v1071
  %v1073 = vrot.slane %v1072, 2
  %v1074 = vmax.f32 %v1072, %v1073
  %v1075 = vrot.slane %v1074, 1
  %v1076 = vmax.f32 %v1074, %v1075
  %v1077 = vsel %vm803, %v758, -inf
  %v1078 = vrot.slane %v1077, 4
  %v1079 = vmax.f32 %v1077, %v1078
  %v1080 = vrot.slane %v1079, 2
  %v1081 = vmax.f32 %v1079, %v1080
  %v1082 = vrot.slane %v1081, 1
  %v1083 = vmax.f32 %v1081, %v1082
  %v1084 = vsel %vm803, %v695, -inf
  %v1085 = vrot.slane %v1084, 4
  %v1086 = vmax.f32 %v1084, %v1085
  %v1087 = vrot.slane %v1086, 2
  %v1088 = vmax.f32 %v1086, %v1087
  %v1089 = vrot.slane %v1088, 1
  %v1090 = vmax.f32 %v1088, %v1089
  %v1091 = vsel %vm803, %v759, -inf
  %v1092 = vrot.slane %v1091, 4
  %v1093 = vmax.f32 %v1091, %v1092
  %v1094 = vrot.slane %v1093, 2
  %v1095 = vmax.f32 %v1093, %v1094
  %v1096 = vrot.slane %v1095, 1
  %v1097 = vmax.f32 %v1095, %v1096
  %v1098 = vsel %vm803, %v696, -inf
  %v1099 = vrot.slane %v1098, 4
  %v1100 = vmax.f32 %v1098, %v1099
  %v1101 = vrot.slane %v1100, 2
  %v1102 = vmax.f32 %v1100, %v1101
  %v1103 = vrot.slane %v1102, 1
  %v1104 = vmax.f32 %v1102, %v1103
  %v1105 = vsel %vm803, %v760, -inf
  %v1106 = vrot.slane %v1105, 4
  %v1107 = vmax.f32 %v1105, %v1106
  %v1108 = vrot.slane %v1107, 2
  %v1109 = vmax.f32 %v1107, %v1108
  %v1110 = vrot.slane %v1109, 1
  %v1111 = vmax.f32 %v1109, %v1110
  %v1112 = vsel %vm803, %v697, -inf
  %v1113 = vrot.slane %v1112, 4
  %v1114 = vmax.f32 %v1112, %v1113
  %v1115 = vrot.slane %v1114, 2
  %v1116 = vmax.f32 %v1114, %v1115
  %v1117 = vrot.slane %v1116, 1
  %v1118 = vmax.f32 %v1116, %v1117
  %v1119 = vsel %vm803, %v761, -inf
  %v1120 = vrot.slane %v1119, 4
  %v1121 = vmax.f32 %v1119, %v1120
  %v1122 = vrot.slane %v1121, 2
  %v1123 = vmax.f32 %v1121, %v1122
  %v1124 = vrot.slane %v1123, 1
  %v1125 = vmax.f32 %v1123, %v1124
  %v1126 = vsel %vm803, %v698, -inf
  %v1127 = vrot.slane %v1126, 4
  %v1128 = vmax.f32 %v1126, %v1127
  %v1129 = vrot.slane %v1128, 2
  %v1130 = vmax.f32 %v1128, %v1129
  %v1131 = vrot.slane %v1130, 1
  %v1132 = vmax.f32 %v1130, %v1131
  %v1133 = vsel %vm803, %v762, -inf
  %v1134 = vrot.slane %v1133, 4
  %v1135 = vmax.f32 %v1133, %v1134
  %v1136 = vrot.slane %v1135, 2
  %v1137 = vmax.f32 %v1135, %v1136
  %v1138 = vrot.slane %v1137, 1
  %v1139 = vmax.f32 %v1137, %v1138
  %v1140 = vsel %vm803, %v699, -inf
  %v1141 = vrot.slane %v1140, 4
  %v1142 = vmax.f32 %v1140, %v1141
  %v1143 = vrot.slane %v1142, 2
  %v1144 = vmax.f32 %v1142, %v1143
  %v1145 = vrot.slane %v1144, 1
  %v1146 = vmax.f32 %v1144, %v1145
  %v1147 = vsel %vm803, %v763, -inf
  %v1148 = vrot.slane %v1147, 4
  %v1149 = vmax.f32 %v1147, %v1148
  %v1150 = vrot.slane %v1149, 2
  %v1151 = vmax.f32 %v1149, %v1150
  %v1152 = vrot.slane %v1151, 1
  %v1153 = vmax.f32 %v1151, %v1152
  %v1154 = vsel %vm803, %v700, -inf
  %v1155 = vrot.slane %v1154, 4
  %v1156 = vmax.f32 %v1154, %v1155
  %v1157 = vrot.slane %v1156, 2
  %v1158 = vmax.f32 %v1156, %v1157
  %v1159 = vrot.slane %v1158, 1
  %v1160 = vmax.f32 %v1158, %v1159
  %v1161 = vsel %vm803, %v764, -inf
  %v1162 = vrot.slane %v1161, 4
  %v1163 = vmax.f32 %v1161, %v1162
  %v1164 = vrot.slane %v1163, 2
  %v1165 = vmax.f32 %v1163, %v1164
  %v1166 = vrot.slane %v1165, 1
  %v1167 = vmax.f32 %v1165, %v1166
  %v1168 = vsel %vm803, %v701, -inf
  %v1169 = vrot.slane %v1168, 4
  %v1170 = vmax.f32 %v1168, %v1169
  %v1171 = vrot.slane %v1170, 2
  %v1172 = vmax.f32 %v1170, %v1171
  %v1173 = vrot.slane %v1172, 1
  %v1174 = vmax.f32 %v1172, %v1173
  %v1175 = vsel %vm803, %v765, -inf
  %v1176 = vrot.slane %v1175, 4
  %v1177 = vmax.f32 %v1175, %v1176
  %v1178 = vrot.slane %v1177, 2
  %v1179 = vmax.f32 %v1177, %v1178
  %v1180 = vrot.slane %v1179, 1
  %v1181 = vmax.f32 %v1179, %v1180
  %v1182 = vsel %vm803, %v702, -inf
  %v1183 = vrot.slane %v1182, 4
  %v1184 = vmax.f32 %v1182, %v1183
  %v1185 = vrot.slane %v1184, 2
  %v1186 = vmax.f32 %v1184, %v1185
  %v1187 = vrot.slane %v1186, 1
  %v1188 = vmax.f32 %v1186, %v1187
  %v1189 = vsel %vm803, %v766, -inf
  %v1190 = vrot.slane %v1189, 4
  %v1191 = vmax.f32 %v1189, %v1190
  %v1192 = vrot.slane %v1191, 2
  %v1193 = vmax.f32 %v1191, %v1192
  %v1194 = vrot.slane %v1193, 1
  %v1195 = vmax.f32 %v1193, %v1194
  %v1196 = vsel %vm803, %v703, -inf
  %v1197 = vrot.slane %v1196, 4
  %v1198 = vmax.f32 %v1196, %v1197
  %v1199 = vrot.slane %v1198, 2
  %v1200 = vmax.f32 %v1198, %v1199
  %v1201 = vrot.slane %v1200, 1
  %v1202 = vmax.f32 %v1200, %v1201
  %v1203 = vsel %vm803, %v767, -inf
  %v1204 = vrot.slane %v1203, 4
  %v1205 = vmax.f32 %v1203, %v1204
  %v1206 = vrot.slane %v1205, 2
  %v1207 = vmax.f32 %v1205, %v1206
  %v1208 = vrot.slane %v1207, 1
  %v1209 = vmax.f32 %v1207, %v1208
  %v1210 = vsel %vm803, %v704, -inf
  %v1211 = vrot.slane %v1210, 4
  %v1212 = vmax.f32 %v1210, %v1211
  %v1213 = vrot.slane %v1212, 2
  %v1214 = vmax.f32 %v1212, %v1213
  %v1215 = vrot.slane %v1214, 1
  %v1216 = vmax.f32 %v1214, %v1215
  %v1217 = vsel %vm803, %v768, -inf
  %v1218 = vrot.slane %v1217, 4
  %v1219 = vmax.f32 %v1217, %v1218
  %v1220 = vrot.slane %v1219, 2
  %v1221 = vmax.f32 %v1219, %v1220
  %v1222 = vrot.slane %v1221, 1
  %v1223 = vmax.f32 %v1221, %v1222
  %v1224 = vsel %vm803, %v705, -inf
  %v1225 = vrot.slane %v1224, 4
  %v1226 = vmax.f32 %v1224, %v1225
  %v1227 = vrot.slane %v1226, 2
  %v1228 = vmax.f32 %v1226, %v1227
  %v1229 = vrot.slane %v1228, 1
  %v1230 = vmax.f32 %v1228, %v1229
  %v1231 = vsel %vm803, %v769, -inf
  %v1232 = vrot.slane %v1231, 4
  %v1233 = vmax.f32 %v1231, %v1232
  %v1234 = vrot.slane %v1233, 2
  %v1235 = vmax.f32 %v1233, %v1234
  %v1236 = vrot.slane %v1235, 1
  %v1237 = vmax.f32 %v1235, %v1236
  %v1238 = vsel %vm803, %v706, -inf
  %v1239 = vrot.slane %v1238, 4
  %v1240 = vmax.f32 %v1238, %v1239
  %v1241 = vrot.slane %v1240, 2
  %v1242 = vmax.f32 %v1240, %v1241
  %v1243 = vrot.slane %v1242, 1
  %v1244 = vmax.f32 %v1242, %v1243
  %v1245 = vsel %vm803, %v770, -inf
  %v1246 = vrot.slane %v1245, 4
  %v1247 = vmax.f32 %v1245, %v1246
  %v1248 = vrot.slane %v1247, 2
  %v1249 = vmax.f32 %v1247, %v1248
  %v1250 = vrot.slane %v1249, 1
  %v1251 = vmax.f32 %v1249, %v1250
  %vm1316 = vcmask 1041409
  %v1317 = vsel %vm1316, %v824, %v810
  %vm1318 = vcmask 1042434
  %v1319 = vsel %vm1318, %v838, %v1317
  %vm1320 = vcmask 1043459
  %v1321 = vsel %vm1320, %v852, %v1319
  %vm1322 = vcmask 1044484
  %v1323 = vsel %vm1322, %v866, %v1321
  %vm1324 = vcmask 1045509
  %v1325 = vsel %vm1324, %v880, %v1323
  %vm1326 = vcmask 1046534
  %v1327 = vsel %vm1326, %v894, %v1325
  %vm1328 = vcmask 1047559
  %v1329 = vsel %vm1328, %v908, %v1327
  %v1330 = vsel %vm1316, %v831, %v817
  %v1331 = vsel %vm1318, %v845, %v1330
  %v1332 = vsel %vm1320, %v859, %v1331
  %v1333 = vsel %vm1322, %v873, %v1332
  %v1334 = vsel %vm1324, %v887, %v1333
  %v1335 = vsel %vm1326, %v901, %v1334
  %v1336 = vsel %vm1328, %v915, %v1335
  %v1337 = vsel %vm1316, %v936, %v922
  %v1338 = vsel %vm1318, %v950, %v1337
  %v1339 = vsel %vm1320, %v964, %v1338
  %v1340 = vsel %vm1322, %v978, %v1339
  %v1341 = vsel %vm1324, %v992, %v1340
  %v1342 = vsel %vm1326, %v1006, %v1341
  %v1343 = vsel %vm1328, %v1020, %v1342
  %v1344 = vsel %vm1316, %v943, %v929
  %v1345 = vsel %vm1318, %v957, %v1344
  %v1346 = vsel %vm1320, %v971, %v1345
  %v1347 = vsel %vm1322, %v985, %v1346
  %v1348 = vsel %vm1324, %v999, %v1347
  %v1349 = vsel %vm1326, %v1013, %v1348
  %v1350 = vsel %vm1328, %v1027, %v1349
  %v1351 = vsel %vm1316, %v1048, %v1034
  %v1352 = vsel %vm1318, %v1062, %v1351
  %v1353 = vsel %vm1320, %v1076, %v1352
  %v1354 = vsel %vm1322, %v1090, %v1353
  %v1355 = vsel %vm1324, %v1104, %v1354
  %v1356 = vsel %vm1326, %v1118, %v1355
  %v1357 = vsel %vm1328, %v1132, %v1356
  %v1358 = vsel %vm1316, %v1055, %v1041
  %v1359 = vsel %vm1318, %v1069, %v1358
  %v1360 = vsel %vm1320, %v1083, %v1359
  %v1361 = vsel %vm1322, %v1097, %v1360
  %v1362 = vsel %vm1324, %v1111, %v1361
  %v1363 = vsel %vm1326, %v1125, %v1362
  %v1364 = vsel %vm1328, %v1139, %v1363
  %v1365 = vsel %vm1316, %v1160, %v1146
  %v1366 = vsel %vm1318, %v1174, %v1365
  %v1367 = vsel %vm1320, %v1188, %v1366
  %v1368 = vsel %vm1322, %v1202, %v1367
  %v1369 = vsel %vm1324, %v1216, %v1368
  %v1370 = vsel %vm1326, %v1230, %v1369
  %v1371 = vsel %vm1328, %v1244, %v1370
  %v1372 = vsel %vm1316, %v1167, %v1153
  %v1373 = vsel %vm1318, %v1181, %v1372
  %v1374 = vsel %vm1320, %v1195, %v1373
  %v1375 = vsel %vm1322, %v1209, %v1374
  %v1376 = vsel %vm1324, %v1223, %v1375
  %v1377 = vsel %vm1326, %v1237, %v1376
  %v1378 = vsel %vm1328, %v1251, %v1377
  %1387 = vst [vmem:[%s2] sm:$0xff] %v1329
  %1388 = vst [vmem:[%s2 + $0x8] sm:$0xff] %v1336
  %1389 = vst [vmem:[%s2 + $0x10] sm:$0xff] %v1343
  %1390 = vst [vmem:[%s2 + $0x18] sm:$0xff] %v1350
  %1391 = vst [vmem:[%s2 + $0x20] sm:$0xff] %v1357
  %1392 = vst [vmem:[%s2 + $0x28] sm:$0xff] %v1364
  %1393 = vst [vmem:[%s2 + $0x30] sm:$0xff] %v1371
  %1394 = vst [vmem:[%s2 + $0x38] sm:$0xff] %v1378
  // Predicated region
  $region10: #{dgcnn_encoder.26} parent=0 // pred_check
    _
  $region11: #{dgcnn_encoder.26} parent=0 // pred_check_branch
    %1396 = sbr.rel (0) target = $region13
  $region12: #{dgcnn_encoder.26} parent=0 // pred_region
    _
  $region13: #{dgcnn_encoder.26} parent=0 // pred_fallthru
    _
  // Predicated region
  $region14: #{dgcnn_encoder.26} parent=0 // pred_check
    _
  $region15: #{dgcnn_encoder.26} parent=0 // pred_check_branch
    %1398 = sbr.rel (0) target = $region17
  $region16: #{dgcnn_encoder.26} parent=0 // pred_region
    _
  $region17: #{dgcnn_encoder.26} parent=0 // pred_fallthru
    _

// kernel: dgcnn_encoder.27
$region0: #{dgcnn_encoder.27}
  #allocation0 [shape = 'u32[]', space=smem, size = 0x4, offset = 0x4, fixed_abs, tag = 'smem constant byte address 0x4 - core index']
  #allocation1 [shape = 'u32[144,128]{1,0:T(1,128)}', space=vmem, size = 0x12000, scoped, tag = 'internal scratch']
  %s0 = inlined_call_operand.vmem [shape: f32[2,16,512], index: 0, kind: input, shape index: {}]
  %s1 = inlined_call_operand.vmem [shape: f32[512,128], index: 1, kind: input, shape index: {}]
  %s2 = inlined_call_operand.vmem [shape: f32[1,128], index: 2, kind: input, shape index: {}]
  %s3 = inlined_call_operand.vmem [shape: f32[1,128], index: 3, kind: input, shape index: {}]
  %s4 = inlined_call_operand.vmem [shape: f32[2,1,128], index: 4, kind: output, shape index: {0}]
  %s5 = inlined_call_operand.vmem [shape: f32[2,1,128], index: 5, kind: output, shape index: {1}]
  %6 = xla_tuple %s4, %s5
  %s7 = sld [smem:[#allocation0]]
  $region69: #{dgcnn_encoder.27} parent=0
    _
  %s9 = ssub.s32 1, %s7
  %s10 = scalar_select 0, %s9, %s7
  loop: start=0, step=1, limit=4
  $region2: #{dgcnn_encoder.27} parent=0 // loop_pre_header
    _
  $region3: #{dgcnn_encoder.27} parent=0 // loop_header
    %s12 = sphi 0, %s16
    %p13 = scmp.ge.s32.totalorder %s12, 4
    %s19 = sphi 0, %s31
    %s20 = sphi 0, %s27
    %s21 = sphi 0, %s19
    %s22 = sphi 0, %s20
    %s23 = sphi 0, %s21
    %s24 = sphi 0, %s22
    %s36 = sphi 0, %s38
    %s39 = sphi 0, %s36
    %s40 = sphi 0, %s39
    %s56 = sphi 0, %s40
    %s60 = sphi 0, %s60
    %s62 = sphi 0, %s60
    %s63 = sphi 0, %s62
    %s77 = sphi 0, %s63
    %s81 = sphi 0, %s81
    %s83 = sphi 0, %s81
    %s84 = sphi 0, %s83
    %s98 = sphi 0, %s84
    %s102 = sphi 0, %s102
    %s104 = sphi 0, %s102
    %s105 = sphi 0, %s104
    %s119 = sphi 0, %s105
    %s125 = sphi 0, %s127
    %s128 = sphi 0, %s125
    %s129 = sphi 0, %s128
    %s145 = sphi 0, %s129
    %s151 = sphi 0, %s153
    %s154 = sphi 0, %s151
    %s155 = sphi 0, %s154
    %s171 = sphi 0, %s155
  $region4: #{dgcnn_encoder.27} parent=0 // loop_header_branch
    %15 = sbr.rel (%p13) target = $region8
  $region5: #{dgcnn_encoder.27} parent=0 // loop_body
    %s17 = ssub.s32 %s12, 1
    %s18 = ssub.s32 %s12, 2
    %s25 = sadd.s32 1, %s20
    %p26 = scmp.ge.s32.totalorder %s25, 1
    %s27 = scalar_select %p26, 0, %s25
    %s28 = sadd.s32 1, %s19
    %s29 = scalar_select %p26, %s28, %s19
    %p30 = scmp.ge.s32.totalorder %s29, 2
    %s31 = scalar_select %p30, 0, %s29
    %s32 = ssub.s32 %s19, %s31
    %s33 = ssub.s32 %s20, %s27
    %s34 = sor.u32 %s32, %s33
    %p35 = scmp.eq.s32.totalorder %s34, 0
    %s37 = sadd.s32 %s36, 1
    %s38 = scalar_select %p35, %s36, %s37
    %p41 = pneg %p35
    %p42 = scmp.eq.s32.totalorder %s12, 1
    %p43 = por %p41, %p42
    %p44 = scmp.ne.s32.totalorder %s36, %s39
    %p45 = scmp.eq.s32.totalorder %s12, 0
    %p46 = por %p44, %p45
    %p47 = scmp.ne.s32.totalorder %s36, %s39
    %p48 = scmp.eq.s32.totalorder %s17, 1
    %p49 = por %p47, %p48
    %p50 = scmp.ne.s32.totalorder %s39, %s40
    %p51 = scmp.eq.s32.totalorder %s17, 0
    %p52 = por %p50, %p51
    %p53 = scmp.ne.s32.totalorder %s39, %s40
    %p54 = scmp.eq.s32.totalorder %s18, 1
    %p55 = por %p53, %p54
    %p57 = scmp.ne.s32.totalorder %s40, %s56
    %p58 = scmp.eq.s32.totalorder %s18, 0
    %p59 = por %p57, %p58
    %s61 = sadd.s32 %s60, 1
    %p64 = scmp.eq.s32.totalorder %s12, 1
    %p65 = scmp.ne.s32.totalorder %s60, %s62
    %p66 = scmp.eq.s32.totalorder %s12, 0
    %p67 = por %p65, %p66
    %p68 = scmp.ne.s32.totalorder %s60, %s62
    %p69 = scmp.eq.s32.totalorder %s17, 1
    %p70 = por %p68, %p69
    %p71 = scmp.ne.s32.totalorder %s62, %s63
    %p72 = scmp.eq.s32.totalorder %s17, 0
    %p73 = por %p71, %p72
    %p74 = scmp.ne.s32.totalorder %s62, %s63
    %p75 = scmp.eq.s32.totalorder %s18, 1
    %p76 = por %p74, %p75
    %p78 = scmp.ne.s32.totalorder %s63, %s77
    %p79 = scmp.eq.s32.totalorder %s18, 0
    %p80 = por %p78, %p79
    %s82 = sadd.s32 %s81, 1
    %p85 = scmp.eq.s32.totalorder %s12, 1
    %p86 = scmp.ne.s32.totalorder %s81, %s83
    %p87 = scmp.eq.s32.totalorder %s12, 0
    %p88 = por %p86, %p87
    %p89 = scmp.ne.s32.totalorder %s81, %s83
    %p90 = scmp.eq.s32.totalorder %s17, 1
    %p91 = por %p89, %p90
    %p92 = scmp.ne.s32.totalorder %s83, %s84
    %p93 = scmp.eq.s32.totalorder %s17, 0
    %p94 = por %p92, %p93
    %p95 = scmp.ne.s32.totalorder %s83, %s84
    %p96 = scmp.eq.s32.totalorder %s18, 1
    %p97 = por %p95, %p96
    %p99 = scmp.ne.s32.totalorder %s84, %s98
    %p100 = scmp.eq.s32.totalorder %s18, 0
    %p101 = por %p99, %p100
    %s103 = sadd.s32 %s102, 1
    %p106 = scmp.eq.s32.totalorder %s12, 1
    %p107 = scmp.ne.s32.totalorder %s102, %s104
    %p108 = scmp.eq.s32.totalorder %s12, 0
    %p109 = por %p107, %p108
    %p110 = scmp.ne.s32.totalorder %s102, %s104
    %p111 = scmp.eq.s32.totalorder %s17, 1
    %p112 = por %p110, %p111
    %p113 = scmp.ne.s32.totalorder %s104, %s105
    %p114 = scmp.eq.s32.totalorder %s17, 0
    %p115 = por %p113, %p114
    %p116 = scmp.ne.s32.totalorder %s104, %s105
    %p117 = scmp.eq.s32.totalorder %s18, 1
    %p118 = por %p116, %p117
    %p120 = scmp.ne.s32.totalorder %s105, %s119
    %p121 = scmp.eq.s32.totalorder %s18, 0
    %p122 = por %p120, %p121
    %s123 = ssub.s32 %s19, %s31
    %p124 = scmp.eq.s32.totalorder %s123, 0
    %s126 = sadd.s32 %s125, 1
    %s127 = scalar_select %p124, %s125, %s126
    %p130 = pneg %p124
    %p131 = scmp.eq.s32.totalorder %s12, 1
    %p132 = por %p130, %p131
    %p133 = scmp.ne.s32.totalorder %s125, %s128
    %p134 = scmp.eq.s32.totalorder %s12, 0
    %p135 = por %p133, %p134
    %p136 = scmp.ne.s32.totalorder %s125, %s128
    %p137 = scmp.eq.s32.totalorder %s17, 1
    %p138 = por %p136, %p137
    %p139 = scmp.ne.s32.totalorder %s128, %s129
    %p140 = scmp.eq.s32.totalorder %s17, 0
    %p141 = por %p139, %p140
    %p142 = scmp.ne.s32.totalorder %s128, %s129
    %p143 = scmp.eq.s32.totalorder %s18, 1
    %p144 = por %p142, %p143
    %p146 = scmp.ne.s32.totalorder %s129, %s145
    %p147 = scmp.eq.s32.totalorder %s18, 0
    %p148 = por %p146, %p147
    %s149 = ssub.s32 %s19, %s31
    %p150 = scmp.eq.s32.totalorder %s149, 0
    %s152 = sadd.s32 %s151, 1
    %s153 = scalar_select %p150, %s151, %s152
    %p156 = pneg %p150
    %p157 = scmp.eq.s32.totalorder %s12, 1
    %p158 = por %p156, %p157
    %p159 = scmp.ne.s32.totalorder %s151, %s154
    %p160 = scmp.eq.s32.totalorder %s12, 0
    %p161 = por %p159, %p160
    %p162 = scmp.ne.s32.totalorder %s151, %s154
    %p163 = scmp.eq.s32.totalorder %s17, 1
    %p164 = por %p162, %p163
    %p165 = scmp.ne.s32.totalorder %s154, %s155
    %p166 = scmp.eq.s32.totalorder %s17, 0
    %p167 = por %p165, %p166
    %p168 = scmp.ne.s32.totalorder %s154, %s155
    %p169 = scmp.eq.s32.totalorder %s18, 1
    %p170 = por %p168, %p169
    %p172 = scmp.ne.s32.totalorder %s155, %s171
    %p173 = scmp.eq.s32.totalorder %s18, 0
    %p174 = por %p172, %p173
    %p175 = scmp.le.s32.totalorder 1, %s12
    %p176 = scmp.lt.s32.totalorder %s12, 3
    %p177 = pnand %p175, %p176
    %p178 = pneg %p177
    // Predicated region
    $region9: #{dgcnn_encoder.27} parent=5 // pred_check
      _
    $region10: #{dgcnn_encoder.27} parent=5 // pred_check_branch
      %180 = sbr.rel (%p177) target = $region12
    $region11: #{dgcnn_encoder.27} parent=5 // pred_region
      %s181 = ssub.s32 %s12, 1
      // Predicated region
      $region13: #{dgcnn_encoder.27} parent=11 // pred_check
        %p182 = pneg %p73
      $region14: #{dgcnn_encoder.27} parent=11 // pred_check_branch
        %184 = sbr.rel (%p182) target = $region16
      $region15: #{dgcnn_encoder.27} parent=11 // pred_region
        _
      $region16: #{dgcnn_encoder.27} parent=11 // pred_fallthru
        _
      // Predicated region
      $region17: #{dgcnn_encoder.27} parent=11 // pred_check
        %p185 = pneg %p94
      $region18: #{dgcnn_encoder.27} parent=11 // pred_check_branch
        %187 = sbr.rel (%p185) target = $region20
      $region19: #{dgcnn_encoder.27} parent=11 // pred_region
        _
      $region20: #{dgcnn_encoder.27} parent=11 // pred_fallthru
        _
      // Predicated region
      $region21: #{dgcnn_encoder.27} parent=11 // pred_check
        %p188 = pneg %p115
      $region22: #{dgcnn_encoder.27} parent=11 // pred_check_branch
        %190 = sbr.rel (%p188) target = $region24
      $region23: #{dgcnn_encoder.27} parent=11 // pred_region
        _
      $region24: #{dgcnn_encoder.27} parent=11 // pred_fallthru
        _
    $region12: #{dgcnn_encoder.27} parent=5 // pred_fallthru
      _
    %p191 = scmp.lt.s32.totalorder %s12, 2
    // Predicated region
    $region25: #{dgcnn_encoder.27} parent=5 // pred_check
      %p192 = pneg %p191
    $region26: #{dgcnn_encoder.27} parent=5 // pred_check_branch
      %194 = sbr.rel (%p192) target = $region28
    $region27: #{dgcnn_encoder.27} parent=5 // pred_region
      // Predicated region
      $region29: #{dgcnn_encoder.27} parent=27 // pred_check
        %p195 = pneg %p46
      $region30: #{dgcnn_encoder.27} parent=27 // pred_check_branch
        %197 = sbr.rel (%p195) target = $region32
      $region31: #{dgcnn_encoder.27} parent=27 // pred_region
        %s198 = smul.u32 2, %s20
        %p199 = scmp.lt.s32.totalorder %s19, 1
        %s200 = scalar_select %p199, %s19, 1
        %p201 = scmp.lt.s32.totalorder %s198, 1
        %s202 = scalar_select %p201, %s198, 1
        %s203 = smul.addr %s202, 4
        %s204 = smul.addr %s200, 8
        %s205 = sadd.s32 %s203, %s204
        %s206 = smul.addr %s205, 8
        %s207 = scalar_lea.vmem %s0, %s206
        %s208 = smul.u32 2, %s20
      $region32: #{dgcnn_encoder.27} parent=27 // pred_fallthru
        _
    $region28: #{dgcnn_encoder.27} parent=5 // pred_fallthru
      _
    %p209 = scmp.le.s32.totalorder 1, %s12
    %p210 = scmp.lt.s32.totalorder %s12, 3
    %p211 = pnand %p209, %p210
    %p212 = pneg %p211
    // Predicated region
    $region33: #{dgcnn_encoder.27} parent=5 // pred_check
      _
    $region34: #{dgcnn_encoder.27} parent=5 // pred_check_branch
      %214 = sbr.rel (%p211) target = $region36
    $region35: #{dgcnn_encoder.27} parent=5 // pred_region
      %s215 = ssub.s32 %s12, 1
      %s216 = smul.u32 2, %s22
      %p217 = scmp.lt.s32.totalorder %s21, 1
      %s218 = scalar_select %p217, %s21, 1
      %p219 = scmp.lt.s32.totalorder %s216, 1
      %s220 = scalar_select %p219, %s216, 1
      %s221 = smul.addr %s220, 4
      %s222 = smul.addr %s218, 8
      %s223 = sadd.s32 %s221, %s222
      %s224 = smul.addr %s223, 8
      %s225 = scalar_lea.vmem %s0, %s224
      %p226 = pneg %p52
      %p227 = pneg %p49
      %p228 = pneg %p73
      %p229 = pneg %p70
      %p230 = pneg %p94
      %p231 = pneg %p91
      %p232 = pneg %p115
      %p233 = pneg %p112
      %p234 = pneg %p141
      %p235 = pneg %p138
      %p236 = scmp.lt.s32.totalorder %s21, 1
      %s237 = scalar_select %p236, %s21, 1
      %s238 = scalar_lea.vmem %s4, %s237
      %p239 = pneg %p167
      %p240 = pneg %p164
      %p241 = scmp.lt.s32.totalorder %s21, 1
      %s242 = scalar_select %p241, %s21, 1
      %s243 = scalar_lea.vmem %s5, %s242
      %s244 = smul.u32 2, %s22
      %p245 = scmp.lt.s32.totalorder %s21, 1
      %s246 = scalar_select %p245, %s21, 1
      %p247 = scmp.lt.s32.totalorder %s244, 1
      %s248 = scalar_select %p247, %s244, 1
      %s249 = smul.addr %s248, 4
      %s250 = smul.addr %s246, 8
      %s251 = sadd.s32 %s249, %s250
      %s252 = smul.addr %s251, 8
      %s253 = scalar_lea.vmem %s0, %s252
      %s254 = smul.u32 2, %s22
      %p255 = scmp.lt.s32.totalorder %s21, 1
      %s256 = scalar_select %p255, %s21, 1
      %s257 = scalar_lea.vmem %s4, %s256
      %p258 = scmp.lt.s32.totalorder %s21, 1
      %s259 = scalar_select %p258, %s21, 1
      %s260 = scalar_lea.vmem %s5, %s259
      %v261 = vld [vmem:[%s253] sm:$0xff]
      %v262 = vld [vmem:[%s253 + $0x8] sm:$0xff]
      %v263 = vld [vmem:[%s253 + $0x10] sm:$0xff]
      %v264 = vld [vmem:[%s253 + $0x18] sm:$0xff]
      %v265 = vld [vmem:[%s253 + $0x20] sm:$0xff]
      %v266 = vld [vmem:[%s253 + $0x28] sm:$0xff]
      %v267 = vld [vmem:[%s253 + $0x30] sm:$0xff]
      %v268 = vld [vmem:[%s253 + $0x38] sm:$0xff]
      %v269 = vld [vmem:[%s1] sm:$0xff]
      %v270 = vld [vmem:[%s1 + $0x8] sm:$0xff]
      %v271 = vld [vmem:[%s1 + $0x10] sm:$0xff]
      %v272 = vld [vmem:[%s1 + $0x18] sm:$0xff]
      %v273 = vld [vmem:[%s1 + $0x20] sm:$0xff]
      %v274 = vld [vmem:[%s1 + $0x28] sm:$0xff]
      %v275 = vld [vmem:[%s1 + $0x30] sm:$0xff]
      %v276 = vld [vmem:[%s1 + $0x38] sm:$0xff]
      %v277 = vld [vmem:[%s1 + $0x40] sm:$0xff]
      %v278 = vld [vmem:[%s1 + $0x48] sm:$0xff]
      %v279 = vld [vmem:[%s1 + $0x50] sm:$0xff]
      %v280 = vld [vmem:[%s1 + $0x58] sm:$0xff]
      %v281 = vld [vmem:[%s1 + $0x60] sm:$0xff]
      %v282 = vld [vmem:[%s1 + $0x68] sm:$0xff]
      %v283 = vld [vmem:[%s1 + $0x70] sm:$0xff]
      %v284 = vld [vmem:[%s1 + $0x78] sm:$0xff]
      %v285 = vld [vmem:[%s1 + $0x80] sm:$0xff]
      %v286 = vld [vmem:[%s1 + $0x88] sm:$0xff]
      %v287 = vld [vmem:[%s1 + $0x90] sm:$0xff]
      %v288 = vld [vmem:[%s1 + $0x98] sm:$0xff]
      %v289 = vld [vmem:[%s1 + $0xa0] sm:$0xff]
      %v290 = vld [vmem:[%s1 + $0xa8] sm:$0xff]
      %v291 = vld [vmem:[%s1 + $0xb0] sm:$0xff]
      %v292 = vld [vmem:[%s1 + $0xb8] sm:$0xff]
      %v293 = vld [vmem:[%s1 + $0xc0] sm:$0xff]
      %v294 = vld [vmem:[%s1 + $0xc8] sm:$0xff]
      %v295 = vld [vmem:[%s1 + $0xd0] sm:$0xff]
      %v296 = vld [vmem:[%s1 + $0xd8] sm:$0xff]
      %v297 = vld [vmem:[%s1 + $0xe0] sm:$0xff]
      %v298 = vld [vmem:[%s1 + $0xe8] sm:$0xff]
      %v299 = vld [vmem:[%s1 + $0xf0] sm:$0xff]
      %v300 = vld [vmem:[%s1 + $0xf8] sm:$0xff]
      %v301 = vld [vmem:[%s1 + $0x100] sm:$0xff]
      %v302 = vld [vmem:[%s1 + $0x108] sm:$0xff]
      %v303 = vld [vmem:[%s1 + $0x110] sm:$0xff]
      %v304 = vld [vmem:[%s1 + $0x118] sm:$0xff]
      %v305 = vld [vmem:[%s1 + $0x120] sm:$0xff]
      %v306 = vld [vmem:[%s1 + $0x128] sm:$0xff]
      %v307 = vld [vmem:[%s1 + $0x130] sm:$0xff]
      %v308 = vld [vmem:[%s1 + $0x138] sm:$0xff]
      %v309 = vld [vmem:[%s1 + $0x140] sm:$0xff]
      %v310 = vld [vmem:[%s1 + $0x148] sm:$0xff]
      %v311 = vld [vmem:[%s1 + $0x150] sm:$0xff]
      %v312 = vld [vmem:[%s1 + $0x158] sm:$0xff]
      %v313 = vld [vmem:[%s1 + $0x160] sm:$0xff]
      %v314 = vld [vmem:[%s1 + $0x168] sm:$0xff]
      %v315 = vld [vmem:[%s1 + $0x170] sm:$0xff]
      %v316 = vld [vmem:[%s1 + $0x178] sm:$0xff]
      %v317 = vld [vmem:[%s1 + $0x180] sm:$0xff]
      %v318 = vld [vmem:[%s1 + $0x188] sm:$0xff]
      %v319 = vld [vmem:[%s1 + $0x190] sm:$0xff]
      %v320 = vld [vmem:[%s1 + $0x198] sm:$0xff]
      %v321 = vld [vmem:[%s1 + $0x1a0] sm:$0xff]
      %v322 = vld [vmem:[%s1 + $0x1a8] sm:$0xff]
      %v323 = vld [vmem:[%s1 + $0x1b0] sm:$0xff]
      %v324 = vld [vmem:[%s1 + $0x1b8] sm:$0xff]
      %v325 = vld [vmem:[%s1 + $0x1c0] sm:$0xff]
      %v326 = vld [vmem:[%s1 + $0x1c8] sm:$0xff]
      %v327 = vld [vmem:[%s1 + $0x1d0] sm:$0xff]
      %v328 = vld [vmem:[%s1 + $0x1d8] sm:$0xff]
      %v329 = vld [vmem:[%s1 + $0x1e0] sm:$0xff]
      %v330 = vld [vmem:[%s1 + $0x1e8] sm:$0xff]
      %v331 = vld [vmem:[%s1 + $0x1f0] sm:$0xff]
      %v332 = vld [vmem:[%s1 + $0x1f8] sm:$0xff]
      %333 = vmatprep.subr.mxu0 0.0
      %334 = vmatpush1.msra.mxu0 %v284
      %335 = vmatprep.subr.mxu0 0.0
      %336 = vmatpush1.msra.mxu0 %v283
      %337 = vmatprep.subr.mxu0 0.0
      %338 = vmatpush1.msra.mxu0 %v282
      %339 = vmatprep.subr.mxu0 0.0
      %340 = vmatpush1.msra.mxu0 %v281
      %341 = vmatprep.subr.mxu0 0.0
      %342 = vmatpush1.msra.mxu0 %v280
      %343 = vmatprep.subr.mxu0 0.0
      %344 = vmatpush1.msra.mxu0 %v279
      %345 = vmatprep.subr.mxu0 0.0
      %346 = vmatpush1.msra.mxu0 %v278
      %347 = vmatprep.subr.mxu0 0.0
      %348 = vmatpush1.msra.mxu0 %v277
      %349 = vmatprep.subr.mxu0 0.0
      %350 = vmatpush1.msra.mxu0 %v276
      %351 = vmatprep.subr.mxu0 0.0
      %352 = vmatpush1.msra.mxu0 %v275
      %353 = vmatprep.subr.mxu0 0.0
      %354 = vmatpush1.msra.mxu0 %v274
      %355 = vmatprep.subr.mxu0 0.0
      %356 = vmatpush1.msra.mxu0 %v273
      %357 = vmatprep.subr.mxu0 0.0
      %358 = vmatpush1.msra.mxu0 %v272
      %359 = vmatprep.subr.mxu0 0.0
      %360 = vmatpush1.msra.mxu0 %v271
      %361 = vmatprep.subr.mxu0 0.0
      %362 = vmatpush1.msra.mxu0 %v270
      %363 = vmatprep.subr.mxu0 0.0
      %364 = vmatpush1.msra.mxu0 %v269
      %365 = vmatprep.subr.mxu0 0.0
      %366 = vmatpush2.msra.mxu0 %v300
      %367 = vmatprep.subr.mxu0 0.0
      %368 = vmatpush2.msra.mxu0 %v299
      %369 = vmatprep.subr.mxu0 0.0
      %370 = vmatpush2.msra.mxu0 %v298
      %371 = vmatprep.subr.mxu0 0.0
      %372 = vmatpush2.msra.mxu0 %v297
      %373 = vmatprep.subr.mxu0 0.0
      %374 = vmatpush2.msra.mxu0 %v296
      %375 = vmatprep.subr.mxu0 0.0
      %376 = vmatpush2.msra.mxu0 %v295
      %377 = vmatprep.subr.mxu0 0.0
      %378 = vmatpush2.msra.mxu0 %v294
      %379 = vmatprep.subr.mxu0 0.0
      %380 = vmatpush2.msra.mxu0 %v293
      %381 = vmatprep.subr.mxu0 0.0
      %382 = vmatpush2.msra.mxu0 %v292
      %383 = vmatprep.subr.mxu0 0.0
      %384 = vmatpush2.msra.mxu0 %v291
      %385 = vmatprep.subr.mxu0 0.0
      %386 = vmatpush2.msra.mxu0 %v290
      %387 = vmatprep.subr.mxu0 0.0
      %388 = vmatpush2.msra.mxu0 %v289
      %389 = vmatprep.subr.mxu0 0.0
      %390 = vmatpush2.msra.mxu0 %v288
      %391 = vmatprep.subr.mxu0 0.0
      %392 = vmatpush2.msra.mxu0 %v287
      %393 = vmatprep.subr.mxu0 0.0
      %394 = vmatpush2.msra.mxu0 %v286
      %395 = vmatprep.subr.mxu0 0.0
      %396 = vmatpush2.msra.mxu0 %v285
      %397 = vmatprep.mubr.f32.mxu0 %v262
      %398 = vmatmul.mubr.f32.gmra.mxu0 %v261
      %v399 = vpop.f32.mrf.mxu0
      %v400 = vadd.f32 0.0, %v399
      %v401 = vpop.f32.mrf.mxu0
      %402 = vmatprep.mubr.f32.mxu0 %v266
      %403 = vmatmul.mubr.f32.gmra.mxu0 %v265
      %v404 = vpop.f32.mrf.mxu0
      %v405 = vadd.f32 0.0, %v404
      %v406 = vpop.f32.mrf.mxu0
      %407 = vdwg.mxu0
      %408 = vmatprep.subr.mxu0 0.0
      %409 = vmatpush1.msra.mxu0 %v316
      %410 = vmatprep.subr.mxu0 0.0
      %411 = vmatpush1.msra.mxu0 %v315
      %412 = vmatprep.subr.mxu0 0.0
      %413 = vmatpush1.msra.mxu0 %v314
      %414 = vmatprep.subr.mxu0 0.0
      %415 = vmatpush1.msra.mxu0 %v313
      %416 = vmatprep.subr.mxu0 0.0
      %417 = vmatpush1.msra.mxu0 %v312
      %418 = vmatprep.subr.mxu0 0.0
      %419 = vmatpush1.msra.mxu0 %v311
      %420 = vmatprep.subr.mxu0 0.0
      %421 = vmatpush1.msra.mxu0 %v310
      %422 = vmatprep.subr.mxu0 0.0
      %423 = vmatpush1.msra.mxu0 %v309
      %424 = vmatprep.subr.mxu0 0.0
      %425 = vmatpush1.msra.mxu0 %v308
      %426 = vmatprep.subr.mxu0 0.0
      %427 = vmatpush1.msra.mxu0 %v307
      %428 = vmatprep.subr.mxu0 0.0
      %429 = vmatpush1.msra.mxu0 %v306
      %430 = vmatprep.subr.mxu0 0.0
      %431 = vmatpush1.msra.mxu0 %v305
      %432 = vmatprep.subr.mxu0 0.0
      %433 = vmatpush1.msra.mxu0 %v304
      %434 = vmatprep.subr.mxu0 0.0
      %435 = vmatpush1.msra.mxu0 %v303
      %436 = vmatprep.subr.mxu0 0.0
      %437 = vmatpush1.msra.mxu0 %v302
      %438 = vmatprep.subr.mxu0 0.0
      %439 = vmatpush1.msra.mxu0 %v301
      %440 = vmatprep.subr.mxu0 0.0
      %441 = vmatpush2.msra.mxu0 %v332
      %442 = vmatprep.subr.mxu0 0.0
      %443 = vmatpush2.msra.mxu0 %v331
      %444 = vmatprep.subr.mxu0 0.0
      %445 = vmatpush2.msra.mxu0 %v330
      %446 = vmatprep.subr.mxu0 0.0
      %447 = vmatpush2.msra.mxu0 %v329
      %448 = vmatprep.subr.mxu0 0.0
      %449 = vmatpush2.msra.mxu0 %v328
      %450 = vmatprep.subr.mxu0 0.0
      %451 = vmatpush2.msra.mxu0 %v327
      %452 = vmatprep.subr.mxu0 0.0
      %453 = vmatpush2.msra.mxu0 %v326
      %454 = vmatprep.subr.mxu0 0.0
      %455 = vmatpush2.msra.mxu0 %v325
      %456 = vmatprep.subr.mxu0 0.0
      %457 = vmatpush2.msra.mxu0 %v324
      %458 = vmatprep.subr.mxu0 0.0
      %459 = vmatpush2.msra.mxu0 %v323
      %460 = vmatprep.subr.mxu0 0.0
      %461 = vmatpush2.msra.mxu0 %v322
      %462 = vmatprep.subr.mxu0 0.0
      %463 = vmatpush2.msra.mxu0 %v321
      %464 = vmatprep.subr.mxu0 0.0
      %465 = vmatpush2.msra.mxu0 %v320
      %466 = vmatprep.subr.mxu0 0.0
      %467 = vmatpush2.msra.mxu0 %v319
      %468 = vmatprep.subr.mxu0 0.0
      %469 = vmatpush2.msra.mxu0 %v318
      %470 = vmatprep.subr.mxu0 0.0
      %471 = vmatpush2.msra.mxu0 %v317
      %472 = vmatprep.mubr.f32.mxu0 %v264
      %473 = vmatmul.mubr.f32.gmra.mxu0 %v263
      %v474 = vpop.f32.mrf.mxu0
      %v475 = vadd.f32 %v400, %v474
      %v476 = vpop.f32.mrf.mxu0
      %477 = vmatprep.mubr.f32.mxu0 %v268
      %478 = vmatmul.mubr.f32.gmra.mxu0 %v267
      %v479 = vpop.f32.mrf.mxu0
      %v480 = vadd.f32 %v405, %v479
      %v481 = vpop.f32.mrf.mxu0
      %482 = vdwg.mxu0
      %v483 = vld [vmem:[%s2] sm:$0x1]
      %v485 = vlaneseq
      %v486 = vshrl.u32 %v485, 7
      %v487 = vsub.s32 0, %v486
      %v488 = vrot.slane %v483, %v487
      %v490 = vmul.f32 %v475, %v488
      %v491 = vmul.f32 %v480, %v488
      %v492 = vld [vmem:[%s3] sm:$0x1]
      %v494 = vlaneseq
      %v495 = vshrl.u32 %v494, 7
      %v496 = vsub.s32 0, %v495
      %v497 = vrot.slane %v492, %v496
      %v499 = vadd.f32 %v490, %v497
      %v500 = vadd.f32 %v491, %v497
      %vm501 = vcmp.gt.f32.partialorder %v499, 0.0
      %vm502 = vcmp.gt.f32.partialorder %v500, 0.0
      %v503 = vmul.f32 %v499, 0.2
      %v504 = vmul.f32 %v500, 0.2
      %v505 = vsel %vm501, %v499, %v503
      %v506 = vsel %vm502, %v500, %v504
      %v507 = vmax.f32 %v505, %v506
      %v508 = vrot.slane %v507, 4
      %v509 = vmax.f32 %v507, %v508
      %v510 = vrot.slane %v509, 2
      %v511 = vmax.f32 %v509, %v510
      %v512 = vrot.slane %v511, 1
      %v513 = vmax.f32 %v511, %v512
      %v514 = vadd.f32 %v505, %v506
      %v515 = vrot.slane %v514, 4
      %v516 = vadd.f32 %v514, %v515
      %v517 = vrot.slane %v516, 2
      %v518 = vadd.f32 %v516, %v517
      %v519 = vrot.slane %v518, 1
      %v520 = vadd.f32 %v518, %v519
      %p521 = scmp.eq.s32.totalorder %s22, 0
      // Predicated region
      $region37: #{dgcnn_encoder.27} parent=35 // pred_check
        %p522 = pneg %p521
      $region38: #{dgcnn_encoder.27} parent=35 // pred_check_branch
        %524 = sbr.rel (%p522) target = $region40
      $region39: #{dgcnn_encoder.27} parent=35 // pred_region
        %525 = vst [vmem:[%s257] sm:$0x1] %v513
        %526 = vst [vmem:[%s260] sm:$0x1] %v520
      $region40: #{dgcnn_encoder.27} parent=35 // pred_fallthru
        _
      %p527 = scmp.gt.s32.totalorder %s22, 0
      // Predicated region
      $region41: #{dgcnn_encoder.27} parent=35 // pred_check
        %p528 = pneg %p527
      $region42: #{dgcnn_encoder.27} parent=35 // pred_check_branch
        %530 = sbr.rel (%p528) target = $region44
      $region43: #{dgcnn_encoder.27} parent=35 // pred_region
        %v531 = vld [vmem:[%s257] sm:$0x1]
        %v532 = vmax.f32 %v531, %v513
        %533 = vst [vmem:[%s257] sm:$0x1] %v532
        %v534 = vld [vmem:[%s260] sm:$0x1]
        %v535 = vadd.f32 %v534, %v520
        %536 = vst [vmem:[%s260] sm:$0x1] %v535
      $region44: #{dgcnn_encoder.27} parent=35 // pred_fallthru
        _
      // Predicated region
      $region45: #{dgcnn_encoder.27} parent=35 // pred_check
        %p537 = pneg %p521
      $region46: #{dgcnn_encoder.27} parent=35 // pred_check_branch
        %539 = sbr.rel (%p537) target = $region48
      $region47: #{dgcnn_encoder.27} parent=35 // pred_region
        %v540 = vld [vmem:[%s260] sm:$0x1]
        %v541 = vmul.f32 %v540, 0.0625
        %542 = vst [vmem:[%s260] sm:$0x1] %v541
      $region48: #{dgcnn_encoder.27} parent=35 // pred_fallthru
        _
      %p543 = scmp.lt.s32.totalorder %s21, 1
      %s544 = scalar_select %p543, %s21, 1
      %s545 = scalar_lea.vmem %s4, %s544
      %p546 = scmp.lt.s32.totalorder %s21, 1
      %s547 = scalar_select %p546, %s21, 1
      %s548 = scalar_lea.vmem %s5, %s547
      // Predicated region
      $region49: #{dgcnn_encoder.27} parent=35 // pred_check
        %p549 = pneg %p138
      $region50: #{dgcnn_encoder.27} parent=35 // pred_check_branch
        %551 = sbr.rel (%p549) target = $region52
      $region51: #{dgcnn_encoder.27} parent=35 // pred_region
        _
      $region52: #{dgcnn_encoder.27} parent=35 // pred_fallthru
        _
      // Predicated region
      $region53: #{dgcnn_encoder.27} parent=35 // pred_check
        %p552 = pneg %p164
      $region54: #{dgcnn_encoder.27} parent=35 // pred_check_branch
        %554 = sbr.rel (%p552) target = $region56
      $region55: #{dgcnn_encoder.27} parent=35 // pred_region
        _
      $region56: #{dgcnn_encoder.27} parent=35 // pred_fallthru
        _
    $region36: #{dgcnn_encoder.27} parent=5 // pred_fallthru
      _
    %p555 = scmp.le.s32.totalorder 2, %s12
    // Predicated region
    $region57: #{dgcnn_encoder.27} parent=5 // pred_check
      %p556 = pneg %p555
    $region58: #{dgcnn_encoder.27} parent=5 // pred_check_branch
      %558 = sbr.rel (%p556) target = $region60
    $region59: #{dgcnn_encoder.27} parent=5 // pred_region
      %s559 = ssub.s32 %s12, 2
      // Predicated region
      $region61: #{dgcnn_encoder.27} parent=59 // pred_check
        %p560 = pneg %p144
      $region62: #{dgcnn_encoder.27} parent=59 // pred_check_branch
        %562 = sbr.rel (%p560) target = $region64
      $region63: #{dgcnn_encoder.27} parent=59 // pred_region
        %p563 = scmp.lt.s32.totalorder %s23, 1
        %s564 = scalar_select %p563, %s23, 1
        %s565 = scalar_lea.vmem %s4, %s564
      $region64: #{dgcnn_encoder.27} parent=59 // pred_fallthru
        _
      // Predicated region
      $region65: #{dgcnn_encoder.27} parent=59 // pred_check
        %p566 = pneg %p170
      $region66: #{dgcnn_encoder.27} parent=59 // pred_check_branch
        %568 = sbr.rel (%p566) target = $region68
      $region67: #{dgcnn_encoder.27} parent=59 // pred_region
        %p569 = scmp.lt.s32.totalorder %s23, 1
        %s570 = scalar_select %p569, %s23, 1
        %s571 = scalar_lea.vmem %s5, %s570
      $region68: #{dgcnn_encoder.27} parent=59 // pred_fallthru
        _
    $region60: #{dgcnn_encoder.27} parent=5 // pred_fallthru
      _
  $region6: #{dgcnn_encoder.27} parent=0 // loop_footer
    %s16 = sadd.s32 1, %s12
  $region7: #{dgcnn_encoder.27} parent=0 // loop_footer_branch
    %11 = sbr.rel target = $region3
  $region8: #{dgcnn_encoder.27} parent=0 // loop_exit
    _

// kernel: dgcnn_encoder.28
$region0: #{dgcnn_encoder.28}
  #allocation0 [shape = 'u32[]', space=smem, size = 0x4, offset = 0x4, fixed_abs, tag = 'smem constant byte address 0x4 - core index']
  #allocation1 [shape = 'u32[144,128]{1,0:T(1,128)}', space=vmem, size = 0x12000, scoped, tag = 'internal scratch']
  %s0 = inlined_call_operand.vmem [shape: f32[2,256], index: 0, kind: input, shape index: {}]
  %s1 = inlined_call_operand.vmem [shape: f32[256,2048], index: 1, kind: input, shape index: {}]
  %s2 = inlined_call_operand.vmem [shape: f32[1,2048], index: 2, kind: input, shape index: {}]
  %s3 = inlined_call_operand.vmem [shape: f32[1,2048], index: 3, kind: input, shape index: {}]
  %s4 = inlined_call_operand.vmem [shape: f32[2,2048], index: 4, kind: output, shape index: {}]
  %s5 = sld [smem:[#allocation0]]
  $region26: #{dgcnn_encoder.28} parent=0
    _
  %s7 = ssub.s32 1, %s5
  %s8 = scalar_select 0, %s7, %s5
  // Predicated region
  $region2: #{dgcnn_encoder.28} parent=0 // pred_check
    _
  $region3: #{dgcnn_encoder.28} parent=0 // pred_check_branch
    %10 = sbr.rel (0) target = $region5
  $region4: #{dgcnn_encoder.28} parent=0 // pred_region
    _
  $region5: #{dgcnn_encoder.28} parent=0 // pred_fallthru
    _
  // Predicated region
  $region6: #{dgcnn_encoder.28} parent=0 // pred_check
    _
  $region7: #{dgcnn_encoder.28} parent=0 // pred_check_branch
    %12 = sbr.rel (0) target = $region9
  $region8: #{dgcnn_encoder.28} parent=0 // pred_region
    _
  $region9: #{dgcnn_encoder.28} parent=0 // pred_fallthru
    _
  // Predicated region
  $region10: #{dgcnn_encoder.28} parent=0 // pred_check
    _
  $region11: #{dgcnn_encoder.28} parent=0 // pred_check_branch
    %14 = sbr.rel (0) target = $region13
  $region12: #{dgcnn_encoder.28} parent=0 // pred_region
    _
  $region13: #{dgcnn_encoder.28} parent=0 // pred_fallthru
    _
  // Predicated region
  $region14: #{dgcnn_encoder.28} parent=0 // pred_check
    _
  $region15: #{dgcnn_encoder.28} parent=0 // pred_check_branch
    %16 = sbr.rel (0) target = $region17
  $region16: #{dgcnn_encoder.28} parent=0 // pred_region
    _
  $region17: #{dgcnn_encoder.28} parent=0 // pred_fallthru
    _
  %v17 = vld [vmem:[%s0] sm:$0xf]
  %v18 = vld [vmem:[%s1] sm:$0xff]
  %v19 = vld [vmem:[%s1 + $0x8] sm:$0xff]
  %v20 = vld [vmem:[%s1 + $0x10] sm:$0xff]
  %v21 = vld [vmem:[%s1 + $0x18] sm:$0xff]
  %v22 = vld [vmem:[%s1 + $0x20] sm:$0xff]
  %v23 = vld [vmem:[%s1 + $0x28] sm:$0xff]
  %v24 = vld [vmem:[%s1 + $0x30] sm:$0xff]
  %v25 = vld [vmem:[%s1 + $0x38] sm:$0xff]
  %v26 = vld [vmem:[%s1 + $0x40] sm:$0xff]
  %v27 = vld [vmem:[%s1 + $0x48] sm:$0xff]
  %v28 = vld [vmem:[%s1 + $0x50] sm:$0xff]
  %v29 = vld [vmem:[%s1 + $0x58] sm:$0xff]
  %v30 = vld [vmem:[%s1 + $0x60] sm:$0xff]
  %v31 = vld [vmem:[%s1 + $0x68] sm:$0xff]
  %v32 = vld [vmem:[%s1 + $0x70] sm:$0xff]
  %v33 = vld [vmem:[%s1 + $0x78] sm:$0xff]
  %v34 = vld [vmem:[%s1 + $0x80] sm:$0xff]
  %v35 = vld [vmem:[%s1 + $0x88] sm:$0xff]
  %v36 = vld [vmem:[%s1 + $0x90] sm:$0xff]
  %v37 = vld [vmem:[%s1 + $0x98] sm:$0xff]
  %v38 = vld [vmem:[%s1 + $0xa0] sm:$0xff]
  %v39 = vld [vmem:[%s1 + $0xa8] sm:$0xff]
  %v40 = vld [vmem:[%s1 + $0xb0] sm:$0xff]
  %v41 = vld [vmem:[%s1 + $0xb8] sm:$0xff]
  %v42 = vld [vmem:[%s1 + $0xc0] sm:$0xff]
  %v43 = vld [vmem:[%s1 + $0xc8] sm:$0xff]
  %v44 = vld [vmem:[%s1 + $0xd0] sm:$0xff]
  %v45 = vld [vmem:[%s1 + $0xd8] sm:$0xff]
  %v46 = vld [vmem:[%s1 + $0xe0] sm:$0xff]
  %v47 = vld [vmem:[%s1 + $0xe8] sm:$0xff]
  %v48 = vld [vmem:[%s1 + $0xf0] sm:$0xff]
  %v49 = vld [vmem:[%s1 + $0xf8] sm:$0xff]
  %v50 = vld [vmem:[%s1 + $0x100] sm:$0xff]
  %v51 = vld [vmem:[%s1 + $0x108] sm:$0xff]
  %v52 = vld [vmem:[%s1 + $0x110] sm:$0xff]
  %v53 = vld [vmem:[%s1 + $0x118] sm:$0xff]
  %v54 = vld [vmem:[%s1 + $0x120] sm:$0xff]
  %v55 = vld [vmem:[%s1 + $0x128] sm:$0xff]
  %v56 = vld [vmem:[%s1 + $0x130] sm:$0xff]
  %v57 = vld [vmem:[%s1 + $0x138] sm:$0xff]
  %v58 = vld [vmem:[%s1 + $0x140] sm:$0xff]
  %v59 = vld [vmem:[%s1 + $0x148] sm:$0xff]
  %v60 = vld [vmem:[%s1 + $0x150] sm:$0xff]
  %v61 = vld [vmem:[%s1 + $0x158] sm:$0xff]
  %v62 = vld [vmem:[%s1 + $0x160] sm:$0xff]
  %v63 = vld [vmem:[%s1 + $0x168] sm:$0xff]
  %v64 = vld [vmem:[%s1 + $0x170] sm:$0xff]
  %v65 = vld [vmem:[%s1 + $0x178] sm:$0xff]
  %v66 = vld [vmem:[%s1 + $0x180] sm:$0xff]
  %v67 = vld [vmem:[%s1 + $0x188] sm:$0xff]
  %v68 = vld [vmem:[%s1 + $0x190] sm:$0xff]
  %v69 = vld [vmem:[%s1 + $0x198] sm:$0xff]
  %v70 = vld [vmem:[%s1 + $0x1a0] sm:$0xff]
  %v71 = vld [vmem:[%s1 + $0x1a8] sm:$0xff]
  %v72 = vld [vmem:[%s1 + $0x1b0] sm:$0xff]
  %v73 = vld [vmem:[%s1 + $0x1b8] sm:$0xff]
  %v74 = vld [vmem:[%s1 + $0x1c0] sm:$0xff]
  %v75 = vld [vmem:[%s1 + $0x1c8] sm:$0xff]
  %v76 = vld [vmem:[%s1 + $0x1d0] sm:$0xff]
  %v77 = vld [vmem:[%s1 + $0x1d8] sm:$0xff]
  %v78 = vld [vmem:[%s1 + $0x1e0] sm:$0xff]
  %v79 = vld [vmem:[%s1 + $0x1e8] sm:$0xff]
  %v80 = vld [vmem:[%s1 + $0x1f0] sm:$0xff]
  %v81 = vld [vmem:[%s1 + $0x1f8] sm:$0xff]
  %v82 = vld [vmem:[%s1 + $0x200] sm:$0xff]
  %v83 = vld [vmem:[%s1 + $0x208] sm:$0xff]
  %v84 = vld [vmem:[%s1 + $0x210] sm:$0xff]
  %v85 = vld [vmem:[%s1 + $0x218] sm:$0xff]
  %v86 = vld [vmem:[%s1 + $0x220] sm:$0xff]
  %v87 = vld [vmem:[%s1 + $0x228] sm:$0xff]
  %v88 = vld [vmem:[%s1 + $0x230] sm:$0xff]
  %v89 = vld [vmem:[%s1 + $0x238] sm:$0xff]
  %v90 = vld [vmem:[%s1 + $0x240] sm:$0xff]
  %v91 = vld [vmem:[%s1 + $0x248] sm:$0xff]
  %v92 = vld [vmem:[%s1 + $0x250] sm:$0xff]
  %v93 = vld [vmem:[%s1 + $0x258] sm:$0xff]
  %v94 = vld [vmem:[%s1 + $0x260] sm:$0xff]
  %v95 = vld [vmem:[%s1 + $0x268] sm:$0xff]
  %v96 = vld [vmem:[%s1 + $0x270] sm:$0xff]
  %v97 = vld [vmem:[%s1 + $0x278] sm:$0xff]
  %v98 = vld [vmem:[%s1 + $0x280] sm:$0xff]
  %v99 = vld [vmem:[%s1 + $0x288] sm:$0xff]
  %v100 = vld [vmem:[%s1 + $0x290] sm:$0xff]
  %v101 = vld [vmem:[%s1 + $0x298] sm:$0xff]
  %v102 = vld [vmem:[%s1 + $0x2a0] sm:$0xff]
  %v103 = vld [vmem:[%s1 + $0x2a8] sm:$0xff]
  %v104 = vld [vmem:[%s1 + $0x2b0] sm:$0xff]
  %v105 = vld [vmem:[%s1 + $0x2b8] sm:$0xff]
  %v106 = vld [vmem:[%s1 + $0x2c0] sm:$0xff]
  %v107 = vld [vmem:[%s1 + $0x2c8] sm:$0xff]
  %v108 = vld [vmem:[%s1 + $0x2d0] sm:$0xff]
  %v109 = vld [vmem:[%s1 + $0x2d8] sm:$0xff]
  %v110 = vld [vmem:[%s1 + $0x2e0] sm:$0xff]
  %v111 = vld [vmem:[%s1 + $0x2e8] sm:$0xff]
  %v112 = vld [vmem:[%s1 + $0x2f0] sm:$0xff]
  %v113 = vld [vmem:[%s1 + $0x2f8] sm:$0xff]
  %v114 = vld [vmem:[%s1 + $0x300] sm:$0xff]
  %v115 = vld [vmem:[%s1 + $0x308] sm:$0xff]
  %v116 = vld [vmem:[%s1 + $0x310] sm:$0xff]
  %v117 = vld [vmem:[%s1 + $0x318] sm:$0xff]
  %v118 = vld [vmem:[%s1 + $0x320] sm:$0xff]
  %v119 = vld [vmem:[%s1 + $0x328] sm:$0xff]
  %v120 = vld [vmem:[%s1 + $0x330] sm:$0xff]
  %v121 = vld [vmem:[%s1 + $0x338] sm:$0xff]
  %v122 = vld [vmem:[%s1 + $0x340] sm:$0xff]
  %v123 = vld [vmem:[%s1 + $0x348] sm:$0xff]
  %v124 = vld [vmem:[%s1 + $0x350] sm:$0xff]
  %v125 = vld [vmem:[%s1 + $0x358] sm:$0xff]
  %v126 = vld [vmem:[%s1 + $0x360] sm:$0xff]
  %v127 = vld [vmem:[%s1 + $0x368] sm:$0xff]
  %v128 = vld [vmem:[%s1 + $0x370] sm:$0xff]
  %v129 = vld [vmem:[%s1 + $0x378] sm:$0xff]
  %v130 = vld [vmem:[%s1 + $0x380] sm:$0xff]
  %v131 = vld [vmem:[%s1 + $0x388] sm:$0xff]
  %v132 = vld [vmem:[%s1 + $0x390] sm:$0xff]
  %v133 = vld [vmem:[%s1 + $0x398] sm:$0xff]
  %v134 = vld [vmem:[%s1 + $0x3a0] sm:$0xff]
  %v135 = vld [vmem:[%s1 + $0x3a8] sm:$0xff]
  %v136 = vld [vmem:[%s1 + $0x3b0] sm:$0xff]
  %v137 = vld [vmem:[%s1 + $0x3b8] sm:$0xff]
  %v138 = vld [vmem:[%s1 + $0x3c0] sm:$0xff]
  %v139 = vld [vmem:[%s1 + $0x3c8] sm:$0xff]
  %v140 = vld [vmem:[%s1 + $0x3d0] sm:$0xff]
  %v141 = vld [vmem:[%s1 + $0x3d8] sm:$0xff]
  %v142 = vld [vmem:[%s1 + $0x3e0] sm:$0xff]
  %v143 = vld [vmem:[%s1 + $0x3e8] sm:$0xff]
  %v144 = vld [vmem:[%s1 + $0x3f0] sm:$0xff]
  %v145 = vld [vmem:[%s1 + $0x3f8] sm:$0xff]
  %v146 = vld [vmem:[%s1 + $0x400] sm:$0xff]
  %v147 = vld [vmem:[%s1 + $0x408] sm:$0xff]
  %v148 = vld [vmem:[%s1 + $0x410] sm:$0xff]
  %v149 = vld [vmem:[%s1 + $0x418] sm:$0xff]
  %v150 = vld [vmem:[%s1 + $0x420] sm:$0xff]
  %v151 = vld [vmem:[%s1 + $0x428] sm:$0xff]
  %v152 = vld [vmem:[%s1 + $0x430] sm:$0xff]
  %v153 = vld [vmem:[%s1 + $0x438] sm:$0xff]
  %v154 = vld [vmem:[%s1 + $0x440] sm:$0xff]
  %v155 = vld [vmem:[%s1 + $0x448] sm:$0xff]
  %v156 = vld [vmem:[%s1 + $0x450] sm:$0xff]
  %v157 = vld [vmem:[%s1 + $0x458] sm:$0xff]
  %v158 = vld [vmem:[%s1 + $0x460] sm:$0xff]
  %v159 = vld [vmem:[%s1 + $0x468] sm:$0xff]
  %v160 = vld [vmem:[%s1 + $0x470] sm:$0xff]
  %v161 = vld [vmem:[%s1 + $0x478] sm:$0xff]
  %v162 = vld [vmem:[%s1 + $0x480] sm:$0xff]
  %v163 = vld [vmem:[%s1 + $0x488] sm:$0xff]
  %v164 = vld [vmem:[%s1 + $0x490] sm:$0xff]
  %v165 = vld [vmem:[%s1 + $0x498] sm:$0xff]
  %v166 = vld [vmem:[%s1 + $0x4a0] sm:$0xff]
  %v167 = vld [vmem:[%s1 + $0x4a8] sm:$0xff]
  %v168 = vld [vmem:[%s1 + $0x4b0] sm:$0xff]
  %v169 = vld [vmem:[%s1 + $0x4b8] sm:$0xff]
  %v170 = vld [vmem:[%s1 + $0x4c0] sm:$0xff]
  %v171 = vld [vmem:[%s1 + $0x4c8] sm:$0xff]
  %v172 = vld [vmem:[%s1 + $0x4d0] sm:$0xff]
  %v173 = vld [vmem:[%s1 + $0x4d8] sm:$0xff]
  %v174 = vld [vmem:[%s1 + $0x4e0] sm:$0xff]
  %v175 = vld [vmem:[%s1 + $0x4e8] sm:$0xff]
  %v176 = vld [vmem:[%s1 + $0x4f0] sm:$0xff]
  %v177 = vld [vmem:[%s1 + $0x4f8] sm:$0xff]
  %v178 = vld [vmem:[%s1 + $0x500] sm:$0xff]
  %v179 = vld [vmem:[%s1 + $0x508] sm:$0xff]
  %v180 = vld [vmem:[%s1 + $0x510] sm:$0xff]
  %v181 = vld [vmem:[%s1 + $0x518] sm:$0xff]
  %v182 = vld [vmem:[%s1 + $0x520] sm:$0xff]
  %v183 = vld [vmem:[%s1 + $0x528] sm:$0xff]
  %v184 = vld [vmem:[%s1 + $0x530] sm:$0xff]
  %v185 = vld [vmem:[%s1 + $0x538] sm:$0xff]
  %v186 = vld [vmem:[%s1 + $0x540] sm:$0xff]
  %v187 = vld [vmem:[%s1 + $0x548] sm:$0xff]
  %v188 = vld [vmem:[%s1 + $0x550] sm:$0xff]
  %v189 = vld [vmem:[%s1 + $0x558] sm:$0xff]
  %v190 = vld [vmem:[%s1 + $0x560] sm:$0xff]
  %v191 = vld [vmem:[%s1 + $0x568] sm:$0xff]
  %v192 = vld [vmem:[%s1 + $0x570] sm:$0xff]
  %v193 = vld [vmem:[%s1 + $0x578] sm:$0xff]
  %v194 = vld [vmem:[%s1 + $0x580] sm:$0xff]
  %v195 = vld [vmem:[%s1 + $0x588] sm:$0xff]
  %v196 = vld [vmem:[%s1 + $0x590] sm:$0xff]
  %v197 = vld [vmem:[%s1 + $0x598] sm:$0xff]
  %v198 = vld [vmem:[%s1 + $0x5a0] sm:$0xff]
  %v199 = vld [vmem:[%s1 + $0x5a8] sm:$0xff]
  %v200 = vld [vmem:[%s1 + $0x5b0] sm:$0xff]
  %v201 = vld [vmem:[%s1 + $0x5b8] sm:$0xff]
  %v202 = vld [vmem:[%s1 + $0x5c0] sm:$0xff]
  %v203 = vld [vmem:[%s1 + $0x5c8] sm:$0xff]
  %v204 = vld [vmem:[%s1 + $0x5d0] sm:$0xff]
  %v205 = vld [vmem:[%s1 + $0x5d8] sm:$0xff]
  %v206 = vld [vmem:[%s1 + $0x5e0] sm:$0xff]
  %v207 = vld [vmem:[%s1 + $0x5e8] sm:$0xff]
  %v208 = vld [vmem:[%s1 + $0x5f0] sm:$0xff]
  %v209 = vld [vmem:[%s1 + $0x5f8] sm:$0xff]
  %v210 = vld [vmem:[%s1 + $0x600] sm:$0xff]
  %v211 = vld [vmem:[%s1 + $0x608] sm:$0xff]
  %v212 = vld [vmem:[%s1 + $0x610] sm:$0xff]
  %v213 = vld [vmem:[%s1 + $0x618] sm:$0xff]
  %v214 = vld [vmem:[%s1 + $0x620] sm:$0xff]
  %v215 = vld [vmem:[%s1 + $0x628] sm:$0xff]
  %v216 = vld [vmem:[%s1 + $0x630] sm:$0xff]
  %v217 = vld [vmem:[%s1 + $0x638] sm:$0xff]
  %v218 = vld [vmem:[%s1 + $0x640] sm:$0xff]
  %v219 = vld [vmem:[%s1 + $0x648] sm:$0xff]
  %v220 = vld [vmem:[%s1 + $0x650] sm:$0xff]
  %v221 = vld [vmem:[%s1 + $0x658] sm:$0xff]
  %v222 = vld [vmem:[%s1 + $0x660] sm:$0xff]
  %v223 = vld [vmem:[%s1 + $0x668] sm:$0xff]
  %v224 = vld [vmem:[%s1 + $0x670] sm:$0xff]
  %v225 = vld [vmem:[%s1 + $0x678] sm:$0xff]
  %v226 = vld [vmem:[%s1 + $0x680] sm:$0xff]
  %v227 = vld [vmem:[%s1 + $0x688] sm:$0xff]
  %v228 = vld [vmem:[%s1 + $0x690] sm:$0xff]
  %v229 = vld [vmem:[%s1 + $0x698] sm:$0xff]
  %v230 = vld [vmem:[%s1 + $0x6a0] sm:$0xff]
  %v231 = vld [vmem:[%s1 + $0x6a8] sm:$0xff]
  %v232 = vld [vmem:[%s1 + $0x6b0] sm:$0xff]
  %v233 = vld [vmem:[%s1 + $0x6b8] sm:$0xff]
  %v234 = vld [vmem:[%s1 + $0x6c0] sm:$0xff]
  %v235 = vld [vmem:[%s1 + $0x6c8] sm:$0xff]
  %v236 = vld [vmem:[%s1 + $0x6d0] sm:$0xff]
  %v237 = vld [vmem:[%s1 + $0x6d8] sm:$0xff]
  %v238 = vld [vmem:[%s1 + $0x6e0] sm:$0xff]
  %v239 = vld [vmem:[%s1 + $0x6e8] sm:$0xff]
  %v240 = vld [vmem:[%s1 + $0x6f0] sm:$0xff]
  %v241 = vld [vmem:[%s1 + $0x6f8] sm:$0xff]
  %v242 = vld [vmem:[%s1 + $0x700] sm:$0xff]
  %v243 = vld [vmem:[%s1 + $0x708] sm:$0xff]
  %v244 = vld [vmem:[%s1 + $0x710] sm:$0xff]
  %v245 = vld [vmem:[%s1 + $0x718] sm:$0xff]
  %v246 = vld [vmem:[%s1 + $0x720] sm:$0xff]
  %v247 = vld [vmem:[%s1 + $0x728] sm:$0xff]
  %v248 = vld [vmem:[%s1 + $0x730] sm:$0xff]
  %v249 = vld [vmem:[%s1 + $0x738] sm:$0xff]
  %v250 = vld [vmem:[%s1 + $0x740] sm:$0xff]
  %v251 = vld [vmem:[%s1 + $0x748] sm:$0xff]
  %v252 = vld [vmem:[%s1 + $0x750] sm:$0xff]
  %v253 = vld [vmem:[%s1 + $0x758] sm:$0xff]
  %v254 = vld [vmem:[%s1 + $0x760] sm:$0xff]
  %v255 = vld [vmem:[%s1 + $0x768] sm:$0xff]
  %v256 = vld [vmem:[%s1 + $0x770] sm:$0xff]
  %v257 = vld [vmem:[%s1 + $0x778] sm:$0xff]
  %v258 = vld [vmem:[%s1 + $0x780] sm:$0xff]
  %v259 = vld [vmem:[%s1 + $0x788] sm:$0xff]
  %v260 = vld [vmem:[%s1 + $0x790] sm:$0xff]
  %v261 = vld [vmem:[%s1 + $0x798] sm:$0xff]
  %v262 = vld [vmem:[%s1 + $0x7a0] sm:$0xff]
  %v263 = vld [vmem:[%s1 + $0x7a8] sm:$0xff]
  %v264 = vld [vmem:[%s1 + $0x7b0] sm:$0xff]
  %v265 = vld [vmem:[%s1 + $0x7b8] sm:$0xff]
  %v266 = vld [vmem:[%s1 + $0x7c0] sm:$0xff]
  %v267 = vld [vmem:[%s1 + $0x7c8] sm:$0xff]
  %v268 = vld [vmem:[%s1 + $0x7d0] sm:$0xff]
  %v269 = vld [vmem:[%s1 + $0x7d8] sm:$0xff]
  %v270 = vld [vmem:[%s1 + $0x7e0] sm:$0xff]
  %v271 = vld [vmem:[%s1 + $0x7e8] sm:$0xff]
  %v272 = vld [vmem:[%s1 + $0x7f0] sm:$0xff]
  %v273 = vld [vmem:[%s1 + $0x7f8] sm:$0xff]
  %v274 = vld [vmem:[%s1 + $0x800] sm:$0xff]
  %v275 = vld [vmem:[%s1 + $0x808] sm:$0xff]
  %v276 = vld [vmem:[%s1 + $0x810] sm:$0xff]
  %v277 = vld [vmem:[%s1 + $0x818] sm:$0xff]
  %v278 = vld [vmem:[%s1 + $0x820] sm:$0xff]
  %v279 = vld [vmem:[%s1 + $0x828] sm:$0xff]
  %v280 = vld [vmem:[%s1 + $0x830] sm:$0xff]
  %v281 = vld [vmem:[%s1 + $0x838] sm:$0xff]
  %v282 = vld [vmem:[%s1 + $0x840] sm:$0xff]
  %v283 = vld [vmem:[%s1 + $0x848] sm:$0xff]
  %v284 = vld [vmem:[%s1 + $0x850] sm:$0xff]
  %v285 = vld [vmem:[%s1 + $0x858] sm:$0xff]
  %v286 = vld [vmem:[%s1 + $0x860] sm:$0xff]
  %v287 = vld [vmem:[%s1 + $0x868] sm:$0xff]
  %v288 = vld [vmem:[%s1 + $0x870] sm:$0xff]
  %v289 = vld [vmem:[%s1 + $0x878] sm:$0xff]
  %v290 = vld [vmem:[%s1 + $0x880] sm:$0xff]
  %v291 = vld [vmem:[%s1 + $0x888] sm:$0xff]
  %v292 = vld [vmem:[%s1 + $0x890] sm:$0xff]
  %v293 = vld [vmem:[%s1 + $0x898] sm:$0xff]
  %v294 = vld [vmem:[%s1 + $0x8a0] sm:$0xff]
  %v295 = vld [vmem:[%s1 + $0x8a8] sm:$0xff]
  %v296 = vld [vmem:[%s1 + $0x8b0] sm:$0xff]
  %v297 = vld [vmem:[%s1 + $0x8b8] sm:$0xff]
  %v298 = vld [vmem:[%s1 + $0x8c0] sm:$0xff]
  %v299 = vld [vmem:[%s1 + $0x8c8] sm:$0xff]
  %v300 = vld [vmem:[%s1 + $0x8d0] sm:$0xff]
  %v301 = vld [vmem:[%s1 + $0x8d8] sm:$0xff]
  %v302 = vld [vmem:[%s1 + $0x8e0] sm:$0xff]
  %v303 = vld [vmem:[%s1 + $0x8e8] sm:$0xff]
  %v304 = vld [vmem:[%s1 + $0x8f0] sm:$0xff]
  %v305 = vld [vmem:[%s1 + $0x8f8] sm:$0xff]
  %v306 = vld [vmem:[%s1 + $0x900] sm:$0xff]
  %v307 = vld [vmem:[%s1 + $0x908] sm:$0xff]
  %v308 = vld [vmem:[%s1 + $0x910] sm:$0xff]
  %v309 = vld [vmem:[%s1 + $0x918] sm:$0xff]
  %v310 = vld [vmem:[%s1 + $0x920] sm:$0xff]
  %v311 = vld [vmem:[%s1 + $0x928] sm:$0xff]
  %v312 = vld [vmem:[%s1 + $0x930] sm:$0xff]
  %v313 = vld [vmem:[%s1 + $0x938] sm:$0xff]
  %v314 = vld [vmem:[%s1 + $0x940] sm:$0xff]
  %v315 = vld [vmem:[%s1 + $0x948] sm:$0xff]
  %v316 = vld [vmem:[%s1 + $0x950] sm:$0xff]
  %v317 = vld [vmem:[%s1 + $0x958] sm:$0xff]
  %v318 = vld [vmem:[%s1 + $0x960] sm:$0xff]
  %v319 = vld [vmem:[%s1 + $0x968] sm:$0xff]
  %v320 = vld [vmem:[%s1 + $0x970] sm:$0xff]
  %v321 = vld [vmem:[%s1 + $0x978] sm:$0xff]
  %v322 = vld [vmem:[%s1 + $0x980] sm:$0xff]
  %v323 = vld [vmem:[%s1 + $0x988] sm:$0xff]
  %v324 = vld [vmem:[%s1 + $0x990] sm:$0xff]
  %v325 = vld [vmem:[%s1 + $0x998] sm:$0xff]
  %v326 = vld [vmem:[%s1 + $0x9a0] sm:$0xff]
  %v327 = vld [vmem:[%s1 + $0x9a8] sm:$0xff]
  %v328 = vld [vmem:[%s1 + $0x9b0] sm:$0xff]
  %v329 = vld [vmem:[%s1 + $0x9b8] sm:$0xff]
  %v330 = vld [vmem:[%s1 + $0x9c0] sm:$0xff]
  %v331 = vld [vmem:[%s1 + $0x9c8] sm:$0xff]
  %v332 = vld [vmem:[%s1 + $0x9d0] sm:$0xff]
  %v333 = vld [vmem:[%s1 + $0x9d8] sm:$0xff]
  %v334 = vld [vmem:[%s1 + $0x9e0] sm:$0xff]
  %v335 = vld [vmem:[%s1 + $0x9e8] sm:$0xff]
  %v336 = vld [vmem:[%s1 + $0x9f0] sm:$0xff]
  %v337 = vld [vmem:[%s1 + $0x9f8] sm:$0xff]
  %v338 = vld [vmem:[%s1 + $0xa00] sm:$0xff]
  %v339 = vld [vmem:[%s1 + $0xa08] sm:$0xff]
  %v340 = vld [vmem:[%s1 + $0xa10] sm:$0xff]
  %v341 = vld [vmem:[%s1 + $0xa18] sm:$0xff]
  %v342 = vld [vmem:[%s1 + $0xa20] sm:$0xff]
  %v343 = vld [vmem:[%s1 + $0xa28] sm:$0xff]
  %v344 = vld [vmem:[%s1 + $0xa30] sm:$0xff]
  %v345 = vld [vmem:[%s1 + $0xa38] sm:$0xff]
  %v346 = vld [vmem:[%s1 + $0xa40] sm:$0xff]
  %v347 = vld [vmem:[%s1 + $0xa48] sm:$0xff]
  %v348 = vld [vmem:[%s1 + $0xa50] sm:$0xff]
  %v349 = vld [vmem:[%s1 + $0xa58] sm:$0xff]
  %v350 = vld [vmem:[%s1 + $0xa60] sm:$0xff]
  %v351 = vld [vmem:[%s1 + $0xa68] sm:$0xff]
  %v352 = vld [vmem:[%s1 + $0xa70] sm:$0xff]
  %v353 = vld [vmem:[%s1 + $0xa78] sm:$0xff]
  %v354 = vld [vmem:[%s1 + $0xa80] sm:$0xff]
  %v355 = vld [vmem:[%s1 + $0xa88] sm:$0xff]
  %v356 = vld [vmem:[%s1 + $0xa90] sm:$0xff]
  %v357 = vld [vmem:[%s1 + $0xa98] sm:$0xff]
  %v358 = vld [vmem:[%s1 + $0xaa0] sm:$0xff]
  %v359 = vld [vmem:[%s1 + $0xaa8] sm:$0xff]
  %v360 = vld [vmem:[%s1 + $0xab0] sm:$0xff]
  %v361 = vld [vmem:[%s1 + $0xab8] sm:$0xff]
  %v362 = vld [vmem:[%s1 + $0xac0] sm:$0xff]
  %v363 = vld [vmem:[%s1 + $0xac8] sm:$0xff]
  %v364 = vld [vmem:[%s1 + $0xad0] sm:$0xff]
  %v365 = vld [vmem:[%s1 + $0xad8] sm:$0xff]
  %v366 = vld [vmem:[%s1 + $0xae0] sm:$0xff]
  %v367 = vld [vmem:[%s1 + $0xae8] sm:$0xff]
  %v368 = vld [vmem:[%s1 + $0xaf0] sm:$0xff]
  %v369 = vld [vmem:[%s1 + $0xaf8] sm:$0xff]
  %v370 = vld [vmem:[%s1 + $0xb00] sm:$0xff]
  %v371 = vld [vmem:[%s1 + $0xb08] sm:$0xff]
  %v372 = vld [vmem:[%s1 + $0xb10] sm:$0xff]
  %v373 = vld [vmem:[%s1 + $0xb18] sm:$0xff]
  %v374 = vld [vmem:[%s1 + $0xb20] sm:$0xff]
  %v375 = vld [vmem:[%s1 + $0xb28] sm:$0xff]
  %v376 = vld [vmem:[%s1 + $0xb30] sm:$0xff]
  %v377 = vld [vmem:[%s1 + $0xb38] sm:$0xff]
  %v378 = vld [vmem:[%s1 + $0xb40] sm:$0xff]
  %v379 = vld [vmem:[%s1 + $0xb48] sm:$0xff]
  %v380 = vld [vmem:[%s1 + $0xb50] sm:$0xff]
  %v381 = vld [vmem:[%s1 + $0xb58] sm:$0xff]
  %v382 = vld [vmem:[%s1 + $0xb60] sm:$0xff]
  %v383 = vld [vmem:[%s1 + $0xb68] sm:$0xff]
  %v384 = vld [vmem:[%s1 + $0xb70] sm:$0xff]
  %v385 = vld [vmem:[%s1 + $0xb78] sm:$0xff]
  %v386 = vld [vmem:[%s1 + $0xb80] sm:$0xff]
  %v387 = vld [vmem:[%s1 + $0xb88] sm:$0xff]
  %v388 = vld [vmem:[%s1 + $0xb90] sm:$0xff]
  %v389 = vld [vmem:[%s1 + $0xb98] sm:$0xff]
  %v390 = vld [vmem:[%s1 + $0xba0] sm:$0xff]
  %v391 = vld [vmem:[%s1 + $0xba8] sm:$0xff]
  %v392 = vld [vmem:[%s1 + $0xbb0] sm:$0xff]
  %v393 = vld [vmem:[%s1 + $0xbb8] sm:$0xff]
  %v394 = vld [vmem:[%s1 + $0xbc0] sm:$0xff]
  %v395 = vld [vmem:[%s1 + $0xbc8] sm:$0xff]
  %v396 = vld [vmem:[%s1 + $0xbd0] sm:$0xff]
  %v397 = vld [vmem:[%s1 + $0xbd8] sm:$0xff]
  %v398 = vld [vmem:[%s1 + $0xbe0] sm:$0xff]
  %v399 = vld [vmem:[%s1 + $0xbe8] sm:$0xff]
  %v400 = vld [vmem:[%s1 + $0xbf0] sm:$0xff]
  %v401 = vld [vmem:[%s1 + $0xbf8] sm:$0xff]
  %v402 = vld [vmem:[%s1 + $0xc00] sm:$0xff]
  %v403 = vld [vmem:[%s1 + $0xc08] sm:$0xff]
  %v404 = vld [vmem:[%s1 + $0xc10] sm:$0xff]
  %v405 = vld [vmem:[%s1 + $0xc18] sm:$0xff]
  %v406 = vld [vmem:[%s1 + $0xc20] sm:$0xff]
  %v407 = vld [vmem:[%s1 + $0xc28] sm:$0xff]
  %v408 = vld [vmem:[%s1 + $0xc30] sm:$0xff]
  %v409 = vld [vmem:[%s1 + $0xc38] sm:$0xff]
  %v410 = vld [vmem:[%s1 + $0xc40] sm:$0xff]
  %v411 = vld [vmem:[%s1 + $0xc48] sm:$0xff]
  %v412 = vld [vmem:[%s1 + $0xc50] sm:$0xff]
  %v413 = vld [vmem:[%s1 + $0xc58] sm:$0xff]
  %v414 = vld [vmem:[%s1 + $0xc60] sm:$0xff]
  %v415 = vld [vmem:[%s1 + $0xc68] sm:$0xff]
  %v416 = vld [vmem:[%s1 + $0xc70] sm:$0xff]
  %v417 = vld [vmem:[%s1 + $0xc78] sm:$0xff]
  %v418 = vld [vmem:[%s1 + $0xc80] sm:$0xff]
  %v419 = vld [vmem:[%s1 + $0xc88] sm:$0xff]
  %v420 = vld [vmem:[%s1 + $0xc90] sm:$0xff]
  %v421 = vld [vmem:[%s1 + $0xc98] sm:$0xff]
  %v422 = vld [vmem:[%s1 + $0xca0] sm:$0xff]
  %v423 = vld [vmem:[%s1 + $0xca8] sm:$0xff]
  %v424 = vld [vmem:[%s1 + $0xcb0] sm:$0xff]
  %v425 = vld [vmem:[%s1 + $0xcb8] sm:$0xff]
  %v426 = vld [vmem:[%s1 + $0xcc0] sm:$0xff]
  %v427 = vld [vmem:[%s1 + $0xcc8] sm:$0xff]
  %v428 = vld [vmem:[%s1 + $0xcd0] sm:$0xff]
  %v429 = vld [vmem:[%s1 + $0xcd8] sm:$0xff]
  %v430 = vld [vmem:[%s1 + $0xce0] sm:$0xff]
  %v431 = vld [vmem:[%s1 + $0xce8] sm:$0xff]
  %v432 = vld [vmem:[%s1 + $0xcf0] sm:$0xff]
  %v433 = vld [vmem:[%s1 + $0xcf8] sm:$0xff]
  %v434 = vld [vmem:[%s1 + $0xd00] sm:$0xff]
  %v435 = vld [vmem:[%s1 + $0xd08] sm:$0xff]
  %v436 = vld [vmem:[%s1 + $0xd10] sm:$0xff]
  %v437 = vld [vmem:[%s1 + $0xd18] sm:$0xff]
  %v438 = vld [vmem:[%s1 + $0xd20] sm:$0xff]
  %v439 = vld [vmem:[%s1 + $0xd28] sm:$0xff]
  %v440 = vld [vmem:[%s1 + $0xd30] sm:$0xff]
  %v441 = vld [vmem:[%s1 + $0xd38] sm:$0xff]
  %v442 = vld [vmem:[%s1 + $0xd40] sm:$0xff]
  %v443 = vld [vmem:[%s1 + $0xd48] sm:$0xff]
  %v444 = vld [vmem:[%s1 + $0xd50] sm:$0xff]
  %v445 = vld [vmem:[%s1 + $0xd58] sm:$0xff]
  %v446 = vld [vmem:[%s1 + $0xd60] sm:$0xff]
  %v447 = vld [vmem:[%s1 + $0xd68] sm:$0xff]
  %v448 = vld [vmem:[%s1 + $0xd70] sm:$0xff]
  %v449 = vld [vmem:[%s1 + $0xd78] sm:$0xff]
  %v450 = vld [vmem:[%s1 + $0xd80] sm:$0xff]
  %v451 = vld [vmem:[%s1 + $0xd88] sm:$0xff]
  %v452 = vld [vmem:[%s1 + $0xd90] sm:$0xff]
  %v453 = vld [vmem:[%s1 + $0xd98] sm:$0xff]
  %v454 = vld [vmem:[%s1 + $0xda0] sm:$0xff]
  %v455 = vld [vmem:[%s1 + $0xda8] sm:$0xff]
  %v456 = vld [vmem:[%s1 + $0xdb0] sm:$0xff]
  %v457 = vld [vmem:[%s1 + $0xdb8] sm:$0xff]
  %v458 = vld [vmem:[%s1 + $0xdc0] sm:$0xff]
  %v459 = vld [vmem:[%s1 + $0xdc8] sm:$0xff]
  %v460 = vld [vmem:[%s1 + $0xdd0] sm:$0xff]
  %v461 = vld [vmem:[%s1 + $0xdd8] sm:$0xff]
  %v462 = vld [vmem:[%s1 + $0xde0] sm:$0xff]
  %v463 = vld [vmem:[%s1 + $0xde8] sm:$0xff]
  %v464 = vld [vmem:[%s1 + $0xdf0] sm:$0xff]
  %v465 = vld [vmem:[%s1 + $0xdf8] sm:$0xff]
  %v466 = vld [vmem:[%s1 + $0xe00] sm:$0xff]
  %v467 = vld [vmem:[%s1 + $0xe08] sm:$0xff]
  %v468 = vld [vmem:[%s1 + $0xe10] sm:$0xff]
  %v469 = vld [vmem:[%s1 + $0xe18] sm:$0xff]
  %v470 = vld [vmem:[%s1 + $0xe20] sm:$0xff]
  %v471 = vld [vmem:[%s1 + $0xe28] sm:$0xff]
  %v472 = vld [vmem:[%s1 + $0xe30] sm:$0xff]
  %v473 = vld [vmem:[%s1 + $0xe38] sm:$0xff]
  %v474 = vld [vmem:[%s1 + $0xe40] sm:$0xff]
  %v475 = vld [vmem:[%s1 + $0xe48] sm:$0xff]
  %v476 = vld [vmem:[%s1 + $0xe50] sm:$0xff]
  %v477 = vld [vmem:[%s1 + $0xe58] sm:$0xff]
  %v478 = vld [vmem:[%s1 + $0xe60] sm:$0xff]
  %v479 = vld [vmem:[%s1 + $0xe68] sm:$0xff]
  %v480 = vld [vmem:[%s1 + $0xe70] sm:$0xff]
  %v481 = vld [vmem:[%s1 + $0xe78] sm:$0xff]
  %v482 = vld [vmem:[%s1 + $0xe80] sm:$0xff]
  %v483 = vld [vmem:[%s1 + $0xe88] sm:$0xff]
  %v484 = vld [vmem:[%s1 + $0xe90] sm:$0xff]
  %v485 = vld [vmem:[%s1 + $0xe98] sm:$0xff]
  %v486 = vld [vmem:[%s1 + $0xea0] sm:$0xff]
  %v487 = vld [vmem:[%s1 + $0xea8] sm:$0xff]
  %v488 = vld [vmem:[%s1 + $0xeb0] sm:$0xff]
  %v489 = vld [vmem:[%s1 + $0xeb8] sm:$0xff]
  %v490 = vld [vmem:[%s1 + $0xec0] sm:$0xff]
  %v491 = vld [vmem:[%s1 + $0xec8] sm:$0xff]
  %v492 = vld [vmem:[%s1 + $0xed0] sm:$0xff]
  %v493 = vld [vmem:[%s1 + $0xed8] sm:$0xff]
  %v494 = vld [vmem:[%s1 + $0xee0] sm:$0xff]
  %v495 = vld [vmem:[%s1 + $0xee8] sm:$0xff]
  %v496 = vld [vmem:[%s1 + $0xef0] sm:$0xff]
  %v497 = vld [vmem:[%s1 + $0xef8] sm:$0xff]
  %v498 = vld [vmem:[%s1 + $0xf00] sm:$0xff]
  %v499 = vld [vmem:[%s1 + $0xf08] sm:$0xff]
  %v500 = vld [vmem:[%s1 + $0xf10] sm:$0xff]
  %v501 = vld [vmem:[%s1 + $0xf18] sm:$0xff]
  %v502 = vld [vmem:[%s1 + $0xf20] sm:$0xff]
  %v503 = vld [vmem:[%s1 + $0xf28] sm:$0xff]
  %v504 = vld [vmem:[%s1 + $0xf30] sm:$0xff]
  %v505 = vld [vmem:[%s1 + $0xf38] sm:$0xff]
  %v506 = vld [vmem:[%s1 + $0xf40] sm:$0xff]
  %v507 = vld [vmem:[%s1 + $0xf48] sm:$0xff]
  %v508 = vld [vmem:[%s1 + $0xf50] sm:$0xff]
  %v509 = vld [vmem:[%s1 + $0xf58] sm:$0xff]
  %v510 = vld [vmem:[%s1 + $0xf60] sm:$0xff]
  %v511 = vld [vmem:[%s1 + $0xf68] sm:$0xff]
  %v512 = vld [vmem:[%s1 + $0xf70] sm:$0xff]
  %v513 = vld [vmem:[%s1 + $0xf78] sm:$0xff]
  %v514 = vld [vmem:[%s1 + $0xf80] sm:$0xff]
  %v515 = vld [vmem:[%s1 + $0xf88] sm:$0xff]
  %v516 = vld [vmem:[%s1 + $0xf90] sm:$0xff]
  %v517 = vld [vmem:[%s1 + $0xf98] sm:$0xff]
  %v518 = vld [vmem:[%s1 + $0xfa0] sm:$0xff]
  %v519 = vld [vmem:[%s1 + $0xfa8] sm:$0xff]
  %v520 = vld [vmem:[%s1 + $0xfb0] sm:$0xff]
  %v521 = vld [vmem:[%s1 + $0xfb8] sm:$0xff]
  %v522 = vld [vmem:[%s1 + $0xfc0] sm:$0xff]
  %v523 = vld [vmem:[%s1 + $0xfc8] sm:$0xff]
  %v524 = vld [vmem:[%s1 + $0xfd0] sm:$0xff]
  %v525 = vld [vmem:[%s1 + $0xfd8] sm:$0xff]
  %v526 = vld [vmem:[%s1 + $0xfe0] sm:$0xff]
  %v527 = vld [vmem:[%s1 + $0xfe8] sm:$0xff]
  %v528 = vld [vmem:[%s1 + $0xff0] sm:$0xff]
  %v529 = vld [vmem:[%s1 + $0xff8] sm:$0xff]
  %v532 = vunpack.c.l.s4 1983009808
  %v533 = vunpack.c.0.s8 %v532
  %v534 = vlaneseq
  %v535 = vshrl.u32 %v534, 7
  %v536 = vsub.s32 %v533, %v535
  %v537 = vrot.slane %v17, %v536
  %v538 = vcombine.high %v537, %v537
  %541 = vmatprep.subr.mxu0 %v259
  %542 = vmatpush1.msra.mxu0 %v258
  %543 = vmatprep.subr.mxu0 %v243
  %544 = vmatpush1.msra.mxu0 %v242
  %545 = vmatprep.subr.mxu0 %v227
  %546 = vmatpush1.msra.mxu0 %v226
  %547 = vmatprep.subr.mxu0 %v211
  %548 = vmatpush1.msra.mxu0 %v210
  %549 = vmatprep.subr.mxu0 %v195
  %550 = vmatpush1.msra.mxu0 %v194
  %551 = vmatprep.subr.mxu0 %v179
  %552 = vmatpush1.msra.mxu0 %v178
  %553 = vmatprep.subr.mxu0 %v163
  %554 = vmatpush1.msra.mxu0 %v162
  %555 = vmatprep.subr.mxu0 %v147
  %556 = vmatpush1.msra.mxu0 %v146
  %557 = vmatprep.subr.mxu0 %v131
  %558 = vmatpush1.msra.mxu0 %v130
  %559 = vmatprep.subr.mxu0 %v115
  %560 = vmatpush1.msra.mxu0 %v114
  %561 = vmatprep.subr.mxu0 %v99
  %562 = vmatpush1.msra.mxu0 %v98
  %563 = vmatprep.subr.mxu0 %v83
  %564 = vmatpush1.msra.mxu0 %v82
  %565 = vmatprep.subr.mxu0 %v67
  %566 = vmatpush1.msra.mxu0 %v66
  %567 = vmatprep.subr.mxu0 %v51
  %568 = vmatpush1.msra.mxu0 %v50
  %569 = vmatprep.subr.mxu0 %v35
  %570 = vmatpush1.msra.mxu0 %v34
  %571 = vmatprep.subr.mxu0 %v19
  %572 = vmatpush1.msra.mxu0 %v18
  %573 = vmatprep.subr.mxu0 %v515
  %574 = vmatpush2.msra.mxu0 %v514
  %575 = vmatprep.subr.mxu0 %v499
  %576 = vmatpush2.msra.mxu0 %v498
  %577 = vmatprep.subr.mxu0 %v483
  %578 = vmatpush2.msra.mxu0 %v482
  %579 = vmatprep.subr.mxu0 %v467
  %580 = vmatpush2.msra.mxu0 %v466
  %581 = vmatprep.subr.mxu0 %v451
  %582 = vmatpush2.msra.mxu0 %v450
  %583 = vmatprep.subr.mxu0 %v435
  %584 = vmatpush2.msra.mxu0 %v434
  %585 = vmatprep.subr.mxu0 %v419
  %586 = vmatpush2.msra.mxu0 %v418
  %587 = vmatprep.subr.mxu0 %v403
  %588 = vmatpush2.msra.mxu0 %v402
  %589 = vmatprep.subr.mxu0 %v387
  %590 = vmatpush2.msra.mxu0 %v386
  %591 = vmatprep.subr.mxu0 %v371
  %592 = vmatpush2.msra.mxu0 %v370
  %593 = vmatprep.subr.mxu0 %v355
  %594 = vmatpush2.msra.mxu0 %v354
  %595 = vmatprep.subr.mxu0 %v339
  %596 = vmatpush2.msra.mxu0 %v338
  %597 = vmatprep.subr.mxu0 %v323
  %598 = vmatpush2.msra.mxu0 %v322
  %599 = vmatprep.subr.mxu0 %v307
  %600 = vmatpush2.msra.mxu0 %v306
  %601 = vmatprep.subr.mxu0 %v291
  %602 = vmatpush2.msra.mxu0 %v290
  %603 = vmatprep.subr.mxu0 %v275
  %604 = vmatpush2.msra.mxu0 %v274
  %605 = vmatprep.mubr.f32.mxu0 %v538
  %606 = vmatmul.mubr.f32.gmra.mxu0 %v537
  %v607 = vpop.f32.mrf.mxu0
  %v608 = vadd.f32 0.0, %v607
  %v609 = vpop.f32.mrf.mxu0
  %v610 = vadd.f32 0.0, %v609
  %611 = vdwg.mxu0
  %612 = vmatprep.subr.mxu0 %v261
  %613 = vmatpush1.msra.mxu0 %v260
  %614 = vmatprep.subr.mxu0 %v245
  %615 = vmatpush1.msra.mxu0 %v244
  %616 = vmatprep.subr.mxu0 %v229
  %617 = vmatpush1.msra.mxu0 %v228
  %618 = vmatprep.subr.mxu0 %v213
  %619 = vmatpush1.msra.mxu0 %v212
  %620 = vmatprep.subr.mxu0 %v197
  %621 = vmatpush1.msra.mxu0 %v196
  %622 = vmatprep.subr.mxu0 %v181
  %623 = vmatpush1.msra.mxu0 %v180
  %624 = vmatprep.subr.mxu0 %v165
  %625 = vmatpush1.msra.mxu0 %v164
  %626 = vmatprep.subr.mxu0 %v149
  %627 = vmatpush1.msra.mxu0 %v148
  %628 = vmatprep.subr.mxu0 %v133
  %629 = vmatpush1.msra.mxu0 %v132
  %630 = vmatprep.subr.mxu0 %v117
  %631 = vmatpush1.msra.mxu0 %v116
  %632 = vmatprep.subr.mxu0 %v101
  %633 = vmatpush1.msra.mxu0 %v100
  %634 = vmatprep.subr.mxu0 %v85
  %635 = vmatpush1.msra.mxu0 %v84
  %636 = vmatprep.subr.mxu0 %v69
  %637 = vmatpush1.msra.mxu0 %v68
  %638 = vmatprep.subr.mxu0 %v53
  %639 = vmatpush1.msra.mxu0 %v52
  %640 = vmatprep.subr.mxu0 %v37
  %641 = vmatpush1.msra.mxu0 %v36
  %642 = vmatprep.subr.mxu0 %v21
  %643 = vmatpush1.msra.mxu0 %v20
  %644 = vmatprep.subr.mxu0 %v517
  %645 = vmatpush2.msra.mxu0 %v516
  %646 = vmatprep.subr.mxu0 %v501
  %647 = vmatpush2.msra.mxu0 %v500
  %648 = vmatprep.subr.mxu0 %v485
  %649 = vmatpush2.msra.mxu0 %v484
  %650 = vmatprep.subr.mxu0 %v469
  %651 = vmatpush2.msra.mxu0 %v468
  %652 = vmatprep.subr.mxu0 %v453
  %653 = vmatpush2.msra.mxu0 %v452
  %654 = vmatprep.subr.mxu0 %v437
  %655 = vmatpush2.msra.mxu0 %v436
  %656 = vmatprep.subr.mxu0 %v421
  %657 = vmatpush2.msra.mxu0 %v420
  %658 = vmatprep.subr.mxu0 %v405
  %659 = vmatpush2.msra.mxu0 %v404
  %660 = vmatprep.subr.mxu0 %v389
  %661 = vmatpush2.msra.mxu0 %v388
  %662 = vmatprep.subr.mxu0 %v373
  %663 = vmatpush2.msra.mxu0 %v372
  %664 = vmatprep.subr.mxu0 %v357
  %665 = vmatpush2.msra.mxu0 %v356
  %666 = vmatprep.subr.mxu0 %v341
  %667 = vmatpush2.msra.mxu0 %v340
  %668 = vmatprep.subr.mxu0 %v325
  %669 = vmatpush2.msra.mxu0 %v324
  %670 = vmatprep.subr.mxu0 %v309
  %671 = vmatpush2.msra.mxu0 %v308
  %672 = vmatprep.subr.mxu0 %v293
  %673 = vmatpush2.msra.mxu0 %v292
  %674 = vmatprep.subr.mxu0 %v277
  %675 = vmatpush2.msra.mxu0 %v276
  %676 = vmatprep.mubr.f32.mxu0 %v538
  %677 = vmatmul.mubr.f32.gmra.mxu0 %v537
  %v678 = vpop.f32.mrf.mxu0
  %v679 = vadd.f32 0.0, %v678
  %v680 = vpop.f32.mrf.mxu0
  %v681 = vadd.f32 0.0, %v680
  %682 = vdwg.mxu0
  %683 = vmatprep.subr.mxu0 %v263
  %684 = vmatpush1.msra.mxu0 %v262
  %685 = vmatprep.subr.mxu0 %v247
  %686 = vmatpush1.msra.mxu0 %v246
  %687 = vmatprep.subr.mxu0 %v231
  %688 = vmatpush1.msra.mxu0 %v230
  %689 = vmatprep.subr.mxu0 %v215
  %690 = vmatpush1.msra.mxu0 %v214
  %691 = vmatprep.subr.mxu0 %v199
  %692 = vmatpush1.msra.mxu0 %v198
  %693 = vmatprep.subr.mxu0 %v183
  %694 = vmatpush1.msra.mxu0 %v182
  %695 = vmatprep.subr.mxu0 %v167
  %696 = vmatpush1.msra.mxu0 %v166
  %697 = vmatprep.subr.mxu0 %v151
  %698 = vmatpush1.msra.mxu0 %v150
  %699 = vmatprep.subr.mxu0 %v135
  %700 = vmatpush1.msra.mxu0 %v134
  %701 = vmatprep.subr.mxu0 %v119
  %702 = vmatpush1.msra.mxu0 %v118
  %703 = vmatprep.subr.mxu0 %v103
  %704 = vmatpush1.msra.mxu0 %v102
  %705 = vmatprep.subr.mxu0 %v87
  %706 = vmatpush1.msra.mxu0 %v86
  %707 = vmatprep.subr.mxu0 %v71
  %708 = vmatpush1.msra.mxu0 %v70
  %709 = vmatprep.subr.mxu0 %v55
  %710 = vmatpush1.msra.mxu0 %v54
  %711 = vmatprep.subr.mxu0 %v39
  %712 = vmatpush1.msra.mxu0 %v38
  %713 = vmatprep.subr.mxu0 %v23
  %714 = vmatpush1.msra.mxu0 %v22
  %715 = vmatprep.subr.mxu0 %v519
  %716 = vmatpush2.msra.mxu0 %v518
  %717 = vmatprep.subr.mxu0 %v503
  %718 = vmatpush2.msra.mxu0 %v502
  %719 = vmatprep.subr.mxu0 %v487
  %720 = vmatpush2.msra.mxu0 %v486
  %721 = vmatprep.subr.mxu0 %v471
  %722 = vmatpush2.msra.mxu0 %v470
  %723 = vmatprep.subr.mxu0 %v455
  %724 = vmatpush2.msra.mxu0 %v454
  %725 = vmatprep.subr.mxu0 %v439
  %726 = vmatpush2.msra.mxu0 %v438
  %727 = vmatprep.subr.mxu0 %v423
  %728 = vmatpush2.msra.mxu0 %v422
  %729 = vmatprep.subr.mxu0 %v407
  %730 = vmatpush2.msra.mxu0 %v406
  %731 = vmatprep.subr.mxu0 %v391
  %732 = vmatpush2.msra.mxu0 %v390
  %733 = vmatprep.subr.mxu0 %v375
  %734 = vmatpush2.msra.mxu0 %v374
  %735 = vmatprep.subr.mxu0 %v359
  %736 = vmatpush2.msra.mxu0 %v358
  %737 = vmatprep.subr.mxu0 %v343
  %738 = vmatpush2.msra.mxu0 %v342
  %739 = vmatprep.subr.mxu0 %v327
  %740 = vmatpush2.msra.mxu0 %v326
  %741 = vmatprep.subr.mxu0 %v311
  %742 = vmatpush2.msra.mxu0 %v310
  %743 = vmatprep.subr.mxu0 %v295
  %744 = vmatpush2.msra.mxu0 %v294
  %745 = vmatprep.subr.mxu0 %v279
  %746 = vmatpush2.msra.mxu0 %v278
  %747 = vmatprep.mubr.f32.mxu0 %v538
  %748 = vmatmul.mubr.f32.gmra.mxu0 %v537
  %v749 = vpop.f32.mrf.mxu0
  %v750 = vadd.f32 0.0, %v749
  %v751 = vpop.f32.mrf.mxu0
  %v752 = vadd.f32 0.0, %v751
  %753 = vdwg.mxu0
  %754 = vmatprep.subr.mxu0 %v265
  %755 = vmatpush1.msra.mxu0 %v264
  %756 = vmatprep.subr.mxu0 %v249
  %757 = vmatpush1.msra.mxu0 %v248
  %758 = vmatprep.subr.mxu0 %v233
  %759 = vmatpush1.msra.mxu0 %v232
  %760 = vmatprep.subr.mxu0 %v217
  %761 = vmatpush1.msra.mxu0 %v216
  %762 = vmatprep.subr.mxu0 %v201
  %763 = vmatpush1.msra.mxu0 %v200
  %764 = vmatprep.subr.mxu0 %v185
  %765 = vmatpush1.msra.mxu0 %v184
  %766 = vmatprep.subr.mxu0 %v169
  %767 = vmatpush1.msra.mxu0 %v168
  %768 = vmatprep.subr.mxu0 %v153
  %769 = vmatpush1.msra.mxu0 %v152
  %770 = vmatprep.subr.mxu0 %v137
  %771 = vmatpush1.msra.mxu0 %v136
  %772 = vmatprep.subr.mxu0 %v121
  %773 = vmatpush1.msra.mxu0 %v120
  %774 = vmatprep.subr.mxu0 %v105
  %775 = vmatpush1.msra.mxu0 %v104
  %776 = vmatprep.subr.mxu0 %v89
  %777 = vmatpush1.msra.mxu0 %v88
  %778 = vmatprep.subr.mxu0 %v73
  %779 = vmatpush1.msra.mxu0 %v72
  %780 = vmatprep.subr.mxu0 %v57
  %781 = vmatpush1.msra.mxu0 %v56
  %782 = vmatprep.subr.mxu0 %v41
  %783 = vmatpush1.msra.mxu0 %v40
  %784 = vmatprep.subr.mxu0 %v25
  %785 = vmatpush1.msra.mxu0 %v24
  %786 = vmatprep.subr.mxu0 %v521
  %787 = vmatpush2.msra.mxu0 %v520
  %788 = vmatprep.subr.mxu0 %v505
  %789 = vmatpush2.msra.mxu0 %v504
  %790 = vmatprep.subr.mxu0 %v489
  %791 = vmatpush2.msra.mxu0 %v488
  %792 = vmatprep.subr.mxu0 %v473
  %793 = vmatpush2.msra.mxu0 %v472
  %794 = vmatprep.subr.mxu0 %v457
  %795 = vmatpush2.msra.mxu0 %v456
  %796 = vmatprep.subr.mxu0 %v441
  %797 = vmatpush2.msra.mxu0 %v440
  %798 = vmatprep.subr.mxu0 %v425
  %799 = vmatpush2.msra.mxu0 %v424
  %800 = vmatprep.subr.mxu0 %v409
  %801 = vmatpush2.msra.mxu0 %v408
  %802 = vmatprep.subr.mxu0 %v393
  %803 = vmatpush2.msra.mxu0 %v392
  %804 = vmatprep.subr.mxu0 %v377
  %805 = vmatpush2.msra.mxu0 %v376
  %806 = vmatprep.subr.mxu0 %v361
  %807 = vmatpush2.msra.mxu0 %v360
  %808 = vmatprep.subr.mxu0 %v345
  %809 = vmatpush2.msra.mxu0 %v344
  %810 = vmatprep.subr.mxu0 %v329
  %811 = vmatpush2.msra.mxu0 %v328
  %812 = vmatprep.subr.mxu0 %v313
  %813 = vmatpush2.msra.mxu0 %v312
  %814 = vmatprep.subr.mxu0 %v297
  %815 = vmatpush2.msra.mxu0 %v296
  %816 = vmatprep.subr.mxu0 %v281
  %817 = vmatpush2.msra.mxu0 %v280
  %818 = vmatprep.mubr.f32.mxu0 %v538
  %819 = vmatmul.mubr.f32.gmra.mxu0 %v537
  %v820 = vpop.f32.mrf.mxu0
  %v821 = vadd.f32 0.0, %v820
  %v822 = vpop.f32.mrf.mxu0
  %v823 = vadd.f32 0.0, %v822
  %824 = vdwg.mxu0
  %825 = vmatprep.subr.mxu0 %v267
  %826 = vmatpush1.msra.mxu0 %v266
  %827 = vmatprep.subr.mxu0 %v251
  %828 = vmatpush1.msra.mxu0 %v250
  %829 = vmatprep.subr.mxu0 %v235
  %830 = vmatpush1.msra.mxu0 %v234
  %831 = vmatprep.subr.mxu0 %v219
  %832 = vmatpush1.msra.mxu0 %v218
  %833 = vmatprep.subr.mxu0 %v203
  %834 = vmatpush1.msra.mxu0 %v202
  %835 = vmatprep.subr.mxu0 %v187
  %836 = vmatpush1.msra.mxu0 %v186
  %837 = vmatprep.subr.mxu0 %v171
  %838 = vmatpush1.msra.mxu0 %v170
  %839 = vmatprep.subr.mxu0 %v155
  %840 = vmatpush1.msra.mxu0 %v154
  %841 = vmatprep.subr.mxu0 %v139
  %842 = vmatpush1.msra.mxu0 %v138
  %843 = vmatprep.subr.mxu0 %v123
  %844 = vmatpush1.msra.mxu0 %v122
  %845 = vmatprep.subr.mxu0 %v107
  %846 = vmatpush1.msra.mxu0 %v106
  %847 = vmatprep.subr.mxu0 %v91
  %848 = vmatpush1.msra.mxu0 %v90
  %849 = vmatprep.subr.mxu0 %v75
  %850 = vmatpush1.msra.mxu0 %v74
  %851 = vmatprep.subr.mxu0 %v59
  %852 = vmatpush1.msra.mxu0 %v58
  %853 = vmatprep.subr.mxu0 %v43
  %854 = vmatpush1.msra.mxu0 %v42
  %855 = vmatprep.subr.mxu0 %v27
  %856 = vmatpush1.msra.mxu0 %v26
  %857 = vmatprep.subr.mxu0 %v523
  %858 = vmatpush2.msra.mxu0 %v522
  %859 = vmatprep.subr.mxu0 %v507
  %860 = vmatpush2.msra.mxu0 %v506
  %861 = vmatprep.subr.mxu0 %v491
  %862 = vmatpush2.msra.mxu0 %v490
  %863 = vmatprep.subr.mxu0 %v475
  %864 = vmatpush2.msra.mxu0 %v474
  %865 = vmatprep.subr.mxu0 %v459
  %866 = vmatpush2.msra.mxu0 %v458
  %867 = vmatprep.subr.mxu0 %v443
  %868 = vmatpush2.msra.mxu0 %v442
  %869 = vmatprep.subr.mxu0 %v427
  %870 = vmatpush2.msra.mxu0 %v426
  %871 = vmatprep.subr.mxu0 %v411
  %872 = vmatpush2.msra.mxu0 %v410
  %873 = vmatprep.subr.mxu0 %v395
  %874 = vmatpush2.msra.mxu0 %v394
  %875 = vmatprep.subr.mxu0 %v379
  %876 = vmatpush2.msra.mxu0 %v378
  %877 = vmatprep.subr.mxu0 %v363
  %878 = vmatpush2.msra.mxu0 %v362
  %879 = vmatprep.subr.mxu0 %v347
  %880 = vmatpush2.msra.mxu0 %v346
  %881 = vmatprep.subr.mxu0 %v331
  %882 = vmatpush2.msra.mxu0 %v330
  %883 = vmatprep.subr.mxu0 %v315
  %884 = vmatpush2.msra.mxu0 %v314
  %885 = vmatprep.subr.mxu0 %v299
  %886 = vmatpush2.msra.mxu0 %v298
  %887 = vmatprep.subr.mxu0 %v283
  %888 = vmatpush2.msra.mxu0 %v282
  %889 = vmatprep.mubr.f32.mxu0 %v538
  %890 = vmatmul.mubr.f32.gmra.mxu0 %v537
  %v891 = vpop.f32.mrf.mxu0
  %v892 = vadd.f32 0.0, %v891
  %v893 = vpop.f32.mrf.mxu0
  %v894 = vadd.f32 0.0, %v893
  %895 = vdwg.mxu0
  %896 = vmatprep.subr.mxu0 %v269
  %897 = vmatpush1.msra.mxu0 %v268
  %898 = vmatprep.subr.mxu0 %v253
  %899 = vmatpush1.msra.mxu0 %v252
  %900 = vmatprep.subr.mxu0 %v237
  %901 = vmatpush1.msra.mxu0 %v236
  %902 = vmatprep.subr.mxu0 %v221
  %903 = vmatpush1.msra.mxu0 %v220
  %904 = vmatprep.subr.mxu0 %v205
  %905 = vmatpush1.msra.mxu0 %v204
  %906 = vmatprep.subr.mxu0 %v189
  %907 = vmatpush1.msra.mxu0 %v188
  %908 = vmatprep.subr.mxu0 %v173
  %909 = vmatpush1.msra.mxu0 %v172
  %910 = vmatprep.subr.mxu0 %v157
  %911 = vmatpush1.msra.mxu0 %v156
  %912 = vmatprep.subr.mxu0 %v141
  %913 = vmatpush1.msra.mxu0 %v140
  %914 = vmatprep.subr.mxu0 %v125
  %915 = vmatpush1.msra.mxu0 %v124
  %916 = vmatprep.subr.mxu0 %v109
  %917 = vmatpush1.msra.mxu0 %v108
  %918 = vmatprep.subr.mxu0 %v93
  %919 = vmatpush1.msra.mxu0 %v92
  %920 = vmatprep.subr.mxu0 %v77
  %921 = vmatpush1.msra.mxu0 %v76
  %922 = vmatprep.subr.mxu0 %v61
  %923 = vmatpush1.msra.mxu0 %v60
  %924 = vmatprep.subr.mxu0 %v45
  %925 = vmatpush1.msra.mxu0 %v44
  %926 = vmatprep.subr.mxu0 %v29
  %927 = vmatpush1.msra.mxu0 %v28
  %928 = vmatprep.subr.mxu0 %v525
  %929 = vmatpush2.msra.mxu0 %v524
  %930 = vmatprep.subr.mxu0 %v509
  %931 = vmatpush2.msra.mxu0 %v508
  %932 = vmatprep.subr.mxu0 %v493
  %933 = vmatpush2.msra.mxu0 %v492
  %934 = vmatprep.subr.mxu0 %v477
  %935 = vmatpush2.msra.mxu0 %v476
  %936 = vmatprep.subr.mxu0 %v461
  %937 = vmatpush2.msra.mxu0 %v460
  %938 = vmatprep.subr.mxu0 %v445
  %939 = vmatpush2.msra.mxu0 %v444
  %940 = vmatprep.subr.mxu0 %v429
  %941 = vmatpush2.msra.mxu0 %v428
  %942 = vmatprep.subr.mxu0 %v413
  %943 = vmatpush2.msra.mxu0 %v412
  %944 = vmatprep.subr.mxu0 %v397
  %945 = vmatpush2.msra.mxu0 %v396
  %946 = vmatprep.subr.mxu0 %v381
  %947 = vmatpush2.msra.mxu0 %v380
  %948 = vmatprep.subr.mxu0 %v365
  %949 = vmatpush2.msra.mxu0 %v364
  %950 = vmatprep.subr.mxu0 %v349
  %951 = vmatpush2.msra.mxu0 %v348
  %952 = vmatprep.subr.mxu0 %v333
  %953 = vmatpush2.msra.mxu0 %v332
  %954 = vmatprep.subr.mxu0 %v317
  %955 = vmatpush2.msra.mxu0 %v316
  %956 = vmatprep.subr.mxu0 %v301
  %957 = vmatpush2.msra.mxu0 %v300
  %958 = vmatprep.subr.mxu0 %v285
  %959 = vmatpush2.msra.mxu0 %v284
  %960 = vmatprep.mubr.f32.mxu0 %v538
  %961 = vmatmul.mubr.f32.gmra.mxu0 %v537
  %v962 = vpop.f32.mrf.mxu0
  %v963 = vadd.f32 0.0, %v962
  %v964 = vpop.f32.mrf.mxu0
  %v965 = vadd.f32 0.0, %v964
  %966 = vdwg.mxu0
  %967 = vmatprep.subr.mxu0 %v271
  %968 = vmatpush1.msra.mxu0 %v270
  %969 = vmatprep.subr.mxu0 %v255
  %970 = vmatpush1.msra.mxu0 %v254
  %971 = vmatprep.subr.mxu0 %v239
  %972 = vmatpush1.msra.mxu0 %v238
  %973 = vmatprep.subr.mxu0 %v223
  %974 = vmatpush1.msra.mxu0 %v222
  %975 = vmatprep.subr.mxu0 %v207
  %976 = vmatpush1.msra.mxu0 %v206
  %977 = vmatprep.subr.mxu0 %v191
  %978 = vmatpush1.msra.mxu0 %v190
  %979 = vmatprep.subr.mxu0 %v175
  %980 = vmatpush1.msra.mxu0 %v174
  %981 = vmatprep.subr.mxu0 %v159
  %982 = vmatpush1.msra.mxu0 %v158
  %983 = vmatprep.subr.mxu0 %v143
  %984 = vmatpush1.msra.mxu0 %v142
  %985 = vmatprep.subr.mxu0 %v127
  %986 = vmatpush1.msra.mxu0 %v126
  %987 = vmatprep.subr.mxu0 %v111
  %988 = vmatpush1.msra.mxu0 %v110
  %989 = vmatprep.subr.mxu0 %v95
  %990 = vmatpush1.msra.mxu0 %v94
  %991 = vmatprep.subr.mxu0 %v79
  %992 = vmatpush1.msra.mxu0 %v78
  %993 = vmatprep.subr.mxu0 %v63
  %994 = vmatpush1.msra.mxu0 %v62
  %995 = vmatprep.subr.mxu0 %v47
  %996 = vmatpush1.msra.mxu0 %v46
  %997 = vmatprep.subr.mxu0 %v31
  %998 = vmatpush1.msra.mxu0 %v30
  %999 = vmatprep.subr.mxu0 %v527
  %1000 = vmatpush2.msra.mxu0 %v526
  %1001 = vmatprep.subr.mxu0 %v511
  %1002 = vmatpush2.msra.mxu0 %v510
  %1003 = vmatprep.subr.mxu0 %v495
  %1004 = vmatpush2.msra.mxu0 %v494
  %1005 = vmatprep.subr.mxu0 %v479
  %1006 = vmatpush2.msra.mxu0 %v478
  %1007 = vmatprep.subr.mxu0 %v463
  %1008 = vmatpush2.msra.mxu0 %v462
  %1009 = vmatprep.subr.mxu0 %v447
  %1010 = vmatpush2.msra.mxu0 %v446
  %1011 = vmatprep.subr.mxu0 %v431
  %1012 = vmatpush2.msra.mxu0 %v430
  %1013 = vmatprep.subr.mxu0 %v415
  %1014 = vmatpush2.msra.mxu0 %v414
  %1015 = vmatprep.subr.mxu0 %v399
  %1016 = vmatpush2.msra.mxu0 %v398
  %1017 = vmatprep.subr.mxu0 %v383
  %1018 = vmatpush2.msra.mxu0 %v382
  %1019 = vmatprep.subr.mxu0 %v367
  %1020 = vmatpush2.msra.mxu0 %v366
  %1021 = vmatprep.subr.mxu0 %v351
  %1022 = vmatpush2.msra.mxu0 %v350
  %1023 = vmatprep.subr.mxu0 %v335
  %1024 = vmatpush2.msra.mxu0 %v334
  %1025 = vmatprep.subr.mxu0 %v319
  %1026 = vmatpush2.msra.mxu0 %v318
  %1027 = vmatprep.subr.mxu0 %v303
  %1028 = vmatpush2.msra.mxu0 %v302
  %1029 = vmatprep.subr.mxu0 %v287
  %1030 = vmatpush2.msra.mxu0 %v286
  %1031 = vmatprep.mubr.f32.mxu0 %v538
  %1032 = vmatmul.mubr.f32.gmra.mxu0 %v537
  %v1033 = vpop.f32.mrf.mxu0
  %v1034 = vadd.f32 0.0, %v1033
  %v1035 = vpop.f32.mrf.mxu0
  %v1036 = vadd.f32 0.0, %v1035
  %1037 = vdwg.mxu0
  %1038 = vmatprep.subr.mxu0 %v273
  %1039 = vmatpush1.msra.mxu0 %v272
  %1040 = vmatprep.subr.mxu0 %v257
  %1041 = vmatpush1.msra.mxu0 %v256
  %1042 = vmatprep.subr.mxu0 %v241
  %1043 = vmatpush1.msra.mxu0 %v240
  %1044 = vmatprep.subr.mxu0 %v225
  %1045 = vmatpush1.msra.mxu0 %v224
  %1046 = vmatprep.subr.mxu0 %v209
  %1047 = vmatpush1.msra.mxu0 %v208
  %1048 = vmatprep.subr.mxu0 %v193
  %1049 = vmatpush1.msra.mxu0 %v192
  %1050 = vmatprep.subr.mxu0 %v177
  %1051 = vmatpush1.msra.mxu0 %v176
  %1052 = vmatprep.subr.mxu0 %v161
  %1053 = vmatpush1.msra.mxu0 %v160
  %1054 = vmatprep.subr.mxu0 %v145
  %1055 = vmatpush1.msra.mxu0 %v144
  %1056 = vmatprep.subr.mxu0 %v129
  %1057 = vmatpush1.msra.mxu0 %v128
  %1058 = vmatprep.subr.mxu0 %v113
  %1059 = vmatpush1.msra.mxu0 %v112
  %1060 = vmatprep.subr.mxu0 %v97
  %1061 = vmatpush1.msra.mxu0 %v96
  %1062 = vmatprep.subr.mxu0 %v81
  %1063 = vmatpush1.msra.mxu0 %v80
  %1064 = vmatprep.subr.mxu0 %v65
  %1065 = vmatpush1.msra.mxu0 %v64
  %1066 = vmatprep.subr.mxu0 %v49
  %1067 = vmatpush1.msra.mxu0 %v48
  %1068 = vmatprep.subr.mxu0 %v33
  %1069 = vmatpush1.msra.mxu0 %v32
  %1070 = vmatprep.subr.mxu0 %v529
  %1071 = vmatpush2.msra.mxu0 %v528
  %1072 = vmatprep.subr.mxu0 %v513
  %1073 = vmatpush2.msra.mxu0 %v512
  %1074 = vmatprep.subr.mxu0 %v497
  %1075 = vmatpush2.msra.mxu0 %v496
  %1076 = vmatprep.subr.mxu0 %v481
  %1077 = vmatpush2.msra.mxu0 %v480
  %1078 = vmatprep.subr.mxu0 %v465
  %1079 = vmatpush2.msra.mxu0 %v464
  %1080 = vmatprep.subr.mxu0 %v449
  %1081 = vmatpush2.msra.mxu0 %v448
  %1082 = vmatprep.subr.mxu0 %v433
  %1083 = vmatpush2.msra.mxu0 %v432
  %1084 = vmatprep.subr.mxu0 %v417
  %1085 = vmatpush2.msra.mxu0 %v416
  %1086 = vmatprep.subr.mxu0 %v401
  %1087 = vmatpush2.msra.mxu0 %v400
  %1088 = vmatprep.subr.mxu0 %v385
  %1089 = vmatpush2.msra.mxu0 %v384
  %1090 = vmatprep.subr.mxu0 %v369
  %1091 = vmatpush2.msra.mxu0 %v368
  %1092 = vmatprep.subr.mxu0 %v353
  %1093 = vmatpush2.msra.mxu0 %v352
  %1094 = vmatprep.subr.mxu0 %v337
  %1095 = vmatpush2.msra.mxu0 %v336
  %1096 = vmatprep.subr.mxu0 %v321
  %1097 = vmatpush2.msra.mxu0 %v320
  %1098 = vmatprep.subr.mxu0 %v305
  %1099 = vmatpush2.msra.mxu0 %v304
  %1100 = vmatprep.subr.mxu0 %v289
  %1101 = vmatpush2.msra.mxu0 %v288
  %1102 = vmatprep.mubr.f32.mxu0 %v538
  %1103 = vmatmul.mubr.f32.gmra.mxu0 %v537
  %v1104 = vpop.f32.mrf.mxu0
  %v1105 = vadd.f32 0.0, %v1104
  %v1106 = vpop.f32.mrf.mxu0
  %v1107 = vadd.f32 0.0, %v1106
  %1108 = vdwg.mxu0
  %v1109 = vld [vmem:[%s2] sm:$0xff]
  %v1110 = vld [vmem:[%s2 + $0x8] sm:$0xff]
  %v1113 = vlaneseq
  %v1114 = vshrl.u32 %v1113, 7
  %v1115 = vsub.s32 0, %v1114
  %v1116 = vrot.slane %v1109, %v1115
  %v1117 = vlaneseq
  %v1118 = vshrl.u32 %v1117, 7
  %v1119 = vsub.s32 1, %v1118
  %v1120 = vrot.slane %v1109, %v1119
  %v1121 = vlaneseq
  %v1122 = vshrl.u32 %v1121, 7
  %v1123 = vsub.s32 2, %v1122
  %v1124 = vrot.slane %v1109, %v1123
  %v1125 = vlaneseq
  %v1126 = vshrl.u32 %v1125, 7
  %v1127 = vsub.s32 3, %v1126
  %v1128 = vrot.slane %v1109, %v1127
  %v1129 = vlaneseq
  %v1130 = vshrl.u32 %v1129, 7
  %v1131 = vsub.s32 4, %v1130
  %v1132 = vrot.slane %v1109, %v1131
  %v1133 = vlaneseq
  %v1134 = vshrl.u32 %v1133, 7
  %v1135 = vsub.s32 5, %v1134
  %v1136 = vrot.slane %v1109, %v1135
  %v1137 = vlaneseq
  %v1138 = vshrl.u32 %v1137, 7
  %v1139 = vsub.s32 6, %v1138
  %v1140 = vrot.slane %v1109, %v1139
  %v1141 = vlaneseq
  %v1142 = vshrl.u32 %v1141, 7
  %v1143 = vsub.s32 7, %v1142
  %v1144 = vrot.slane %v1109, %v1143
  %v1145 = vlaneseq
  %v1146 = vshrl.u32 %v1145, 7
  %v1147 = vsub.s32 0, %v1146
  %v1148 = vrot.slane %v1110, %v1147
  %v1149 = vlaneseq
  %v1150 = vshrl.u32 %v1149, 7
  %v1151 = vsub.s32 1, %v1150
  %v1152 = vrot.slane %v1110, %v1151
  %v1153 = vlaneseq
  %v1154 = vshrl.u32 %v1153, 7
  %v1155 = vsub.s32 2, %v1154
  %v1156 = vrot.slane %v1110, %v1155
  %v1157 = vlaneseq
  %v1158 = vshrl.u32 %v1157, 7
  %v1159 = vsub.s32 3, %v1158
  %v1160 = vrot.slane %v1110, %v1159
  %v1161 = vlaneseq
  %v1162 = vshrl.u32 %v1161, 7
  %v1163 = vsub.s32 4, %v1162
  %v1164 = vrot.slane %v1110, %v1163
  %v1165 = vlaneseq
  %v1166 = vshrl.u32 %v1165, 7
  %v1167 = vsub.s32 5, %v1166
  %v1168 = vrot.slane %v1110, %v1167
  %v1169 = vlaneseq
  %v1170 = vshrl.u32 %v1169, 7
  %v1171 = vsub.s32 6, %v1170
  %v1172 = vrot.slane %v1110, %v1171
  %v1173 = vlaneseq
  %v1174 = vshrl.u32 %v1173, 7
  %v1175 = vsub.s32 7, %v1174
  %v1176 = vrot.slane %v1110, %v1175
  %v1193 = vmul.f32 %v608, %v1116
  %v1194 = vmul.f32 %v610, %v1120
  %v1195 = vmul.f32 %v679, %v1124
  %v1196 = vmul.f32 %v681, %v1128
  %v1197 = vmul.f32 %v750, %v1132
  %v1198 = vmul.f32 %v752, %v1136
  %v1199 = vmul.f32 %v821, %v1140
  %v1200 = vmul.f32 %v823, %v1144
  %v1201 = vmul.f32 %v892, %v1148
  %v1202 = vmul.f32 %v894, %v1152
  %v1203 = vmul.f32 %v963, %v1156
  %v1204 = vmul.f32 %v965, %v1160
  %v1205 = vmul.f32 %v1034, %v1164
  %v1206 = vmul.f32 %v1036, %v1168
  %v1207 = vmul.f32 %v1105, %v1172
  %v1208 = vmul.f32 %v1107, %v1176
  %v1209 = vld [vmem:[%s3] sm:$0xff]
  %v1210 = vld [vmem:[%s3 + $0x8] sm:$0xff]
  %v1213 = vlaneseq
  %v1214 = vshrl.u32 %v1213, 7
  %v1215 = vsub.s32 0, %v1214
  %v1216 = vrot.slane %v1209, %v1215
  %v1217 = vlaneseq
  %v1218 = vshrl.u32 %v1217, 7
  %v1219 = vsub.s32 1, %v1218
  %v1220 = vrot.slane %v1209, %v1219
  %v1221 = vlaneseq
  %v1222 = vshrl.u32 %v1221, 7
  %v1223 = vsub.s32 2, %v1222
  %v1224 = vrot.slane %v1209, %v1223
  %v1225 = vlaneseq
  %v1226 = vshrl.u32 %v1225, 7
  %v1227 = vsub.s32 3, %v1226
  %v1228 = vrot.slane %v1209, %v1227
  %v1229 = vlaneseq
  %v1230 = vshrl.u32 %v1229, 7
  %v1231 = vsub.s32 4, %v1230
  %v1232 = vrot.slane %v1209, %v1231
  %v1233 = vlaneseq
  %v1234 = vshrl.u32 %v1233, 7
  %v1235 = vsub.s32 5, %v1234
  %v1236 = vrot.slane %v1209, %v1235
  %v1237 = vlaneseq
  %v1238 = vshrl.u32 %v1237, 7
  %v1239 = vsub.s32 6, %v1238
  %v1240 = vrot.slane %v1209, %v1239
  %v1241 = vlaneseq
  %v1242 = vshrl.u32 %v1241, 7
  %v1243 = vsub.s32 7, %v1242
  %v1244 = vrot.slane %v1209, %v1243
  %v1245 = vlaneseq
  %v1246 = vshrl.u32 %v1245, 7
  %v1247 = vsub.s32 0, %v1246
  %v1248 = vrot.slane %v1210, %v1247
  %v1249 = vlaneseq
  %v1250 = vshrl.u32 %v1249, 7
  %v1251 = vsub.s32 1, %v1250
  %v1252 = vrot.slane %v1210, %v1251
  %v1253 = vlaneseq
  %v1254 = vshrl.u32 %v1253, 7
  %v1255 = vsub.s32 2, %v1254
  %v1256 = vrot.slane %v1210, %v1255
  %v1257 = vlaneseq
  %v1258 = vshrl.u32 %v1257, 7
  %v1259 = vsub.s32 3, %v1258
  %v1260 = vrot.slane %v1210, %v1259
  %v1261 = vlaneseq
  %v1262 = vshrl.u32 %v1261, 7
  %v1263 = vsub.s32 4, %v1262
  %v1264 = vrot.slane %v1210, %v1263
  %v1265 = vlaneseq
  %v1266 = vshrl.u32 %v1265, 7
  %v1267 = vsub.s32 5, %v1266
  %v1268 = vrot.slane %v1210, %v1267
  %v1269 = vlaneseq
  %v1270 = vshrl.u32 %v1269, 7
  %v1271 = vsub.s32 6, %v1270
  %v1272 = vrot.slane %v1210, %v1271
  %v1273 = vlaneseq
  %v1274 = vshrl.u32 %v1273, 7
  %v1275 = vsub.s32 7, %v1274
  %v1276 = vrot.slane %v1210, %v1275
  %v1293 = vadd.f32 %v1193, %v1216
  %v1294 = vadd.f32 %v1194, %v1220
  %v1295 = vadd.f32 %v1195, %v1224
  %v1296 = vadd.f32 %v1196, %v1228
  %v1297 = vadd.f32 %v1197, %v1232
  %v1298 = vadd.f32 %v1198, %v1236
  %v1299 = vadd.f32 %v1199, %v1240
  %v1300 = vadd.f32 %v1200, %v1244
  %v1301 = vadd.f32 %v1201, %v1248
  %v1302 = vadd.f32 %v1202, %v1252
  %v1303 = vadd.f32 %v1203, %v1256
  %v1304 = vadd.f32 %v1204, %v1260
  %v1305 = vadd.f32 %v1205, %v1264
  %v1306 = vadd.f32 %v1206, %v1268
  %v1307 = vadd.f32 %v1207, %v1272
  %v1308 = vadd.f32 %v1208, %v1276
  %vm1309 = vcmp.gt.f32.partialorder %v1293, 0.0
  %vm1310 = vcmp.gt.f32.partialorder %v1294, 0.0
  %vm1311 = vcmp.gt.f32.partialorder %v1295, 0.0
  %vm1312 = vcmp.gt.f32.partialorder %v1296, 0.0
  %vm1313 = vcmp.gt.f32.partialorder %v1297, 0.0
  %vm1314 = vcmp.gt.f32.partialorder %v1298, 0.0
  %vm1315 = vcmp.gt.f32.partialorder %v1299, 0.0
  %vm1316 = vcmp.gt.f32.partialorder %v1300, 0.0
  %vm1317 = vcmp.gt.f32.partialorder %v1301, 0.0
  %vm1318 = vcmp.gt.f32.partialorder %v1302, 0.0
  %vm1319 = vcmp.gt.f32.partialorder %v1303, 0.0
  %vm1320 = vcmp.gt.f32.partialorder %v1304, 0.0
  %vm1321 = vcmp.gt.f32.partialorder %v1305, 0.0
  %vm1322 = vcmp.gt.f32.partialorder %v1306, 0.0
  %vm1323 = vcmp.gt.f32.partialorder %v1307, 0.0
  %vm1324 = vcmp.gt.f32.partialorder %v1308, 0.0
  %v1325 = vmul.f32 %v1293, 0.2
  %v1326 = vmul.f32 %v1294, 0.2
  %v1327 = vmul.f32 %v1295, 0.2
  %v1328 = vmul.f32 %v1296, 0.2
  %v1329 = vmul.f32 %v1297, 0.2
  %v1330 = vmul.f32 %v1298, 0.2
  %v1331 = vmul.f32 %v1299, 0.2
  %v1332 = vmul.f32 %v1300, 0.2
  %v1333 = vmul.f32 %v1301, 0.2
  %v1334 = vmul.f32 %v1302, 0.2
  %v1335 = vmul.f32 %v1303, 0.2
  %v1336 = vmul.f32 %v1304, 0.2
  %v1337 = vmul.f32 %v1305, 0.2
  %v1338 = vmul.f32 %v1306, 0.2
  %v1339 = vmul.f32 %v1307, 0.2
  %v1340 = vmul.f32 %v1308, 0.2
  %v1341 = vsel %vm1309, %v1293, %v1325
  %v1342 = vsel %vm1310, %v1294, %v1326
  %v1343 = vsel %vm1311, %v1295, %v1327
  %v1344 = vsel %vm1312, %v1296, %v1328
  %v1345 = vsel %vm1313, %v1297, %v1329
  %v1346 = vsel %vm1314, %v1298, %v1330
  %v1347 = vsel %vm1315, %v1299, %v1331
  %v1348 = vsel %vm1316, %v1300, %v1332
  %v1349 = vsel %vm1317, %v1301, %v1333
  %v1350 = vsel %vm1318, %v1302, %v1334
  %v1351 = vsel %vm1319, %v1303, %v1335
  %v1352 = vsel %vm1320, %v1304, %v1336
  %v1353 = vsel %vm1321, %v1305, %v1337
  %v1354 = vsel %vm1322, %v1306, %v1338
  %v1355 = vsel %vm1323, %v1307, %v1339
  %v1356 = vsel %vm1324, %v1308, %v1340
  %v1373 = vcombine.low %v1341, %v1342
  %v1374 = vcombine.low %v1343, %v1344
  %v1376 = vunpack.c.l.s4 1983009808
  %v1377 = vunpack.c.0.s8 %v1376
  %v1378 = vlaneseq
  %v1379 = vshrl.u32 %v1378, 7
  %v1380 = vsub.s32 %v1377, %v1379
  %v1381 = vrot.slane %v1373, %v1380
  %v1383 = vunpack.c.l.s4 1983009808
  %v1384 = vunpack.c.0.s8 %v1383
  %v1385 = vlaneseq
  %v1386 = vshrl.u32 %v1385, 7
  %v1387 = vsub.s32 %v1384, %v1386
  %v1388 = vrot.slane %v1374, %v1387
  %v1389 = vcombine.low %v1381, %v1388
  %v1390 = vcombine.low %v1345, %v1346
  %v1391 = vcombine.low %v1347, %v1348
  %v1393 = vunpack.c.l.s4 1983009808
  %v1394 = vunpack.c.0.s8 %v1393
  %v1395 = vlaneseq
  %v1396 = vshrl.u32 %v1395, 7
  %v1397 = vsub.s32 %v1394, %v1396
  %v1398 = vrot.slane %v1390, %v1397
  %v1400 = vunpack.c.l.s4 1983009808
  %v1401 = vunpack.c.0.s8 %v1400
  %v1402 = vlaneseq
  %v1403 = vshrl.u32 %v1402, 7
  %v1404 = vsub.s32 %v1401, %v1403
  %v1405 = vrot.slane %v1391, %v1404
  %v1406 = vcombine.low %v1398, %v1405
  %v1407 = vcombine.low %v1349, %v1350
  %v1408 = vcombine.low %v1351, %v1352
  %v1410 = vunpack.c.l.s4 1983009808
  %v1411 = vunpack.c.0.s8 %v1410
  %v1412 = vlaneseq
  %v1413 = vshrl.u32 %v1412, 7
  %v1414 = vsub.s32 %v1411, %v1413
  %v1415 = vrot.slane %v1407, %v1414
  %v1417 = vunpack.c.l.s4 1983009808
  %v1418 = vunpack.c.0.s8 %v1417
  %v1419 = vlaneseq
  %v1420 = vshrl.u32 %v1419, 7
  %v1421 = vsub.s32 %v1418, %v1420
  %v1422 = vrot.slane %v1408, %v1421
  %v1423 = vcombine.low %v1415, %v1422
  %v1424 = vcombine.low %v1353, %v1354
  %v1425 = vcombine.low %v1355, %v1356
  %v1427 = vunpack.c.l.s4 1983009808
  %v1428 = vunpack.c.0.s8 %v1427
  %v1429 = vlaneseq
  %v1430 = vshrl.u32 %v1429, 7
  %v1431 = vsub.s32 %v1428, %v1430
  %v1432 = vrot.slane %v1424, %v1431
  %v1434 = vunpack.c.l.s4 1983009808
  %v1435 = vunpack.c.0.s8 %v1434
  %v1436 = vlaneseq
  %v1437 = vshrl.u32 %v1436, 7
  %v1438 = vsub.s32 %v1435, %v1437
  %v1439 = vrot.slane %v1425, %v1438
  %v1440 = vcombine.low %v1432, %v1439
  %1445 = vst [vmem:[%s4] sm:$0xff] %v1389
  %1446 = vst [vmem:[%s4 + $0x8] sm:$0xff] %v1406
  %1447 = vst [vmem:[%s4 + $0x10] sm:$0xff] %v1423
  %1448 = vst [vmem:[%s4 + $0x18] sm:$0xff] %v1440
  // Predicated region
  $region18: #{dgcnn_encoder.28} parent=0 // pred_check
    _
  $region19: #{dgcnn_encoder.28} parent=0 // pred_check_branch
    %1450 = sbr.rel (0) target = $region21
  $region20: #{dgcnn_encoder.28} parent=0 // pred_region
    _
  $region21: #{dgcnn_encoder.28} parent=0 // pred_fallthru
    _
  // Predicated region
  $region22: #{dgcnn_encoder.28} parent=0 // pred_check
    _
  $region23: #{dgcnn_encoder.28} parent=0 // pred_check_branch
    %1452 = sbr.rel (0) target = $region25
  $region24: #{dgcnn_encoder.28} parent=0 // pred_region
    _
  $region25: #{dgcnn_encoder.28} parent=0 // pred_fallthru
    _

// kernel: dgcnn_encoder.29
$region0: #{dgcnn_encoder.29}
  #allocation0 [shape = 'u32[]', space=smem, size = 0x4, offset = 0x4, fixed_abs, tag = 'smem constant byte address 0x4 - core index']
  #allocation1 [shape = 'u32[144,128]{1,0:T(1,128)}', space=vmem, size = 0x12000, scoped, tag = 'internal scratch']
  %s0 = inlined_call_operand.vmem [shape: f32[2,2048], index: 0, kind: input, shape index: {}]
  %s1 = inlined_call_operand.vmem [shape: f32[2048,128], index: 1, kind: input, shape index: {}]
  %s2 = inlined_call_operand.vmem [shape: f32[1,128], index: 2, kind: input, shape index: {}]
  %s3 = inlined_call_operand.vmem [shape: f32[1,128], index: 3, kind: input, shape index: {}]
  %s4 = inlined_call_operand.vmem [shape: f32[2,128], index: 4, kind: output, shape index: {}]
  %s5 = sld [smem:[#allocation0]]
  $region26: #{dgcnn_encoder.29} parent=0
    _
  %s7 = ssub.s32 1, %s5
  %s8 = scalar_select 0, %s7, %s5
  // Predicated region
  $region2: #{dgcnn_encoder.29} parent=0 // pred_check
    _
  $region3: #{dgcnn_encoder.29} parent=0 // pred_check_branch
    %10 = sbr.rel (0) target = $region5
  $region4: #{dgcnn_encoder.29} parent=0 // pred_region
    _
  $region5: #{dgcnn_encoder.29} parent=0 // pred_fallthru
    _
  // Predicated region
  $region6: #{dgcnn_encoder.29} parent=0 // pred_check
    _
  $region7: #{dgcnn_encoder.29} parent=0 // pred_check_branch
    %12 = sbr.rel (0) target = $region9
  $region8: #{dgcnn_encoder.29} parent=0 // pred_region
    _
  $region9: #{dgcnn_encoder.29} parent=0 // pred_fallthru
    _
  // Predicated region
  $region10: #{dgcnn_encoder.29} parent=0 // pred_check
    _
  $region11: #{dgcnn_encoder.29} parent=0 // pred_check_branch
    %14 = sbr.rel (0) target = $region13
  $region12: #{dgcnn_encoder.29} parent=0 // pred_region
    _
  $region13: #{dgcnn_encoder.29} parent=0 // pred_fallthru
    _
  // Predicated region
  $region14: #{dgcnn_encoder.29} parent=0 // pred_check
    _
  $region15: #{dgcnn_encoder.29} parent=0 // pred_check_branch
    %16 = sbr.rel (0) target = $region17
  $region16: #{dgcnn_encoder.29} parent=0 // pred_region
    _
  $region17: #{dgcnn_encoder.29} parent=0 // pred_fallthru
    _
  %v17 = vld [vmem:[%s0] sm:$0xff]
  %v18 = vld [vmem:[%s0 + $0x8] sm:$0xff]
  %v19 = vld [vmem:[%s0 + $0x10] sm:$0xff]
  %v20 = vld [vmem:[%s0 + $0x18] sm:$0xff]
  %v21 = vld [vmem:[%s1] sm:$0xff]
  %v22 = vld [vmem:[%s1 + $0x8] sm:$0xff]
  %v23 = vld [vmem:[%s1 + $0x10] sm:$0xff]
  %v24 = vld [vmem:[%s1 + $0x18] sm:$0xff]
  %v25 = vld [vmem:[%s1 + $0x20] sm:$0xff]
  %v26 = vld [vmem:[%s1 + $0x28] sm:$0xff]
  %v27 = vld [vmem:[%s1 + $0x30] sm:$0xff]
  %v28 = vld [vmem:[%s1 + $0x38] sm:$0xff]
  %v29 = vld [vmem:[%s1 + $0x40] sm:$0xff]
  %v30 = vld [vmem:[%s1 + $0x48] sm:$0xff]
  %v31 = vld [vmem:[%s1 + $0x50] sm:$0xff]
  %v32 = vld [vmem:[%s1 + $0x58] sm:$0xff]
  %v33 = vld [vmem:[%s1 + $0x60] sm:$0xff]
  %v34 = vld [vmem:[%s1 + $0x68] sm:$0xff]
  %v35 = vld [vmem:[%s1 + $0x70] sm:$0xff]
  %v36 = vld [vmem:[%s1 + $0x78] sm:$0xff]
  %v37 = vld [vmem:[%s1 + $0x80] sm:$0xff]
  %v38 = vld [vmem:[%s1 + $0x88] sm:$0xff]
  %v39 = vld [vmem:[%s1 + $0x90] sm:$0xff]
  %v40 = vld [vmem:[%s1 + $0x98] sm:$0xff]
  %v41 = vld [vmem:[%s1 + $0xa0] sm:$0xff]
  %v42 = vld [vmem:[%s1 + $0xa8] sm:$0xff]
  %v43 = vld [vmem:[%s1 + $0xb0] sm:$0xff]
  %v44 = vld [vmem:[%s1 + $0xb8] sm:$0xff]
  %v45 = vld [vmem:[%s1 + $0xc0] sm:$0xff]
  %v46 = vld [vmem:[%s1 + $0xc8] sm:$0xff]
  %v47 = vld [vmem:[%s1 + $0xd0] sm:$0xff]
  %v48 = vld [vmem:[%s1 + $0xd8] sm:$0xff]
  %v49 = vld [vmem:[%s1 + $0xe0] sm:$0xff]
  %v50 = vld [vmem:[%s1 + $0xe8] sm:$0xff]
  %v51 = vld [vmem:[%s1 + $0xf0] sm:$0xff]
  %v52 = vld [vmem:[%s1 + $0xf8] sm:$0xff]
  %v53 = vld [vmem:[%s1 + $0x100] sm:$0xff]
  %v54 = vld [vmem:[%s1 + $0x108] sm:$0xff]
  %v55 = vld [vmem:[%s1 + $0x110] sm:$0xff]
  %v56 = vld [vmem:[%s1 + $0x118] sm:$0xff]
  %v57 = vld [vmem:[%s1 + $0x120] sm:$0xff]
  %v58 = vld [vmem:[%s1 + $0x128] sm:$0xff]
  %v59 = vld [vmem:[%s1 + $0x130] sm:$0xff]
  %v60 = vld [vmem:[%s1 + $0x138] sm:$0xff]
  %v61 = vld [vmem:[%s1 + $0x140] sm:$0xff]
  %v62 = vld [vmem:[%s1 + $0x148] sm:$0xff]
  %v63 = vld [vmem:[%s1 + $0x150] sm:$0xff]
  %v64 = vld [vmem:[%s1 + $0x158] sm:$0xff]
  %v65 = vld [vmem:[%s1 + $0x160] sm:$0xff]
  %v66 = vld [vmem:[%s1 + $0x168] sm:$0xff]
  %v67 = vld [vmem:[%s1 + $0x170] sm:$0xff]
  %v68 = vld [vmem:[%s1 + $0x178] sm:$0xff]
  %v69 = vld [vmem:[%s1 + $0x180] sm:$0xff]
  %v70 = vld [vmem:[%s1 + $0x188] sm:$0xff]
  %v71 = vld [vmem:[%s1 + $0x190] sm:$0xff]
  %v72 = vld [vmem:[%s1 + $0x198] sm:$0xff]
  %v73 = vld [vmem:[%s1 + $0x1a0] sm:$0xff]
  %v74 = vld [vmem:[%s1 + $0x1a8] sm:$0xff]
  %v75 = vld [vmem:[%s1 + $0x1b0] sm:$0xff]
  %v76 = vld [vmem:[%s1 + $0x1b8] sm:$0xff]
  %v77 = vld [vmem:[%s1 + $0x1c0] sm:$0xff]
  %v78 = vld [vmem:[%s1 + $0x1c8] sm:$0xff]
  %v79 = vld [vmem:[%s1 + $0x1d0] sm:$0xff]
  %v80 = vld [vmem:[%s1 + $0x1d8] sm:$0xff]
  %v81 = vld [vmem:[%s1 + $0x1e0] sm:$0xff]
  %v82 = vld [vmem:[%s1 + $0x1e8] sm:$0xff]
  %v83 = vld [vmem:[%s1 + $0x1f0] sm:$0xff]
  %v84 = vld [vmem:[%s1 + $0x1f8] sm:$0xff]
  %v85 = vld [vmem:[%s1 + $0x200] sm:$0xff]
  %v86 = vld [vmem:[%s1 + $0x208] sm:$0xff]
  %v87 = vld [vmem:[%s1 + $0x210] sm:$0xff]
  %v88 = vld [vmem:[%s1 + $0x218] sm:$0xff]
  %v89 = vld [vmem:[%s1 + $0x220] sm:$0xff]
  %v90 = vld [vmem:[%s1 + $0x228] sm:$0xff]
  %v91 = vld [vmem:[%s1 + $0x230] sm:$0xff]
  %v92 = vld [vmem:[%s1 + $0x238] sm:$0xff]
  %v93 = vld [vmem:[%s1 + $0x240] sm:$0xff]
  %v94 = vld [vmem:[%s1 + $0x248] sm:$0xff]
  %v95 = vld [vmem:[%s1 + $0x250] sm:$0xff]
  %v96 = vld [vmem:[%s1 + $0x258] sm:$0xff]
  %v97 = vld [vmem:[%s1 + $0x260] sm:$0xff]
  %v98 = vld [vmem:[%s1 + $0x268] sm:$0xff]
  %v99 = vld [vmem:[%s1 + $0x270] sm:$0xff]
  %v100 = vld [vmem:[%s1 + $0x278] sm:$0xff]
  %v101 = vld [vmem:[%s1 + $0x280] sm:$0xff]
  %v102 = vld [vmem:[%s1 + $0x288] sm:$0xff]
  %v103 = vld [vmem:[%s1 + $0x290] sm:$0xff]
  %v104 = vld [vmem:[%s1 + $0x298] sm:$0xff]
  %v105 = vld [vmem:[%s1 + $0x2a0] sm:$0xff]
  %v106 = vld [vmem:[%s1 + $0x2a8] sm:$0xff]
  %v107 = vld [vmem:[%s1 + $0x2b0] sm:$0xff]
  %v108 = vld [vmem:[%s1 + $0x2b8] sm:$0xff]
  %v109 = vld [vmem:[%s1 + $0x2c0] sm:$0xff]
  %v110 = vld [vmem:[%s1 + $0x2c8] sm:$0xff]
  %v111 = vld [vmem:[%s1 + $0x2d0] sm:$0xff]
  %v112 = vld [vmem:[%s1 + $0x2d8] sm:$0xff]
  %v113 = vld [vmem:[%s1 + $0x2e0] sm:$0xff]
  %v114 = vld [vmem:[%s1 + $0x2e8] sm:$0xff]
  %v115 = vld [vmem:[%s1 + $0x2f0] sm:$0xff]
  %v116 = vld [vmem:[%s1 + $0x2f8] sm:$0xff]
  %v117 = vld [vmem:[%s1 + $0x300] sm:$0xff]
  %v118 = vld [vmem:[%s1 + $0x308] sm:$0xff]
  %v119 = vld [vmem:[%s1 + $0x310] sm:$0xff]
  %v120 = vld [vmem:[%s1 + $0x318] sm:$0xff]
  %v121 = vld [vmem:[%s1 + $0x320] sm:$0xff]
  %v122 = vld [vmem:[%s1 + $0x328] sm:$0xff]
  %v123 = vld [vmem:[%s1 + $0x330] sm:$0xff]
  %v124 = vld [vmem:[%s1 + $0x338] sm:$0xff]
  %v125 = vld [vmem:[%s1 + $0x340] sm:$0xff]
  %v126 = vld [vmem:[%s1 + $0x348] sm:$0xff]
  %v127 = vld [vmem:[%s1 + $0x350] sm:$0xff]
  %v128 = vld [vmem:[%s1 + $0x358] sm:$0xff]
  %v129 = vld [vmem:[%s1 + $0x360] sm:$0xff]
  %v130 = vld [vmem:[%s1 + $0x368] sm:$0xff]
  %v131 = vld [vmem:[%s1 + $0x370] sm:$0xff]
  %v132 = vld [vmem:[%s1 + $0x378] sm:$0xff]
  %v133 = vld [vmem:[%s1 + $0x380] sm:$0xff]
  %v134 = vld [vmem:[%s1 + $0x388] sm:$0xff]
  %v135 = vld [vmem:[%s1 + $0x390] sm:$0xff]
  %v136 = vld [vmem:[%s1 + $0x398] sm:$0xff]
  %v137 = vld [vmem:[%s1 + $0x3a0] sm:$0xff]
  %v138 = vld [vmem:[%s1 + $0x3a8] sm:$0xff]
  %v139 = vld [vmem:[%s1 + $0x3b0] sm:$0xff]
  %v140 = vld [vmem:[%s1 + $0x3b8] sm:$0xff]
  %v141 = vld [vmem:[%s1 + $0x3c0] sm:$0xff]
  %v142 = vld [vmem:[%s1 + $0x3c8] sm:$0xff]
  %v143 = vld [vmem:[%s1 + $0x3d0] sm:$0xff]
  %v144 = vld [vmem:[%s1 + $0x3d8] sm:$0xff]
  %v145 = vld [vmem:[%s1 + $0x3e0] sm:$0xff]
  %v146 = vld [vmem:[%s1 + $0x3e8] sm:$0xff]
  %v147 = vld [vmem:[%s1 + $0x3f0] sm:$0xff]
  %v148 = vld [vmem:[%s1 + $0x3f8] sm:$0xff]
  %v149 = vld [vmem:[%s1 + $0x400] sm:$0xff]
  %v150 = vld [vmem:[%s1 + $0x408] sm:$0xff]
  %v151 = vld [vmem:[%s1 + $0x410] sm:$0xff]
  %v152 = vld [vmem:[%s1 + $0x418] sm:$0xff]
  %v153 = vld [vmem:[%s1 + $0x420] sm:$0xff]
  %v154 = vld [vmem:[%s1 + $0x428] sm:$0xff]
  %v155 = vld [vmem:[%s1 + $0x430] sm:$0xff]
  %v156 = vld [vmem:[%s1 + $0x438] sm:$0xff]
  %v157 = vld [vmem:[%s1 + $0x440] sm:$0xff]
  %v158 = vld [vmem:[%s1 + $0x448] sm:$0xff]
  %v159 = vld [vmem:[%s1 + $0x450] sm:$0xff]
  %v160 = vld [vmem:[%s1 + $0x458] sm:$0xff]
  %v161 = vld [vmem:[%s1 + $0x460] sm:$0xff]
  %v162 = vld [vmem:[%s1 + $0x468] sm:$0xff]
  %v163 = vld [vmem:[%s1 + $0x470] sm:$0xff]
  %v164 = vld [vmem:[%s1 + $0x478] sm:$0xff]
  %v165 = vld [vmem:[%s1 + $0x480] sm:$0xff]
  %v166 = vld [vmem:[%s1 + $0x488] sm:$0xff]
  %v167 = vld [vmem:[%s1 + $0x490] sm:$0xff]
  %v168 = vld [vmem:[%s1 + $0x498] sm:$0xff]
  %v169 = vld [vmem:[%s1 + $0x4a0] sm:$0xff]
  %v170 = vld [vmem:[%s1 + $0x4a8] sm:$0xff]
  %v171 = vld [vmem:[%s1 + $0x4b0] sm:$0xff]
  %v172 = vld [vmem:[%s1 + $0x4b8] sm:$0xff]
  %v173 = vld [vmem:[%s1 + $0x4c0] sm:$0xff]
  %v174 = vld [vmem:[%s1 + $0x4c8] sm:$0xff]
  %v175 = vld [vmem:[%s1 + $0x4d0] sm:$0xff]
  %v176 = vld [vmem:[%s1 + $0x4d8] sm:$0xff]
  %v177 = vld [vmem:[%s1 + $0x4e0] sm:$0xff]
  %v178 = vld [vmem:[%s1 + $0x4e8] sm:$0xff]
  %v179 = vld [vmem:[%s1 + $0x4f0] sm:$0xff]
  %v180 = vld [vmem:[%s1 + $0x4f8] sm:$0xff]
  %v181 = vld [vmem:[%s1 + $0x500] sm:$0xff]
  %v182 = vld [vmem:[%s1 + $0x508] sm:$0xff]
  %v183 = vld [vmem:[%s1 + $0x510] sm:$0xff]
  %v184 = vld [vmem:[%s1 + $0x518] sm:$0xff]
  %v185 = vld [vmem:[%s1 + $0x520] sm:$0xff]
  %v186 = vld [vmem:[%s1 + $0x528] sm:$0xff]
  %v187 = vld [vmem:[%s1 + $0x530] sm:$0xff]
  %v188 = vld [vmem:[%s1 + $0x538] sm:$0xff]
  %v189 = vld [vmem:[%s1 + $0x540] sm:$0xff]
  %v190 = vld [vmem:[%s1 + $0x548] sm:$0xff]
  %v191 = vld [vmem:[%s1 + $0x550] sm:$0xff]
  %v192 = vld [vmem:[%s1 + $0x558] sm:$0xff]
  %v193 = vld [vmem:[%s1 + $0x560] sm:$0xff]
  %v194 = vld [vmem:[%s1 + $0x568] sm:$0xff]
  %v195 = vld [vmem:[%s1 + $0x570] sm:$0xff]
  %v196 = vld [vmem:[%s1 + $0x578] sm:$0xff]
  %v197 = vld [vmem:[%s1 + $0x580] sm:$0xff]
  %v198 = vld [vmem:[%s1 + $0x588] sm:$0xff]
  %v199 = vld [vmem:[%s1 + $0x590] sm:$0xff]
  %v200 = vld [vmem:[%s1 + $0x598] sm:$0xff]
  %v201 = vld [vmem:[%s1 + $0x5a0] sm:$0xff]
  %v202 = vld [vmem:[%s1 + $0x5a8] sm:$0xff]
  %v203 = vld [vmem:[%s1 + $0x5b0] sm:$0xff]
  %v204 = vld [vmem:[%s1 + $0x5b8] sm:$0xff]
  %v205 = vld [vmem:[%s1 + $0x5c0] sm:$0xff]
  %v206 = vld [vmem:[%s1 + $0x5c8] sm:$0xff]
  %v207 = vld [vmem:[%s1 + $0x5d0] sm:$0xff]
  %v208 = vld [vmem:[%s1 + $0x5d8] sm:$0xff]
  %v209 = vld [vmem:[%s1 + $0x5e0] sm:$0xff]
  %v210 = vld [vmem:[%s1 + $0x5e8] sm:$0xff]
  %v211 = vld [vmem:[%s1 + $0x5f0] sm:$0xff]
  %v212 = vld [vmem:[%s1 + $0x5f8] sm:$0xff]
  %v213 = vld [vmem:[%s1 + $0x600] sm:$0xff]
  %v214 = vld [vmem:[%s1 + $0x608] sm:$0xff]
  %v215 = vld [vmem:[%s1 + $0x610] sm:$0xff]
  %v216 = vld [vmem:[%s1 + $0x618] sm:$0xff]
  %v217 = vld [vmem:[%s1 + $0x620] sm:$0xff]
  %v218 = vld [vmem:[%s1 + $0x628] sm:$0xff]
  %v219 = vld [vmem:[%s1 + $0x630] sm:$0xff]
  %v220 = vld [vmem:[%s1 + $0x638] sm:$0xff]
  %v221 = vld [vmem:[%s1 + $0x640] sm:$0xff]
  %v222 = vld [vmem:[%s1 + $0x648] sm:$0xff]
  %v223 = vld [vmem:[%s1 + $0x650] sm:$0xff]
  %v224 = vld [vmem:[%s1 + $0x658] sm:$0xff]
  %v225 = vld [vmem:[%s1 + $0x660] sm:$0xff]
  %v226 = vld [vmem:[%s1 + $0x668] sm:$0xff]
  %v227 = vld [vmem:[%s1 + $0x670] sm:$0xff]
  %v228 = vld [vmem:[%s1 + $0x678] sm:$0xff]
  %v229 = vld [vmem:[%s1 + $0x680] sm:$0xff]
  %v230 = vld [vmem:[%s1 + $0x688] sm:$0xff]
  %v231 = vld [vmem:[%s1 + $0x690] sm:$0xff]
  %v232 = vld [vmem:[%s1 + $0x698] sm:$0xff]
  %v233 = vld [vmem:[%s1 + $0x6a0] sm:$0xff]
  %v234 = vld [vmem:[%s1 + $0x6a8] sm:$0xff]
  %v235 = vld [vmem:[%s1 + $0x6b0] sm:$0xff]
  %v236 = vld [vmem:[%s1 + $0x6b8] sm:$0xff]
  %v237 = vld [vmem:[%s1 + $0x6c0] sm:$0xff]
  %v238 = vld [vmem:[%s1 + $0x6c8] sm:$0xff]
  %v239 = vld [vmem:[%s1 + $0x6d0] sm:$0xff]
  %v240 = vld [vmem:[%s1 + $0x6d8] sm:$0xff]
  %v241 = vld [vmem:[%s1 + $0x6e0] sm:$0xff]
  %v242 = vld [vmem:[%s1 + $0x6e8] sm:$0xff]
  %v243 = vld [vmem:[%s1 + $0x6f0] sm:$0xff]
  %v244 = vld [vmem:[%s1 + $0x6f8] sm:$0xff]
  %v245 = vld [vmem:[%s1 + $0x700] sm:$0xff]
  %v246 = vld [vmem:[%s1 + $0x708] sm:$0xff]
  %v247 = vld [vmem:[%s1 + $0x710] sm:$0xff]
  %v248 = vld [vmem:[%s1 + $0x718] sm:$0xff]
  %v249 = vld [vmem:[%s1 + $0x720] sm:$0xff]
  %v250 = vld [vmem:[%s1 + $0x728] sm:$0xff]
  %v251 = vld [vmem:[%s1 + $0x730] sm:$0xff]
  %v252 = vld [vmem:[%s1 + $0x738] sm:$0xff]
  %v253 = vld [vmem:[%s1 + $0x740] sm:$0xff]
  %v254 = vld [vmem:[%s1 + $0x748] sm:$0xff]
  %v255 = vld [vmem:[%s1 + $0x750] sm:$0xff]
  %v256 = vld [vmem:[%s1 + $0x758] sm:$0xff]
  %v257 = vld [vmem:[%s1 + $0x760] sm:$0xff]
  %v258 = vld [vmem:[%s1 + $0x768] sm:$0xff]
  %v259 = vld [vmem:[%s1 + $0x770] sm:$0xff]
  %v260 = vld [vmem:[%s1 + $0x778] sm:$0xff]
  %v261 = vld [vmem:[%s1 + $0x780] sm:$0xff]
  %v262 = vld [vmem:[%s1 + $0x788] sm:$0xff]
  %v263 = vld [vmem:[%s1 + $0x790] sm:$0xff]
  %v264 = vld [vmem:[%s1 + $0x798] sm:$0xff]
  %v265 = vld [vmem:[%s1 + $0x7a0] sm:$0xff]
  %v266 = vld [vmem:[%s1 + $0x7a8] sm:$0xff]
  %v267 = vld [vmem:[%s1 + $0x7b0] sm:$0xff]
  %v268 = vld [vmem:[%s1 + $0x7b8] sm:$0xff]
  %v269 = vld [vmem:[%s1 + $0x7c0] sm:$0xff]
  %v270 = vld [vmem:[%s1 + $0x7c8] sm:$0xff]
  %v271 = vld [vmem:[%s1 + $0x7d0] sm:$0xff]
  %v272 = vld [vmem:[%s1 + $0x7d8] sm:$0xff]
  %v273 = vld [vmem:[%s1 + $0x7e0] sm:$0xff]
  %v274 = vld [vmem:[%s1 + $0x7e8] sm:$0xff]
  %v275 = vld [vmem:[%s1 + $0x7f0] sm:$0xff]
  %v276 = vld [vmem:[%s1 + $0x7f8] sm:$0xff]
  %v281 = vcombine.high %v17, %v17
  %v283 = vunpack.c.l.s4 1983009808
  %v284 = vunpack.c.0.s8 %v283
  %v285 = vlaneseq
  %v286 = vshrl.u32 %v285, 7
  %v287 = vsub.s32 %v284, %v286
  %v288 = vrot.slane %v17, %v287
  %v290 = vunpack.c.l.s4 1983009808
  %v291 = vunpack.c.0.s8 %v290
  %v292 = vlaneseq
  %v293 = vshrl.u32 %v292, 7
  %v294 = vsub.s32 %v291, %v293
  %v295 = vrot.slane %v281, %v294
  %v296 = vcombine.high %v288, %v288
  %v297 = vcombine.high %v295, %v295
  %v298 = vcombine.high %v18, %v18
  %v300 = vunpack.c.l.s4 1983009808
  %v301 = vunpack.c.0.s8 %v300
  %v302 = vlaneseq
  %v303 = vshrl.u32 %v302, 7
  %v304 = vsub.s32 %v301, %v303
  %v305 = vrot.slane %v18, %v304
  %v307 = vunpack.c.l.s4 1983009808
  %v308 = vunpack.c.0.s8 %v307
  %v309 = vlaneseq
  %v310 = vshrl.u32 %v309, 7
  %v311 = vsub.s32 %v308, %v310
  %v312 = vrot.slane %v298, %v311
  %v313 = vcombine.high %v305, %v305
  %v314 = vcombine.high %v312, %v312
  %v315 = vcombine.high %v19, %v19
  %v317 = vunpack.c.l.s4 1983009808
  %v318 = vunpack.c.0.s8 %v317
  %v319 = vlaneseq
  %v320 = vshrl.u32 %v319, 7
  %v321 = vsub.s32 %v318, %v320
  %v322 = vrot.slane %v19, %v321
  %v324 = vunpack.c.l.s4 1983009808
  %v325 = vunpack.c.0.s8 %v324
  %v326 = vlaneseq
  %v327 = vshrl.u32 %v326, 7
  %v328 = vsub.s32 %v325, %v327
  %v329 = vrot.slane %v315, %v328
  %v330 = vcombine.high %v322, %v322
  %v331 = vcombine.high %v329, %v329
  %v332 = vcombine.high %v20, %v20
  %v334 = vunpack.c.l.s4 1983009808
  %v335 = vunpack.c.0.s8 %v334
  %v336 = vlaneseq
  %v337 = vshrl.u32 %v336, 7
  %v338 = vsub.s32 %v335, %v337
  %v339 = vrot.slane %v20, %v338
  %v341 = vunpack.c.l.s4 1983009808
  %v342 = vunpack.c.0.s8 %v341
  %v343 = vlaneseq
  %v344 = vshrl.u32 %v343, 7
  %v345 = vsub.s32 %v342, %v344
  %v346 = vrot.slane %v332, %v345
  %v347 = vcombine.high %v339, %v339
  %v348 = vcombine.high %v346, %v346
  %365 = vmatprep.subr.mxu0 0.0
  %366 = vmatpush1.msra.mxu0 %v36
  %367 = vmatprep.subr.mxu0 0.0
  %368 = vmatpush1.msra.mxu0 %v35
  %369 = vmatprep.subr.mxu0 0.0
  %370 = vmatpush1.msra.mxu0 %v34
  %371 = vmatprep.subr.mxu0 0.0
  %372 = vmatpush1.msra.mxu0 %v33
  %373 = vmatprep.subr.mxu0 0.0
  %374 = vmatpush1.msra.mxu0 %v32
  %375 = vmatprep.subr.mxu0 0.0
  %376 = vmatpush1.msra.mxu0 %v31
  %377 = vmatprep.subr.mxu0 0.0
  %378 = vmatpush1.msra.mxu0 %v30
  %379 = vmatprep.subr.mxu0 0.0
  %380 = vmatpush1.msra.mxu0 %v29
  %381 = vmatprep.subr.mxu0 0.0
  %382 = vmatpush1.msra.mxu0 %v28
  %383 = vmatprep.subr.mxu0 0.0
  %384 = vmatpush1.msra.mxu0 %v27
  %385 = vmatprep.subr.mxu0 0.0
  %386 = vmatpush1.msra.mxu0 %v26
  %387 = vmatprep.subr.mxu0 0.0
  %388 = vmatpush1.msra.mxu0 %v25
  %389 = vmatprep.subr.mxu0 0.0
  %390 = vmatpush1.msra.mxu0 %v24
  %391 = vmatprep.subr.mxu0 0.0
  %392 = vmatpush1.msra.mxu0 %v23
  %393 = vmatprep.subr.mxu0 0.0
  %394 = vmatpush1.msra.mxu0 %v22
  %395 = vmatprep.subr.mxu0 0.0
  %396 = vmatpush1.msra.mxu0 %v21
  %397 = vmatprep.subr.mxu0 0.0
  %398 = vmatpush2.msra.mxu0 %v52
  %399 = vmatprep.subr.mxu0 0.0
  %400 = vmatpush2.msra.mxu0 %v51
  %401 = vmatprep.subr.mxu0 0.0
  %402 = vmatpush2.msra.mxu0 %v50
  %403 = vmatprep.subr.mxu0 0.0
  %404 = vmatpush2.msra.mxu0 %v49
  %405 = vmatprep.subr.mxu0 0.0
  %406 = vmatpush2.msra.mxu0 %v48
  %407 = vmatprep.subr.mxu0 0.0
  %408 = vmatpush2.msra.mxu0 %v47
  %409 = vmatprep.subr.mxu0 0.0
  %410 = vmatpush2.msra.mxu0 %v46
  %411 = vmatprep.subr.mxu0 0.0
  %412 = vmatpush2.msra.mxu0 %v45
  %413 = vmatprep.subr.mxu0 0.0
  %414 = vmatpush2.msra.mxu0 %v44
  %415 = vmatprep.subr.mxu0 0.0
  %416 = vmatpush2.msra.mxu0 %v43
  %417 = vmatprep.subr.mxu0 0.0
  %418 = vmatpush2.msra.mxu0 %v42
  %419 = vmatprep.subr.mxu0 0.0
  %420 = vmatpush2.msra.mxu0 %v41
  %421 = vmatprep.subr.mxu0 0.0
  %422 = vmatpush2.msra.mxu0 %v40
  %423 = vmatprep.subr.mxu0 0.0
  %424 = vmatpush2.msra.mxu0 %v39
  %425 = vmatprep.subr.mxu0 0.0
  %426 = vmatpush2.msra.mxu0 %v38
  %427 = vmatprep.subr.mxu0 0.0
  %428 = vmatpush2.msra.mxu0 %v37
  %429 = vmatprep.mubr.f32.mxu0 %v296
  %430 = vmatmul.mubr.f32.gmra.mxu0 %v288
  %v431 = vpop.f32.mrf.mxu0
  %v432 = vadd.f32 0.0, %v431
  %v433 = vpop.f32.mrf.mxu0
  %434 = vdwg.mxu0
  %435 = vmatprep.subr.mxu0 0.0
  %436 = vmatpush1.msra.mxu0 %v68
  %437 = vmatprep.subr.mxu0 0.0
  %438 = vmatpush1.msra.mxu0 %v67
  %439 = vmatprep.subr.mxu0 0.0
  %440 = vmatpush1.msra.mxu0 %v66
  %441 = vmatprep.subr.mxu0 0.0
  %442 = vmatpush1.msra.mxu0 %v65
  %443 = vmatprep.subr.mxu0 0.0
  %444 = vmatpush1.msra.mxu0 %v64
  %445 = vmatprep.subr.mxu0 0.0
  %446 = vmatpush1.msra.mxu0 %v63
  %447 = vmatprep.subr.mxu0 0.0
  %448 = vmatpush1.msra.mxu0 %v62
  %449 = vmatprep.subr.mxu0 0.0
  %450 = vmatpush1.msra.mxu0 %v61
  %451 = vmatprep.subr.mxu0 0.0
  %452 = vmatpush1.msra.mxu0 %v60
  %453 = vmatprep.subr.mxu0 0.0
  %454 = vmatpush1.msra.mxu0 %v59
  %455 = vmatprep.subr.mxu0 0.0
  %456 = vmatpush1.msra.mxu0 %v58
  %457 = vmatprep.subr.mxu0 0.0
  %458 = vmatpush1.msra.mxu0 %v57
  %459 = vmatprep.subr.mxu0 0.0
  %460 = vmatpush1.msra.mxu0 %v56
  %461 = vmatprep.subr.mxu0 0.0
  %462 = vmatpush1.msra.mxu0 %v55
  %463 = vmatprep.subr.mxu0 0.0
  %464 = vmatpush1.msra.mxu0 %v54
  %465 = vmatprep.subr.mxu0 0.0
  %466 = vmatpush1.msra.mxu0 %v53
  %467 = vmatprep.subr.mxu0 0.0
  %468 = vmatpush2.msra.mxu0 %v84
  %469 = vmatprep.subr.mxu0 0.0
  %470 = vmatpush2.msra.mxu0 %v83
  %471 = vmatprep.subr.mxu0 0.0
  %472 = vmatpush2.msra.mxu0 %v82
  %473 = vmatprep.subr.mxu0 0.0
  %474 = vmatpush2.msra.mxu0 %v81
  %475 = vmatprep.subr.mxu0 0.0
  %476 = vmatpush2.msra.mxu0 %v80
  %477 = vmatprep.subr.mxu0 0.0
  %478 = vmatpush2.msra.mxu0 %v79
  %479 = vmatprep.subr.mxu0 0.0
  %480 = vmatpush2.msra.mxu0 %v78
  %481 = vmatprep.subr.mxu0 0.0
  %482 = vmatpush2.msra.mxu0 %v77
  %483 = vmatprep.subr.mxu0 0.0
  %484 = vmatpush2.msra.mxu0 %v76
  %485 = vmatprep.subr.mxu0 0.0
  %486 = vmatpush2.msra.mxu0 %v75
  %487 = vmatprep.subr.mxu0 0.0
  %488 = vmatpush2.msra.mxu0 %v74
  %489 = vmatprep.subr.mxu0 0.0
  %490 = vmatpush2.msra.mxu0 %v73
  %491 = vmatprep.subr.mxu0 0.0
  %492 = vmatpush2.msra.mxu0 %v72
  %493 = vmatprep.subr.mxu0 0.0
  %494 = vmatpush2.msra.mxu0 %v71
  %495 = vmatprep.subr.mxu0 0.0
  %496 = vmatpush2.msra.mxu0 %v70
  %497 = vmatprep.subr.mxu0 0.0
  %498 = vmatpush2.msra.mxu0 %v69
  %499 = vmatprep.mubr.f32.mxu0 %v297
  %500 = vmatmul.mubr.f32.gmra.mxu0 %v295
  %v501 = vpop.f32.mrf.mxu0
  %v502 = vadd.f32 %v432, %v501
  %v503 = vpop.f32.mrf.mxu0
  %504 = vdwg.mxu0
  %505 = vmatprep.subr.mxu0 0.0
  %506 = vmatpush1.msra.mxu0 %v100
  %507 = vmatprep.subr.mxu0 0.0
  %508 = vmatpush1.msra.mxu0 %v99
  %509 = vmatprep.subr.mxu0 0.0
  %510 = vmatpush1.msra.mxu0 %v98
  %511 = vmatprep.subr.mxu0 0.0
  %512 = vmatpush1.msra.mxu0 %v97
  %513 = vmatprep.subr.mxu0 0.0
  %514 = vmatpush1.msra.mxu0 %v96
  %515 = vmatprep.subr.mxu0 0.0
  %516 = vmatpush1.msra.mxu0 %v95
  %517 = vmatprep.subr.mxu0 0.0
  %518 = vmatpush1.msra.mxu0 %v94
  %519 = vmatprep.subr.mxu0 0.0
  %520 = vmatpush1.msra.mxu0 %v93
  %521 = vmatprep.subr.mxu0 0.0
  %522 = vmatpush1.msra.mxu0 %v92
  %523 = vmatprep.subr.mxu0 0.0
  %524 = vmatpush1.msra.mxu0 %v91
  %525 = vmatprep.subr.mxu0 0.0
  %526 = vmatpush1.msra.mxu0 %v90
  %527 = vmatprep.subr.mxu0 0.0
  %528 = vmatpush1.msra.mxu0 %v89
  %529 = vmatprep.subr.mxu0 0.0
  %530 = vmatpush1.msra.mxu0 %v88
  %531 = vmatprep.subr.mxu0 0.0
  %532 = vmatpush1.msra.mxu0 %v87
  %533 = vmatprep.subr.mxu0 0.0
  %534 = vmatpush1.msra.mxu0 %v86
  %535 = vmatprep.subr.mxu0 0.0
  %536 = vmatpush1.msra.mxu0 %v85
  %537 = vmatprep.subr.mxu0 0.0
  %538 = vmatpush2.msra.mxu0 %v116
  %539 = vmatprep.subr.mxu0 0.0
  %540 = vmatpush2.msra.mxu0 %v115
  %541 = vmatprep.subr.mxu0 0.0
  %542 = vmatpush2.msra.mxu0 %v114
  %543 = vmatprep.subr.mxu0 0.0
  %544 = vmatpush2.msra.mxu0 %v113
  %545 = vmatprep.subr.mxu0 0.0
  %546 = vmatpush2.msra.mxu0 %v112
  %547 = vmatprep.subr.mxu0 0.0
  %548 = vmatpush2.msra.mxu0 %v111
  %549 = vmatprep.subr.mxu0 0.0
  %550 = vmatpush2.msra.mxu0 %v110
  %551 = vmatprep.subr.mxu0 0.0
  %552 = vmatpush2.msra.mxu0 %v109
  %553 = vmatprep.subr.mxu0 0.0
  %554 = vmatpush2.msra.mxu0 %v108
  %555 = vmatprep.subr.mxu0 0.0
  %556 = vmatpush2.msra.mxu0 %v107
  %557 = vmatprep.subr.mxu0 0.0
  %558 = vmatpush2.msra.mxu0 %v106
  %559 = vmatprep.subr.mxu0 0.0
  %560 = vmatpush2.msra.mxu0 %v105
  %561 = vmatprep.subr.mxu0 0.0
  %562 = vmatpush2.msra.mxu0 %v104
  %563 = vmatprep.subr.mxu0 0.0
  %564 = vmatpush2.msra.mxu0 %v103
  %565 = vmatprep.subr.mxu0 0.0
  %566 = vmatpush2.msra.mxu0 %v102
  %567 = vmatprep.subr.mxu0 0.0
  %568 = vmatpush2.msra.mxu0 %v101
  %569 = vmatprep.mubr.f32.mxu0 %v313
  %570 = vmatmul.mubr.f32.gmra.mxu0 %v305
  %v571 = vpop.f32.mrf.mxu0
  %v572 = vadd.f32 %v502, %v571
  %v573 = vpop.f32.mrf.mxu0
  %574 = vdwg.mxu0
  %575 = vmatprep.subr.mxu0 0.0
  %576 = vmatpush1.msra.mxu0 %v132
  %577 = vmatprep.subr.mxu0 0.0
  %578 = vmatpush1.msra.mxu0 %v131
  %579 = vmatprep.subr.mxu0 0.0
  %580 = vmatpush1.msra.mxu0 %v130
  %581 = vmatprep.subr.mxu0 0.0
  %582 = vmatpush1.msra.mxu0 %v129
  %583 = vmatprep.subr.mxu0 0.0
  %584 = vmatpush1.msra.mxu0 %v128
  %585 = vmatprep.subr.mxu0 0.0
  %586 = vmatpush1.msra.mxu0 %v127
  %587 = vmatprep.subr.mxu0 0.0
  %588 = vmatpush1.msra.mxu0 %v126
  %589 = vmatprep.subr.mxu0 0.0
  %590 = vmatpush1.msra.mxu0 %v125
  %591 = vmatprep.subr.mxu0 0.0
  %592 = vmatpush1.msra.mxu0 %v124
  %593 = vmatprep.subr.mxu0 0.0
  %594 = vmatpush1.msra.mxu0 %v123
  %595 = vmatprep.subr.mxu0 0.0
  %596 = vmatpush1.msra.mxu0 %v122
  %597 = vmatprep.subr.mxu0 0.0
  %598 = vmatpush1.msra.mxu0 %v121
  %599 = vmatprep.subr.mxu0 0.0
  %600 = vmatpush1.msra.mxu0 %v120
  %601 = vmatprep.subr.mxu0 0.0
  %602 = vmatpush1.msra.mxu0 %v119
  %603 = vmatprep.subr.mxu0 0.0
  %604 = vmatpush1.msra.mxu0 %v118
  %605 = vmatprep.subr.mxu0 0.0
  %606 = vmatpush1.msra.mxu0 %v117
  %607 = vmatprep.subr.mxu0 0.0
  %608 = vmatpush2.msra.mxu0 %v148
  %609 = vmatprep.subr.mxu0 0.0
  %610 = vmatpush2.msra.mxu0 %v147
  %611 = vmatprep.subr.mxu0 0.0
  %612 = vmatpush2.msra.mxu0 %v146
  %613 = vmatprep.subr.mxu0 0.0
  %614 = vmatpush2.msra.mxu0 %v145
  %615 = vmatprep.subr.mxu0 0.0
  %616 = vmatpush2.msra.mxu0 %v144
  %617 = vmatprep.subr.mxu0 0.0
  %618 = vmatpush2.msra.mxu0 %v143
  %619 = vmatprep.subr.mxu0 0.0
  %620 = vmatpush2.msra.mxu0 %v142
  %621 = vmatprep.subr.mxu0 0.0
  %622 = vmatpush2.msra.mxu0 %v141
  %623 = vmatprep.subr.mxu0 0.0
  %624 = vmatpush2.msra.mxu0 %v140
  %625 = vmatprep.subr.mxu0 0.0
  %626 = vmatpush2.msra.mxu0 %v139
  %627 = vmatprep.subr.mxu0 0.0
  %628 = vmatpush2.msra.mxu0 %v138
  %629 = vmatprep.subr.mxu0 0.0
  %630 = vmatpush2.msra.mxu0 %v137
  %631 = vmatprep.subr.mxu0 0.0
  %632 = vmatpush2.msra.mxu0 %v136
  %633 = vmatprep.subr.mxu0 0.0
  %634 = vmatpush2.msra.mxu0 %v135
  %635 = vmatprep.subr.mxu0 0.0
  %636 = vmatpush2.msra.mxu0 %v134
  %637 = vmatprep.subr.mxu0 0.0
  %638 = vmatpush2.msra.mxu0 %v133
  %639 = vmatprep.mubr.f32.mxu0 %v314
  %640 = vmatmul.mubr.f32.gmra.mxu0 %v312
  %v641 = vpop.f32.mrf.mxu0
  %v642 = vadd.f32 %v572, %v641
  %v643 = vpop.f32.mrf.mxu0
  %644 = vdwg.mxu0
  %645 = vmatprep.subr.mxu0 0.0
  %646 = vmatpush1.msra.mxu0 %v164
  %647 = vmatprep.subr.mxu0 0.0
  %648 = vmatpush1.msra.mxu0 %v163
  %649 = vmatprep.subr.mxu0 0.0
  %650 = vmatpush1.msra.mxu0 %v162
  %651 = vmatprep.subr.mxu0 0.0
  %652 = vmatpush1.msra.mxu0 %v161
  %653 = vmatprep.subr.mxu0 0.0
  %654 = vmatpush1.msra.mxu0 %v160
  %655 = vmatprep.subr.mxu0 0.0
  %656 = vmatpush1.msra.mxu0 %v159
  %657 = vmatprep.subr.mxu0 0.0
  %658 = vmatpush1.msra.mxu0 %v158
  %659 = vmatprep.subr.mxu0 0.0
  %660 = vmatpush1.msra.mxu0 %v157
  %661 = vmatprep.subr.mxu0 0.0
  %662 = vmatpush1.msra.mxu0 %v156
  %663 = vmatprep.subr.mxu0 0.0
  %664 = vmatpush1.msra.mxu0 %v155
  %665 = vmatprep.subr.mxu0 0.0
  %666 = vmatpush1.msra.mxu0 %v154
  %667 = vmatprep.subr.mxu0 0.0
  %668 = vmatpush1.msra.mxu0 %v153
  %669 = vmatprep.subr.mxu0 0.0
  %670 = vmatpush1.msra.mxu0 %v152
  %671 = vmatprep.subr.mxu0 0.0
  %672 = vmatpush1.msra.mxu0 %v151
  %673 = vmatprep.subr.mxu0 0.0
  %674 = vmatpush1.msra.mxu0 %v150
  %675 = vmatprep.subr.mxu0 0.0
  %676 = vmatpush1.msra.mxu0 %v149
  %677 = vmatprep.subr.mxu0 0.0
  %678 = vmatpush2.msra.mxu0 %v180
  %679 = vmatprep.subr.mxu0 0.0
  %680 = vmatpush2.msra.mxu0 %v179
  %681 = vmatprep.subr.mxu0 0.0
  %682 = vmatpush2.msra.mxu0 %v178
  %683 = vmatprep.subr.mxu0 0.0
  %684 = vmatpush2.msra.mxu0 %v177
  %685 = vmatprep.subr.mxu0 0.0
  %686 = vmatpush2.msra.mxu0 %v176
  %687 = vmatprep.subr.mxu0 0.0
  %688 = vmatpush2.msra.mxu0 %v175
  %689 = vmatprep.subr.mxu0 0.0
  %690 = vmatpush2.msra.mxu0 %v174
  %691 = vmatprep.subr.mxu0 0.0
  %692 = vmatpush2.msra.mxu0 %v173
  %693 = vmatprep.subr.mxu0 0.0
  %694 = vmatpush2.msra.mxu0 %v172
  %695 = vmatprep.subr.mxu0 0.0
  %696 = vmatpush2.msra.mxu0 %v171
  %697 = vmatprep.subr.mxu0 0.0
  %698 = vmatpush2.msra.mxu0 %v170
  %699 = vmatprep.subr.mxu0 0.0
  %700 = vmatpush2.msra.mxu0 %v169
  %701 = vmatprep.subr.mxu0 0.0
  %702 = vmatpush2.msra.mxu0 %v168
  %703 = vmatprep.subr.mxu0 0.0
  %704 = vmatpush2.msra.mxu0 %v167
  %705 = vmatprep.subr.mxu0 0.0
  %706 = vmatpush2.msra.mxu0 %v166
  %707 = vmatprep.subr.mxu0 0.0
  %708 = vmatpush2.msra.mxu0 %v165
  %709 = vmatprep.mubr.f32.mxu0 %v330
  %710 = vmatmul.mubr.f32.gmra.mxu0 %v322
  %v711 = vpop.f32.mrf.mxu0
  %v712 = vadd.f32 %v642, %v711
  %v713 = vpop.f32.mrf.mxu0
  %714 = vdwg.mxu0
  %715 = vmatprep.subr.mxu0 0.0
  %716 = vmatpush1.msra.mxu0 %v196
  %717 = vmatprep.subr.mxu0 0.0
  %718 = vmatpush1.msra.mxu0 %v195
  %719 = vmatprep.subr.mxu0 0.0
  %720 = vmatpush1.msra.mxu0 %v194
  %721 = vmatprep.subr.mxu0 0.0
  %722 = vmatpush1.msra.mxu0 %v193
  %723 = vmatprep.subr.mxu0 0.0
  %724 = vmatpush1.msra.mxu0 %v192
  %725 = vmatprep.subr.mxu0 0.0
  %726 = vmatpush1.msra.mxu0 %v191
  %727 = vmatprep.subr.mxu0 0.0
  %728 = vmatpush1.msra.mxu0 %v190
  %729 = vmatprep.subr.mxu0 0.0
  %730 = vmatpush1.msra.mxu0 %v189
  %731 = vmatprep.subr.mxu0 0.0
  %732 = vmatpush1.msra.mxu0 %v188
  %733 = vmatprep.subr.mxu0 0.0
  %734 = vmatpush1.msra.mxu0 %v187
  %735 = vmatprep.subr.mxu0 0.0
  %736 = vmatpush1.msra.mxu0 %v186
  %737 = vmatprep.subr.mxu0 0.0
  %738 = vmatpush1.msra.mxu0 %v185
  %739 = vmatprep.subr.mxu0 0.0
  %740 = vmatpush1.msra.mxu0 %v184
  %741 = vmatprep.subr.mxu0 0.0
  %742 = vmatpush1.msra.mxu0 %v183
  %743 = vmatprep.subr.mxu0 0.0
  %744 = vmatpush1.msra.mxu0 %v182
  %745 = vmatprep.subr.mxu0 0.0
  %746 = vmatpush1.msra.mxu0 %v181
  %747 = vmatprep.subr.mxu0 0.0
  %748 = vmatpush2.msra.mxu0 %v212
  %749 = vmatprep.subr.mxu0 0.0
  %750 = vmatpush2.msra.mxu0 %v211
  %751 = vmatprep.subr.mxu0 0.0
  %752 = vmatpush2.msra.mxu0 %v210
  %753 = vmatprep.subr.mxu0 0.0
  %754 = vmatpush2.msra.mxu0 %v209
  %755 = vmatprep.subr.mxu0 0.0
  %756 = vmatpush2.msra.mxu0 %v208
  %757 = vmatprep.subr.mxu0 0.0
  %758 = vmatpush2.msra.mxu0 %v207
  %759 = vmatprep.subr.mxu0 0.0
  %760 = vmatpush2.msra.mxu0 %v206
  %761 = vmatprep.subr.mxu0 0.0
  %762 = vmatpush2.msra.mxu0 %v205
  %763 = vmatprep.subr.mxu0 0.0
  %764 = vmatpush2.msra.mxu0 %v204
  %765 = vmatprep.subr.mxu0 0.0
  %766 = vmatpush2.msra.mxu0 %v203
  %767 = vmatprep.subr.mxu0 0.0
  %768 = vmatpush2.msra.mxu0 %v202
  %769 = vmatprep.subr.mxu0 0.0
  %770 = vmatpush2.msra.mxu0 %v201
  %771 = vmatprep.subr.mxu0 0.0
  %772 = vmatpush2.msra.mxu0 %v200
  %773 = vmatprep.subr.mxu0 0.0
  %774 = vmatpush2.msra.mxu0 %v199
  %775 = vmatprep.subr.mxu0 0.0
  %776 = vmatpush2.msra.mxu0 %v198
  %777 = vmatprep.subr.mxu0 0.0
  %778 = vmatpush2.msra.mxu0 %v197
  %779 = vmatprep.mubr.f32.mxu0 %v331
  %780 = vmatmul.mubr.f32.gmra.mxu0 %v329
  %v781 = vpop.f32.mrf.mxu0
  %v782 = vadd.f32 %v712, %v781
  %v783 = vpop.f32.mrf.mxu0
  %784 = vdwg.mxu0
  %785 = vmatprep.subr.mxu0 0.0
  %786 = vmatpush1.msra.mxu0 %v228
  %787 = vmatprep.subr.mxu0 0.0
  %788 = vmatpush1.msra.mxu0 %v227
  %789 = vmatprep.subr.mxu0 0.0
  %790 = vmatpush1.msra.mxu0 %v226
  %791 = vmatprep.subr.mxu0 0.0
  %792 = vmatpush1.msra.mxu0 %v225
  %793 = vmatprep.subr.mxu0 0.0
  %794 = vmatpush1.msra.mxu0 %v224
  %795 = vmatprep.subr.mxu0 0.0
  %796 = vmatpush1.msra.mxu0 %v223
  %797 = vmatprep.subr.mxu0 0.0
  %798 = vmatpush1.msra.mxu0 %v222
  %799 = vmatprep.subr.mxu0 0.0
  %800 = vmatpush1.msra.mxu0 %v221
  %801 = vmatprep.subr.mxu0 0.0
  %802 = vmatpush1.msra.mxu0 %v220
  %803 = vmatprep.subr.mxu0 0.0
  %804 = vmatpush1.msra.mxu0 %v219
  %805 = vmatprep.subr.mxu0 0.0
  %806 = vmatpush1.msra.mxu0 %v218
  %807 = vmatprep.subr.mxu0 0.0
  %808 = vmatpush1.msra.mxu0 %v217
  %809 = vmatprep.subr.mxu0 0.0
  %810 = vmatpush1.msra.mxu0 %v216
  %811 = vmatprep.subr.mxu0 0.0
  %812 = vmatpush1.msra.mxu0 %v215
  %813 = vmatprep.subr.mxu0 0.0
  %814 = vmatpush1.msra.mxu0 %v214
  %815 = vmatprep.subr.mxu0 0.0
  %816 = vmatpush1.msra.mxu0 %v213
  %817 = vmatprep.subr.mxu0 0.0
  %818 = vmatpush2.msra.mxu0 %v244
  %819 = vmatprep.subr.mxu0 0.0
  %820 = vmatpush2.msra.mxu0 %v243
  %821 = vmatprep.subr.mxu0 0.0
  %822 = vmatpush2.msra.mxu0 %v242
  %823 = vmatprep.subr.mxu0 0.0
  %824 = vmatpush2.msra.mxu0 %v241
  %825 = vmatprep.subr.mxu0 0.0
  %826 = vmatpush2.msra.mxu0 %v240
  %827 = vmatprep.subr.mxu0 0.0
  %828 = vmatpush2.msra.mxu0 %v239
  %829 = vmatprep.subr.mxu0 0.0
  %830 = vmatpush2.msra.mxu0 %v238
  %831 = vmatprep.subr.mxu0 0.0
  %832 = vmatpush2.msra.mxu0 %v237
  %833 = vmatprep.subr.mxu0 0.0
  %834 = vmatpush2.msra.mxu0 %v236
  %835 = vmatprep.subr.mxu0 0.0
  %836 = vmatpush2.msra.mxu0 %v235
  %837 = vmatprep.subr.mxu0 0.0
  %838 = vmatpush2.msra.mxu0 %v234
  %839 = vmatprep.subr.mxu0 0.0
  %840 = vmatpush2.msra.mxu0 %v233
  %841 = vmatprep.subr.mxu0 0.0
  %842 = vmatpush2.msra.mxu0 %v232
  %843 = vmatprep.subr.mxu0 0.0
  %844 = vmatpush2.msra.mxu0 %v231
  %845 = vmatprep.subr.mxu0 0.0
  %846 = vmatpush2.msra.mxu0 %v230
  %847 = vmatprep.subr.mxu0 0.0
  %848 = vmatpush2.msra.mxu0 %v229
  %849 = vmatprep.mubr.f32.mxu0 %v347
  %850 = vmatmul.mubr.f32.gmra.mxu0 %v339
  %v851 = vpop.f32.mrf.mxu0
  %v852 = vadd.f32 %v782, %v851
  %v853 = vpop.f32.mrf.mxu0
  %854 = vdwg.mxu0
  %855 = vmatprep.subr.mxu0 0.0
  %856 = vmatpush1.msra.mxu0 %v260
  %857 = vmatprep.subr.mxu0 0.0
  %858 = vmatpush1.msra.mxu0 %v259
  %859 = vmatprep.subr.mxu0 0.0
  %860 = vmatpush1.msra.mxu0 %v258
  %861 = vmatprep.subr.mxu0 0.0
  %862 = vmatpush1.msra.mxu0 %v257
  %863 = vmatprep.subr.mxu0 0.0
  %864 = vmatpush1.msra.mxu0 %v256
  %865 = vmatprep.subr.mxu0 0.0
  %866 = vmatpush1.msra.mxu0 %v255
  %867 = vmatprep.subr.mxu0 0.0
  %868 = vmatpush1.msra.mxu0 %v254
  %869 = vmatprep.subr.mxu0 0.0
  %870 = vmatpush1.msra.mxu0 %v253
  %871 = vmatprep.subr.mxu0 0.0
  %872 = vmatpush1.msra.mxu0 %v252
  %873 = vmatprep.subr.mxu0 0.0
  %874 = vmatpush1.msra.mxu0 %v251
  %875 = vmatprep.subr.mxu0 0.0
  %876 = vmatpush1.msra.mxu0 %v250
  %877 = vmatprep.subr.mxu0 0.0
  %878 = vmatpush1.msra.mxu0 %v249
  %879 = vmatprep.subr.mxu0 0.0
  %880 = vmatpush1.msra.mxu0 %v248
  %881 = vmatprep.subr.mxu0 0.0
  %882 = vmatpush1.msra.mxu0 %v247
  %883 = vmatprep.subr.mxu0 0.0
  %884 = vmatpush1.msra.mxu0 %v246
  %885 = vmatprep.subr.mxu0 0.0
  %886 = vmatpush1.msra.mxu0 %v245
  %887 = vmatprep.subr.mxu0 0.0
  %888 = vmatpush2.msra.mxu0 %v276
  %889 = vmatprep.subr.mxu0 0.0
  %890 = vmatpush2.msra.mxu0 %v275
  %891 = vmatprep.subr.mxu0 0.0
  %892 = vmatpush2.msra.mxu0 %v274
  %893 = vmatprep.subr.mxu0 0.0
  %894 = vmatpush2.msra.mxu0 %v273
  %895 = vmatprep.subr.mxu0 0.0
  %896 = vmatpush2.msra.mxu0 %v272
  %897 = vmatprep.subr.mxu0 0.0
  %898 = vmatpush2.msra.mxu0 %v271
  %899 = vmatprep.subr.mxu0 0.0
  %900 = vmatpush2.msra.mxu0 %v270
  %901 = vmatprep.subr.mxu0 0.0
  %902 = vmatpush2.msra.mxu0 %v269
  %903 = vmatprep.subr.mxu0 0.0
  %904 = vmatpush2.msra.mxu0 %v268
  %905 = vmatprep.subr.mxu0 0.0
  %906 = vmatpush2.msra.mxu0 %v267
  %907 = vmatprep.subr.mxu0 0.0
  %908 = vmatpush2.msra.mxu0 %v266
  %909 = vmatprep.subr.mxu0 0.0
  %910 = vmatpush2.msra.mxu0 %v265
  %911 = vmatprep.subr.mxu0 0.0
  %912 = vmatpush2.msra.mxu0 %v264
  %913 = vmatprep.subr.mxu0 0.0
  %914 = vmatpush2.msra.mxu0 %v263
  %915 = vmatprep.subr.mxu0 0.0
  %916 = vmatpush2.msra.mxu0 %v262
  %917 = vmatprep.subr.mxu0 0.0
  %918 = vmatpush2.msra.mxu0 %v261
  %919 = vmatprep.mubr.f32.mxu0 %v348
  %920 = vmatmul.mubr.f32.gmra.mxu0 %v346
  %v921 = vpop.f32.mrf.mxu0
  %v922 = vadd.f32 %v852, %v921
  %v923 = vpop.f32.mrf.mxu0
  %924 = vdwg.mxu0
  %v925 = vld [vmem:[%s2] sm:$0x1]
  %v927 = vlaneseq
  %v928 = vshrl.u32 %v927, 7
  %v929 = vsub.s32 0, %v928
  %v930 = vrot.slane %v925, %v929
  %v932 = vmul.f32 %v922, %v930
  %v933 = vld [vmem:[%s3] sm:$0x1]
  %v935 = vlaneseq
  %v936 = vshrl.u32 %v935, 7
  %v937 = vsub.s32 0, %v936
  %v938 = vrot.slane %v933, %v937
  %v940 = vadd.f32 %v932, %v938
  %941 = vst [vmem:[%s4] sm:$0x3] %v940
  // Predicated region
  $region18: #{dgcnn_encoder.29} parent=0 // pred_check
    _
  $region19: #{dgcnn_encoder.29} parent=0 // pred_check_branch
    %943 = sbr.rel (0) target = $region21
  $region20: #{dgcnn_encoder.29} parent=0 // pred_region
    _
  $region21: #{dgcnn_encoder.29} parent=0 // pred_fallthru
    _
  // Predicated region
  $region22: #{dgcnn_encoder.29} parent=0 // pred_check
    _
  $region23: #{dgcnn_encoder.29} parent=0 // pred_check_branch
    %945 = sbr.rel (0) target = $region25
  $region24: #{dgcnn_encoder.29} parent=0 // pred_region
    _
  $region25: #{dgcnn_encoder.29} parent=0 // pred_fallthru
    _

</llo_original>
